<compile_context>
chip_gen: v5e
topology: v5e:2x2
jax: 0.10.0
libtpu: 0.0.40
codegen_flags: <defaults>
</compile_context>

<pallas_src>
import functools

import jax
import jax.numpy as jnp
from jax.experimental import pallas as pl
from jax.experimental.pallas import tpu as pltpu


def _round_up(x, m):
    return ((x + m - 1) // m) * m


# ---------------------------------------------------------------------------
# Row-tiled linear: out = x @ w + b      (bf16 MXU operands, f32 accumulate)
# ---------------------------------------------------------------------------
def _linear_kernel(x_ref, w_ref, b_ref, o_ref):
    o_ref[...] = (
        jnp.dot(x_ref[...], w_ref[...], preferred_element_type=jnp.float32)
        + b_ref[...]
    )


def pallas_linear(x, w, b, *, tm=256):
    M, K = x.shape
    N = w.shape[1]
    tm = min(tm, _round_up(M, 8))
    M_pad = _round_up(M, tm)
    if M_pad != M:
        x = jnp.pad(x, ((0, M_pad - M), (0, 0)))
    out = pl.pallas_call(
        _linear_kernel,
        out_shape=jax.ShapeDtypeStruct((M_pad, N), jnp.float32),
        grid=(M_pad // tm,),
        in_specs=[pl.BlockSpec((tm, K), lambda i: (i, 0)),
                  pl.BlockSpec((K, N), lambda i: (0, 0)),
                  pl.BlockSpec((1, N), lambda i: (0, 0))],
        out_specs=pl.BlockSpec((tm, N), lambda i: (i, 0)),
        compiler_params=pltpu.CompilerParams(
            dimension_semantics=("parallel",)),
    )(x.astype(jnp.bfloat16), w.astype(jnp.bfloat16), b)
    return out[:M] if M_pad != M else out


# ---------------------------------------------------------------------------
# Encoder input-gate precompute for BOTH directions: gi = x @ W_ih + b,
# fused [r|z|n] gate layout, grid=(direction, time-block), fully parallel.
# ---------------------------------------------------------------------------
def _enc_gates_kernel(x_ref, w_ref, b_ref, o_ref):
    o_ref[...] = (
        jnp.dot(x_ref[...], w_ref[...], preferred_element_type=jnp.float32)
        + b_ref[...]
    )


def pallas_enc_input_gates(x_flat, w_stack, b_stack, *, S_pad, B_pad, ts):
    M, E = x_flat.shape                       # M = S_pad * B_pad (time-major)
    G = w_stack.shape[-1]                     # 3H
    rows = ts * B_pad
    n_tb = S_pad // ts
    out = pl.pallas_call(
        _enc_gates_kernel,
        out_shape=jax.ShapeDtypeStruct((2, M, G), jnp.float32),
        grid=(2, n_tb),
        in_specs=[pl.BlockSpec((rows, E), lambda d, i: (i, 0)),
                  pl.BlockSpec((None, E, G), lambda d, i: (d, 0, 0)),
                  pl.BlockSpec((None, 1, G), lambda d, i: (d, 0, 0))],
        out_specs=pl.BlockSpec((None, rows, G), lambda d, i: (d, i, 0)),
        compiler_params=pltpu.CompilerParams(
            dimension_semantics=("parallel", "parallel")),
    )(x_flat.astype(jnp.bfloat16), w_stack, b_stack)
    return out                                # (2, S_pad * B_pad, 3H)


# ---------------------------------------------------------------------------
# Bidirectional encoder GRU recurrence: ONE pallas_call, grid=(2, S_pad/Ts).
# Hidden state lives in VMEM scratch; only h @ W_hh (fused 3H) is per-step.
# ---------------------------------------------------------------------------
def _enc_gru_scan_kernel(gi_ref, len_ref, whh_ref, bhn_ref,
                         out_ref, hlast_ref, h_scr, *, ts, H):
    d = pl.program_id(0)
    tb = pl.program_id(1)
    n_tb = pl.num_programs(1)

    @pl.when(tb == 0)
    def _():
        h_scr[...] = jnp.zeros_like(h_scr)

    lengths = len_ref[...]                    # (B, 1) int32
    whh = whh_ref[...]                        # (H, 3H) bf16
    bhn = bhn_ref[...]                        # (1, H)  f32
    blk = tb + d * (n_tb - 1 - 2 * tb)        # d=0: tb,  d=1: n_tb-1-tb

    for i in range(ts):                       # unrolled inner time loop
        idx = i + d * (ts - 1 - 2 * i)        # d=0: i,   d=1: ts-1-i
        orig_t = blk * ts + idx
        gi = gi_ref[idx]                      # (B, 3H); b_ih and b_hh(r,z) prefolded
        h = h_scr[...]
        gh = jnp.dot(h.astype(jnp.bfloat16), whh,
                     preferred_element_type=jnp.float32)        # (B, 3H)
        r = jax.nn.sigmoid(gi[:, :H] + gh[:, :H])
        z = jax.nn.sigmoid(gi[:, H:2 * H] + gh[:, H:2 * H])
        n = jnp.tanh(gi[:, 2 * H:] + r * (gh[:, 2 * H:] + bhn))
        h_new = (1.0 - z) * n + z * h
        # pack_padded_sequence semantics: hold h on padded steps, emit zeros.
        valid = lengths > orig_t              # (B, 1) bool
        h_next = jnp.where(valid, h_new, h)
        h_scr[...] = h_next
        out_ref[idx] = jnp.where(valid, h_next, jnp.zeros_like(h_next))

    @pl.when(tb == n_tb - 1)
    def _():
        hlast_ref[...] = h_scr[...]


def pallas_encoder_scan(gi, lengths, whh, bhn, *, ts):
    _, S_pad, B_pad, G = gi.shape
    H = whh.shape[1]
    n_tb = S_pad // ts
    kernel = functools.partial(_enc_gru_scan_kernel, ts=ts, H=H)

    # forward direction walks time blocks 0..n-1, backward walks n-1..0
    t_idx = lambda d, tb: (d, tb + d * (n_tb - 1 - 2 * tb), 0, 0)

    out_seq, h_last = pl.pallas_call(
        kernel,
        out_shape=(jax.ShapeDtypeStruct((2, S_pad, B_pad, H), jnp.float32),
                   jax.ShapeDtypeStruct((2, B_pad, H), jnp.float32)),
        grid=(2, n_tb),
        in_specs=[pl.BlockSpec((None, ts, B_pad, G), t_idx),
                  pl.BlockSpec((B_pad, 1), lambda d, tb: (0, 0)),
                  pl.BlockSpec((None, H, G), lambda d, tb: (d, 0, 0)),
                  pl.BlockSpec((None, 1, H), lambda d, tb: (d, 0, 0))],
        out_specs=(pl.BlockSpec((None, ts, B_pad, H), t_idx),
                   pl.BlockSpec((None, B_pad, H), lambda d, tb: (d, 0, 0))),
        scratch_shapes=[pltpu.VMEM((B_pad, H), jnp.float32)],
        compiler_params=pltpu.CompilerParams(
            dimension_semantics=("parallel", "arbitrary")),
    )(gi, lengths, whh, bhn)
    return out_seq, h_last


# ---------------------------------------------------------------------------
# Fused decoder scan: GRUCell (fused gates) + attention, grid=(T_pad/Ts,).
# ---------------------------------------------------------------------------
def _decoder_scan_kernel(gie_ref, wic_ref, whh_ref, bhn_ref, enc_ref, h0_ref,
                         ctx_out_ref, h_out_ref, h_scr, ctx_scr, *, ts, D):
    tb = pl.program_id(0)

    @pl.when(tb == 0)
    def _():
        h_scr[...] = h0_ref[...]
        ctx_scr[...] = jnp.zeros_like(ctx_scr)

    kv = enc_ref[...]                         # (B, S, D) resident f32
    wic = wic_ref[...]                        # (D, 3D) bf16
    whh = whh_ref[...]                        # (D, 3D) bf16
    bhn = bhn_ref[...]                        # (1, D)  f32

    for i in range(ts):                       # unrolled inner time loop
        h = h_scr[...]
        ctx = ctx_scr[...]
        # GRUCell on [emb_y_t, ctx]; the emb_y half (+ biases) is precomputed.
        gi = gie_ref[i] + jnp.dot(ctx.astype(jnp.bfloat16), wic,
                                  preferred_element_type=jnp.float32)
        gh = jnp.dot(h.astype(jnp.bfloat16), whh,
                     preferred_element_type=jnp.float32)
        r = jax.nn.sigmoid(gi[:, :D] + gh[:, :D])
        z = jax.nn.sigmoid(gi[:, D:2 * D] + gh[:, D:2 * D])
        n = jnp.tanh(gi[:, 2 * D:] + r * (gh[:, 2 * D:] + bhn))
        h_new = (1.0 - z) * n + z * h

        # myattention(h_new, enc_seq, enc_seq): exact softmax (ctx feeds back).
        scores = jnp.sum(kv * h_new[:, None, :], axis=-1)      # (B, S)
        m = jnp.max(scores, axis=-1, keepdims=True)
        e = jnp.exp(scores - m)
        p = e / jnp.sum(e, axis=-1, keepdims=True)
        ctx_new = jnp.sum(p[:, :, None] * kv, axis=1)          # (B, D)

        h_scr[...] = h_new
        ctx_scr[...] = ctx_new
        h_out_ref[i] = h_new
        ctx_out_ref[i] = ctx_new


def pallas_decoder_scan(gi_e, wic, whh, bhn, enc_seq, h0, *, ts):
    T_pad, B_pad, G = gi_e.shape
    D = whh.shape[0]
    n_tb = T_pad // ts
    step = pl.BlockSpec((ts, B_pad, G), lambda tb: (tb, 0, 0))
    ostep = pl.BlockSpec((ts, B_pad, D), lambda tb: (tb, 0, 0))
    const = lambda shape: pl.BlockSpec(shape, lambda tb: (0,) * len(shape))
    kernel = functools.partial(_decoder_scan_kernel, ts=ts, D=D)

    ctx_all, h_all = pl.pallas_call(
        kernel,
        out_shape=(jax.ShapeDtypeStruct((T_pad, B_pad, D), jnp.float32),
                   jax.ShapeDtypeStruct((T_pad, B_pad, D), jnp.float32)),
        grid=(n_tb,),
        in_specs=[step, const(wic.shape), const(whh.shape), const(bhn.shape),
                  const(enc_seq.shape), const(h0.shape)],
        out_specs=(ostep, ostep),
        scratch_shapes=[pltpu.VMEM((B_pad, D), jnp.float32),
                        pltpu.VMEM((B_pad, D), jnp.float32)],
        compiler_params=pltpu.CompilerParams(
            dimension_semantics=("arbitrary",),
            vmem_limit_bytes=64 * 1024 * 1024),
    )(gi_e, wic, whh, bhn, enc_seq, h0)
    return ctx_all, h_all


# ---------------------------------------------------------------------------
# (row, vocab)-tiled classifier: scores = [ctx, h] @ W + b  (concat-free)
# ---------------------------------------------------------------------------
def _classifier_kernel(c_ref, h_ref, wc_ref, wh_ref, b_ref, o_ref):
    o_ref[...] = (
        jnp.dot(c_ref[...], wc_ref[...], preferred_element_type=jnp.float32)
        + jnp.dot(h_ref[...], wh_ref[...], preferred_element_type=jnp.float32)
        + b_ref[...]
    )


def pallas_classifier(ctx_flat, h_flat, w_ctx, w_h, b, *, tm=256, tn=512):
    M, K = ctx_flat.shape
    V = w_ctx.shape[1]
    tm = min(tm, _round_up(M, 8))
    tn = min(tn, _round_up(V, 128))           # lane-dense (multiple of 128)
    M_pad = _round_up(M, tm)
    V_pad = _round_up(V, tn)
    c = jnp.pad(ctx_flat, ((0, M_pad - M), (0, 0))).astype(jnp.bfloat16)
    h = jnp.pad(h_flat, ((0, M_pad - M), (0, 0))).astype(jnp.bfloat16)
    wc = jnp.pad(w_ctx, ((0, 0), (0, V_pad - V)))
    wh = jnp.pad(w_h, ((0, 0), (0, V_pad - V)))
    bb = jnp.pad(b, ((0, 0), (0, V_pad - V)))
    out = pl.pallas_call(
        _classifier_kernel,
        out_shape=jax.ShapeDtypeStruct((M_pad, V_pad), jnp.float32),
        grid=(M_pad // tm, V_pad // tn),
        in_specs=[pl.BlockSpec((tm, K), lambda i, j: (i, 0)),
                  pl.BlockSpec((tm, K), lambda i, j: (i, 0)),
                  pl.BlockSpec((K, tn), lambda i, j: (0, j)),
                  pl.BlockSpec((K, tn), lambda i, j: (0, j)),
                  pl.BlockSpec((1, tn), lambda i, j: (0, j))],
        out_specs=pl.BlockSpec((tm, tn), lambda i, j: (i, j)),
        compiler_params=pltpu.CompilerParams(
            dimension_semantics=("parallel", "parallel"),
            vmem_limit_bytes=64 * 1024 * 1024),
    )(c, h, wc, wh, bb)
    return out[:M, :V]


# ---------------------------------------------------------------------------
# Model glue (plain JAX: embedding gathers, pads, small transposes)
# ---------------------------------------------------------------------------
def mymodule_forward(params, source_x, x_lengths, y_source, *, ts_enc=8, ts_dec=8):
    B, S = source_x.shape
    T = y_source.shape[1]
    B_pad = _round_up(B, 8)                   # sublane-pad batch
    S_pad = _round_up(S, ts_enc)
    T_pad = _round_up(T, ts_dec)
    H = params["enc_whh"].shape[1]
    D = 2 * H

    # ----------------------------- encoder --------------------------------
    src = jnp.pad(source_x, ((0, B_pad - B), (0, 0)))      # mask idx 0 rows
    lens = jnp.pad(x_lengths.astype(jnp.int32), (0, B_pad - B))
    emb = params["enc_emb"][src]                            # (B_pad, S, E)
    emb_t = jnp.transpose(emb, (1, 0, 2))                   # (S, B_pad, E) time-major
    emb_t = jnp.pad(emb_t, ((0, S_pad - S), (0, 0), (0, 0)))
    E = emb_t.shape[-1]
    x_flat = emb_t.reshape(S_pad * B_pad, E)

    gi = pallas_enc_input_gates(x_flat, params["enc_wih"], params["enc_bih"],
                                S_pad=S_pad, B_pad=B_pad, ts=ts_enc)
    gi = gi.reshape(2, S_pad, B_pad, 3 * H)

    out_seq, h_last = pallas_encoder_scan(gi, lens.reshape(B_pad, 1),
                                          params["enc_whh"], params["enc_bhn"],
                                          ts=ts_enc)
    enc_seq = jnp.concatenate([out_seq[0], out_seq[1]], axis=-1)[:S]   # (S, B_pad, 2H)
    enc_seq = jnp.transpose(enc_seq, (1, 0, 2))                        # (B_pad, S, 2H)
    enc_last = jnp.concatenate([h_last[0], h_last[1]], axis=-1)        # (B_pad, 2H)

    # ----------------------------- decoder --------------------------------
    h0 = pallas_linear(enc_last, params["hid_w"], params["hid_b"])     # hidden_map

    y = jnp.pad(y_source, ((0, B_pad - B), (0, 0)))
    y_t = jnp.transpose(y, (1, 0))                                     # (T, B_pad)
    y_t = jnp.pad(y_t, ((0, T_pad - T), (0, 0)))
    emb_y = params["dec_emb"][y_t]                                     # (T_pad, B_pad, E_dec)
    E_dec = emb_y.shape[-1]
    gi_e = pallas_linear(emb_y.reshape(T_pad * B_pad, E_dec),
                         params["dec_wih_emb"], params["dec_bih"])
    gi_e = gi_e.reshape(T_pad, B_pad, 3 * D)

    ctx_all, h_all = pallas_decoder_scan(gi_e, params["dec_wih_ctx"],
                                         params["dec_whh"], params["dec_bhn"],
                                         enc_seq, h0, ts=ts_dec)

    # batch-major on the small D-wide states (kills the (T,B,V) transpose)
    ctx_bm = jnp.transpose(ctx_all[:T], (1, 0, 2)).reshape(B_pad * T, D)
    h_bm = jnp.transpose(h_all[:T], (1, 0, 2)).reshape(B_pad * T, D)

    scores = pallas_classifier(ctx_bm, h_bm, params["cls_w_ctx"],
                               params["cls_w_h"], params["cls_b"])
    V = params["cls_b"].shape[-1]
    return scores.reshape(B_pad, T, V)[:B]                             # (B, T, V)


# ---------------------------------------------------------------------------
# Deterministic parameter init (fused [r|z|n] gate layout, bf16 MXU weights)
# ---------------------------------------------------------------------------
def init_params(key, enc_vocab, enc_emb_dim, tgt_vocab, tgt_emb_dim, H, src_mask):
    D = 2 * H
    keys = iter(jax.random.split(key, 32))
    u = lambda shape: jax.random.uniform(next(keys), shape, jnp.float32, -0.1, 0.1)

    enc_emb = u((enc_vocab, enc_emb_dim)).at[src_mask].set(0.0)  # padding_idx

    # bidirectional encoder GRU (per-direction stacked, fused gates)
    enc_wih = u((2, enc_emb_dim, 3 * H))
    enc_whh = u((2, H, 3 * H))
    e_bih = u((2, 1, 3 * H))
    e_bhh = u((2, 1, 3 * H))
    enc_bih = e_bih.at[:, :, :2 * H].add(e_bhh[:, :, :2 * H])    # fold b_hh(r,z)
    enc_bhn = e_bhh[:, :, 2 * H:]                                # b_hn stays in-loop

    # decoder GRUCell on [emb_y, ctx]: W_ih split into emb / ctx halves
    dec_wih_emb = u((tgt_emb_dim, 3 * D))
    dec_wih_ctx = u((D, 3 * D))
    dec_whh = u((D, 3 * D))
    d_bih = u((1, 3 * D))
    d_bhh = u((1, 3 * D))
    dec_bih = d_bih.at[:, :2 * D].add(d_bhh[:, :2 * D])
    dec_bhn = d_bhh[:, 2 * D:]

    return dict(
        enc_emb=enc_emb,
        dec_emb=u((tgt_vocab, tgt_emb_dim)),
        enc_wih=enc_wih.astype(jnp.bfloat16), enc_bih=enc_bih,
        enc_whh=enc_whh.astype(jnp.bfloat16), enc_bhn=enc_bhn,
        hid_w=u((D, D)).astype(jnp.bfloat16), hid_b=u((1, D)),
        dec_wih_emb=dec_wih_emb.astype(jnp.bfloat16), dec_bih=dec_bih,
        dec_wih_ctx=dec_wih_ctx.astype(jnp.bfloat16),
        dec_whh=dec_whh.astype(jnp.bfloat16), dec_bhn=dec_bhn,
        cls_w_ctx=u((D, tgt_vocab)).astype(jnp.bfloat16),
        cls_w_h=u((D, tgt_vocab)).astype(jnp.bfloat16),
        cls_b=u((1, tgt_vocab)),
    )


# ---------------------------------------------------------------------------
# Main
# ---------------------------------------------------------------------------
if __name__ == "__main__":
    B, S_SRC, S_TGT = 2, 8, 6
    ENC_VOCAB, ENC_EMB = 20, 16
    TGT_VOCAB, TGT_EMB = 24, 16
    H = 32                       # encoder hidden; decoder hidden = 2H = 64
    SRC_MASK = 0

    key = jax.random.PRNGKey(0)
    kp, kx, ky = jax.random.split(key, 3)

    params = init_params(kp, ENC_VOCAB, ENC_EMB, TGT_VOCAB, TGT_EMB, H, SRC_MASK)

    source_x = jax.random.randint(kx, (B, S_SRC), 1, ENC_VOCAB, dtype=jnp.int32)
    x_lengths = jnp.array([8, 5], dtype=jnp.int32)   # sorted descending
    pos = jnp.arange(S_SRC)[None, :]
    source_x = jnp.where(pos < x_lengths[:, None], source_x, SRC_MASK)
    y_source = jax.random.randint(ky, (B, S_TGT), 1, TGT_VOCAB, dtype=jnp.int32)

    fwd = jax.jit(mymodule_forward)
    out = jax.block_until_ready(fwd(params, source_x, x_lengths, y_source))

    assert out.shape == (B, S_TGT, TGT_VOCAB), out.shape
    assert out.dtype == jnp.float32
    assert bool(jnp.all(jnp.isfinite(out)))
    print("KERNEL_OK")
</pallas_src>

<mosaic_0001>
module attributes {stable_mosaic.version = 11 : i64} {
  func.func @_enc_gates_kernel(%arg0: i32, %arg1: i32, %arg2: memref<64x16xbf16, #tpu.memory_space<vmem>>, %arg3: memref<1x16x96xbf16, #tpu.memory_space<vmem>>, %arg4: memref<1x1x96xf32, #tpu.memory_space<vmem>>, %arg5: memref<1x64x96xf32, #tpu.memory_space<vmem>>) attributes {dimension_semantics = [#tpu.dimension_semantics<parallel>, #tpu.dimension_semantics<parallel>], iteration_bounds = array<i64: 2, 1>, scalar_prefetch = 0 : i64, scratch_operands = 0 : i64, tpu.core_type = #tpu.core_type<tc>, window_params = [{transform_indices = @transform_0, window_bounds = array<i64: 64, 16>}, {transform_indices = @transform_1, window_bounds = array<i64: 1, 16, 96>}, {transform_indices = @transform_2, window_bounds = array<i64: 1, 1, 96>}, {transform_indices = @transform_3, window_bounds = array<i64: 1, 64, 96>}]} {
    %c0 = arith.constant 0 : index
    %c0_0 = arith.constant 0 : index
    %0 = vector.load %arg2[%c0, %c0_0] : memref<64x16xbf16, #tpu.memory_space<vmem>>, vector<64x16xbf16>
    %c0_1 = arith.constant 0 : index
    %c0_2 = arith.constant 0 : index
    %c0_3 = arith.constant 0 : index
    %1 = vector.load %arg3[%c0_1, %c0_2, %c0_3] : memref<1x16x96xbf16, #tpu.memory_space<vmem>>, vector<1x16x96xbf16>
    %2 = vector.shape_cast %1 : vector<1x16x96xbf16> to vector<16x96xbf16>
    %cst = arith.constant dense<0.000000e+00> : vector<64x96xf32>
    %3 = tpu.matmul %0, %2, %cst {dimension_numbers = #tpu.dot_dimension_numbers<[1], [0], [0], [1], [0, 0, 1, 1], [], []>} : vector<64x16xbf16>, vector<16x96xbf16>, vector<64x96xf32> -> vector<64x96xf32>
    %c0_4 = arith.constant 0 : index
    %c0_5 = arith.constant 0 : index
    %c0_6 = arith.constant 0 : index
    %4 = vector.load %arg4[%c0_4, %c0_5, %c0_6] : memref<1x1x96xf32, #tpu.memory_space<vmem>>, vector<1x1x96xf32>
    %5 = vector.shape_cast %4 : vector<1x1x96xf32> to vector<1x96xf32>
    %6 = vector.broadcast %5 : vector<1x96xf32> to vector<64x96xf32>
    %7 = arith.addf %3, %6 : vector<64x96xf32>
    %c0_7 = arith.constant 0 : index
    %c0_8 = arith.constant 0 : index
    %c0_9 = arith.constant 0 : index
    %8 = vector.load %arg5[%c0_7, %c0_8, %c0_9] : memref<1x64x96xf32, #tpu.memory_space<vmem>>, vector<1x64x96xf32>
    %9 = vector.shape_cast %8 : vector<1x64x96xf32> to vector<64x96xf32>
    %10 = vector.shape_cast %7 : vector<64x96xf32> to vector<1x64x96xf32>
    tpu.vector_store %arg5[%c0_7, %c0_8, %c0_9], %10 {strides = array<i32>} : memref<1x64x96xf32, #tpu.memory_space<vmem>>, vector<1x64x96xf32>,
    return
  }
  func.func @transform_0(%arg0: i32, %arg1: i32) -> (i32, i32) {
    %c0_i32 = arith.constant 0 : i32
    %c0_i32_0 = arith.constant 0 : i32
    return %arg1, %c0_i32 : i32, i32
  }
  func.func @transform_1(%arg0: i32, %arg1: i32) -> (i32, i32, i32) {
    %c0_i32 = arith.constant 0 : i32
    %c0_i32_0 = arith.constant 0 : i32
    %c0_i32_1 = arith.constant 0 : i32
    return %arg0, %c0_i32, %c0_i32_0 : i32, i32, i32
  }
  func.func @transform_2(%arg0: i32, %arg1: i32) -> (i32, i32, i32) {
    %c0_i32 = arith.constant 0 : i32
    %c0_i32_0 = arith.constant 0 : i32
    %c0_i32_1 = arith.constant 0 : i32
    return %arg0, %c0_i32, %c0_i32_0 : i32, i32, i32
  }
  func.func @transform_3(%arg0: i32, %arg1: i32) -> (i32, i32, i32) {
    %c0_i32 = arith.constant 0 : i32
    %c0_i32_0 = arith.constant 0 : i32
    return %arg0, %arg1, %c0_i32 : i32, i32, i32
  }
}

module attributes {stable_mosaic.version = 11 : i64} {
  func.func @_enc_gru_scan_kernel(%arg0: i32, %arg1: i32, %arg2: memref<1x8x8x96xf32, #tpu.memory_space<vmem>>, %arg3: memref<8x1xi32, #tpu.memory_space<vmem>>, %arg4: memref<1x32x96xbf16, #tpu.memory_space<vmem>>, %arg5: memref<1x1x32xf32, #tpu.memory_space<vmem>>, %arg6: memref<1x8x8x32xf32, #tpu.memory_space<vmem>>, %arg7: memref<1x8x32xf32, #tpu.memory_space<vmem>>, %arg8: memref<8x32xf32, #tpu.memory_space<vmem>>) attributes {dimension_semantics = [#tpu.dimension_semantics<parallel>, #tpu.dimension_semantics<arbitrary>], iteration_bounds = array<i64: 2, 1>, scalar_prefetch = 0 : i64, scratch_operands = 1 : i64, tpu.core_type = #tpu.core_type<tc>, window_params = [{transform_indices = @transform_0, window_bounds = array<i64: 1, 8, 8, 96>}, {pipeline_mode = #tpu.pipeline_mode<synchronous>, transform_indices = @transform_1, window_bounds = array<i64: 8, 1>}, {transform_indices = @transform_2, window_bounds = array<i64: 1, 32, 96>}, {transform_indices = @transform_3, window_bounds = array<i64: 1, 1, 32>}, {transform_indices = @transform_4, window_bounds = array<i64: 1, 8, 8, 32>}, {transform_indices = @transform_5, window_bounds = array<i64: 1, 8, 32>}]} {
    %c0_i32 = arith.constant 0 : i32
    %0 = arith.cmpi eq, %arg1, %c0_i32 : i32
    %1 = arith.extui %0 : i1 to i32
    %c0_i32_0 = arith.constant 0 : i32
    %2 = arith.cmpi ne, %1, %c0_i32_0 : i32
    scf.if %2 {
      %cst_143 = arith.constant 0.000000e+00 : f32
      %431 = vector.broadcast %cst_143 : f32 to vector<8x32xf32>
      %c0_144 = arith.constant 0 : index
      %c0_145 = arith.constant 0 : index
      %432 = vector.load %arg8[%c0_144, %c0_145] : memref<8x32xf32, #tpu.memory_space<vmem>>, vector<8x32xf32>
      tpu.vector_store %arg8[%c0_144, %c0_145], %431 {strides = array<i32>} : memref<8x32xf32, #tpu.memory_space<vmem>>, vector<8x32xf32>,
    } else {
    }
    %c0 = arith.constant 0 : index
    %c0_1 = arith.constant 0 : index
    %3 = vector.load %arg3[%c0, %c0_1] : memref<8x1xi32, #tpu.memory_space<vmem>>, vector<8x1xi32>
    %c0_2 = arith.constant 0 : index
    %c0_3 = arith.constant 0 : index
    %c0_4 = arith.constant 0 : index
    %4 = vector.load %arg4[%c0_2, %c0_3, %c0_4] : memref<1x32x96xbf16, #tpu.memory_space<vmem>>, vector<1x32x96xbf16>
    %5 = vector.shape_cast %4 : vector<1x32x96xbf16> to vector<32x96xbf16>
    %c0_5 = arith.constant 0 : index
    %c0_6 = arith.constant 0 : index
    %c0_7 = arith.constant 0 : index
    %6 = vector.load %arg5[%c0_5, %c0_6, %c0_7] : memref<1x1x32xf32, #tpu.memory_space<vmem>>, vector<1x1x32xf32>
    %7 = vector.shape_cast %6 : vector<1x1x32xf32> to vector<1x32xf32>
    %c2_i32 = arith.constant 2 : i32
    %8 = arith.muli %c2_i32, %arg1 : i32
    %c0_i32_8 = arith.constant 0 : i32
    %9 = arith.subi %c0_i32_8, %8 : i32
    %10 = arith.muli %arg0, %9 : i32
    %11 = arith.addi %arg1, %10 : i32
    %c7_i32 = arith.constant 7 : i32
    %12 = arith.muli %arg0, %c7_i32 : i32
    %c0_i32_9 = arith.constant 0 : i32
    %13 = arith.addi %c0_i32_9, %12 : i32
    %c8_i32 = arith.constant 8 : i32
    %14 = arith.muli %11, %c8_i32 : i32
    %15 = arith.addi %14, %13 : i32
    %c0_10 = arith.constant 0 : index
    %16 = arith.index_cast %13 : i32 to index
    %c0_11 = arith.constant 0 : index
    %c0_12 = arith.constant 0 : index
    %17 = vector.load %arg2[%c0_10, %16, %c0_11, %c0_12] : memref<1x8x8x96xf32, #tpu.memory_space<vmem>>, vector<1x1x8x96xf32>
    %18 = vector.shape_cast %17 : vector<1x1x8x96xf32> to vector<8x96xf32>
    %c0_13 = arith.constant 0 : index
    %c0_14 = arith.constant 0 : index
    %19 = vector.load %arg8[%c0_13, %c0_14] : memref<8x32xf32, #tpu.memory_space<vmem>>, vector<8x32xf32>
    %20 = arith.truncf %19 : vector<8x32xf32> to vector<8x32xbf16>
    %cst = arith.constant dense<0.000000e+00> : vector<8x96xf32>
    %21 = tpu.matmul %20, %5, %cst {dimension_numbers = #tpu.dot_dimension_numbers<[1], [0], [0], [1], [0, 0, 1, 1], [], []>} : vector<8x32xbf16>, vector<32x96xbf16>, vector<8x96xf32> -> vector<8x96xf32>
    %22 = vector.extract_strided_slice %18 {offsets = [0, 0], sizes = [8, 32], strides = [1, 1]} : vector<8x96xf32> to vector<8x32xf32>
    %23 = vector.extract_strided_slice %21 {offsets = [0, 0], sizes = [8, 32], strides = [1, 1]} : vector<8x96xf32> to vector<8x32xf32>
    %24 = arith.addf %22, %23 : vector<8x32xf32>
    %25 = arith.negf %24 : vector<8x32xf32>
    %26 = math.exp %25 : vector<8x32xf32>
    %cst_15 = arith.constant 1.000000e+00 : f32
    %27 = vector.broadcast %cst_15 : f32 to vector<8x32xf32>
    %28 = arith.addf %27, %26 : vector<8x32xf32>
    %29 = arith.divf %27, %28 : vector<8x32xf32>
    %30 = vector.extract_strided_slice %18 {offsets = [0, 32], sizes = [8, 32], strides = [1, 1]} : vector<8x96xf32> to vector<8x32xf32>
    %31 = vector.extract_strided_slice %21 {offsets = [0, 32], sizes = [8, 32], strides = [1, 1]} : vector<8x96xf32> to vector<8x32xf32>
    %32 = arith.addf %30, %31 : vector<8x32xf32>
    %33 = arith.negf %32 : vector<8x32xf32>
    %34 = math.exp %33 : vector<8x32xf32>
    %cst_16 = arith.constant 1.000000e+00 : f32
    %35 = vector.broadcast %cst_16 : f32 to vector<8x32xf32>
    %36 = arith.addf %35, %34 : vector<8x32xf32>
    %37 = arith.divf %35, %36 : vector<8x32xf32>
    %38 = vector.extract_strided_slice %18 {offsets = [0, 64], sizes = [8, 32], strides = [1, 1]} : vector<8x96xf32> to vector<8x32xf32>
    %39 = vector.extract_strided_slice %21 {offsets = [0, 64], sizes = [8, 32], strides = [1, 1]} : vector<8x96xf32> to vector<8x32xf32>
    %40 = vector.broadcast %7 : vector<1x32xf32> to vector<8x32xf32>
    %41 = arith.addf %39, %40 : vector<8x32xf32>
    %42 = arith.mulf %29, %41 : vector<8x32xf32>
    %43 = arith.addf %38, %42 : vector<8x32xf32>
    %44 = math.tanh %43 : vector<8x32xf32>
    %cst_17 = arith.constant 1.000000e+00 : f32
    %45 = vector.broadcast %cst_17 : f32 to vector<8x32xf32>
    %46 = arith.subf %45, %37 : vector<8x32xf32>
    %47 = arith.mulf %46, %44 : vector<8x32xf32>
    %48 = arith.mulf %37, %19 : vector<8x32xf32>
    %49 = arith.addf %47, %48 : vector<8x32xf32>
    %50 = vector.broadcast %15 : i32 to vector<8x1xi32>
    %51 = arith.cmpi sgt, %3, %50 : vector<8x1xi32>
    %52 = vector.shape_cast %51 : vector<8x1xi1> to vector<8x1xi1>
    %53 = vector.broadcast %52 : vector<8x1xi1> to vector<8x32xi1>
    %54 = arith.select %53, %49, %19 : vector<8x32xi1>, vector<8x32xf32>
    %c0_18 = arith.constant 0 : index
    %c0_19 = arith.constant 0 : index
    %55 = vector.load %arg8[%c0_18, %c0_19] : memref<8x32xf32, #tpu.memory_space<vmem>>, vector<8x32xf32>
    tpu.vector_store %arg8[%c0_18, %c0_19], %54 {strides = array<i32>} : memref<8x32xf32, #tpu.memory_space<vmem>>, vector<8x32xf32>,
    %cst_20 = arith.constant 0.000000e+00 : f32
    %56 = vector.broadcast %cst_20 : f32 to vector<8x32xf32>
    %57 = vector.shape_cast %51 : vector<8x1xi1> to vector<8x1xi1>
    %58 = vector.broadcast %57 : vector<8x1xi1> to vector<8x32xi1>
    %59 = arith.select %58, %54, %56 : vector<8x32xi1>, vector<8x32xf32>
    %c0_21 = arith.constant 0 : index
    %60 = arith.index_cast %13 : i32 to index
    %c0_22 = arith.constant 0 : index
    %c0_23 = arith.constant 0 : index
    %61 = vector.load %arg6[%c0_21, %60, %c0_22, %c0_23] : memref<1x8x8x32xf32, #tpu.memory_space<vmem>>, vector<1x1x8x32xf32>
    %62 = vector.shape_cast %61 : vector<1x1x8x32xf32> to vector<8x32xf32>
    %63 = vector.shape_cast %59 : vector<8x32xf32> to vector<1x1x8x32xf32>
    tpu.vector_store %arg6[%c0_21, %60, %c0_22, %c0_23], %63 {strides = array<i32>} : memref<1x8x8x32xf32, #tpu.memory_space<vmem>>, vector<1x1x8x32xf32>,
    %c5_i32 = arith.constant 5 : i32
    %64 = arith.muli %arg0, %c5_i32 : i32
    %c1_i32 = arith.constant 1 : i32
    %65 = arith.addi %c1_i32, %64 : i32
    %c8_i32_24 = arith.constant 8 : i32
    %66 = arith.muli %11, %c8_i32_24 : i32
    %67 = arith.addi %66, %65 : i32
    %c0_25 = arith.constant 0 : index
    %68 = arith.index_cast %65 : i32 to index
    %c0_26 = arith.constant 0 : index
    %c0_27 = arith.constant 0 : index
    %69 = vector.load %arg2[%c0_25, %68, %c0_26, %c0_27] : memref<1x8x8x96xf32, #tpu.memory_space<vmem>>, vector<1x1x8x96xf32>
    %70 = vector.shape_cast %69 : vector<1x1x8x96xf32> to vector<8x96xf32>
    %c0_28 = arith.constant 0 : index
    %c0_29 = arith.constant 0 : index
    %71 = vector.load %arg8[%c0_28, %c0_29] : memref<8x32xf32, #tpu.memory_space<vmem>>, vector<8x32xf32>
    %72 = arith.truncf %71 : vector<8x32xf32> to vector<8x32xbf16>
    %cst_30 = arith.constant dense<0.000000e+00> : vector<8x96xf32>
    %73 = tpu.matmul %72, %5, %cst_30 {dimension_numbers = #tpu.dot_dimension_numbers<[1], [0], [0], [1], [0, 0, 1, 1], [], []>} : vector<8x32xbf16>, vector<32x96xbf16>, vector<8x96xf32> -> vector<8x96xf32>
    %74 = vector.extract_strided_slice %70 {offsets = [0, 0], sizes = [8, 32], strides = [1, 1]} : vector<8x96xf32> to vector<8x32xf32>
    %75 = vector.extract_strided_slice %73 {offsets = [0, 0], sizes = [8, 32], strides = [1, 1]} : vector<8x96xf32> to vector<8x32xf32>
    %76 = arith.addf %74, %75 : vector<8x32xf32>
    %77 = arith.negf %76 : vector<8x32xf32>
    %78 = math.exp %77 : vector<8x32xf32>
    %cst_31 = arith.constant 1.000000e+00 : f32
    %79 = vector.broadcast %cst_31 : f32 to vector<8x32xf32>
    %80 = arith.addf %79, %78 : vector<8x32xf32>
    %81 = arith.divf %79, %80 : vector<8x32xf32>
    %82 = vector.extract_strided_slice %70 {offsets = [0, 32], sizes = [8, 32], strides = [1, 1]} : vector<8x96xf32> to vector<8x32xf32>
    %83 = vector.extract_strided_slice %73 {offsets = [0, 32], sizes = [8, 32], strides = [1, 1]} : vector<8x96xf32> to vector<8x32xf32>
    %84 = arith.addf %82, %83 : vector<8x32xf32>
    %85 = arith.negf %84 : vector<8x32xf32>
    %86 = math.exp %85 : vector<8x32xf32>
    %cst_32 = arith.constant 1.000000e+00 : f32
    %87 = vector.broadcast %cst_32 : f32 to vector<8x32xf32>
    %88 = arith.addf %87, %86 : vector<8x32xf32>
    %89 = arith.divf %87, %88 : vector<8x32xf32>
    %90 = vector.extract_strided_slice %70 {offsets = [0, 64], sizes = [8, 32], strides = [1, 1]} : vector<8x96xf32> to vector<8x32xf32>
    %91 = vector.extract_strided_slice %73 {offsets = [0, 64], sizes = [8, 32], strides = [1, 1]} : vector<8x96xf32> to vector<8x32xf32>
    %92 = vector.broadcast %7 : vector<1x32xf32> to vector<8x32xf32>
    %93 = arith.addf %91, %92 : vector<8x32xf32>
    %94 = arith.mulf %81, %93 : vector<8x32xf32>
    %95 = arith.addf %90, %94 : vector<8x32xf32>
    %96 = math.tanh %95 : vector<8x32xf32>
    %cst_33 = arith.constant 1.000000e+00 : f32
    %97 = vector.broadcast %cst_33 : f32 to vector<8x32xf32>
    %98 = arith.subf %97, %89 : vector<8x32xf32>
    %99 = arith.mulf %98, %96 : vector<8x32xf32>
    %100 = arith.mulf %89, %71 : vector<8x32xf32>
    %101 = arith.addf %99, %100 : vector<8x32xf32>
    %102 = vector.broadcast %67 : i32 to vector<8x1xi32>
    %103 = arith.cmpi sgt, %3, %102 : vector<8x1xi32>
    %104 = vector.shape_cast %103 : vector<8x1xi1> to vector<8x1xi1>
    %105 = vector.broadcast %104 : vector<8x1xi1> to vector<8x32xi1>
    %106 = arith.select %105, %101, %71 : vector<8x32xi1>, vector<8x32xf32>
    %c0_34 = arith.constant 0 : index
    %c0_35 = arith.constant 0 : index
    %107 = vector.load %arg8[%c0_34, %c0_35] : memref<8x32xf32, #tpu.memory_space<vmem>>, vector<8x32xf32>
    tpu.vector_store %arg8[%c0_34, %c0_35], %106 {strides = array<i32>} : memref<8x32xf32, #tpu.memory_space<vmem>>, vector<8x32xf32>,
    %cst_36 = arith.constant 0.000000e+00 : f32
    %108 = vector.broadcast %cst_36 : f32 to vector<8x32xf32>
    %109 = vector.shape_cast %103 : vector<8x1xi1> to vector<8x1xi1>
    %110 = vector.broadcast %109 : vector<8x1xi1> to vector<8x32xi1>
    %111 = arith.select %110, %106, %108 : vector<8x32xi1>, vector<8x32xf32>
    %c0_37 = arith.constant 0 : index
    %112 = arith.index_cast %65 : i32 to index
    %c0_38 = arith.constant 0 : index
    %c0_39 = arith.constant 0 : index
    %113 = vector.load %arg6[%c0_37, %112, %c0_38, %c0_39] : memref<1x8x8x32xf32, #tpu.memory_space<vmem>>, vector<1x1x8x32xf32>
    %114 = vector.shape_cast %113 : vector<1x1x8x32xf32> to vector<8x32xf32>
    %115 = vector.shape_cast %111 : vector<8x32xf32> to vector<1x1x8x32xf32>
    tpu.vector_store %arg6[%c0_37, %112, %c0_38, %c0_39], %115 {strides = array<i32>} : memref<1x8x8x32xf32, #tpu.memory_space<vmem>>, vector<1x1x8x32xf32>,
    %c3_i32 = arith.constant 3 : i32
    %116 = arith.muli %arg0, %c3_i32 : i32
    %c2_i32_40 = arith.constant 2 : i32
    %117 = arith.addi %c2_i32_40, %116 : i32
    %c8_i32_41 = arith.constant 8 : i32
    %118 = arith.muli %11, %c8_i32_41 : i32
    %119 = arith.addi %118, %117 : i32
    %c0_42 = arith.constant 0 : index
    %120 = arith.index_cast %117 : i32 to index
    %c0_43 = arith.constant 0 : index
    %c0_44 = arith.constant 0 : index
    %121 = vector.load %arg2[%c0_42, %120, %c0_43, %c0_44] : memref<1x8x8x96xf32, #tpu.memory_space<vmem>>, vector<1x1x8x96xf32>
    %122 = vector.shape_cast %121 : vector<1x1x8x96xf32> to vector<8x96xf32>
    %c0_45 = arith.constant 0 : index
    %c0_46 = arith.constant 0 : index
    %123 = vector.load %arg8[%c0_45, %c0_46] : memref<8x32xf32, #tpu.memory_space<vmem>>, vector<8x32xf32>
    %124 = arith.truncf %123 : vector<8x32xf32> to vector<8x32xbf16>
    %cst_47 = arith.constant dense<0.000000e+00> : vector<8x96xf32>
    %125 = tpu.matmul %124, %5, %cst_47 {dimension_numbers = #tpu.dot_dimension_numbers<[1], [0], [0], [1], [0, 0, 1, 1], [], []>} : vector<8x32xbf16>, vector<32x96xbf16>, vector<8x96xf32> -> vector<8x96xf32>
    %126 = vector.extract_strided_slice %122 {offsets = [0, 0], sizes = [8, 32], strides = [1, 1]} : vector<8x96xf32> to vector<8x32xf32>
    %127 = vector.extract_strided_slice %125 {offsets = [0, 0], sizes = [8, 32], strides = [1, 1]} : vector<8x96xf32> to vector<8x32xf32>
    %128 = arith.addf %126, %127 : vector<8x32xf32>
    %129 = arith.negf %128 : vector<8x32xf32>
    %130 = math.exp %129 : vector<8x32xf32>
    %cst_48 = arith.constant 1.000000e+00 : f32
    %131 = vector.broadcast %cst_48 : f32 to vector<8x32xf32>
    %132 = arith.addf %131, %130 : vector<8x32xf32>
    %133 = arith.divf %131, %132 : vector<8x32xf32>
    %134 = vector.extract_strided_slice %122 {offsets = [0, 32], sizes = [8, 32], strides = [1, 1]} : vector<8x96xf32> to vector<8x32xf32>
    %135 = vector.extract_strided_slice %125 {offsets = [0, 32], sizes = [8, 32], strides = [1, 1]} : vector<8x96xf32> to vector<8x32xf32>
    %136 = arith.addf %134, %135 : vector<8x32xf32>
    %137 = arith.negf %136 : vector<8x32xf32>
    %138 = math.exp %137 : vector<8x32xf32>
    %cst_49 = arith.constant 1.000000e+00 : f32
    %139 = vector.broadcast %cst_49 : f32 to vector<8x32xf32>
    %140 = arith.addf %139, %138 : vector<8x32xf32>
    %141 = arith.divf %139, %140 : vector<8x32xf32>
    %142 = vector.extract_strided_slice %122 {offsets = [0, 64], sizes = [8, 32], strides = [1, 1]} : vector<8x96xf32> to vector<8x32xf32>
    %143 = vector.extract_strided_slice %125 {offsets = [0, 64], sizes = [8, 32], strides = [1, 1]} : vector<8x96xf32> to vector<8x32xf32>
    %144 = vector.broadcast %7 : vector<1x32xf32> to vector<8x32xf32>
    %145 = arith.addf %143, %144 : vector<8x32xf32>
    %146 = arith.mulf %133, %145 : vector<8x32xf32>
    %147 = arith.addf %142, %146 : vector<8x32xf32>
    %148 = math.tanh %147 : vector<8x32xf32>
    %cst_50 = arith.constant 1.000000e+00 : f32
    %149 = vector.broadcast %cst_50 : f32 to vector<8x32xf32>
    %150 = arith.subf %149, %141 : vector<8x32xf32>
    %151 = arith.mulf %150, %148 : vector<8x32xf32>
    %152 = arith.mulf %141, %123 : vector<8x32xf32>
    %153 = arith.addf %151, %152 : vector<8x32xf32>
    %154 = vector.broadcast %119 : i32 to vector<8x1xi32>
    %155 = arith.cmpi sgt, %3, %154 : vector<8x1xi32>
    %156 = vector.shape_cast %155 : vector<8x1xi1> to vector<8x1xi1>
    %157 = vector.broadcast %156 : vector<8x1xi1> to vector<8x32xi1>
    %158 = arith.select %157, %153, %123 : vector<8x32xi1>, vector<8x32xf32>
    %c0_51 = arith.constant 0 : index
    %c0_52 = arith.constant 0 : index
    %159 = vector.load %arg8[%c0_51, %c0_52] : memref<8x32xf32, #tpu.memory_space<vmem>>, vector<8x32xf32>
    tpu.vector_store %arg8[%c0_51, %c0_52], %158 {strides = array<i32>} : memref<8x32xf32, #tpu.memory_space<vmem>>, vector<8x32xf32>,
    %cst_53 = arith.constant 0.000000e+00 : f32
    %160 = vector.broadcast %cst_53 : f32 to vector<8x32xf32>
    %161 = vector.shape_cast %155 : vector<8x1xi1> to vector<8x1xi1>
    %162 = vector.broadcast %161 : vector<8x1xi1> to vector<8x32xi1>
    %163 = arith.select %162, %158, %160 : vector<8x32xi1>, vector<8x32xf32>
    %c0_54 = arith.constant 0 : index
    %164 = arith.index_cast %117 : i32 to index
    %c0_55 = arith.constant 0 : index
    %c0_56 = arith.constant 0 : index
    %165 = vector.load %arg6[%c0_54, %164, %c0_55, %c0_56] : memref<1x8x8x32xf32, #tpu.memory_space<vmem>>, vector<1x1x8x32xf32>
    %166 = vector.shape_cast %165 : vector<1x1x8x32xf32> to vector<8x32xf32>
    %167 = vector.shape_cast %163 : vector<8x32xf32> to vector<1x1x8x32xf32>
    tpu.vector_store %arg6[%c0_54, %164, %c0_55, %c0_56], %167 {strides = array<i32>} : memref<1x8x8x32xf32, #tpu.memory_space<vmem>>, vector<1x1x8x32xf32>,
    %c1_i32_57 = arith.constant 1 : i32
    %168 = arith.muli %arg0, %c1_i32_57 : i32
    %c3_i32_58 = arith.constant 3 : i32
    %169 = arith.addi %c3_i32_58, %168 : i32
    %c8_i32_59 = arith.constant 8 : i32
    %170 = arith.muli %11, %c8_i32_59 : i32
    %171 = arith.addi %170, %169 : i32
    %c0_60 = arith.constant 0 : index
    %172 = arith.index_cast %169 : i32 to index
    %c0_61 = arith.constant 0 : index
    %c0_62 = arith.constant 0 : index
    %173 = vector.load %arg2[%c0_60, %172, %c0_61, %c0_62] : memref<1x8x8x96xf32, #tpu.memory_space<vmem>>, vector<1x1x8x96xf32>
    %174 = vector.shape_cast %173 : vector<1x1x8x96xf32> to vector<8x96xf32>
    %c0_63 = arith.constant 0 : index
    %c0_64 = arith.constant 0 : index
    %175 = vector.load %arg8[%c0_63, %c0_64] : memref<8x32xf32, #tpu.memory_space<vmem>>, vector<8x32xf32>
    %176 = arith.truncf %175 : vector<8x32xf32> to vector<8x32xbf16>
    %cst_65 = arith.constant dense<0.000000e+00> : vector<8x96xf32>
    %177 = tpu.matmul %176, %5, %cst_65 {dimension_numbers = #tpu.dot_dimension_numbers<[1], [0], [0], [1], [0, 0, 1, 1], [], []>} : vector<8x32xbf16>, vector<32x96xbf16>, vector<8x96xf32> -> vector<8x96xf32>
    %178 = vector.extract_strided_slice %174 {offsets = [0, 0], sizes = [8, 32], strides = [1, 1]} : vector<8x96xf32> to vector<8x32xf32>
    %179 = vector.extract_strided_slice %177 {offsets = [0, 0], sizes = [8, 32], strides = [1, 1]} : vector<8x96xf32> to vector<8x32xf32>
    %180 = arith.addf %178, %179 : vector<8x32xf32>
    %181 = arith.negf %180 : vector<8x32xf32>
    %182 = math.exp %181 : vector<8x32xf32>
    %cst_66 = arith.constant 1.000000e+00 : f32
    %183 = vector.broadcast %cst_66 : f32 to vector<8x32xf32>
    %184 = arith.addf %183, %182 : vector<8x32xf32>
    %185 = arith.divf %183, %184 : vector<8x32xf32>
    %186 = vector.extract_strided_slice %174 {offsets = [0, 32], sizes = [8, 32], strides = [1, 1]} : vector<8x96xf32> to vector<8x32xf32>
    %187 = vector.extract_strided_slice %177 {offsets = [0, 32], sizes = [8, 32], strides = [1, 1]} : vector<8x96xf32> to vector<8x32xf32>
    %188 = arith.addf %186, %187 : vector<8x32xf32>
    %189 = arith.negf %188 : vector<8x32xf32>
    %190 = math.exp %189 : vector<8x32xf32>
    %cst_67 = arith.constant 1.000000e+00 : f32
    %191 = vector.broadcast %cst_67 : f32 to vector<8x32xf32>
    %192 = arith.addf %191, %190 : vector<8x32xf32>
    %193 = arith.divf %191, %192 : vector<8x32xf32>
    %194 = vector.extract_strided_slice %174 {offsets = [0, 64], sizes = [8, 32], strides = [1, 1]} : vector<8x96xf32> to vector<8x32xf32>
    %195 = vector.extract_strided_slice %177 {offsets = [0, 64], sizes = [8, 32], strides = [1, 1]} : vector<8x96xf32> to vector<8x32xf32>
    %196 = vector.broadcast %7 : vector<1x32xf32> to vector<8x32xf32>
    %197 = arith.addf %195, %196 : vector<8x32xf32>
    %198 = arith.mulf %185, %197 : vector<8x32xf32>
    %199 = arith.addf %194, %198 : vector<8x32xf32>
    %200 = math.tanh %199 : vector<8x32xf32>
    %cst_68 = arith.constant 1.000000e+00 : f32
    %201 = vector.broadcast %cst_68 : f32 to vector<8x32xf32>
    %202 = arith.subf %201, %193 : vector<8x32xf32>
    %203 = arith.mulf %202, %200 : vector<8x32xf32>
    %204 = arith.mulf %193, %175 : vector<8x32xf32>
    %205 = arith.addf %203, %204 : vector<8x32xf32>
    %206 = vector.broadcast %171 : i32 to vector<8x1xi32>
    %207 = arith.cmpi sgt, %3, %206 : vector<8x1xi32>
    %208 = vector.shape_cast %207 : vector<8x1xi1> to vector<8x1xi1>
    %209 = vector.broadcast %208 : vector<8x1xi1> to vector<8x32xi1>
    %210 = arith.select %209, %205, %175 : vector<8x32xi1>, vector<8x32xf32>
    %c0_69 = arith.constant 0 : index
    %c0_70 = arith.constant 0 : index
    %211 = vector.load %arg8[%c0_69, %c0_70] : memref<8x32xf32, #tpu.memory_space<vmem>>, vector<8x32xf32>
    tpu.vector_store %arg8[%c0_69, %c0_70], %210 {strides = array<i32>} : memref<8x32xf32, #tpu.memory_space<vmem>>, vector<8x32xf32>,
    %cst_71 = arith.constant 0.000000e+00 : f32
    %212 = vector.broadcast %cst_71 : f32 to vector<8x32xf32>
    %213 = vector.shape_cast %207 : vector<8x1xi1> to vector<8x1xi1>
    %214 = vector.broadcast %213 : vector<8x1xi1> to vector<8x32xi1>
    %215 = arith.select %214, %210, %212 : vector<8x32xi1>, vector<8x32xf32>
    %c0_72 = arith.constant 0 : index
    %216 = arith.index_cast %169 : i32 to index
    %c0_73 = arith.constant 0 : index
    %c0_74 = arith.constant 0 : index
    %217 = vector.load %arg6[%c0_72, %216, %c0_73, %c0_74] : memref<1x8x8x32xf32, #tpu.memory_space<vmem>>, vector<1x1x8x32xf32>
    %218 = vector.shape_cast %217 : vector<1x1x8x32xf32> to vector<8x32xf32>
    %219 = vector.shape_cast %215 : vector<8x32xf32> to vector<1x1x8x32xf32>
    tpu.vector_store %arg6[%c0_72, %216, %c0_73, %c0_74], %219 {strides = array<i32>} : memref<1x8x8x32xf32, #tpu.memory_space<vmem>>, vector<1x1x8x32xf32>,
    %c-1_i32 = arith.constant -1 : i32
    %220 = arith.muli %arg0, %c-1_i32 : i32
    %c4_i32 = arith.constant 4 : i32
    %221 = arith.addi %c4_i32, %220 : i32
    %c8_i32_75 = arith.constant 8 : i32
    %222 = arith.muli %11, %c8_i32_75 : i32
    %223 = arith.addi %222, %221 : i32
    %c0_76 = arith.constant 0 : index
    %224 = arith.index_cast %221 : i32 to index
    %c0_77 = arith.constant 0 : index
    %c0_78 = arith.constant 0 : index
    %225 = vector.load %arg2[%c0_76, %224, %c0_77, %c0_78] : memref<1x8x8x96xf32, #tpu.memory_space<vmem>>, vector<1x1x8x96xf32>
    %226 = vector.shape_cast %225 : vector<1x1x8x96xf32> to vector<8x96xf32>
    %c0_79 = arith.constant 0 : index
    %c0_80 = arith.constant 0 : index
    %227 = vector.load %arg8[%c0_79, %c0_80] : memref<8x32xf32, #tpu.memory_space<vmem>>, vector<8x32xf32>
    %228 = arith.truncf %227 : vector<8x32xf32> to vector<8x32xbf16>
    %cst_81 = arith.constant dense<0.000000e+00> : vector<8x96xf32>
    %229 = tpu.matmul %228, %5, %cst_81 {dimension_numbers = #tpu.dot_dimension_numbers<[1], [0], [0], [1], [0, 0, 1, 1], [], []>} : vector<8x32xbf16>, vector<32x96xbf16>, vector<8x96xf32> -> vector<8x96xf32>
    %230 = vector.extract_strided_slice %226 {offsets = [0, 0], sizes = [8, 32], strides = [1, 1]} : vector<8x96xf32> to vector<8x32xf32>
    %231 = vector.extract_strided_slice %229 {offsets = [0, 0], sizes = [8, 32], strides = [1, 1]} : vector<8x96xf32> to vector<8x32xf32>
    %232 = arith.addf %230, %231 : vector<8x32xf32>
    %233 = arith.negf %232 : vector<8x32xf32>
    %234 = math.exp %233 : vector<8x32xf32>
    %cst_82 = arith.constant 1.000000e+00 : f32
    %235 = vector.broadcast %cst_82 : f32 to vector<8x32xf32>
    %236 = arith.addf %235, %234 : vector<8x32xf32>
    %237 = arith.divf %235, %236 : vector<8x32xf32>
    %238 = vector.extract_strided_slice %226 {offsets = [0, 32], sizes = [8, 32], strides = [1, 1]} : vector<8x96xf32> to vector<8x32xf32>
    %239 = vector.extract_strided_slice %229 {offsets = [0, 32], sizes = [8, 32], strides = [1, 1]} : vector<8x96xf32> to vector<8x32xf32>
    %240 = arith.addf %238, %239 : vector<8x32xf32>
    %241 = arith.negf %240 : vector<8x32xf32>
    %242 = math.exp %241 : vector<8x32xf32>
    %cst_83 = arith.constant 1.000000e+00 : f32
    %243 = vector.broadcast %cst_83 : f32 to vector<8x32xf32>
    %244 = arith.addf %243, %242 : vector<8x32xf32>
    %245 = arith.divf %243, %244 : vector<8x32xf32>
    %246 = vector.extract_strided_slice %226 {offsets = [0, 64], sizes = [8, 32], strides = [1, 1]} : vector<8x96xf32> to vector<8x32xf32>
    %247 = vector.extract_strided_slice %229 {offsets = [0, 64], sizes = [8, 32], strides = [1, 1]} : vector<8x96xf32> to vector<8x32xf32>
    %248 = vector.broadcast %7 : vector<1x32xf32> to vector<8x32xf32>
    %249 = arith.addf %247, %248 : vector<8x32xf32>
    %250 = arith.mulf %237, %249 : vector<8x32xf32>
    %251 = arith.addf %246, %250 : vector<8x32xf32>
    %252 = math.tanh %251 : vector<8x32xf32>
    %cst_84 = arith.constant 1.000000e+00 : f32
    %253 = vector.broadcast %cst_84 : f32 to vector<8x32xf32>
    %254 = arith.subf %253, %245 : vector<8x32xf32>
    %255 = arith.mulf %254, %252 : vector<8x32xf32>
    %256 = arith.mulf %245, %227 : vector<8x32xf32>
    %257 = arith.addf %255, %256 : vector<8x32xf32>
    %258 = vector.broadcast %223 : i32 to vector<8x1xi32>
    %259 = arith.cmpi sgt, %3, %258 : vector<8x1xi32>
    %260 = vector.shape_cast %259 : vector<8x1xi1> to vector<8x1xi1>
    %261 = vector.broadcast %260 : vector<8x1xi1> to vector<8x32xi1>
    %262 = arith.select %261, %257, %227 : vector<8x32xi1>, vector<8x32xf32>
    %c0_85 = arith.constant 0 : index
    %c0_86 = arith.constant 0 : index
    %263 = vector.load %arg8[%c0_85, %c0_86] : memref<8x32xf32, #tpu.memory_space<vmem>>, vector<8x32xf32>
    tpu.vector_store %arg8[%c0_85, %c0_86], %262 {strides = array<i32>} : memref<8x32xf32, #tpu.memory_space<vmem>>, vector<8x32xf32>,
    %cst_87 = arith.constant 0.000000e+00 : f32
    %264 = vector.broadcast %cst_87 : f32 to vector<8x32xf32>
    %265 = vector.shape_cast %259 : vector<8x1xi1> to vector<8x1xi1>
    %266 = vector.broadcast %265 : vector<8x1xi1> to vector<8x32xi1>
    %267 = arith.select %266, %262, %264 : vector<8x32xi1>, vector<8x32xf32>
    %c0_88 = arith.constant 0 : index
    %268 = arith.index_cast %221 : i32 to index
    %c0_89 = arith.constant 0 : index
    %c0_90 = arith.constant 0 : index
    %269 = vector.load %arg6[%c0_88, %268, %c0_89, %c0_90] : memref<1x8x8x32xf32, #tpu.memory_space<vmem>>, vector<1x1x8x32xf32>
    %270 = vector.shape_cast %269 : vector<1x1x8x32xf32> to vector<8x32xf32>
    %271 = vector.shape_cast %267 : vector<8x32xf32> to vector<1x1x8x32xf32>
    tpu.vector_store %arg6[%c0_88, %268, %c0_89, %c0_90], %271 {strides = array<i32>} : memref<1x8x8x32xf32, #tpu.memory_space<vmem>>, vector<1x1x8x32xf32>,
    %c-3_i32 = arith.constant -3 : i32
    %272 = arith.muli %arg0, %c-3_i32 : i32
    %c5_i32_91 = arith.constant 5 : i32
    %273 = arith.addi %c5_i32_91, %272 : i32
    %c8_i32_92 = arith.constant 8 : i32
    %274 = arith.muli %11, %c8_i32_92 : i32
    %275 = arith.addi %274, %273 : i32
    %c0_93 = arith.constant 0 : index
    %276 = arith.index_cast %273 : i32 to index
    %c0_94 = arith.constant 0 : index
    %c0_95 = arith.constant 0 : index
    %277 = vector.load %arg2[%c0_93, %276, %c0_94, %c0_95] : memref<1x8x8x96xf32, #tpu.memory_space<vmem>>, vector<1x1x8x96xf32>
    %278 = vector.shape_cast %277 : vector<1x1x8x96xf32> to vector<8x96xf32>
    %c0_96 = arith.constant 0 : index
    %c0_97 = arith.constant 0 : index
    %279 = vector.load %arg8[%c0_96, %c0_97] : memref<8x32xf32, #tpu.memory_space<vmem>>, vector<8x32xf32>
    %280 = arith.truncf %279 : vector<8x32xf32> to vector<8x32xbf16>
    %cst_98 = arith.constant dense<0.000000e+00> : vector<8x96xf32>
    %281 = tpu.matmul %280, %5, %cst_98 {dimension_numbers = #tpu.dot_dimension_numbers<[1], [0], [0], [1], [0, 0, 1, 1], [], []>} : vector<8x32xbf16>, vector<32x96xbf16>, vector<8x96xf32> -> vector<8x96xf32>
    %282 = vector.extract_strided_slice %278 {offsets = [0, 0], sizes = [8, 32], strides = [1, 1]} : vector<8x96xf32> to vector<8x32xf32>
    %283 = vector.extract_strided_slice %281 {offsets = [0, 0], sizes = [8, 32], strides = [1, 1]} : vector<8x96xf32> to vector<8x32xf32>
    %284 = arith.addf %282, %283 : vector<8x32xf32>
    %285 = arith.negf %284 : vector<8x32xf32>
    %286 = math.exp %285 : vector<8x32xf32>
    %cst_99 = arith.constant 1.000000e+00 : f32
    %287 = vector.broadcast %cst_99 : f32 to vector<8x32xf32>
    %288 = arith.addf %287, %286 : vector<8x32xf32>
    %289 = arith.divf %287, %288 : vector<8x32xf32>
    %290 = vector.extract_strided_slice %278 {offsets = [0, 32], sizes = [8, 32], strides = [1, 1]} : vector<8x96xf32> to vector<8x32xf32>
    %291 = vector.extract_strided_slice %281 {offsets = [0, 32], sizes = [8, 32], strides = [1, 1]} : vector<8x96xf32> to vector<8x32xf32>
    %292 = arith.addf %290, %291 : vector<8x32xf32>
    %293 = arith.negf %292 : vector<8x32xf32>
    %294 = math.exp %293 : vector<8x32xf32>
    %cst_100 = arith.constant 1.000000e+00 : f32
    %295 = vector.broadcast %cst_100 : f32 to vector<8x32xf32>
    %296 = arith.addf %295, %294 : vector<8x32xf32>
    %297 = arith.divf %295, %296 : vector<8x32xf32>
    %298 = vector.extract_strided_slice %278 {offsets = [0, 64], sizes = [8, 32], strides = [1, 1]} : vector<8x96xf32> to vector<8x32xf32>
    %299 = vector.extract_strided_slice %281 {offsets = [0, 64], sizes = [8, 32], strides = [1, 1]} : vector<8x96xf32> to vector<8x32xf32>
    %300 = vector.broadcast %7 : vector<1x32xf32> to vector<8x32xf32>
    %301 = arith.addf %299, %300 : vector<8x32xf32>
    %302 = arith.mulf %289, %301 : vector<8x32xf32>
    %303 = arith.addf %298, %302 : vector<8x32xf32>
    %304 = math.tanh %303 : vector<8x32xf32>
    %cst_101 = arith.constant 1.000000e+00 : f32
    %305 = vector.broadcast %cst_101 : f32 to vector<8x32xf32>
    %306 = arith.subf %305, %297 : vector<8x32xf32>
    %307 = arith.mulf %306, %304 : vector<8x32xf32>
    %308 = arith.mulf %297, %279 : vector<8x32xf32>
    %309 = arith.addf %307, %308 : vector<8x32xf32>
    %310 = vector.broadcast %275 : i32 to vector<8x1xi32>
    %311 = arith.cmpi sgt, %3, %310 : vector<8x1xi32>
    %312 = vector.shape_cast %311 : vector<8x1xi1> to vector<8x1xi1>
    %313 = vector.broadcast %312 : vector<8x1xi1> to vector<8x32xi1>
    %314 = arith.select %313, %309, %279 : vector<8x32xi1>, vector<8x32xf32>
    %c0_102 = arith.constant 0 : index
    %c0_103 = arith.constant 0 : index
    %315 = vector.load %arg8[%c0_102, %c0_103] : memref<8x32xf32, #tpu.memory_space<vmem>>, vector<8x32xf32>
    tpu.vector_store %arg8[%c0_102, %c0_103], %314 {strides = array<i32>} : memref<8x32xf32, #tpu.memory_space<vmem>>, vector<8x32xf32>,
    %cst_104 = arith.constant 0.000000e+00 : f32
    %316 = vector.broadcast %cst_104 : f32 to vector<8x32xf32>
    %317 = vector.shape_cast %311 : vector<8x1xi1> to vector<8x1xi1>
    %318 = vector.broadcast %317 : vector<8x1xi1> to vector<8x32xi1>
    %319 = arith.select %318, %314, %316 : vector<8x32xi1>, vector<8x32xf32>
    %c0_105 = arith.constant 0 : index
    %320 = arith.index_cast %273 : i32 to index
    %c0_106 = arith.constant 0 : index
    %c0_107 = arith.constant 0 : index
    %321 = vector.load %arg6[%c0_105, %320, %c0_106, %c0_107] : memref<1x8x8x32xf32, #tpu.memory_space<vmem>>, vector<1x1x8x32xf32>
    %322 = vector.shape_cast %321 : vector<1x1x8x32xf32> to vector<8x32xf32>
    %323 = vector.shape_cast %319 : vector<8x32xf32> to vector<1x1x8x32xf32>
    tpu.vector_store %arg6[%c0_105, %320, %c0_106, %c0_107], %323 {strides = array<i32>} : memref<1x8x8x32xf32, #tpu.memory_space<vmem>>, vector<1x1x8x32xf32>,
    %c-5_i32 = arith.constant -5 : i32
    %324 = arith.muli %arg0, %c-5_i32 : i32
    %c6_i32 = arith.constant 6 : i32
    %325 = arith.addi %c6_i32, %324 : i32
    %c8_i32_108 = arith.constant 8 : i32
    %326 = arith.muli %11, %c8_i32_108 : i32
    %327 = arith.addi %326, %325 : i32
    %c0_109 = arith.constant 0 : index
    %328 = arith.index_cast %325 : i32 to index
    %c0_110 = arith.constant 0 : index
    %c0_111 = arith.constant 0 : index
    %329 = vector.load %arg2[%c0_109, %328, %c0_110, %c0_111] : memref<1x8x8x96xf32, #tpu.memory_space<vmem>>, vector<1x1x8x96xf32>
    %330 = vector.shape_cast %329 : vector<1x1x8x96xf32> to vector<8x96xf32>
    %c0_112 = arith.constant 0 : index
    %c0_113 = arith.constant 0 : index
    %331 = vector.load %arg8[%c0_112, %c0_113] : memref<8x32xf32, #tpu.memory_space<vmem>>, vector<8x32xf32>
    %332 = arith.truncf %331 : vector<8x32xf32> to vector<8x32xbf16>
    %cst_114 = arith.constant dense<0.000000e+00> : vector<8x96xf32>
    %333 = tpu.matmul %332, %5, %cst_114 {dimension_numbers = #tpu.dot_dimension_numbers<[1], [0], [0], [1], [0, 0, 1, 1], [], []>} : vector<8x32xbf16>, vector<32x96xbf16>, vector<8x96xf32> -> vector<8x96xf32>
    %334 = vector.extract_strided_slice %330 {offsets = [0, 0], sizes = [8, 32], strides = [1, 1]} : vector<8x96xf32> to vector<8x32xf32>
    %335 = vector.extract_strided_slice %333 {offsets = [0, 0], sizes = [8, 32], strides = [1, 1]} : vector<8x96xf32> to vector<8x32xf32>
    %336 = arith.addf %334, %335 : vector<8x32xf32>
    %337 = arith.negf %336 : vector<8x32xf32>
    %338 = math.exp %337 : vector<8x32xf32>
    %cst_115 = arith.constant 1.000000e+00 : f32
    %339 = vector.broadcast %cst_115 : f32 to vector<8x32xf32>
    %340 = arith.addf %339, %338 : vector<8x32xf32>
    %341 = arith.divf %339, %340 : vector<8x32xf32>
    %342 = vector.extract_strided_slice %330 {offsets = [0, 32], sizes = [8, 32], strides = [1, 1]} : vector<8x96xf32> to vector<8x32xf32>
    %343 = vector.extract_strided_slice %333 {offsets = [0, 32], sizes = [8, 32], strides = [1, 1]} : vector<8x96xf32> to vector<8x32xf32>
    %344 = arith.addf %342, %343 : vector<8x32xf32>
    %345 = arith.negf %344 : vector<8x32xf32>
    %346 = math.exp %345 : vector<8x32xf32>
    %cst_116 = arith.constant 1.000000e+00 : f32
    %347 = vector.broadcast %cst_116 : f32 to vector<8x32xf32>
    %348 = arith.addf %347, %346 : vector<8x32xf32>
    %349 = arith.divf %347, %348 : vector<8x32xf32>
    %350 = vector.extract_strided_slice %330 {offsets = [0, 64], sizes = [8, 32], strides = [1, 1]} : vector<8x96xf32> to vector<8x32xf32>
    %351 = vector.extract_strided_slice %333 {offsets = [0, 64], sizes = [8, 32], strides = [1, 1]} : vector<8x96xf32> to vector<8x32xf32>
    %352 = vector.broadcast %7 : vector<1x32xf32> to vector<8x32xf32>
    %353 = arith.addf %351, %352 : vector<8x32xf32>
    %354 = arith.mulf %341, %353 : vector<8x32xf32>
    %355 = arith.addf %350, %354 : vector<8x32xf32>
    %356 = math.tanh %355 : vector<8x32xf32>
    %cst_117 = arith.constant 1.000000e+00 : f32
    %357 = vector.broadcast %cst_117 : f32 to vector<8x32xf32>
    %358 = arith.subf %357, %349 : vector<8x32xf32>
    %359 = arith.mulf %358, %356 : vector<8x32xf32>
    %360 = arith.mulf %349, %331 : vector<8x32xf32>
    %361 = arith.addf %359, %360 : vector<8x32xf32>
    %362 = vector.broadcast %327 : i32 to vector<8x1xi32>
    %363 = arith.cmpi sgt, %3, %362 : vector<8x1xi32>
    %364 = vector.shape_cast %363 : vector<8x1xi1> to vector<8x1xi1>
    %365 = vector.broadcast %364 : vector<8x1xi1> to vector<8x32xi1>
    %366 = arith.select %365, %361, %331 : vector<8x32xi1>, vector<8x32xf32>
    %c0_118 = arith.constant 0 : index
    %c0_119 = arith.constant 0 : index
    %367 = vector.load %arg8[%c0_118, %c0_119] : memref<8x32xf32, #tpu.memory_space<vmem>>, vector<8x32xf32>
    tpu.vector_store %arg8[%c0_118, %c0_119], %366 {strides = array<i32>} : memref<8x32xf32, #tpu.memory_space<vmem>>, vector<8x32xf32>,
    %cst_120 = arith.constant 0.000000e+00 : f32
    %368 = vector.broadcast %cst_120 : f32 to vector<8x32xf32>
    %369 = vector.shape_cast %363 : vector<8x1xi1> to vector<8x1xi1>
    %370 = vector.broadcast %369 : vector<8x1xi1> to vector<8x32xi1>
    %371 = arith.select %370, %366, %368 : vector<8x32xi1>, vector<8x32xf32>
    %c0_121 = arith.constant 0 : index
    %372 = arith.index_cast %325 : i32 to index
    %c0_122 = arith.constant 0 : index
    %c0_123 = arith.constant 0 : index
    %373 = vector.load %arg6[%c0_121, %372, %c0_122, %c0_123] : memref<1x8x8x32xf32, #tpu.memory_space<vmem>>, vector<1x1x8x32xf32>
    %374 = vector.shape_cast %373 : vector<1x1x8x32xf32> to vector<8x32xf32>
    %375 = vector.shape_cast %371 : vector<8x32xf32> to vector<1x1x8x32xf32>
    tpu.vector_store %arg6[%c0_121, %372, %c0_122, %c0_123], %375 {strides = array<i32>} : memref<1x8x8x32xf32, #tpu.memory_space<vmem>>, vector<1x1x8x32xf32>,
    %c-7_i32 = arith.constant -7 : i32
    %376 = arith.muli %arg0, %c-7_i32 : i32
    %c7_i32_124 = arith.constant 7 : i32
    %377 = arith.addi %c7_i32_124, %376 : i32
    %c8_i32_125 = arith.constant 8 : i32
    %378 = arith.muli %11, %c8_i32_125 : i32
    %379 = arith.addi %378, %377 : i32
    %c0_126 = arith.constant 0 : index
    %380 = arith.index_cast %377 : i32 to index
    %c0_127 = arith.constant 0 : index
    %c0_128 = arith.constant 0 : index
    %381 = vector.load %arg2[%c0_126, %380, %c0_127, %c0_128] : memref<1x8x8x96xf32, #tpu.memory_space<vmem>>, vector<1x1x8x96xf32>
    %382 = vector.shape_cast %381 : vector<1x1x8x96xf32> to vector<8x96xf32>
    %c0_129 = arith.constant 0 : index
    %c0_130 = arith.constant 0 : index
    %383 = vector.load %arg8[%c0_129, %c0_130] : memref<8x32xf32, #tpu.memory_space<vmem>>, vector<8x32xf32>
    %384 = arith.truncf %383 : vector<8x32xf32> to vector<8x32xbf16>
    %cst_131 = arith.constant dense<0.000000e+00> : vector<8x96xf32>
    %385 = tpu.matmul %384, %5, %cst_131 {dimension_numbers = #tpu.dot_dimension_numbers<[1], [0], [0], [1], [0, 0, 1, 1], [], []>} : vector<8x32xbf16>, vector<32x96xbf16>, vector<8x96xf32> -> vector<8x96xf32>
    %386 = vector.extract_strided_slice %382 {offsets = [0, 0], sizes = [8, 32], strides = [1, 1]} : vector<8x96xf32> to vector<8x32xf32>
    %387 = vector.extract_strided_slice %385 {offsets = [0, 0], sizes = [8, 32], strides = [1, 1]} : vector<8x96xf32> to vector<8x32xf32>
    %388 = arith.addf %386, %387 : vector<8x32xf32>
    %389 = arith.negf %388 : vector<8x32xf32>
    %390 = math.exp %389 : vector<8x32xf32>
    %cst_132 = arith.constant 1.000000e+00 : f32
    %391 = vector.broadcast %cst_132 : f32 to vector<8x32xf32>
    %392 = arith.addf %391, %390 : vector<8x32xf32>
    %393 = arith.divf %391, %392 : vector<8x32xf32>
    %394 = vector.extract_strided_slice %382 {offsets = [0, 32], sizes = [8, 32], strides = [1, 1]} : vector<8x96xf32> to vector<8x32xf32>
    %395 = vector.extract_strided_slice %385 {offsets = [0, 32], sizes = [8, 32], strides = [1, 1]} : vector<8x96xf32> to vector<8x32xf32>
    %396 = arith.addf %394, %395 : vector<8x32xf32>
    %397 = arith.negf %396 : vector<8x32xf32>
    %398 = math.exp %397 : vector<8x32xf32>
    %cst_133 = arith.constant 1.000000e+00 : f32
    %399 = vector.broadcast %cst_133 : f32 to vector<8x32xf32>
    %400 = arith.addf %399, %398 : vector<8x32xf32>
    %401 = arith.divf %399, %400 : vector<8x32xf32>
    %402 = vector.extract_strided_slice %382 {offsets = [0, 64], sizes = [8, 32], strides = [1, 1]} : vector<8x96xf32> to vector<8x32xf32>
    %403 = vector.extract_strided_slice %385 {offsets = [0, 64], sizes = [8, 32], strides = [1, 1]} : vector<8x96xf32> to vector<8x32xf32>
    %404 = vector.broadcast %7 : vector<1x32xf32> to vector<8x32xf32>
    %405 = arith.addf %403, %404 : vector<8x32xf32>
    %406 = arith.mulf %393, %405 : vector<8x32xf32>
    %407 = arith.addf %402, %406 : vector<8x32xf32>
    %408 = math.tanh %407 : vector<8x32xf32>
    %cst_134 = arith.constant 1.000000e+00 : f32
    %409 = vector.broadcast %cst_134 : f32 to vector<8x32xf32>
    %410 = arith.subf %409, %401 : vector<8x32xf32>
    %411 = arith.mulf %410, %408 : vector<8x32xf32>
    %412 = arith.mulf %401, %383 : vector<8x32xf32>
    %413 = arith.addf %411, %412 : vector<8x32xf32>
    %414 = vector.broadcast %379 : i32 to vector<8x1xi32>
    %415 = arith.cmpi sgt, %3, %414 : vector<8x1xi32>
    %416 = vector.shape_cast %415 : vector<8x1xi1> to vector<8x1xi1>
    %417 = vector.broadcast %416 : vector<8x1xi1> to vector<8x32xi1>
    %418 = arith.select %417, %413, %383 : vector<8x32xi1>, vector<8x32xf32>
    %c0_135 = arith.constant 0 : index
    %c0_136 = arith.constant 0 : index
    %419 = vector.load %arg8[%c0_135, %c0_136] : memref<8x32xf32, #tpu.memory_space<vmem>>, vector<8x32xf32>
    tpu.vector_store %arg8[%c0_135, %c0_136], %418 {strides = array<i32>} : memref<8x32xf32, #tpu.memory_space<vmem>>, vector<8x32xf32>,
    %cst_137 = arith.constant 0.000000e+00 : f32
    %420 = vector.broadcast %cst_137 : f32 to vector<8x32xf32>
    %421 = vector.shape_cast %415 : vector<8x1xi1> to vector<8x1xi1>
    %422 = vector.broadcast %421 : vector<8x1xi1> to vector<8x32xi1>
    %423 = arith.select %422, %418, %420 : vector<8x32xi1>, vector<8x32xf32>
    %c0_138 = arith.constant 0 : index
    %424 = arith.index_cast %377 : i32 to index
    %c0_139 = arith.constant 0 : index
    %c0_140 = arith.constant 0 : index
    %425 = vector.load %arg6[%c0_138, %424, %c0_139, %c0_140] : memref<1x8x8x32xf32, #tpu.memory_space<vmem>>, vector<1x1x8x32xf32>
    %426 = vector.shape_cast %425 : vector<1x1x8x32xf32> to vector<8x32xf32>
    %427 = vector.shape_cast %423 : vector<8x32xf32> to vector<1x1x8x32xf32>
    tpu.vector_store %arg6[%c0_138, %424, %c0_139, %c0_140], %427 {strides = array<i32>} : memref<1x8x8x32xf32, #tpu.memory_space<vmem>>, vector<1x1x8x32xf32>,
    %c0_i32_141 = arith.constant 0 : i32
    %428 = arith.cmpi eq, %arg1, %c0_i32_141 : i32
    %429 = arith.extui %428 : i1 to i32
    %c0_i32_142 = arith.constant 0 : i32
    %430 = arith.cmpi ne, %429, %c0_i32_142 : i32
    scf.if %430 {
      %c0_143 = arith.constant 0 : index
      %c0_144 = arith.constant 0 : index
      %431 = vector.load %arg8[%c0_143, %c0_144] : memref<8x32xf32, #tpu.memory_space<vmem>>, vector<8x32xf32>
      %c0_145 = arith.constant 0 : index
      %c0_146 = arith.constant 0 : index
      %c0_147 = arith.constant 0 : index
      %432 = vector.load %arg7[%c0_145, %c0_146, %c0_147] : memref<1x8x32xf32, #tpu.memory_space<vmem>>, vector<1x8x32xf32>
      %433 = vector.shape_cast %432 : vector<1x8x32xf32> to vector<8x32xf32>
      %434 = vector.shape_cast %431 : vector<8x32xf32> to vector<1x8x32xf32>
      tpu.vector_store %arg7[%c0_145, %c0_146, %c0_147], %434 {strides = array<i32>} : memref<1x8x32xf32, #tpu.memory_space<vmem>>, vector<1x8x32xf32>,
    } else {
    }
    return
  }
  func.func @transform_0(%arg0: i32, %arg1: i32) -> (i32, i32, i32, i32) {
    %c2_i32 = arith.constant 2 : i32
    %0 = arith.muli %c2_i32, %arg1 : i32
    %c0_i32 = arith.constant 0 : i32
    %1 = arith.subi %c0_i32, %0 : i32
    %2 = arith.muli %arg0, %1 : i32
    %3 = arith.addi %arg1, %2 : i32
    %c0_i32_0 = arith.constant 0 : i32
    %c0_i32_1 = arith.constant 0 : i32
    %c0_i32_2 = arith.constant 0 : i32
    return %arg0, %3, %c0_i32_0, %c0_i32_1 : i32, i32, i32, i32
  }
  func.func @transform_1(%arg0: i32, %arg1: i32) -> (i32, i32) {
    %c0_i32 = arith.constant 0 : i32
    %c0_i32_0 = arith.constant 0 : i32
    %c0_i32_1 = arith.constant 0 : i32
    return %c0_i32, %c0_i32_0 : i32, i32
  }
  func.func @transform_2(%arg0: i32, %arg1: i32) -> (i32, i32, i32) {
    %c0_i32 = arith.constant 0 : i32
    %c0_i32_0 = arith.constant 0 : i32
    %c0_i32_1 = arith.constant 0 : i32
    return %arg0, %c0_i32, %c0_i32_0 : i32, i32, i32
  }
  func.func @transform_3(%arg0: i32, %arg1: i32) -> (i32, i32, i32) {
    %c0_i32 = arith.constant 0 : i32
    %c0_i32_0 = arith.constant 0 : i32
    %c0_i32_1 = arith.constant 0 : i32
    return %arg0, %c0_i32, %c0_i32_0 : i32, i32, i32
  }
  func.func @transform_4(%arg0: i32, %arg1: i32) -> (i32, i32, i32, i32) {
    %c2_i32 = arith.constant 2 : i32
    %0 = arith.muli %c2_i32, %arg1 : i32
    %c0_i32 = arith.constant 0 : i32
    %1 = arith.subi %c0_i32, %0 : i32
    %2 = arith.muli %arg0, %1 : i32
    %3 = arith.addi %arg1, %2 : i32
    %c0_i32_0 = arith.constant 0 : i32
    %c0_i32_1 = arith.constant 0 : i32
    %c0_i32_2 = arith.constant 0 : i32
    return %arg0, %3, %c0_i32_0, %c0_i32_1 : i32, i32, i32, i32
  }
  func.func @transform_5(%arg0: i32, %arg1: i32) -> (i32, i32, i32) {
    %c0_i32 = arith.constant 0 : i32
    %c0_i32_0 = arith.constant 0 : i32
    %c0_i32_1 = arith.constant 0 : i32
    return %arg0, %c0_i32, %c0_i32_0 : i32, i32, i32
  }
}

module attributes {stable_mosaic.version = 11 : i64} {
  func.func @_linear_kernel(%arg0: i32, %arg1: memref<8x64xbf16, #tpu.memory_space<vmem>>, %arg2: memref<64x64xbf16, #tpu.memory_space<vmem>>, %arg3: memref<1x64xf32, #tpu.memory_space<vmem>>, %arg4: memref<8x64xf32, #tpu.memory_space<vmem>>) attributes {dimension_semantics = [#tpu.dimension_semantics<parallel>], iteration_bounds = array<i64: 1>, scalar_prefetch = 0 : i64, scratch_operands = 0 : i64, tpu.core_type = #tpu.core_type<tc>, window_params = [{transform_indices = @transform_0, window_bounds = array<i64: 8, 64>}, {pipeline_mode = #tpu.pipeline_mode<synchronous>, transform_indices = @transform_1, window_bounds = array<i64: 64, 64>}, {pipeline_mode = #tpu.pipeline_mode<synchronous>, transform_indices = @transform_2, window_bounds = array<i64: 1, 64>}, {transform_indices = @transform_3, window_bounds = array<i64: 8, 64>}]} {
    %c0 = arith.constant 0 : index
    %c0_0 = arith.constant 0 : index
    %0 = vector.load %arg1[%c0, %c0_0] : memref<8x64xbf16, #tpu.memory_space<vmem>>, vector<8x64xbf16>
    %c0_1 = arith.constant 0 : index
    %c0_2 = arith.constant 0 : index
    %1 = vector.load %arg2[%c0_1, %c0_2] : memref<64x64xbf16, #tpu.memory_space<vmem>>, vector<64x64xbf16>
    %cst = arith.constant dense<0.000000e+00> : vector<8x64xf32>
    %2 = tpu.matmul %0, %1, %cst {dimension_numbers = #tpu.dot_dimension_numbers<[1], [0], [0], [1], [0, 0, 1, 1], [], []>} : vector<8x64xbf16>, vector<64x64xbf16>, vector<8x64xf32> -> vector<8x64xf32>
    %c0_3 = arith.constant 0 : index
    %c0_4 = arith.constant 0 : index
    %3 = vector.load %arg3[%c0_3, %c0_4] : memref<1x64xf32, #tpu.memory_space<vmem>>, vector<1x64xf32>
    %4 = vector.broadcast %3 : vector<1x64xf32> to vector<8x64xf32>
    %5 = arith.addf %2, %4 : vector<8x64xf32>
    %c0_5 = arith.constant 0 : index
    %c0_6 = arith.constant 0 : index
    %6 = vector.load %arg4[%c0_5, %c0_6] : memref<8x64xf32, #tpu.memory_space<vmem>>, vector<8x64xf32>
    tpu.vector_store %arg4[%c0_5, %c0_6], %5 {strides = array<i32>} : memref<8x64xf32, #tpu.memory_space<vmem>>, vector<8x64xf32>,
    return
  }
  func.func @transform_0(%arg0: i32) -> (i32, i32) {
    %c0_i32 = arith.constant 0 : i32
    %c0_i32_0 = arith.constant 0 : i32
    return %arg0, %c0_i32 : i32, i32
  }
  func.func @transform_1(%arg0: i32) -> (i32, i32) {
    %c0_i32 = arith.constant 0 : i32
    %c0_i32_0 = arith.constant 0 : i32
    %c0_i32_1 = arith.constant 0 : i32
    return %c0_i32, %c0_i32_0 : i32, i32
  }
  func.func @transform_2(%arg0: i32) -> (i32, i32) {
    %c0_i32 = arith.constant 0 : i32
    %c0_i32_0 = arith.constant 0 : i32
    %c0_i32_1 = arith.constant 0 : i32
    return %c0_i32, %c0_i32_0 : i32, i32
  }
  func.func @transform_3(%arg0: i32) -> (i32, i32) {
    %c0_i32 = arith.constant 0 : i32
    %c0_i32_0 = arith.constant 0 : i32
    return %arg0, %c0_i32 : i32, i32
  }
}

module attributes {stable_mosaic.version = 11 : i64} {
  func.func @_linear_kernel(%arg0: i32, %arg1: memref<64x16xbf16, #tpu.memory_space<vmem>>, %arg2: memref<16x192xbf16, #tpu.memory_space<vmem>>, %arg3: memref<1x192xf32, #tpu.memory_space<vmem>>, %arg4: memref<64x192xf32, #tpu.memory_space<vmem>>) attributes {dimension_semantics = [#tpu.dimension_semantics<parallel>], iteration_bounds = array<i64: 1>, scalar_prefetch = 0 : i64, scratch_operands = 0 : i64, tpu.core_type = #tpu.core_type<tc>, window_params = [{transform_indices = @transform_0, window_bounds = array<i64: 64, 16>}, {pipeline_mode = #tpu.pipeline_mode<synchronous>, transform_indices = @transform_1, window_bounds = array<i64: 16, 192>}, {pipeline_mode = #tpu.pipeline_mode<synchronous>, transform_indices = @transform_2, window_bounds = array<i64: 1, 192>}, {transform_indices = @transform_3, window_bounds = array<i64: 64, 192>}]} {
    %c0 = arith.constant 0 : index
    %c0_0 = arith.constant 0 : index
    %0 = vector.load %arg1[%c0, %c0_0] : memref<64x16xbf16, #tpu.memory_space<vmem>>, vector<64x16xbf16>
    %c0_1 = arith.constant 0 : index
    %c0_2 = arith.constant 0 : index
    %1 = vector.load %arg2[%c0_1, %c0_2] : memref<16x192xbf16, #tpu.memory_space<vmem>>, vector<16x192xbf16>
    %cst = arith.constant dense<0.000000e+00> : vector<64x192xf32>
    %2 = tpu.matmul %0, %1, %cst {dimension_numbers = #tpu.dot_dimension_numbers<[1], [0], [0], [1], [0, 0, 1, 1], [], []>} : vector<64x16xbf16>, vector<16x192xbf16>, vector<64x192xf32> -> vector<64x192xf32>
    %c0_3 = arith.constant 0 : index
    %c0_4 = arith.constant 0 : index
    %3 = vector.load %arg3[%c0_3, %c0_4] : memref<1x192xf32, #tpu.memory_space<vmem>>, vector<1x192xf32>
    %4 = vector.broadcast %3 : vector<1x192xf32> to vector<64x192xf32>
    %5 = arith.addf %2, %4 : vector<64x192xf32>
    %c0_5 = arith.constant 0 : index
    %c0_6 = arith.constant 0 : index
    %6 = vector.load %arg4[%c0_5, %c0_6] : memref<64x192xf32, #tpu.memory_space<vmem>>, vector<64x192xf32>
    tpu.vector_store %arg4[%c0_5, %c0_6], %5 {strides = array<i32>} : memref<64x192xf32, #tpu.memory_space<vmem>>, vector<64x192xf32>,
    return
  }
  func.func @transform_0(%arg0: i32) -> (i32, i32) {
    %c0_i32 = arith.constant 0 : i32
    %c0_i32_0 = arith.constant 0 : i32
    return %arg0, %c0_i32 : i32, i32
  }
  func.func @transform_1(%arg0: i32) -> (i32, i32) {
    %c0_i32 = arith.constant 0 : i32
    %c0_i32_0 = arith.constant 0 : i32
    %c0_i32_1 = arith.constant 0 : i32
    return %c0_i32, %c0_i32_0 : i32, i32
  }
  func.func @transform_2(%arg0: i32) -> (i32, i32) {
    %c0_i32 = arith.constant 0 : i32
    %c0_i32_0 = arith.constant 0 : i32
    %c0_i32_1 = arith.constant 0 : i32
    return %c0_i32, %c0_i32_0 : i32, i32
  }
  func.func @transform_3(%arg0: i32) -> (i32, i32) {
    %c0_i32 = arith.constant 0 : i32
    %c0_i32_0 = arith.constant 0 : i32
    return %arg0, %c0_i32 : i32, i32
  }
}

module attributes {stable_mosaic.version = 11 : i64} {
  func.func @_decoder_scan_kernel(%arg0: i32, %arg1: memref<8x8x192xf32, #tpu.memory_space<vmem>>, %arg2: memref<64x192xbf16, #tpu.memory_space<vmem>>, %arg3: memref<64x192xbf16, #tpu.memory_space<vmem>>, %arg4: memref<1x64xf32, #tpu.memory_space<vmem>>, %arg5: memref<8x8x64xf32, #tpu.memory_space<vmem>>, %arg6: memref<8x64xf32, #tpu.memory_space<vmem>>, %arg7: memref<8x8x64xf32, #tpu.memory_space<vmem>>, %arg8: memref<8x8x64xf32, #tpu.memory_space<vmem>>, %arg9: memref<8x64xf32, #tpu.memory_space<vmem>>, %arg10: memref<8x64xf32, #tpu.memory_space<vmem>>) attributes {dimension_semantics = [#tpu.dimension_semantics<arbitrary>], iteration_bounds = array<i64: 1>, scalar_prefetch = 0 : i64, scratch_operands = 2 : i64, tpu.core_type = #tpu.core_type<tc>, window_params = [{transform_indices = @transform_0, window_bounds = array<i64: 8, 8, 192>}, {pipeline_mode = #tpu.pipeline_mode<synchronous>, transform_indices = @transform_1, window_bounds = array<i64: 64, 192>}, {pipeline_mode = #tpu.pipeline_mode<synchronous>, transform_indices = @transform_2, window_bounds = array<i64: 64, 192>}, {pipeline_mode = #tpu.pipeline_mode<synchronous>, transform_indices = @transform_3, window_bounds = array<i64: 1, 64>}, {pipeline_mode = #tpu.pipeline_mode<synchronous>, transform_indices = @transform_4, window_bounds = array<i64: 8, 8, 64>}, {pipeline_mode = #tpu.pipeline_mode<synchronous>, transform_indices = @transform_5, window_bounds = array<i64: 8, 64>}, {transform_indices = @transform_6, window_bounds = array<i64: 8, 8, 64>}, {transform_indices = @transform_7, window_bounds = array<i64: 8, 8, 64>}]} {
    %c0_i32 = arith.constant 0 : i32
    %0 = arith.cmpi eq, %arg0, %c0_i32 : i32
    %1 = arith.extui %0 : i1 to i32
    %c0_i32_0 = arith.constant 0 : i32
    %2 = arith.cmpi ne, %1, %c0_i32_0 : i32
    scf.if %2 {
      %c0_209 = arith.constant 0 : index
      %c0_210 = arith.constant 0 : index
      %503 = vector.load %arg6[%c0_209, %c0_210] : memref<8x64xf32, #tpu.memory_space<vmem>>, vector<8x64xf32>
      %c0_211 = arith.constant 0 : index
      %c0_212 = arith.constant 0 : index
      %504 = vector.load %arg9[%c0_211, %c0_212] : memref<8x64xf32, #tpu.memory_space<vmem>>, vector<8x64xf32>
      tpu.vector_store %arg9[%c0_211, %c0_212], %503 {strides = array<i32>} : memref<8x64xf32, #tpu.memory_space<vmem>>, vector<8x64xf32>,
      %cst_213 = arith.constant 0.000000e+00 : f32
      %505 = vector.broadcast %cst_213 : f32 to vector<8x64xf32>
      %c0_214 = arith.constant 0 : index
      %c0_215 = arith.constant 0 : index
      %506 = vector.load %arg10[%c0_214, %c0_215] : memref<8x64xf32, #tpu.memory_space<vmem>>, vector<8x64xf32>
      tpu.vector_store %arg10[%c0_214, %c0_215], %505 {strides = array<i32>} : memref<8x64xf32, #tpu.memory_space<vmem>>, vector<8x64xf32>,
    } else {
    }
    %c0 = arith.constant 0 : index
    %c0_1 = arith.constant 0 : index
    %c0_2 = arith.constant 0 : index
    %3 = vector.load %arg5[%c0, %c0_1, %c0_2] : memref<8x8x64xf32, #tpu.memory_space<vmem>>, vector<8x8x64xf32>
    %c0_3 = arith.constant 0 : index
    %c0_4 = arith.constant 0 : index
    %4 = vector.load %arg2[%c0_3, %c0_4] : memref<64x192xbf16, #tpu.memory_space<vmem>>, vector<64x192xbf16>
    %c0_5 = arith.constant 0 : index
    %c0_6 = arith.constant 0 : index
    %5 = vector.load %arg3[%c0_5, %c0_6] : memref<64x192xbf16, #tpu.memory_space<vmem>>, vector<64x192xbf16>
    %c0_7 = arith.constant 0 : index
    %c0_8 = arith.constant 0 : index
    %6 = vector.load %arg4[%c0_7, %c0_8] : memref<1x64xf32, #tpu.memory_space<vmem>>, vector<1x64xf32>
    %c0_9 = arith.constant 0 : index
    %c0_10 = arith.constant 0 : index
    %7 = vector.load %arg9[%c0_9, %c0_10] : memref<8x64xf32, #tpu.memory_space<vmem>>, vector<8x64xf32>
    %c0_11 = arith.constant 0 : index
    %c0_12 = arith.constant 0 : index
    %8 = vector.load %arg10[%c0_11, %c0_12] : memref<8x64xf32, #tpu.memory_space<vmem>>, vector<8x64xf32>
    %c0_13 = arith.constant 0 : index
    %c0_14 = arith.constant 0 : index
    %c0_15 = arith.constant 0 : index
    %9 = vector.load %arg1[%c0_13, %c0_14, %c0_15] : memref<8x8x192xf32, #tpu.memory_space<vmem>>, vector<1x8x192xf32>
    %10 = vector.shape_cast %9 : vector<1x8x192xf32> to vector<8x192xf32>
    %11 = arith.truncf %8 : vector<8x64xf32> to vector<8x64xbf16>
    %cst = arith.constant dense<0.000000e+00> : vector<8x192xf32>
    %12 = tpu.matmul %11, %4, %cst {dimension_numbers = #tpu.dot_dimension_numbers<[1], [0], [0], [1], [0, 0, 1, 1], [], []>} : vector<8x64xbf16>, vector<64x192xbf16>, vector<8x192xf32> -> vector<8x192xf32>
    %13 = arith.addf %10, %12 : vector<8x192xf32>
    %14 = arith.truncf %7 : vector<8x64xf32> to vector<8x64xbf16>
    %cst_16 = arith.constant dense<0.000000e+00> : vector<8x192xf32>
    %15 = tpu.matmul %14, %5, %cst_16 {dimension_numbers = #tpu.dot_dimension_numbers<[1], [0], [0], [1], [0, 0, 1, 1], [], []>} : vector<8x64xbf16>, vector<64x192xbf16>, vector<8x192xf32> -> vector<8x192xf32>
    %16 = vector.extract_strided_slice %13 {offsets = [0, 0], sizes = [8, 64], strides = [1, 1]} : vector<8x192xf32> to vector<8x64xf32>
    %17 = vector.extract_strided_slice %15 {offsets = [0, 0], sizes = [8, 64], strides = [1, 1]} : vector<8x192xf32> to vector<8x64xf32>
    %18 = arith.addf %16, %17 : vector<8x64xf32>
    %19 = arith.negf %18 : vector<8x64xf32>
    %20 = math.exp %19 : vector<8x64xf32>
    %cst_17 = arith.constant 1.000000e+00 : f32
    %21 = vector.broadcast %cst_17 : f32 to vector<8x64xf32>
    %22 = arith.addf %21, %20 : vector<8x64xf32>
    %23 = arith.divf %21, %22 : vector<8x64xf32>
    %24 = vector.extract_strided_slice %13 {offsets = [0, 64], sizes = [8, 64], strides = [1, 1]} : vector<8x192xf32> to vector<8x64xf32>
    %25 = vector.extract_strided_slice %15 {offsets = [0, 64], sizes = [8, 64], strides = [1, 1]} : vector<8x192xf32> to vector<8x64xf32>
    %26 = arith.addf %24, %25 : vector<8x64xf32>
    %27 = arith.negf %26 : vector<8x64xf32>
    %28 = math.exp %27 : vector<8x64xf32>
    %cst_18 = arith.constant 1.000000e+00 : f32
    %29 = vector.broadcast %cst_18 : f32 to vector<8x64xf32>
    %30 = arith.addf %29, %28 : vector<8x64xf32>
    %31 = arith.divf %29, %30 : vector<8x64xf32>
    %32 = vector.extract_strided_slice %13 {offsets = [0, 128], sizes = [8, 64], strides = [1, 1]} : vector<8x192xf32> to vector<8x64xf32>
    %33 = vector.extract_strided_slice %15 {offsets = [0, 128], sizes = [8, 64], strides = [1, 1]} : vector<8x192xf32> to vector<8x64xf32>
    %34 = vector.broadcast %6 : vector<1x64xf32> to vector<8x64xf32>
    %35 = arith.addf %33, %34 : vector<8x64xf32>
    %36 = arith.mulf %23, %35 : vector<8x64xf32>
    %37 = arith.addf %32, %36 : vector<8x64xf32>
    %38 = math.tanh %37 : vector<8x64xf32>
    %cst_19 = arith.constant 1.000000e+00 : f32
    %39 = vector.broadcast %cst_19 : f32 to vector<8x64xf32>
    %40 = arith.subf %39, %31 : vector<8x64xf32>
    %41 = arith.mulf %40, %38 : vector<8x64xf32>
    %42 = arith.mulf %31, %7 : vector<8x64xf32>
    %43 = arith.addf %41, %42 : vector<8x64xf32>
    %44 = vector.shape_cast %43 : vector<8x64xf32> to vector<8x1x64xf32>
    %45 = vector.broadcast %44 : vector<8x1x64xf32> to vector<8x8x64xf32>
    %46 = arith.mulf %3, %45 : vector<8x8x64xf32>
    %cst_20 = arith.constant dense<0.000000e+00> : vector<8x8xf32>
    %47 = vector.multi_reduction <add>, %46, %cst_20 [2] : vector<8x8x64xf32> to vector<8x8xf32>
    %cst_21 = arith.constant dense<0xFF800000> : vector<8xf32>
    %48 = vector.multi_reduction <maximumf>, %47, %cst_21 [1] : vector<8x8xf32> to vector<8xf32>
    %49 = vector.shape_cast %48 : vector<8xf32> to vector<8x1xf32>
    %50 = vector.broadcast %49 : vector<8x1xf32> to vector<8x8xf32>
    %51 = arith.subf %47, %50 : vector<8x8xf32>
    %52 = math.exp %51 : vector<8x8xf32>
    %cst_22 = arith.constant dense<0.000000e+00> : vector<8xf32>
    %53 = vector.multi_reduction <add>, %52, %cst_22 [1] : vector<8x8xf32> to vector<8xf32>
    %54 = vector.shape_cast %53 : vector<8xf32> to vector<8x1xf32>
    %55 = vector.broadcast %54 : vector<8x1xf32> to vector<8x8xf32>
    %56 = arith.divf %52, %55 : vector<8x8xf32>
    %57 = vector.shape_cast %56 : vector<8x8xf32> to vector<8x8x1xf32>
    %58 = vector.broadcast %57 : vector<8x8x1xf32> to vector<8x8x64xf32>
    %59 = arith.mulf %58, %3 : vector<8x8x64xf32>
    %cst_23 = arith.constant dense<0.000000e+00> : vector<8x64xf32>
    %60 = vector.multi_reduction <add>, %59, %cst_23 [1] : vector<8x8x64xf32> to vector<8x64xf32>
    %c0_24 = arith.constant 0 : index
    %c0_25 = arith.constant 0 : index
    %61 = vector.load %arg9[%c0_24, %c0_25] : memref<8x64xf32, #tpu.memory_space<vmem>>, vector<8x64xf32>
    tpu.vector_store %arg9[%c0_24, %c0_25], %43 {strides = array<i32>} : memref<8x64xf32, #tpu.memory_space<vmem>>, vector<8x64xf32>,
    %c0_26 = arith.constant 0 : index
    %c0_27 = arith.constant 0 : index
    %62 = vector.load %arg10[%c0_26, %c0_27] : memref<8x64xf32, #tpu.memory_space<vmem>>, vector<8x64xf32>
    tpu.vector_store %arg10[%c0_26, %c0_27], %60 {strides = array<i32>} : memref<8x64xf32, #tpu.memory_space<vmem>>, vector<8x64xf32>,
    %c0_28 = arith.constant 0 : index
    %c0_29 = arith.constant 0 : index
    %c0_30 = arith.constant 0 : index
    %63 = vector.load %arg8[%c0_28, %c0_29, %c0_30] : memref<8x8x64xf32, #tpu.memory_space<vmem>>, vector<1x8x64xf32>
    %64 = vector.shape_cast %63 : vector<1x8x64xf32> to vector<8x64xf32>
    %65 = vector.shape_cast %43 : vector<8x64xf32> to vector<1x8x64xf32>
    tpu.vector_store %arg8[%c0_28, %c0_29, %c0_30], %65 {strides = array<i32>} : memref<8x8x64xf32, #tpu.memory_space<vmem>>, vector<1x8x64xf32>,
    %c0_31 = arith.constant 0 : index
    %c0_32 = arith.constant 0 : index
    %c0_33 = arith.constant 0 : index
    %66 = vector.load %arg7[%c0_31, %c0_32, %c0_33] : memref<8x8x64xf32, #tpu.memory_space<vmem>>, vector<1x8x64xf32>
    %67 = vector.shape_cast %66 : vector<1x8x64xf32> to vector<8x64xf32>
    %68 = vector.shape_cast %60 : vector<8x64xf32> to vector<1x8x64xf32>
    tpu.vector_store %arg7[%c0_31, %c0_32, %c0_33], %68 {strides = array<i32>} : memref<8x8x64xf32, #tpu.memory_space<vmem>>, vector<1x8x64xf32>,
    %c0_34 = arith.constant 0 : index
    %c0_35 = arith.constant 0 : index
    %69 = vector.load %arg9[%c0_34, %c0_35] : memref<8x64xf32, #tpu.memory_space<vmem>>, vector<8x64xf32>
    %c0_36 = arith.constant 0 : index
    %c0_37 = arith.constant 0 : index
    %70 = vector.load %arg10[%c0_36, %c0_37] : memref<8x64xf32, #tpu.memory_space<vmem>>, vector<8x64xf32>
    %c1 = arith.constant 1 : index
    %c0_38 = arith.constant 0 : index
    %c0_39 = arith.constant 0 : index
    %71 = vector.load %arg1[%c1, %c0_38, %c0_39] : memref<8x8x192xf32, #tpu.memory_space<vmem>>, vector<1x8x192xf32>
    %72 = vector.shape_cast %71 : vector<1x8x192xf32> to vector<8x192xf32>
    %73 = arith.truncf %70 : vector<8x64xf32> to vector<8x64xbf16>
    %cst_40 = arith.constant dense<0.000000e+00> : vector<8x192xf32>
    %74 = tpu.matmul %73, %4, %cst_40 {dimension_numbers = #tpu.dot_dimension_numbers<[1], [0], [0], [1], [0, 0, 1, 1], [], []>} : vector<8x64xbf16>, vector<64x192xbf16>, vector<8x192xf32> -> vector<8x192xf32>
    %75 = arith.addf %72, %74 : vector<8x192xf32>
    %76 = arith.truncf %69 : vector<8x64xf32> to vector<8x64xbf16>
    %cst_41 = arith.constant dense<0.000000e+00> : vector<8x192xf32>
    %77 = tpu.matmul %76, %5, %cst_41 {dimension_numbers = #tpu.dot_dimension_numbers<[1], [0], [0], [1], [0, 0, 1, 1], [], []>} : vector<8x64xbf16>, vector<64x192xbf16>, vector<8x192xf32> -> vector<8x192xf32>
    %78 = vector.extract_strided_slice %75 {offsets = [0, 0], sizes = [8, 64], strides = [1, 1]} : vector<8x192xf32> to vector<8x64xf32>
    %79 = vector.extract_strided_slice %77 {offsets = [0, 0], sizes = [8, 64], strides = [1, 1]} : vector<8x192xf32> to vector<8x64xf32>
    %80 = arith.addf %78, %79 : vector<8x64xf32>
    %81 = arith.negf %80 : vector<8x64xf32>
    %82 = math.exp %81 : vector<8x64xf32>
    %cst_42 = arith.constant 1.000000e+00 : f32
    %83 = vector.broadcast %cst_42 : f32 to vector<8x64xf32>
    %84 = arith.addf %83, %82 : vector<8x64xf32>
    %85 = arith.divf %83, %84 : vector<8x64xf32>
    %86 = vector.extract_strided_slice %75 {offsets = [0, 64], sizes = [8, 64], strides = [1, 1]} : vector<8x192xf32> to vector<8x64xf32>
    %87 = vector.extract_strided_slice %77 {offsets = [0, 64], sizes = [8, 64], strides = [1, 1]} : vector<8x192xf32> to vector<8x64xf32>
    %88 = arith.addf %86, %87 : vector<8x64xf32>
    %89 = arith.negf %88 : vector<8x64xf32>
    %90 = math.exp %89 : vector<8x64xf32>
    %cst_43 = arith.constant 1.000000e+00 : f32
    %91 = vector.broadcast %cst_43 : f32 to vector<8x64xf32>
    %92 = arith.addf %91, %90 : vector<8x64xf32>
    %93 = arith.divf %91, %92 : vector<8x64xf32>
    %94 = vector.extract_strided_slice %75 {offsets = [0, 128], sizes = [8, 64], strides = [1, 1]} : vector<8x192xf32> to vector<8x64xf32>
    %95 = vector.extract_strided_slice %77 {offsets = [0, 128], sizes = [8, 64], strides = [1, 1]} : vector<8x192xf32> to vector<8x64xf32>
    %96 = vector.broadcast %6 : vector<1x64xf32> to vector<8x64xf32>
    %97 = arith.addf %95, %96 : vector<8x64xf32>
    %98 = arith.mulf %85, %97 : vector<8x64xf32>
    %99 = arith.addf %94, %98 : vector<8x64xf32>
    %100 = math.tanh %99 : vector<8x64xf32>
    %cst_44 = arith.constant 1.000000e+00 : f32
    %101 = vector.broadcast %cst_44 : f32 to vector<8x64xf32>
    %102 = arith.subf %101, %93 : vector<8x64xf32>
    %103 = arith.mulf %102, %100 : vector<8x64xf32>
    %104 = arith.mulf %93, %69 : vector<8x64xf32>
    %105 = arith.addf %103, %104 : vector<8x64xf32>
    %106 = vector.shape_cast %105 : vector<8x64xf32> to vector<8x1x64xf32>
    %107 = vector.broadcast %106 : vector<8x1x64xf32> to vector<8x8x64xf32>
    %108 = arith.mulf %3, %107 : vector<8x8x64xf32>
    %cst_45 = arith.constant dense<0.000000e+00> : vector<8x8xf32>
    %109 = vector.multi_reduction <add>, %108, %cst_45 [2] : vector<8x8x64xf32> to vector<8x8xf32>
    %cst_46 = arith.constant dense<0xFF800000> : vector<8xf32>
    %110 = vector.multi_reduction <maximumf>, %109, %cst_46 [1] : vector<8x8xf32> to vector<8xf32>
    %111 = vector.shape_cast %110 : vector<8xf32> to vector<8x1xf32>
    %112 = vector.broadcast %111 : vector<8x1xf32> to vector<8x8xf32>
    %113 = arith.subf %109, %112 : vector<8x8xf32>
    %114 = math.exp %113 : vector<8x8xf32>
    %cst_47 = arith.constant dense<0.000000e+00> : vector<8xf32>
    %115 = vector.multi_reduction <add>, %114, %cst_47 [1] : vector<8x8xf32> to vector<8xf32>
    %116 = vector.shape_cast %115 : vector<8xf32> to vector<8x1xf32>
    %117 = vector.broadcast %116 : vector<8x1xf32> to vector<8x8xf32>
    %118 = arith.divf %114, %117 : vector<8x8xf32>
    %119 = vector.shape_cast %118 : vector<8x8xf32> to vector<8x8x1xf32>
    %120 = vector.broadcast %119 : vector<8x8x1xf32> to vector<8x8x64xf32>
    %121 = arith.mulf %120, %3 : vector<8x8x64xf32>
    %cst_48 = arith.constant dense<0.000000e+00> : vector<8x64xf32>
    %122 = vector.multi_reduction <add>, %121, %cst_48 [1] : vector<8x8x64xf32> to vector<8x64xf32>
    %c0_49 = arith.constant 0 : index
    %c0_50 = arith.constant 0 : index
    %123 = vector.load %arg9[%c0_49, %c0_50] : memref<8x64xf32, #tpu.memory_space<vmem>>, vector<8x64xf32>
    tpu.vector_store %arg9[%c0_49, %c0_50], %105 {strides = array<i32>} : memref<8x64xf32, #tpu.memory_space<vmem>>, vector<8x64xf32>,
    %c0_51 = arith.constant 0 : index
    %c0_52 = arith.constant 0 : index
    %124 = vector.load %arg10[%c0_51, %c0_52] : memref<8x64xf32, #tpu.memory_space<vmem>>, vector<8x64xf32>
    tpu.vector_store %arg10[%c0_51, %c0_52], %122 {strides = array<i32>} : memref<8x64xf32, #tpu.memory_space<vmem>>, vector<8x64xf32>,
    %c1_53 = arith.constant 1 : index
    %c0_54 = arith.constant 0 : index
    %c0_55 = arith.constant 0 : index
    %125 = vector.load %arg8[%c1_53, %c0_54, %c0_55] : memref<8x8x64xf32, #tpu.memory_space<vmem>>, vector<1x8x64xf32>
    %126 = vector.shape_cast %125 : vector<1x8x64xf32> to vector<8x64xf32>
    %127 = vector.shape_cast %105 : vector<8x64xf32> to vector<1x8x64xf32>
    tpu.vector_store %arg8[%c1_53, %c0_54, %c0_55], %127 {strides = array<i32>} : memref<8x8x64xf32, #tpu.memory_space<vmem>>, vector<1x8x64xf32>,
    %c1_56 = arith.constant 1 : index
    %c0_57 = arith.constant 0 : index
    %c0_58 = arith.constant 0 : index
    %128 = vector.load %arg7[%c1_56, %c0_57, %c0_58] : memref<8x8x64xf32, #tpu.memory_space<vmem>>, vector<1x8x64xf32>
    %129 = vector.shape_cast %128 : vector<1x8x64xf32> to vector<8x64xf32>
    %130 = vector.shape_cast %122 : vector<8x64xf32> to vector<1x8x64xf32>
    tpu.vector_store %arg7[%c1_56, %c0_57, %c0_58], %130 {strides = array<i32>} : memref<8x8x64xf32, #tpu.memory_space<vmem>>, vector<1x8x64xf32>,
    %c0_59 = arith.constant 0 : index
    %c0_60 = arith.constant 0 : index
    %131 = vector.load %arg9[%c0_59, %c0_60] : memref<8x64xf32, #tpu.memory_space<vmem>>, vector<8x64xf32>
    %c0_61 = arith.constant 0 : index
    %c0_62 = arith.constant 0 : index
    %132 = vector.load %arg10[%c0_61, %c0_62] : memref<8x64xf32, #tpu.memory_space<vmem>>, vector<8x64xf32>
    %c2 = arith.constant 2 : index
    %c0_63 = arith.constant 0 : index
    %c0_64 = arith.constant 0 : index
    %133 = vector.load %arg1[%c2, %c0_63, %c0_64] : memref<8x8x192xf32, #tpu.memory_space<vmem>>, vector<1x8x192xf32>
    %134 = vector.shape_cast %133 : vector<1x8x192xf32> to vector<8x192xf32>
    %135 = arith.truncf %132 : vector<8x64xf32> to vector<8x64xbf16>
    %cst_65 = arith.constant dense<0.000000e+00> : vector<8x192xf32>
    %136 = tpu.matmul %135, %4, %cst_65 {dimension_numbers = #tpu.dot_dimension_numbers<[1], [0], [0], [1], [0, 0, 1, 1], [], []>} : vector<8x64xbf16>, vector<64x192xbf16>, vector<8x192xf32> -> vector<8x192xf32>
    %137 = arith.addf %134, %136 : vector<8x192xf32>
    %138 = arith.truncf %131 : vector<8x64xf32> to vector<8x64xbf16>
    %cst_66 = arith.constant dense<0.000000e+00> : vector<8x192xf32>
    %139 = tpu.matmul %138, %5, %cst_66 {dimension_numbers = #tpu.dot_dimension_numbers<[1], [0], [0], [1], [0, 0, 1, 1], [], []>} : vector<8x64xbf16>, vector<64x192xbf16>, vector<8x192xf32> -> vector<8x192xf32>
    %140 = vector.extract_strided_slice %137 {offsets = [0, 0], sizes = [8, 64], strides = [1, 1]} : vector<8x192xf32> to vector<8x64xf32>
    %141 = vector.extract_strided_slice %139 {offsets = [0, 0], sizes = [8, 64], strides = [1, 1]} : vector<8x192xf32> to vector<8x64xf32>
    %142 = arith.addf %140, %141 : vector<8x64xf32>
    %143 = arith.negf %142 : vector<8x64xf32>
    %144 = math.exp %143 : vector<8x64xf32>
    %cst_67 = arith.constant 1.000000e+00 : f32
    %145 = vector.broadcast %cst_67 : f32 to vector<8x64xf32>
    %146 = arith.addf %145, %144 : vector<8x64xf32>
    %147 = arith.divf %145, %146 : vector<8x64xf32>
    %148 = vector.extract_strided_slice %137 {offsets = [0, 64], sizes = [8, 64], strides = [1, 1]} : vector<8x192xf32> to vector<8x64xf32>
    %149 = vector.extract_strided_slice %139 {offsets = [0, 64], sizes = [8, 64], strides = [1, 1]} : vector<8x192xf32> to vector<8x64xf32>
    %150 = arith.addf %148, %149 : vector<8x64xf32>
    %151 = arith.negf %150 : vector<8x64xf32>
    %152 = math.exp %151 : vector<8x64xf32>
    %cst_68 = arith.constant 1.000000e+00 : f32
    %153 = vector.broadcast %cst_68 : f32 to vector<8x64xf32>
    %154 = arith.addf %153, %152 : vector<8x64xf32>
    %155 = arith.divf %153, %154 : vector<8x64xf32>
    %156 = vector.extract_strided_slice %137 {offsets = [0, 128], sizes = [8, 64], strides = [1, 1]} : vector<8x192xf32> to vector<8x64xf32>
    %157 = vector.extract_strided_slice %139 {offsets = [0, 128], sizes = [8, 64], strides = [1, 1]} : vector<8x192xf32> to vector<8x64xf32>
    %158 = vector.broadcast %6 : vector<1x64xf32> to vector<8x64xf32>
    %159 = arith.addf %157, %158 : vector<8x64xf32>
    %160 = arith.mulf %147, %159 : vector<8x64xf32>
    %161 = arith.addf %156, %160 : vector<8x64xf32>
    %162 = math.tanh %161 : vector<8x64xf32>
    %cst_69 = arith.constant 1.000000e+00 : f32
    %163 = vector.broadcast %cst_69 : f32 to vector<8x64xf32>
    %164 = arith.subf %163, %155 : vector<8x64xf32>
    %165 = arith.mulf %164, %162 : vector<8x64xf32>
    %166 = arith.mulf %155, %131 : vector<8x64xf32>
    %167 = arith.addf %165, %166 : vector<8x64xf32>
    %168 = vector.shape_cast %167 : vector<8x64xf32> to vector<8x1x64xf32>
    %169 = vector.broadcast %168 : vector<8x1x64xf32> to vector<8x8x64xf32>
    %170 = arith.mulf %3, %169 : vector<8x8x64xf32>
    %cst_70 = arith.constant dense<0.000000e+00> : vector<8x8xf32>
    %171 = vector.multi_reduction <add>, %170, %cst_70 [2] : vector<8x8x64xf32> to vector<8x8xf32>
    %cst_71 = arith.constant dense<0xFF800000> : vector<8xf32>
    %172 = vector.multi_reduction <maximumf>, %171, %cst_71 [1] : vector<8x8xf32> to vector<8xf32>
    %173 = vector.shape_cast %172 : vector<8xf32> to vector<8x1xf32>
    %174 = vector.broadcast %173 : vector<8x1xf32> to vector<8x8xf32>
    %175 = arith.subf %171, %174 : vector<8x8xf32>
    %176 = math.exp %175 : vector<8x8xf32>
    %cst_72 = arith.constant dense<0.000000e+00> : vector<8xf32>
    %177 = vector.multi_reduction <add>, %176, %cst_72 [1] : vector<8x8xf32> to vector<8xf32>
    %178 = vector.shape_cast %177 : vector<8xf32> to vector<8x1xf32>
    %179 = vector.broadcast %178 : vector<8x1xf32> to vector<8x8xf32>
    %180 = arith.divf %176, %179 : vector<8x8xf32>
    %181 = vector.shape_cast %180 : vector<8x8xf32> to vector<8x8x1xf32>
    %182 = vector.broadcast %181 : vector<8x8x1xf32> to vector<8x8x64xf32>
    %183 = arith.mulf %182, %3 : vector<8x8x64xf32>
    %cst_73 = arith.constant dense<0.000000e+00> : vector<8x64xf32>
    %184 = vector.multi_reduction <add>, %183, %cst_73 [1] : vector<8x8x64xf32> to vector<8x64xf32>
    %c0_74 = arith.constant 0 : index
    %c0_75 = arith.constant 0 : index
    %185 = vector.load %arg9[%c0_74, %c0_75] : memref<8x64xf32, #tpu.memory_space<vmem>>, vector<8x64xf32>
    tpu.vector_store %arg9[%c0_74, %c0_75], %167 {strides = array<i32>} : memref<8x64xf32, #tpu.memory_space<vmem>>, vector<8x64xf32>,
    %c0_76 = arith.constant 0 : index
    %c0_77 = arith.constant 0 : index
    %186 = vector.load %arg10[%c0_76, %c0_77] : memref<8x64xf32, #tpu.memory_space<vmem>>, vector<8x64xf32>
    tpu.vector_store %arg10[%c0_76, %c0_77], %184 {strides = array<i32>} : memref<8x64xf32, #tpu.memory_space<vmem>>, vector<8x64xf32>,
    %c2_78 = arith.constant 2 : index
    %c0_79 = arith.constant 0 : index
    %c0_80 = arith.constant 0 : index
    %187 = vector.load %arg8[%c2_78, %c0_79, %c0_80] : memref<8x8x64xf32, #tpu.memory_space<vmem>>, vector<1x8x64xf32>
    %188 = vector.shape_cast %187 : vector<1x8x64xf32> to vector<8x64xf32>
    %189 = vector.shape_cast %167 : vector<8x64xf32> to vector<1x8x64xf32>
    tpu.vector_store %arg8[%c2_78, %c0_79, %c0_80], %189 {strides = array<i32>} : memref<8x8x64xf32, #tpu.memory_space<vmem>>, vector<1x8x64xf32>,
    %c2_81 = arith.constant 2 : index
    %c0_82 = arith.constant 0 : index
    %c0_83 = arith.constant 0 : index
    %190 = vector.load %arg7[%c2_81, %c0_82, %c0_83] : memref<8x8x64xf32, #tpu.memory_space<vmem>>, vector<1x8x64xf32>
    %191 = vector.shape_cast %190 : vector<1x8x64xf32> to vector<8x64xf32>
    %192 = vector.shape_cast %184 : vector<8x64xf32> to vector<1x8x64xf32>
    tpu.vector_store %arg7[%c2_81, %c0_82, %c0_83], %192 {strides = array<i32>} : memref<8x8x64xf32, #tpu.memory_space<vmem>>, vector<1x8x64xf32>,
    %c0_84 = arith.constant 0 : index
    %c0_85 = arith.constant 0 : index
    %193 = vector.load %arg9[%c0_84, %c0_85] : memref<8x64xf32, #tpu.memory_space<vmem>>, vector<8x64xf32>
    %c0_86 = arith.constant 0 : index
    %c0_87 = arith.constant 0 : index
    %194 = vector.load %arg10[%c0_86, %c0_87] : memref<8x64xf32, #tpu.memory_space<vmem>>, vector<8x64xf32>
    %c3 = arith.constant 3 : index
    %c0_88 = arith.constant 0 : index
    %c0_89 = arith.constant 0 : index
    %195 = vector.load %arg1[%c3, %c0_88, %c0_89] : memref<8x8x192xf32, #tpu.memory_space<vmem>>, vector<1x8x192xf32>
    %196 = vector.shape_cast %195 : vector<1x8x192xf32> to vector<8x192xf32>
    %197 = arith.truncf %194 : vector<8x64xf32> to vector<8x64xbf16>
    %cst_90 = arith.constant dense<0.000000e+00> : vector<8x192xf32>
    %198 = tpu.matmul %197, %4, %cst_90 {dimension_numbers = #tpu.dot_dimension_numbers<[1], [0], [0], [1], [0, 0, 1, 1], [], []>} : vector<8x64xbf16>, vector<64x192xbf16>, vector<8x192xf32> -> vector<8x192xf32>
    %199 = arith.addf %196, %198 : vector<8x192xf32>
    %200 = arith.truncf %193 : vector<8x64xf32> to vector<8x64xbf16>
    %cst_91 = arith.constant dense<0.000000e+00> : vector<8x192xf32>
    %201 = tpu.matmul %200, %5, %cst_91 {dimension_numbers = #tpu.dot_dimension_numbers<[1], [0], [0], [1], [0, 0, 1, 1], [], []>} : vector<8x64xbf16>, vector<64x192xbf16>, vector<8x192xf32> -> vector<8x192xf32>
    %202 = vector.extract_strided_slice %199 {offsets = [0, 0], sizes = [8, 64], strides = [1, 1]} : vector<8x192xf32> to vector<8x64xf32>
    %203 = vector.extract_strided_slice %201 {offsets = [0, 0], sizes = [8, 64], strides = [1, 1]} : vector<8x192xf32> to vector<8x64xf32>
    %204 = arith.addf %202, %203 : vector<8x64xf32>
    %205 = arith.negf %204 : vector<8x64xf32>
    %206 = math.exp %205 : vector<8x64xf32>
    %cst_92 = arith.constant 1.000000e+00 : f32
    %207 = vector.broadcast %cst_92 : f32 to vector<8x64xf32>
    %208 = arith.addf %207, %206 : vector<8x64xf32>
    %209 = arith.divf %207, %208 : vector<8x64xf32>
    %210 = vector.extract_strided_slice %199 {offsets = [0, 64], sizes = [8, 64], strides = [1, 1]} : vector<8x192xf32> to vector<8x64xf32>
    %211 = vector.extract_strided_slice %201 {offsets = [0, 64], sizes = [8, 64], strides = [1, 1]} : vector<8x192xf32> to vector<8x64xf32>
    %212 = arith.addf %210, %211 : vector<8x64xf32>
    %213 = arith.negf %212 : vector<8x64xf32>
    %214 = math.exp %213 : vector<8x64xf32>
    %cst_93 = arith.constant 1.000000e+00 : f32
    %215 = vector.broadcast %cst_93 : f32 to vector<8x64xf32>
    %216 = arith.addf %215, %214 : vector<8x64xf32>
    %217 = arith.divf %215, %216 : vector<8x64xf32>
    %218 = vector.extract_strided_slice %199 {offsets = [0, 128], sizes = [8, 64], strides = [1, 1]} : vector<8x192xf32> to vector<8x64xf32>
    %219 = vector.extract_strided_slice %201 {offsets = [0, 128], sizes = [8, 64], strides = [1, 1]} : vector<8x192xf32> to vector<8x64xf32>
    %220 = vector.broadcast %6 : vector<1x64xf32> to vector<8x64xf32>
    %221 = arith.addf %219, %220 : vector<8x64xf32>
    %222 = arith.mulf %209, %221 : vector<8x64xf32>
    %223 = arith.addf %218, %222 : vector<8x64xf32>
    %224 = math.tanh %223 : vector<8x64xf32>
    %cst_94 = arith.constant 1.000000e+00 : f32
    %225 = vector.broadcast %cst_94 : f32 to vector<8x64xf32>
    %226 = arith.subf %225, %217 : vector<8x64xf32>
    %227 = arith.mulf %226, %224 : vector<8x64xf32>
    %228 = arith.mulf %217, %193 : vector<8x64xf32>
    %229 = arith.addf %227, %228 : vector<8x64xf32>
    %230 = vector.shape_cast %229 : vector<8x64xf32> to vector<8x1x64xf32>
    %231 = vector.broadcast %230 : vector<8x1x64xf32> to vector<8x8x64xf32>
    %232 = arith.mulf %3, %231 : vector<8x8x64xf32>
    %cst_95 = arith.constant dense<0.000000e+00> : vector<8x8xf32>
    %233 = vector.multi_reduction <add>, %232, %cst_95 [2] : vector<8x8x64xf32> to vector<8x8xf32>
    %cst_96 = arith.constant dense<0xFF800000> : vector<8xf32>
    %234 = vector.multi_reduction <maximumf>, %233, %cst_96 [1] : vector<8x8xf32> to vector<8xf32>
    %235 = vector.shape_cast %234 : vector<8xf32> to vector<8x1xf32>
    %236 = vector.broadcast %235 : vector<8x1xf32> to vector<8x8xf32>
    %237 = arith.subf %233, %236 : vector<8x8xf32>
    %238 = math.exp %237 : vector<8x8xf32>
    %cst_97 = arith.constant dense<0.000000e+00> : vector<8xf32>
    %239 = vector.multi_reduction <add>, %238, %cst_97 [1] : vector<8x8xf32> to vector<8xf32>
    %240 = vector.shape_cast %239 : vector<8xf32> to vector<8x1xf32>
    %241 = vector.broadcast %240 : vector<8x1xf32> to vector<8x8xf32>
    %242 = arith.divf %238, %241 : vector<8x8xf32>
    %243 = vector.shape_cast %242 : vector<8x8xf32> to vector<8x8x1xf32>
    %244 = vector.broadcast %243 : vector<8x8x1xf32> to vector<8x8x64xf32>
    %245 = arith.mulf %244, %3 : vector<8x8x64xf32>
    %cst_98 = arith.constant dense<0.000000e+00> : vector<8x64xf32>
    %246 = vector.multi_reduction <add>, %245, %cst_98 [1] : vector<8x8x64xf32> to vector<8x64xf32>
    %c0_99 = arith.constant 0 : index
    %c0_100 = arith.constant 0 : index
    %247 = vector.load %arg9[%c0_99, %c0_100] : memref<8x64xf32, #tpu.memory_space<vmem>>, vector<8x64xf32>
    tpu.vector_store %arg9[%c0_99, %c0_100], %229 {strides = array<i32>} : memref<8x64xf32, #tpu.memory_space<vmem>>, vector<8x64xf32>,
    %c0_101 = arith.constant 0 : index
    %c0_102 = arith.constant 0 : index
    %248 = vector.load %arg10[%c0_101, %c0_102] : memref<8x64xf32, #tpu.memory_space<vmem>>, vector<8x64xf32>
    tpu.vector_store %arg10[%c0_101, %c0_102], %246 {strides = array<i32>} : memref<8x64xf32, #tpu.memory_space<vmem>>, vector<8x64xf32>,
    %c3_103 = arith.constant 3 : index
    %c0_104 = arith.constant 0 : index
    %c0_105 = arith.constant 0 : index
    %249 = vector.load %arg8[%c3_103, %c0_104, %c0_105] : memref<8x8x64xf32, #tpu.memory_space<vmem>>, vector<1x8x64xf32>
    %250 = vector.shape_cast %249 : vector<1x8x64xf32> to vector<8x64xf32>
    %251 = vector.shape_cast %229 : vector<8x64xf32> to vector<1x8x64xf32>
    tpu.vector_store %arg8[%c3_103, %c0_104, %c0_105], %251 {strides = array<i32>} : memref<8x8x64xf32, #tpu.memory_space<vmem>>, vector<1x8x64xf32>,
    %c3_106 = arith.constant 3 : index
    %c0_107 = arith.constant 0 : index
    %c0_108 = arith.constant 0 : index
    %252 = vector.load %arg7[%c3_106, %c0_107, %c0_108] : memref<8x8x64xf32, #tpu.memory_space<vmem>>, vector<1x8x64xf32>
    %253 = vector.shape_cast %252 : vector<1x8x64xf32> to vector<8x64xf32>
    %254 = vector.shape_cast %246 : vector<8x64xf32> to vector<1x8x64xf32>
    tpu.vector_store %arg7[%c3_106, %c0_107, %c0_108], %254 {strides = array<i32>} : memref<8x8x64xf32, #tpu.memory_space<vmem>>, vector<1x8x64xf32>,
    %c0_109 = arith.constant 0 : index
    %c0_110 = arith.constant 0 : index
    %255 = vector.load %arg9[%c0_109, %c0_110] : memref<8x64xf32, #tpu.memory_space<vmem>>, vector<8x64xf32>
    %c0_111 = arith.constant 0 : index
    %c0_112 = arith.constant 0 : index
    %256 = vector.load %arg10[%c0_111, %c0_112] : memref<8x64xf32, #tpu.memory_space<vmem>>, vector<8x64xf32>
    %c4 = arith.constant 4 : index
    %c0_113 = arith.constant 0 : index
    %c0_114 = arith.constant 0 : index
    %257 = vector.load %arg1[%c4, %c0_113, %c0_114] : memref<8x8x192xf32, #tpu.memory_space<vmem>>, vector<1x8x192xf32>
    %258 = vector.shape_cast %257 : vector<1x8x192xf32> to vector<8x192xf32>
    %259 = arith.truncf %256 : vector<8x64xf32> to vector<8x64xbf16>
    %cst_115 = arith.constant dense<0.000000e+00> : vector<8x192xf32>
    %260 = tpu.matmul %259, %4, %cst_115 {dimension_numbers = #tpu.dot_dimension_numbers<[1], [0], [0], [1], [0, 0, 1, 1], [], []>} : vector<8x64xbf16>, vector<64x192xbf16>, vector<8x192xf32> -> vector<8x192xf32>
    %261 = arith.addf %258, %260 : vector<8x192xf32>
    %262 = arith.truncf %255 : vector<8x64xf32> to vector<8x64xbf16>
    %cst_116 = arith.constant dense<0.000000e+00> : vector<8x192xf32>
    %263 = tpu.matmul %262, %5, %cst_116 {dimension_numbers = #tpu.dot_dimension_numbers<[1], [0], [0], [1], [0, 0, 1, 1], [], []>} : vector<8x64xbf16>, vector<64x192xbf16>, vector<8x192xf32> -> vector<8x192xf32>
    %264 = vector.extract_strided_slice %261 {offsets = [0, 0], sizes = [8, 64], strides = [1, 1]} : vector<8x192xf32> to vector<8x64xf32>
    %265 = vector.extract_strided_slice %263 {offsets = [0, 0], sizes = [8, 64], strides = [1, 1]} : vector<8x192xf32> to vector<8x64xf32>
    %266 = arith.addf %264, %265 : vector<8x64xf32>
    %267 = arith.negf %266 : vector<8x64xf32>
    %268 = math.exp %267 : vector<8x64xf32>
    %cst_117 = arith.constant 1.000000e+00 : f32
    %269 = vector.broadcast %cst_117 : f32 to vector<8x64xf32>
    %270 = arith.addf %269, %268 : vector<8x64xf32>
    %271 = arith.divf %269, %270 : vector<8x64xf32>
    %272 = vector.extract_strided_slice %261 {offsets = [0, 64], sizes = [8, 64], strides = [1, 1]} : vector<8x192xf32> to vector<8x64xf32>
    %273 = vector.extract_strided_slice %263 {offsets = [0, 64], sizes = [8, 64], strides = [1, 1]} : vector<8x192xf32> to vector<8x64xf32>
    %274 = arith.addf %272, %273 : vector<8x64xf32>
    %275 = arith.negf %274 : vector<8x64xf32>
    %276 = math.exp %275 : vector<8x64xf32>
    %cst_118 = arith.constant 1.000000e+00 : f32
    %277 = vector.broadcast %cst_118 : f32 to vector<8x64xf32>
    %278 = arith.addf %277, %276 : vector<8x64xf32>
    %279 = arith.divf %277, %278 : vector<8x64xf32>
    %280 = vector.extract_strided_slice %261 {offsets = [0, 128], sizes = [8, 64], strides = [1, 1]} : vector<8x192xf32> to vector<8x64xf32>
    %281 = vector.extract_strided_slice %263 {offsets = [0, 128], sizes = [8, 64], strides = [1, 1]} : vector<8x192xf32> to vector<8x64xf32>
    %282 = vector.broadcast %6 : vector<1x64xf32> to vector<8x64xf32>
    %283 = arith.addf %281, %282 : vector<8x64xf32>
    %284 = arith.mulf %271, %283 : vector<8x64xf32>
    %285 = arith.addf %280, %284 : vector<8x64xf32>
    %286 = math.tanh %285 : vector<8x64xf32>
    %cst_119 = arith.constant 1.000000e+00 : f32
    %287 = vector.broadcast %cst_119 : f32 to vector<8x64xf32>
    %288 = arith.subf %287, %279 : vector<8x64xf32>
    %289 = arith.mulf %288, %286 : vector<8x64xf32>
    %290 = arith.mulf %279, %255 : vector<8x64xf32>
    %291 = arith.addf %289, %290 : vector<8x64xf32>
    %292 = vector.shape_cast %291 : vector<8x64xf32> to vector<8x1x64xf32>
    %293 = vector.broadcast %292 : vector<8x1x64xf32> to vector<8x8x64xf32>
    %294 = arith.mulf %3, %293 : vector<8x8x64xf32>
    %cst_120 = arith.constant dense<0.000000e+00> : vector<8x8xf32>
    %295 = vector.multi_reduction <add>, %294, %cst_120 [2] : vector<8x8x64xf32> to vector<8x8xf32>
    %cst_121 = arith.constant dense<0xFF800000> : vector<8xf32>
    %296 = vector.multi_reduction <maximumf>, %295, %cst_121 [1] : vector<8x8xf32> to vector<8xf32>
    %297 = vector.shape_cast %296 : vector<8xf32> to vector<8x1xf32>
    %298 = vector.broadcast %297 : vector<8x1xf32> to vector<8x8xf32>
    %299 = arith.subf %295, %298 : vector<8x8xf32>
    %300 = math.exp %299 : vector<8x8xf32>
    %cst_122 = arith.constant dense<0.000000e+00> : vector<8xf32>
    %301 = vector.multi_reduction <add>, %300, %cst_122 [1] : vector<8x8xf32> to vector<8xf32>
    %302 = vector.shape_cast %301 : vector<8xf32> to vector<8x1xf32>
    %303 = vector.broadcast %302 : vector<8x1xf32> to vector<8x8xf32>
    %304 = arith.divf %300, %303 : vector<8x8xf32>
    %305 = vector.shape_cast %304 : vector<8x8xf32> to vector<8x8x1xf32>
    %306 = vector.broadcast %305 : vector<8x8x1xf32> to vector<8x8x64xf32>
    %307 = arith.mulf %306, %3 : vector<8x8x64xf32>
    %cst_123 = arith.constant dense<0.000000e+00> : vector<8x64xf32>
    %308 = vector.multi_reduction <add>, %307, %cst_123 [1] : vector<8x8x64xf32> to vector<8x64xf32>
    %c0_124 = arith.constant 0 : index
    %c0_125 = arith.constant 0 : index
    %309 = vector.load %arg9[%c0_124, %c0_125] : memref<8x64xf32, #tpu.memory_space<vmem>>, vector<8x64xf32>
    tpu.vector_store %arg9[%c0_124, %c0_125], %291 {strides = array<i32>} : memref<8x64xf32, #tpu.memory_space<vmem>>, vector<8x64xf32>,
    %c0_126 = arith.constant 0 : index
    %c0_127 = arith.constant 0 : index
    %310 = vector.load %arg10[%c0_126, %c0_127] : memref<8x64xf32, #tpu.memory_space<vmem>>, vector<8x64xf32>
    tpu.vector_store %arg10[%c0_126, %c0_127], %308 {strides = array<i32>} : memref<8x64xf32, #tpu.memory_space<vmem>>, vector<8x64xf32>,
    %c4_128 = arith.constant 4 : index
    %c0_129 = arith.constant 0 : index
    %c0_130 = arith.constant 0 : index
    %311 = vector.load %arg8[%c4_128, %c0_129, %c0_130] : memref<8x8x64xf32, #tpu.memory_space<vmem>>, vector<1x8x64xf32>
    %312 = vector.shape_cast %311 : vector<1x8x64xf32> to vector<8x64xf32>
    %313 = vector.shape_cast %291 : vector<8x64xf32> to vector<1x8x64xf32>
    tpu.vector_store %arg8[%c4_128, %c0_129, %c0_130], %313 {strides = array<i32>} : memref<8x8x64xf32, #tpu.memory_space<vmem>>, vector<1x8x64xf32>,
    %c4_131 = arith.constant 4 : index
    %c0_132 = arith.constant 0 : index
    %c0_133 = arith.constant 0 : index
    %314 = vector.load %arg7[%c4_131, %c0_132, %c0_133] : memref<8x8x64xf32, #tpu.memory_space<vmem>>, vector<1x8x64xf32>
    %315 = vector.shape_cast %314 : vector<1x8x64xf32> to vector<8x64xf32>
    %316 = vector.shape_cast %308 : vector<8x64xf32> to vector<1x8x64xf32>
    tpu.vector_store %arg7[%c4_131, %c0_132, %c0_133], %316 {strides = array<i32>} : memref<8x8x64xf32, #tpu.memory_space<vmem>>, vector<1x8x64xf32>,
    %c0_134 = arith.constant 0 : index
    %c0_135 = arith.constant 0 : index
    %317 = vector.load %arg9[%c0_134, %c0_135] : memref<8x64xf32, #tpu.memory_space<vmem>>, vector<8x64xf32>
    %c0_136 = arith.constant 0 : index
    %c0_137 = arith.constant 0 : index
    %318 = vector.load %arg10[%c0_136, %c0_137] : memref<8x64xf32, #tpu.memory_space<vmem>>, vector<8x64xf32>
    %c5 = arith.constant 5 : index
    %c0_138 = arith.constant 0 : index
    %c0_139 = arith.constant 0 : index
    %319 = vector.load %arg1[%c5, %c0_138, %c0_139] : memref<8x8x192xf32, #tpu.memory_space<vmem>>, vector<1x8x192xf32>
    %320 = vector.shape_cast %319 : vector<1x8x192xf32> to vector<8x192xf32>
    %321 = arith.truncf %318 : vector<8x64xf32> to vector<8x64xbf16>
    %cst_140 = arith.constant dense<0.000000e+00> : vector<8x192xf32>
    %322 = tpu.matmul %321, %4, %cst_140 {dimension_numbers = #tpu.dot_dimension_numbers<[1], [0], [0], [1], [0, 0, 1, 1], [], []>} : vector<8x64xbf16>, vector<64x192xbf16>, vector<8x192xf32> -> vector<8x192xf32>
    %323 = arith.addf %320, %322 : vector<8x192xf32>
    %324 = arith.truncf %317 : vector<8x64xf32> to vector<8x64xbf16>
    %cst_141 = arith.constant dense<0.000000e+00> : vector<8x192xf32>
    %325 = tpu.matmul %324, %5, %cst_141 {dimension_numbers = #tpu.dot_dimension_numbers<[1], [0], [0], [1], [0, 0, 1, 1], [], []>} : vector<8x64xbf16>, vector<64x192xbf16>, vector<8x192xf32> -> vector<8x192xf32>
    %326 = vector.extract_strided_slice %323 {offsets = [0, 0], sizes = [8, 64], strides = [1, 1]} : vector<8x192xf32> to vector<8x64xf32>
    %327 = vector.extract_strided_slice %325 {offsets = [0, 0], sizes = [8, 64], strides = [1, 1]} : vector<8x192xf32> to vector<8x64xf32>
    %328 = arith.addf %326, %327 : vector<8x64xf32>
    %329 = arith.negf %328 : vector<8x64xf32>
    %330 = math.exp %329 : vector<8x64xf32>
    %cst_142 = arith.constant 1.000000e+00 : f32
    %331 = vector.broadcast %cst_142 : f32 to vector<8x64xf32>
    %332 = arith.addf %331, %330 : vector<8x64xf32>
    %333 = arith.divf %331, %332 : vector<8x64xf32>
    %334 = vector.extract_strided_slice %323 {offsets = [0, 64], sizes = [8, 64], strides = [1, 1]} : vector<8x192xf32> to vector<8x64xf32>
    %335 = vector.extract_strided_slice %325 {offsets = [0, 64], sizes = [8, 64], strides = [1, 1]} : vector<8x192xf32> to vector<8x64xf32>
    %336 = arith.addf %334, %335 : vector<8x64xf32>
    %337 = arith.negf %336 : vector<8x64xf32>
    %338 = math.exp %337 : vector<8x64xf32>
    %cst_143 = arith.constant 1.000000e+00 : f32
    %339 = vector.broadcast %cst_143 : f32 to vector<8x64xf32>
    %340 = arith.addf %339, %338 : vector<8x64xf32>
    %341 = arith.divf %339, %340 : vector<8x64xf32>
    %342 = vector.extract_strided_slice %323 {offsets = [0, 128], sizes = [8, 64], strides = [1, 1]} : vector<8x192xf32> to vector<8x64xf32>
    %343 = vector.extract_strided_slice %325 {offsets = [0, 128], sizes = [8, 64], strides = [1, 1]} : vector<8x192xf32> to vector<8x64xf32>
    %344 = vector.broadcast %6 : vector<1x64xf32> to vector<8x64xf32>
    %345 = arith.addf %343, %344 : vector<8x64xf32>
    %346 = arith.mulf %333, %345 : vector<8x64xf32>
    %347 = arith.addf %342, %346 : vector<8x64xf32>
    %348 = math.tanh %347 : vector<8x64xf32>
    %cst_144 = arith.constant 1.000000e+00 : f32
    %349 = vector.broadcast %cst_144 : f32 to vector<8x64xf32>
    %350 = arith.subf %349, %341 : vector<8x64xf32>
    %351 = arith.mulf %350, %348 : vector<8x64xf32>
    %352 = arith.mulf %341, %317 : vector<8x64xf32>
    %353 = arith.addf %351, %352 : vector<8x64xf32>
    %354 = vector.shape_cast %353 : vector<8x64xf32> to vector<8x1x64xf32>
    %355 = vector.broadcast %354 : vector<8x1x64xf32> to vector<8x8x64xf32>
    %356 = arith.mulf %3, %355 : vector<8x8x64xf32>
    %cst_145 = arith.constant dense<0.000000e+00> : vector<8x8xf32>
    %357 = vector.multi_reduction <add>, %356, %cst_145 [2] : vector<8x8x64xf32> to vector<8x8xf32>
    %cst_146 = arith.constant dense<0xFF800000> : vector<8xf32>
    %358 = vector.multi_reduction <maximumf>, %357, %cst_146 [1] : vector<8x8xf32> to vector<8xf32>
    %359 = vector.shape_cast %358 : vector<8xf32> to vector<8x1xf32>
    %360 = vector.broadcast %359 : vector<8x1xf32> to vector<8x8xf32>
    %361 = arith.subf %357, %360 : vector<8x8xf32>
    %362 = math.exp %361 : vector<8x8xf32>
    %cst_147 = arith.constant dense<0.000000e+00> : vector<8xf32>
    %363 = vector.multi_reduction <add>, %362, %cst_147 [1] : vector<8x8xf32> to vector<8xf32>
    %364 = vector.shape_cast %363 : vector<8xf32> to vector<8x1xf32>
    %365 = vector.broadcast %364 : vector<8x1xf32> to vector<8x8xf32>
    %366 = arith.divf %362, %365 : vector<8x8xf32>
    %367 = vector.shape_cast %366 : vector<8x8xf32> to vector<8x8x1xf32>
    %368 = vector.broadcast %367 : vector<8x8x1xf32> to vector<8x8x64xf32>
    %369 = arith.mulf %368, %3 : vector<8x8x64xf32>
    %cst_148 = arith.constant dense<0.000000e+00> : vector<8x64xf32>
    %370 = vector.multi_reduction <add>, %369, %cst_148 [1] : vector<8x8x64xf32> to vector<8x64xf32>
    %c0_149 = arith.constant 0 : index
    %c0_150 = arith.constant 0 : index
    %371 = vector.load %arg9[%c0_149, %c0_150] : memref<8x64xf32, #tpu.memory_space<vmem>>, vector<8x64xf32>
    tpu.vector_store %arg9[%c0_149, %c0_150], %353 {strides = array<i32>} : memref<8x64xf32, #tpu.memory_space<vmem>>, vector<8x64xf32>,
    %c0_151 = arith.constant 0 : index
    %c0_152 = arith.constant 0 : index
    %372 = vector.load %arg10[%c0_151, %c0_152] : memref<8x64xf32, #tpu.memory_space<vmem>>, vector<8x64xf32>
    tpu.vector_store %arg10[%c0_151, %c0_152], %370 {strides = array<i32>} : memref<8x64xf32, #tpu.memory_space<vmem>>, vector<8x64xf32>,
    %c5_153 = arith.constant 5 : index
    %c0_154 = arith.constant 0 : index
    %c0_155 = arith.constant 0 : index
    %373 = vector.load %arg8[%c5_153, %c0_154, %c0_155] : memref<8x8x64xf32, #tpu.memory_space<vmem>>, vector<1x8x64xf32>
    %374 = vector.shape_cast %373 : vector<1x8x64xf32> to vector<8x64xf32>
    %375 = vector.shape_cast %353 : vector<8x64xf32> to vector<1x8x64xf32>
    tpu.vector_store %arg8[%c5_153, %c0_154, %c0_155], %375 {strides = array<i32>} : memref<8x8x64xf32, #tpu.memory_space<vmem>>, vector<1x8x64xf32>,
    %c5_156 = arith.constant 5 : index
    %c0_157 = arith.constant 0 : index
    %c0_158 = arith.constant 0 : index
    %376 = vector.load %arg7[%c5_156, %c0_157, %c0_158] : memref<8x8x64xf32, #tpu.memory_space<vmem>>, vector<1x8x64xf32>
    %377 = vector.shape_cast %376 : vector<1x8x64xf32> to vector<8x64xf32>
    %378 = vector.shape_cast %370 : vector<8x64xf32> to vector<1x8x64xf32>
    tpu.vector_store %arg7[%c5_156, %c0_157, %c0_158], %378 {strides = array<i32>} : memref<8x8x64xf32, #tpu.memory_space<vmem>>, vector<1x8x64xf32>,
    %c0_159 = arith.constant 0 : index
    %c0_160 = arith.constant 0 : index
    %379 = vector.load %arg9[%c0_159, %c0_160] : memref<8x64xf32, #tpu.memory_space<vmem>>, vector<8x64xf32>
    %c0_161 = arith.constant 0 : index
    %c0_162 = arith.constant 0 : index
    %380 = vector.load %arg10[%c0_161, %c0_162] : memref<8x64xf32, #tpu.memory_space<vmem>>, vector<8x64xf32>
    %c6 = arith.constant 6 : index
    %c0_163 = arith.constant 0 : index
    %c0_164 = arith.constant 0 : index
    %381 = vector.load %arg1[%c6, %c0_163, %c0_164] : memref<8x8x192xf32, #tpu.memory_space<vmem>>, vector<1x8x192xf32>
    %382 = vector.shape_cast %381 : vector<1x8x192xf32> to vector<8x192xf32>
    %383 = arith.truncf %380 : vector<8x64xf32> to vector<8x64xbf16>
    %cst_165 = arith.constant dense<0.000000e+00> : vector<8x192xf32>
    %384 = tpu.matmul %383, %4, %cst_165 {dimension_numbers = #tpu.dot_dimension_numbers<[1], [0], [0], [1], [0, 0, 1, 1], [], []>} : vector<8x64xbf16>, vector<64x192xbf16>, vector<8x192xf32> -> vector<8x192xf32>
    %385 = arith.addf %382, %384 : vector<8x192xf32>
    %386 = arith.truncf %379 : vector<8x64xf32> to vector<8x64xbf16>
    %cst_166 = arith.constant dense<0.000000e+00> : vector<8x192xf32>
    %387 = tpu.matmul %386, %5, %cst_166 {dimension_numbers = #tpu.dot_dimension_numbers<[1], [0], [0], [1], [0, 0, 1, 1], [], []>} : vector<8x64xbf16>, vector<64x192xbf16>, vector<8x192xf32> -> vector<8x192xf32>
    %388 = vector.extract_strided_slice %385 {offsets = [0, 0], sizes = [8, 64], strides = [1, 1]} : vector<8x192xf32> to vector<8x64xf32>
    %389 = vector.extract_strided_slice %387 {offsets = [0, 0], sizes = [8, 64], strides = [1, 1]} : vector<8x192xf32> to vector<8x64xf32>
    %390 = arith.addf %388, %389 : vector<8x64xf32>
    %391 = arith.negf %390 : vector<8x64xf32>
    %392 = math.exp %391 : vector<8x64xf32>
    %cst_167 = arith.constant 1.000000e+00 : f32
    %393 = vector.broadcast %cst_167 : f32 to vector<8x64xf32>
    %394 = arith.addf %393, %392 : vector<8x64xf32>
    %395 = arith.divf %393, %394 : vector<8x64xf32>
    %396 = vector.extract_strided_slice %385 {offsets = [0, 64], sizes = [8, 64], strides = [1, 1]} : vector<8x192xf32> to vector<8x64xf32>
    %397 = vector.extract_strided_slice %387 {offsets = [0, 64], sizes = [8, 64], strides = [1, 1]} : vector<8x192xf32> to vector<8x64xf32>
    %398 = arith.addf %396, %397 : vector<8x64xf32>
    %399 = arith.negf %398 : vector<8x64xf32>
    %400 = math.exp %399 : vector<8x64xf32>
    %cst_168 = arith.constant 1.000000e+00 : f32
    %401 = vector.broadcast %cst_168 : f32 to vector<8x64xf32>
    %402 = arith.addf %401, %400 : vector<8x64xf32>
    %403 = arith.divf %401, %402 : vector<8x64xf32>
    %404 = vector.extract_strided_slice %385 {offsets = [0, 128], sizes = [8, 64], strides = [1, 1]} : vector<8x192xf32> to vector<8x64xf32>
    %405 = vector.extract_strided_slice %387 {offsets = [0, 128], sizes = [8, 64], strides = [1, 1]} : vector<8x192xf32> to vector<8x64xf32>
    %406 = vector.broadcast %6 : vector<1x64xf32> to vector<8x64xf32>
    %407 = arith.addf %405, %406 : vector<8x64xf32>
    %408 = arith.mulf %395, %407 : vector<8x64xf32>
    %409 = arith.addf %404, %408 : vector<8x64xf32>
    %410 = math.tanh %409 : vector<8x64xf32>
    %cst_169 = arith.constant 1.000000e+00 : f32
    %411 = vector.broadcast %cst_169 : f32 to vector<8x64xf32>
    %412 = arith.subf %411, %403 : vector<8x64xf32>
    %413 = arith.mulf %412, %410 : vector<8x64xf32>
    %414 = arith.mulf %403, %379 : vector<8x64xf32>
    %415 = arith.addf %413, %414 : vector<8x64xf32>
    %416 = vector.shape_cast %415 : vector<8x64xf32> to vector<8x1x64xf32>
    %417 = vector.broadcast %416 : vector<8x1x64xf32> to vector<8x8x64xf32>
    %418 = arith.mulf %3, %417 : vector<8x8x64xf32>
    %cst_170 = arith.constant dense<0.000000e+00> : vector<8x8xf32>
    %419 = vector.multi_reduction <add>, %418, %cst_170 [2] : vector<8x8x64xf32> to vector<8x8xf32>
    %cst_171 = arith.constant dense<0xFF800000> : vector<8xf32>
    %420 = vector.multi_reduction <maximumf>, %419, %cst_171 [1] : vector<8x8xf32> to vector<8xf32>
    %421 = vector.shape_cast %420 : vector<8xf32> to vector<8x1xf32>
    %422 = vector.broadcast %421 : vector<8x1xf32> to vector<8x8xf32>
    %423 = arith.subf %419, %422 : vector<8x8xf32>
    %424 = math.exp %423 : vector<8x8xf32>
    %cst_172 = arith.constant dense<0.000000e+00> : vector<8xf32>
    %425 = vector.multi_reduction <add>, %424, %cst_172 [1] : vector<8x8xf32> to vector<8xf32>
    %426 = vector.shape_cast %425 : vector<8xf32> to vector<8x1xf32>
    %427 = vector.broadcast %426 : vector<8x1xf32> to vector<8x8xf32>
    %428 = arith.divf %424, %427 : vector<8x8xf32>
    %429 = vector.shape_cast %428 : vector<8x8xf32> to vector<8x8x1xf32>
    %430 = vector.broadcast %429 : vector<8x8x1xf32> to vector<8x8x64xf32>
    %431 = arith.mulf %430, %3 : vector<8x8x64xf32>
    %cst_173 = arith.constant dense<0.000000e+00> : vector<8x64xf32>
    %432 = vector.multi_reduction <add>, %431, %cst_173 [1] : vector<8x8x64xf32> to vector<8x64xf32>
    %c0_174 = arith.constant 0 : index
    %c0_175 = arith.constant 0 : index
    %433 = vector.load %arg9[%c0_174, %c0_175] : memref<8x64xf32, #tpu.memory_space<vmem>>, vector<8x64xf32>
    tpu.vector_store %arg9[%c0_174, %c0_175], %415 {strides = array<i32>} : memref<8x64xf32, #tpu.memory_space<vmem>>, vector<8x64xf32>,
    %c0_176 = arith.constant 0 : index
    %c0_177 = arith.constant 0 : index
    %434 = vector.load %arg10[%c0_176, %c0_177] : memref<8x64xf32, #tpu.memory_space<vmem>>, vector<8x64xf32>
    tpu.vector_store %arg10[%c0_176, %c0_177], %432 {strides = array<i32>} : memref<8x64xf32, #tpu.memory_space<vmem>>, vector<8x64xf32>,
    %c6_178 = arith.constant 6 : index
    %c0_179 = arith.constant 0 : index
    %c0_180 = arith.constant 0 : index
    %435 = vector.load %arg8[%c6_178, %c0_179, %c0_180] : memref<8x8x64xf32, #tpu.memory_space<vmem>>, vector<1x8x64xf32>
    %436 = vector.shape_cast %435 : vector<1x8x64xf32> to vector<8x64xf32>
    %437 = vector.shape_cast %415 : vector<8x64xf32> to vector<1x8x64xf32>
    tpu.vector_store %arg8[%c6_178, %c0_179, %c0_180], %437 {strides = array<i32>} : memref<8x8x64xf32, #tpu.memory_space<vmem>>, vector<1x8x64xf32>,
    %c6_181 = arith.constant 6 : index
    %c0_182 = arith.constant 0 : index
    %c0_183 = arith.constant 0 : index
    %438 = vector.load %arg7[%c6_181, %c0_182, %c0_183] : memref<8x8x64xf32, #tpu.memory_space<vmem>>, vector<1x8x64xf32>
    %439 = vector.shape_cast %438 : vector<1x8x64xf32> to vector<8x64xf32>
    %440 = vector.shape_cast %432 : vector<8x64xf32> to vector<1x8x64xf32>
    tpu.vector_store %arg7[%c6_181, %c0_182, %c0_183], %440 {strides = array<i32>} : memref<8x8x64xf32, #tpu.memory_space<vmem>>, vector<1x8x64xf32>,
    %c0_184 = arith.constant 0 : index
    %c0_185 = arith.constant 0 : index
    %441 = vector.load %arg9[%c0_184, %c0_185] : memref<8x64xf32, #tpu.memory_space<vmem>>, vector<8x64xf32>
    %c0_186 = arith.constant 0 : index
    %c0_187 = arith.constant 0 : index
    %442 = vector.load %arg10[%c0_186, %c0_187] : memref<8x64xf32, #tpu.memory_space<vmem>>, vector<8x64xf32>
    %c7 = arith.constant 7 : index
    %c0_188 = arith.constant 0 : index
    %c0_189 = arith.constant 0 : index
    %443 = vector.load %arg1[%c7, %c0_188, %c0_189] : memref<8x8x192xf32, #tpu.memory_space<vmem>>, vector<1x8x192xf32>
    %444 = vector.shape_cast %443 : vector<1x8x192xf32> to vector<8x192xf32>
    %445 = arith.truncf %442 : vector<8x64xf32> to vector<8x64xbf16>
    %cst_190 = arith.constant dense<0.000000e+00> : vector<8x192xf32>
    %446 = tpu.matmul %445, %4, %cst_190 {dimension_numbers = #tpu.dot_dimension_numbers<[1], [0], [0], [1], [0, 0, 1, 1], [], []>} : vector<8x64xbf16>, vector<64x192xbf16>, vector<8x192xf32> -> vector<8x192xf32>
    %447 = arith.addf %444, %446 : vector<8x192xf32>
    %448 = arith.truncf %441 : vector<8x64xf32> to vector<8x64xbf16>
    %cst_191 = arith.constant dense<0.000000e+00> : vector<8x192xf32>
    %449 = tpu.matmul %448, %5, %cst_191 {dimension_numbers = #tpu.dot_dimension_numbers<[1], [0], [0], [1], [0, 0, 1, 1], [], []>} : vector<8x64xbf16>, vector<64x192xbf16>, vector<8x192xf32> -> vector<8x192xf32>
    %450 = vector.extract_strided_slice %447 {offsets = [0, 0], sizes = [8, 64], strides = [1, 1]} : vector<8x192xf32> to vector<8x64xf32>
    %451 = vector.extract_strided_slice %449 {offsets = [0, 0], sizes = [8, 64], strides = [1, 1]} : vector<8x192xf32> to vector<8x64xf32>
    %452 = arith.addf %450, %451 : vector<8x64xf32>
    %453 = arith.negf %452 : vector<8x64xf32>
    %454 = math.exp %453 : vector<8x64xf32>
    %cst_192 = arith.constant 1.000000e+00 : f32
    %455 = vector.broadcast %cst_192 : f32 to vector<8x64xf32>
    %456 = arith.addf %455, %454 : vector<8x64xf32>
    %457 = arith.divf %455, %456 : vector<8x64xf32>
    %458 = vector.extract_strided_slice %447 {offsets = [0, 64], sizes = [8, 64], strides = [1, 1]} : vector<8x192xf32> to vector<8x64xf32>
    %459 = vector.extract_strided_slice %449 {offsets = [0, 64], sizes = [8, 64], strides = [1, 1]} : vector<8x192xf32> to vector<8x64xf32>
    %460 = arith.addf %458, %459 : vector<8x64xf32>
    %461 = arith.negf %460 : vector<8x64xf32>
    %462 = math.exp %461 : vector<8x64xf32>
    %cst_193 = arith.constant 1.000000e+00 : f32
    %463 = vector.broadcast %cst_193 : f32 to vector<8x64xf32>
    %464 = arith.addf %463, %462 : vector<8x64xf32>
    %465 = arith.divf %463, %464 : vector<8x64xf32>
    %466 = vector.extract_strided_slice %447 {offsets = [0, 128], sizes = [8, 64], strides = [1, 1]} : vector<8x192xf32> to vector<8x64xf32>
    %467 = vector.extract_strided_slice %449 {offsets = [0, 128], sizes = [8, 64], strides = [1, 1]} : vector<8x192xf32> to vector<8x64xf32>
    %468 = vector.broadcast %6 : vector<1x64xf32> to vector<8x64xf32>
    %469 = arith.addf %467, %468 : vector<8x64xf32>
    %470 = arith.mulf %457, %469 : vector<8x64xf32>
    %471 = arith.addf %466, %470 : vector<8x64xf32>
    %472 = math.tanh %471 : vector<8x64xf32>
    %cst_194 = arith.constant 1.000000e+00 : f32
    %473 = vector.broadcast %cst_194 : f32 to vector<8x64xf32>
    %474 = arith.subf %473, %465 : vector<8x64xf32>
    %475 = arith.mulf %474, %472 : vector<8x64xf32>
    %476 = arith.mulf %465, %441 : vector<8x64xf32>
    %477 = arith.addf %475, %476 : vector<8x64xf32>
    %478 = vector.shape_cast %477 : vector<8x64xf32> to vector<8x1x64xf32>
    %479 = vector.broadcast %478 : vector<8x1x64xf32> to vector<8x8x64xf32>
    %480 = arith.mulf %3, %479 : vector<8x8x64xf32>
    %cst_195 = arith.constant dense<0.000000e+00> : vector<8x8xf32>
    %481 = vector.multi_reduction <add>, %480, %cst_195 [2] : vector<8x8x64xf32> to vector<8x8xf32>
    %cst_196 = arith.constant dense<0xFF800000> : vector<8xf32>
    %482 = vector.multi_reduction <maximumf>, %481, %cst_196 [1] : vector<8x8xf32> to vector<8xf32>
    %483 = vector.shape_cast %482 : vector<8xf32> to vector<8x1xf32>
    %484 = vector.broadcast %483 : vector<8x1xf32> to vector<8x8xf32>
    %485 = arith.subf %481, %484 : vector<8x8xf32>
    %486 = math.exp %485 : vector<8x8xf32>
    %cst_197 = arith.constant dense<0.000000e+00> : vector<8xf32>
    %487 = vector.multi_reduction <add>, %486, %cst_197 [1] : vector<8x8xf32> to vector<8xf32>
    %488 = vector.shape_cast %487 : vector<8xf32> to vector<8x1xf32>
    %489 = vector.broadcast %488 : vector<8x1xf32> to vector<8x8xf32>
    %490 = arith.divf %486, %489 : vector<8x8xf32>
    %491 = vector.shape_cast %490 : vector<8x8xf32> to vector<8x8x1xf32>
    %492 = vector.broadcast %491 : vector<8x8x1xf32> to vector<8x8x64xf32>
    %493 = arith.mulf %492, %3 : vector<8x8x64xf32>
    %cst_198 = arith.constant dense<0.000000e+00> : vector<8x64xf32>
    %494 = vector.multi_reduction <add>, %493, %cst_198 [1] : vector<8x8x64xf32> to vector<8x64xf32>
    %c0_199 = arith.constant 0 : index
    %c0_200 = arith.constant 0 : index
    %495 = vector.load %arg9[%c0_199, %c0_200] : memref<8x64xf32, #tpu.memory_space<vmem>>, vector<8x64xf32>
    tpu.vector_store %arg9[%c0_199, %c0_200], %477 {strides = array<i32>} : memref<8x64xf32, #tpu.memory_space<vmem>>, vector<8x64xf32>,
    %c0_201 = arith.constant 0 : index
    %c0_202 = arith.constant 0 : index
    %496 = vector.load %arg10[%c0_201, %c0_202] : memref<8x64xf32, #tpu.memory_space<vmem>>, vector<8x64xf32>
    tpu.vector_store %arg10[%c0_201, %c0_202], %494 {strides = array<i32>} : memref<8x64xf32, #tpu.memory_space<vmem>>, vector<8x64xf32>,
    %c7_203 = arith.constant 7 : index
    %c0_204 = arith.constant 0 : index
    %c0_205 = arith.constant 0 : index
    %497 = vector.load %arg8[%c7_203, %c0_204, %c0_205] : memref<8x8x64xf32, #tpu.memory_space<vmem>>, vector<1x8x64xf32>
    %498 = vector.shape_cast %497 : vector<1x8x64xf32> to vector<8x64xf32>
    %499 = vector.shape_cast %477 : vector<8x64xf32> to vector<1x8x64xf32>
    tpu.vector_store %arg8[%c7_203, %c0_204, %c0_205], %499 {strides = array<i32>} : memref<8x8x64xf32, #tpu.memory_space<vmem>>, vector<1x8x64xf32>,
    %c7_206 = arith.constant 7 : index
    %c0_207 = arith.constant 0 : index
    %c0_208 = arith.constant 0 : index
    %500 = vector.load %arg7[%c7_206, %c0_207, %c0_208] : memref<8x8x64xf32, #tpu.memory_space<vmem>>, vector<1x8x64xf32>
    %501 = vector.shape_cast %500 : vector<1x8x64xf32> to vector<8x64xf32>
    %502 = vector.shape_cast %494 : vector<8x64xf32> to vector<1x8x64xf32>
    tpu.vector_store %arg7[%c7_206, %c0_207, %c0_208], %502 {strides = array<i32>} : memref<8x8x64xf32, #tpu.memory_space<vmem>>, vector<1x8x64xf32>,
    return
  }
  func.func @transform_0(%arg0: i32) -> (i32, i32, i32) {
    %c0_i32 = arith.constant 0 : i32
    %c0_i32_0 = arith.constant 0 : i32
    %c0_i32_1 = arith.constant 0 : i32
    return %arg0, %c0_i32, %c0_i32_0 : i32, i32, i32
  }
  func.func @transform_1(%arg0: i32) -> (i32, i32) {
    %c0_i32 = arith.constant 0 : i32
    %c0_i32_0 = arith.constant 0 : i32
    %c0_i32_1 = arith.constant 0 : i32
    return %c0_i32, %c0_i32_0 : i32, i32
  }
  func.func @transform_2(%arg0: i32) -> (i32, i32) {
    %c0_i32 = arith.constant 0 : i32
    %c0_i32_0 = arith.constant 0 : i32
    %c0_i32_1 = arith.constant 0 : i32
    return %c0_i32, %c0_i32_0 : i32, i32
  }
  func.func @transform_3(%arg0: i32) -> (i32, i32) {
    %c0_i32 = arith.constant 0 : i32
    %c0_i32_0 = arith.constant 0 : i32
    %c0_i32_1 = arith.constant 0 : i32
    return %c0_i32, %c0_i32_0 : i32, i32
  }
  func.func @transform_4(%arg0: i32) -> (i32, i32, i32) {
    %c0_i32 = arith.constant 0 : i32
    %c0_i32_0 = arith.constant 0 : i32
    %c0_i32_1 = arith.constant 0 : i32
    %c0_i32_2 = arith.constant 0 : i32
    return %c0_i32, %c0_i32_0, %c0_i32_1 : i32, i32, i32
  }
  func.func @transform_5(%arg0: i32) -> (i32, i32) {
    %c0_i32 = arith.constant 0 : i32
    %c0_i32_0 = arith.constant 0 : i32
    %c0_i32_1 = arith.constant 0 : i32
    return %c0_i32, %c0_i32_0 : i32, i32
  }
  func.func @transform_6(%arg0: i32) -> (i32, i32, i32) {
    %c0_i32 = arith.constant 0 : i32
    %c0_i32_0 = arith.constant 0 : i32
    %c0_i32_1 = arith.constant 0 : i32
    return %arg0, %c0_i32, %c0_i32_0 : i32, i32, i32
  }
  func.func @transform_7(%arg0: i32) -> (i32, i32, i32) {
    %c0_i32 = arith.constant 0 : i32
    %c0_i32_0 = arith.constant 0 : i32
    %c0_i32_1 = arith.constant 0 : i32
    return %arg0, %c0_i32, %c0_i32_0 : i32, i32, i32
  }
}

module attributes {stable_mosaic.version = 11 : i64} {
  func.func @_classifier_kernel(%arg0: i32, %arg1: i32, %arg2: memref<48x64xbf16, #tpu.memory_space<vmem>>, %arg3: memref<48x64xbf16, #tpu.memory_space<vmem>>, %arg4: memref<64x128xbf16, #tpu.memory_space<vmem>>, %arg5: memref<64x128xbf16, #tpu.memory_space<vmem>>, %arg6: memref<1x128xf32, #tpu.memory_space<vmem>>, %arg7: memref<48x128xf32, #tpu.memory_space<vmem>>) attributes {dimension_semantics = [#tpu.dimension_semantics<parallel>, #tpu.dimension_semantics<parallel>], iteration_bounds = array<i64: 1, 1>, scalar_prefetch = 0 : i64, scratch_operands = 0 : i64, tpu.core_type = #tpu.core_type<tc>, window_params = [{transform_indices = @transform_0, window_bounds = array<i64: 48, 64>}, {transform_indices = @transform_1, window_bounds = array<i64: 48, 64>}, {transform_indices = @transform_2, window_bounds = array<i64: 64, 128>}, {transform_indices = @transform_3, window_bounds = array<i64: 64, 128>}, {transform_indices = @transform_4, window_bounds = array<i64: 1, 128>}, {transform_indices = @transform_5, window_bounds = array<i64: 48, 128>}]} {
    %c0 = arith.constant 0 : index
    %c0_0 = arith.constant 0 : index
    %0 = vector.load %arg2[%c0, %c0_0] : memref<48x64xbf16, #tpu.memory_space<vmem>>, vector<48x64xbf16>
    %c0_1 = arith.constant 0 : index
    %c0_2 = arith.constant 0 : index
    %1 = vector.load %arg4[%c0_1, %c0_2] : memref<64x128xbf16, #tpu.memory_space<vmem>>, vector<64x128xbf16>
    %cst = arith.constant dense<0.000000e+00> : vector<48x128xf32>
    %2 = tpu.matmul %0, %1, %cst {dimension_numbers = #tpu.dot_dimension_numbers<[1], [0], [0], [1], [0, 0, 1, 1], [], []>} : vector<48x64xbf16>, vector<64x128xbf16>, vector<48x128xf32> -> vector<48x128xf32>
    %c0_3 = arith.constant 0 : index
    %c0_4 = arith.constant 0 : index
    %3 = vector.load %arg3[%c0_3, %c0_4] : memref<48x64xbf16, #tpu.memory_space<vmem>>, vector<48x64xbf16>
    %c0_5 = arith.constant 0 : index
    %c0_6 = arith.constant 0 : index
    %4 = vector.load %arg5[%c0_5, %c0_6] : memref<64x128xbf16, #tpu.memory_space<vmem>>, vector<64x128xbf16>
    %cst_7 = arith.constant dense<0.000000e+00> : vector<48x128xf32>
    %5 = tpu.matmul %3, %4, %cst_7 {dimension_numbers = #tpu.dot_dimension_numbers<[1], [0], [0], [1], [0, 0, 1, 1], [], []>} : vector<48x64xbf16>, vector<64x128xbf16>, vector<48x128xf32> -> vector<48x128xf32>
    %6 = arith.addf %2, %5 : vector<48x128xf32>
    %c0_8 = arith.constant 0 : index
    %c0_9 = arith.constant 0 : index
    %7 = vector.load %arg6[%c0_8, %c0_9] : memref<1x128xf32, #tpu.memory_space<vmem>>, vector<1x128xf32>
    %8 = vector.broadcast %7 : vector<1x128xf32> to vector<48x128xf32>
    %9 = arith.addf %6, %8 : vector<48x128xf32>
    %c0_10 = arith.constant 0 : index
    %c0_11 = arith.constant 0 : index
    %10 = vector.load %arg7[%c0_10, %c0_11] : memref<48x128xf32, #tpu.memory_space<vmem>>, vector<48x128xf32>
    tpu.vector_store %arg7[%c0_10, %c0_11], %9 {strides = array<i32>} : memref<48x128xf32, #tpu.memory_space<vmem>>, vector<48x128xf32>,
    return
  }
  func.func @transform_0(%arg0: i32, %arg1: i32) -> (i32, i32) {
    %c0_i32 = arith.constant 0 : i32
    %c0_i32_0 = arith.constant 0 : i32
    return %arg0, %c0_i32 : i32, i32
  }
  func.func @transform_1(%arg0: i32, %arg1: i32) -> (i32, i32) {
    %c0_i32 = arith.constant 0 : i32
    %c0_i32_0 = arith.constant 0 : i32
    return %arg0, %c0_i32 : i32, i32
  }
  func.func @transform_2(%arg0: i32, %arg1: i32) -> (i32, i32) {
    %c0_i32 = arith.constant 0 : i32
    %c0_i32_0 = arith.constant 0 : i32
    return %c0_i32, %arg1 : i32, i32
  }
  func.func @transform_3(%arg0: i32, %arg1: i32) -> (i32, i32) {
    %c0_i32 = arith.constant 0 : i32
    %c0_i32_0 = arith.constant 0 : i32
    return %c0_i32, %arg1 : i32, i32
  }
  func.func @transform_4(%arg0: i32, %arg1: i32) -> (i32, i32) {
    %c0_i32 = arith.constant 0 : i32
    %c0_i32_0 = arith.constant 0 : i32
    return %c0_i32, %arg1 : i32, i32
  }
  func.func @transform_5(%arg0: i32, %arg1: i32) -> (i32, i32) {
    %c0_i32 = arith.constant 0 : i32
    return %arg0, %arg1 : i32, i32
  }
}

</mosaic_0001>

<llo_original>
// kernel: mymodule_forward.6
$region0: #{mymodule_forward.6}
  #allocation0 [shape = 'u32[]', space=smem, size = 0x4, offset = 0x4, fixed_abs, tag = 'smem constant byte address 0x4 - core index']
  #allocation1 [shape = 'u32[72,128]{1,0:T(1,128)}', space=vmem, size = 0x9000, scoped, tag = 'internal scratch']
  %s0 = inlined_call_operand.vmem [shape: bf16[64,16], index: 0, kind: input, shape index: {}]
  %s1 = inlined_call_operand.vmem [shape: bf16[2,16,96], index: 1, kind: input, shape index: {}]
  %s2 = inlined_call_operand.vmem [shape: f32[2,1,96], index: 2, kind: input, shape index: {}]
  %s3 = inlined_call_operand.vmem [shape: f32[2,64,96], index: 3, kind: output, shape index: {}]
  %s4 = sld [smem:[#allocation0]]
  $region45: #{mymodule_forward.6} parent=0
    _
  %s6 = ssub.s32 1, %s4
  %s7 = scalar_select 0, %s6, %s4
  loop: start=0, step=1, limit=4
  $region2: #{mymodule_forward.6} parent=0 // loop_pre_header
    _
  $region3: #{mymodule_forward.6} parent=0 // loop_header
    %s9 = sphi 0, %s13
    %p10 = scmp.ge.s32.totalorder %s9, 4
    %s16 = sphi 0, %s28
    %s17 = sphi 0, %s24
    %s18 = sphi 0, %s16
    %s19 = sphi 0, %s17
    %s20 = sphi 0, %s18
    %s21 = sphi 0, %s19
    %s31 = sphi 0, %s33
    %s34 = sphi 0, %s31
    %s35 = sphi 0, %s34
    %s51 = sphi 0, %s35
    %s57 = sphi 0, %s59
    %s60 = sphi 0, %s57
    %s61 = sphi 0, %s60
    %s77 = sphi 0, %s61
    %s83 = sphi 0, %s85
    %s86 = sphi 0, %s83
    %s87 = sphi 0, %s86
    %s103 = sphi 0, %s87
    %s111 = sphi 0, %s113
    %s114 = sphi 0, %s111
    %s115 = sphi 0, %s114
    %s131 = sphi 0, %s115
  $region4: #{mymodule_forward.6} parent=0 // loop_header_branch
    %12 = sbr.rel (%p10) target = $region8
  $region5: #{mymodule_forward.6} parent=0 // loop_body
    %s14 = ssub.s32 %s9, 1
    %s15 = ssub.s32 %s9, 2
    %s22 = sadd.s32 1, %s17
    %p23 = scmp.ge.s32.totalorder %s22, 1
    %s24 = scalar_select %p23, 0, %s22
    %s25 = sadd.s32 1, %s16
    %s26 = scalar_select %p23, %s25, %s16
    %p27 = scmp.ge.s32.totalorder %s26, 2
    %s28 = scalar_select %p27, 0, %s26
    %s29 = ssub.s32 %s17, %s24
    %p30 = scmp.eq.s32.totalorder %s29, 0
    %s32 = sadd.s32 %s31, 1
    %s33 = scalar_select %p30, %s31, %s32
    %p36 = pneg %p30
    %p37 = scmp.eq.s32.totalorder %s9, 1
    %p38 = por %p36, %p37
    %p39 = scmp.ne.s32.totalorder %s31, %s34
    %p40 = scmp.eq.s32.totalorder %s9, 0
    %p41 = por %p39, %p40
    %p42 = scmp.ne.s32.totalorder %s31, %s34
    %p43 = scmp.eq.s32.totalorder %s14, 1
    %p44 = por %p42, %p43
    %p45 = scmp.ne.s32.totalorder %s34, %s35
    %p46 = scmp.eq.s32.totalorder %s14, 0
    %p47 = por %p45, %p46
    %p48 = scmp.ne.s32.totalorder %s34, %s35
    %p49 = scmp.eq.s32.totalorder %s15, 1
    %p50 = por %p48, %p49
    %p52 = scmp.ne.s32.totalorder %s35, %s51
    %p53 = scmp.eq.s32.totalorder %s15, 0
    %p54 = por %p52, %p53
    %s55 = ssub.s32 %s16, %s28
    %p56 = scmp.eq.s32.totalorder %s55, 0
    %s58 = sadd.s32 %s57, 1
    %s59 = scalar_select %p56, %s57, %s58
    %p62 = pneg %p56
    %p63 = scmp.eq.s32.totalorder %s9, 1
    %p64 = por %p62, %p63
    %p65 = scmp.ne.s32.totalorder %s57, %s60
    %p66 = scmp.eq.s32.totalorder %s9, 0
    %p67 = por %p65, %p66
    %p68 = scmp.ne.s32.totalorder %s57, %s60
    %p69 = scmp.eq.s32.totalorder %s14, 1
    %p70 = por %p68, %p69
    %p71 = scmp.ne.s32.totalorder %s60, %s61
    %p72 = scmp.eq.s32.totalorder %s14, 0
    %p73 = por %p71, %p72
    %p74 = scmp.ne.s32.totalorder %s60, %s61
    %p75 = scmp.eq.s32.totalorder %s15, 1
    %p76 = por %p74, %p75
    %p78 = scmp.ne.s32.totalorder %s61, %s77
    %p79 = scmp.eq.s32.totalorder %s15, 0
    %p80 = por %p78, %p79
    %s81 = ssub.s32 %s16, %s28
    %p82 = scmp.eq.s32.totalorder %s81, 0
    %s84 = sadd.s32 %s83, 1
    %s85 = scalar_select %p82, %s83, %s84
    %p88 = pneg %p82
    %p89 = scmp.eq.s32.totalorder %s9, 1
    %p90 = por %p88, %p89
    %p91 = scmp.ne.s32.totalorder %s83, %s86
    %p92 = scmp.eq.s32.totalorder %s9, 0
    %p93 = por %p91, %p92
    %p94 = scmp.ne.s32.totalorder %s83, %s86
    %p95 = scmp.eq.s32.totalorder %s14, 1
    %p96 = por %p94, %p95
    %p97 = scmp.ne.s32.totalorder %s86, %s87
    %p98 = scmp.eq.s32.totalorder %s14, 0
    %p99 = por %p97, %p98
    %p100 = scmp.ne.s32.totalorder %s86, %s87
    %p101 = scmp.eq.s32.totalorder %s15, 1
    %p102 = por %p100, %p101
    %p104 = scmp.ne.s32.totalorder %s87, %s103
    %p105 = scmp.eq.s32.totalorder %s15, 0
    %p106 = por %p104, %p105
    %s107 = ssub.s32 %s16, %s28
    %s108 = ssub.s32 %s17, %s24
    %s109 = sor.u32 %s107, %s108
    %p110 = scmp.eq.s32.totalorder %s109, 0
    %s112 = sadd.s32 %s111, 1
    %s113 = scalar_select %p110, %s111, %s112
    %p116 = pneg %p110
    %p117 = scmp.eq.s32.totalorder %s9, 1
    %p118 = por %p116, %p117
    %p119 = scmp.ne.s32.totalorder %s111, %s114
    %p120 = scmp.eq.s32.totalorder %s9, 0
    %p121 = por %p119, %p120
    %p122 = scmp.ne.s32.totalorder %s111, %s114
    %p123 = scmp.eq.s32.totalorder %s14, 1
    %p124 = por %p122, %p123
    %p125 = scmp.ne.s32.totalorder %s114, %s115
    %p126 = scmp.eq.s32.totalorder %s14, 0
    %p127 = por %p125, %p126
    %p128 = scmp.ne.s32.totalorder %s114, %s115
    %p129 = scmp.eq.s32.totalorder %s15, 1
    %p130 = por %p128, %p129
    %p132 = scmp.ne.s32.totalorder %s115, %s131
    %p133 = scmp.eq.s32.totalorder %s15, 0
    %p134 = por %p132, %p133
    %p135 = scmp.le.s32.totalorder 1, %s9
    %p136 = scmp.lt.s32.totalorder %s9, 3
    %p137 = pnand %p135, %p136
    %p138 = pneg %p137
    // Predicated region
    $region9: #{mymodule_forward.6} parent=5 // pred_check
      _
    $region10: #{mymodule_forward.6} parent=5 // pred_check_branch
      %140 = sbr.rel (%p137) target = $region12
    $region11: #{mymodule_forward.6} parent=5 // pred_region
      %s141 = ssub.s32 %s9, 1
      // Predicated region
      $region13: #{mymodule_forward.6} parent=11 // pred_check
        %p142 = pneg %p47
      $region14: #{mymodule_forward.6} parent=11 // pred_check_branch
        %144 = sbr.rel (%p142) target = $region16
      $region15: #{mymodule_forward.6} parent=11 // pred_region
        %s145 = smul.u32 8, %s19
        %p146 = scmp.lt.s32.totalorder %s145, 7
        %s147 = scalar_select %p146, %s145, 7
        %s148 = smul.addr %s147, 4
        %s149 = scalar_lea.vmem %s0, %s148
        %s150 = smul.u32 8, %s19
      $region16: #{mymodule_forward.6} parent=11 // pred_fallthru
        _
    $region12: #{mymodule_forward.6} parent=5 // pred_fallthru
      _
    %p151 = scmp.lt.s32.totalorder %s9, 2
    // Predicated region
    $region17: #{mymodule_forward.6} parent=5 // pred_check
      %p152 = pneg %p151
    $region18: #{mymodule_forward.6} parent=5 // pred_check_branch
      %154 = sbr.rel (%p152) target = $region20
    $region19: #{mymodule_forward.6} parent=5 // pred_region
      // Predicated region
      $region21: #{mymodule_forward.6} parent=19 // pred_check
        %p155 = pneg %p67
      $region22: #{mymodule_forward.6} parent=19 // pred_check_branch
        %157 = sbr.rel (%p155) target = $region24
      $region23: #{mymodule_forward.6} parent=19 // pred_region
        %p158 = scmp.lt.s32.totalorder %s16, 1
        %s159 = scalar_select %p158, %s16, 1
        %s160 = smul.addr %s159, 2
        %s161 = smul.addr %s160, 4
        %s162 = scalar_lea.vmem %s1, %s161
      $region24: #{mymodule_forward.6} parent=19 // pred_fallthru
        _
      // Predicated region
      $region25: #{mymodule_forward.6} parent=19 // pred_check
        %p163 = pneg %p93
      $region26: #{mymodule_forward.6} parent=19 // pred_check_branch
        %165 = sbr.rel (%p163) target = $region28
      $region27: #{mymodule_forward.6} parent=19 // pred_region
        %p166 = scmp.lt.s32.totalorder %s16, 1
        %s167 = scalar_select %p166, %s16, 1
        %s168 = scalar_lea.vmem %s2, %s167
      $region28: #{mymodule_forward.6} parent=19 // pred_fallthru
        _
    $region20: #{mymodule_forward.6} parent=5 // pred_fallthru
      _
    %p169 = scmp.le.s32.totalorder 1, %s9
    %p170 = scmp.lt.s32.totalorder %s9, 3
    %p171 = pnand %p169, %p170
    %p172 = pneg %p171
    // Predicated region
    $region29: #{mymodule_forward.6} parent=5 // pred_check
      _
    $region30: #{mymodule_forward.6} parent=5 // pred_check_branch
      %174 = sbr.rel (%p171) target = $region32
    $region31: #{mymodule_forward.6} parent=5 // pred_region
      %s175 = ssub.s32 %s9, 1
      %s176 = smul.u32 8, %s19
      %p177 = scmp.lt.s32.totalorder %s176, 7
      %s178 = scalar_select %p177, %s176, 7
      %s179 = smul.addr %s178, 4
      %s180 = scalar_lea.vmem %s0, %s179
      %p181 = pneg %p47
      %p182 = pneg %p44
      %p183 = scmp.lt.s32.totalorder %s18, 1
      %s184 = scalar_select %p183, %s18, 1
      %s185 = smul.addr %s184, 2
      %s186 = smul.addr %s185, 4
      %s187 = scalar_lea.vmem %s1, %s186
      %p188 = pneg %p73
      %p189 = pneg %p70
      %p190 = scmp.lt.s32.totalorder %s18, 1
      %s191 = scalar_select %p190, %s18, 1
      %s192 = scalar_lea.vmem %s2, %s191
      %p193 = pneg %p99
      %p194 = pneg %p96
      %p195 = pneg %p127
      %p196 = pneg %p124
      %s197 = smul.u32 8, %s19
      %p198 = scmp.lt.s32.totalorder %s18, 1
      %s199 = scalar_select %p198, %s18, 1
      %p200 = scmp.lt.s32.totalorder %s197, 7
      %s201 = scalar_select %p200, %s197, 7
      %s202 = smul.addr %s199, 8
      %s203 = sadd.s32 %s201, %s202
      %s204 = smul.addr %s203, 8
      %s205 = scalar_lea.vmem %s3, %s204
      %s206 = smul.u32 8, %s19
      %p207 = scmp.lt.s32.totalorder %s206, 7
      %s208 = scalar_select %p207, %s206, 7
      %s209 = smul.addr %s208, 4
      %s210 = scalar_lea.vmem %s0, %s209
      %s211 = smul.u32 8, %s19
      %p212 = scmp.lt.s32.totalorder %s18, 1
      %s213 = scalar_select %p212, %s18, 1
      %s214 = smul.addr %s213, 2
      %s215 = smul.addr %s214, 4
      %s216 = scalar_lea.vmem %s1, %s215
      %p217 = scmp.lt.s32.totalorder %s18, 1
      %s218 = scalar_select %p217, %s18, 1
      %s219 = scalar_lea.vmem %s2, %s218
      %s220 = smul.u32 8, %s19
      %p221 = scmp.lt.s32.totalorder %s18, 1
      %s222 = scalar_select %p221, %s18, 1
      %p223 = scmp.lt.s32.totalorder %s220, 7
      %s224 = scalar_select %p223, %s220, 7
      %s225 = smul.addr %s222, 8
      %s226 = sadd.s32 %s224, %s225
      %s227 = smul.addr %s226, 8
      %s228 = scalar_lea.vmem %s3, %s227
      %s229 = smul.u32 8, %s19
      %v231 = vld [vmem:[%s210] sm:$0xf]
      %v232 = vld [vmem:[%s210 + $0x4] sm:$0xf]
      %v233 = vld [vmem:[%s210 + $0x8] sm:$0xf]
      %v234 = vld [vmem:[%s210 + $0xc] sm:$0xf]
      %v235 = vld [vmem:[%s210 + $0x10] sm:$0xf]
      %v236 = vld [vmem:[%s210 + $0x14] sm:$0xf]
      %v237 = vld [vmem:[%s210 + $0x18] sm:$0xf]
      %v238 = vld [vmem:[%s210 + $0x1c] sm:$0xf]
      %v239 = vld [vmem:[%s216] sm:$0xf]
      %v240 = vld [vmem:[%s216 + $0x4] sm:$0xf]
      %v241 = vld [vmem:[%s219] sm:$0x1]
      %v243 = vperm.slane %v241, 0
      %v253 = vunpack.c.l.b16 %v231
      %v254 = vunpack.c.l.b16 %v232
      %v255 = vunpack.c.l.b16 %v233
      %v256 = vunpack.c.l.b16 %v234
      %v257 = vunpack.c.l.b16 %v235
      %v258 = vunpack.c.l.b16 %v236
      %v259 = vunpack.c.l.b16 %v237
      %v260 = vunpack.c.l.b16 %v238
      %v261 = vpack.c.b16 %v254, %v253
      %v262 = vpack.c.b16 %v256, %v255
      %v263 = vpack.c.b16 %v258, %v257
      %v264 = vpack.c.b16 %v260, %v259
      %v267 = vunpack.c.l.b16 %v239
      %v268 = vunpack.c.l.b16 %v240
      %v269 = vpack.c.b16 %v268, %v267
      %vm271 = vcmask 130048
      %v273 = vsel %vm271, %v261, 0
      %v276 = vsel %vm271, %v262, 0
      %v279 = vsel %vm271, %v263, 0
      %v282 = vsel %vm271, %v264, 0
      %284 = vmatpush.bf16.msra.mxu0 0
      %285 = vmatpush.bf16.msra.mxu0 0
      %286 = vmatpush.bf16.msra.mxu0 0
      %287 = vmatpush.bf16.msra.mxu0 0
      %288 = vmatpush.bf16.msra.mxu0 0
      %289 = vmatpush.bf16.msra.mxu0 0
      %290 = vmatpush.bf16.msra.mxu0 0
      %291 = vmatpush.bf16.msra.mxu0 %v269
      %292 = vmatmul.bf16.gmra.mxu0 %v273
      %v293 = vpop.f32.mrf.mxu0
      %v294 = vadd.f32 %v243, %v293
      %v295 = vpop.f32.mrf.mxu0
      %v296 = vadd.f32 %v243, %v295
      %297 = vmatmul.bf16.gmra.mxu0 %v276
      %v298 = vpop.f32.mrf.mxu0
      %v299 = vadd.f32 %v243, %v298
      %v300 = vpop.f32.mrf.mxu0
      %v301 = vadd.f32 %v243, %v300
      %302 = vmatmul.bf16.gmra.mxu0 %v279
      %v303 = vpop.f32.mrf.mxu0
      %v304 = vadd.f32 %v243, %v303
      %v305 = vpop.f32.mrf.mxu0
      %v306 = vadd.f32 %v243, %v305
      %307 = vmatmul.bf16.gmra.mxu0 %v282
      %v308 = vpop.f32.mrf.mxu0
      %v309 = vadd.f32 %v243, %v308
      %v310 = vpop.f32.mrf.mxu0
      %v311 = vadd.f32 %v243, %v310
      %312 = vdwg.mxu0
      %vm313 = vcmask 785408
      %314 = vst.msk [vmem:[%s228] sm:$0xff] %vm313, %v294
      %315 = vst.msk [vmem:[%s228 + $0x8] sm:$0xff] %vm313, %v296
      %316 = vst.msk [vmem:[%s228 + $0x10] sm:$0xff] %vm313, %v299
      %317 = vst.msk [vmem:[%s228 + $0x18] sm:$0xff] %vm313, %v301
      %318 = vst.msk [vmem:[%s228 + $0x20] sm:$0xff] %vm313, %v304
      %319 = vst.msk [vmem:[%s228 + $0x28] sm:$0xff] %vm313, %v306
      %320 = vst.msk [vmem:[%s228 + $0x30] sm:$0xff] %vm313, %v309
      %321 = vst.msk [vmem:[%s228 + $0x38] sm:$0xff] %vm313, %v311
      %s322 = smul.u32 8, %s19
      %p323 = scmp.lt.s32.totalorder %s18, 1
      %s324 = scalar_select %p323, %s18, 1
      %p325 = scmp.lt.s32.totalorder %s322, 7
      %s326 = scalar_select %p325, %s322, 7
      %s327 = smul.addr %s324, 8
      %s328 = sadd.s32 %s326, %s327
      %s329 = smul.addr %s328, 8
      %s330 = scalar_lea.vmem %s3, %s329
      // Predicated region
      $region33: #{mymodule_forward.6} parent=31 // pred_check
        %p331 = pneg %p124
      $region34: #{mymodule_forward.6} parent=31 // pred_check_branch
        %333 = sbr.rel (%p331) target = $region36
      $region35: #{mymodule_forward.6} parent=31 // pred_region
        %s334 = smul.u32 8, %s19
      $region36: #{mymodule_forward.6} parent=31 // pred_fallthru
        _
    $region32: #{mymodule_forward.6} parent=5 // pred_fallthru
      _
    %p335 = scmp.le.s32.totalorder 2, %s9
    // Predicated region
    $region37: #{mymodule_forward.6} parent=5 // pred_check
      %p336 = pneg %p335
    $region38: #{mymodule_forward.6} parent=5 // pred_check_branch
      %338 = sbr.rel (%p336) target = $region40
    $region39: #{mymodule_forward.6} parent=5 // pred_region
      %s339 = ssub.s32 %s9, 2
      // Predicated region
      $region41: #{mymodule_forward.6} parent=39 // pred_check
        %p340 = pneg %p130
      $region42: #{mymodule_forward.6} parent=39 // pred_check_branch
        %342 = sbr.rel (%p340) target = $region44
      $region43: #{mymodule_forward.6} parent=39 // pred_region
        %s343 = smul.u32 8, %s21
        %p344 = scmp.lt.s32.totalorder %s20, 1
        %s345 = scalar_select %p344, %s20, 1
        %p346 = scmp.lt.s32.totalorder %s343, 7
        %s347 = scalar_select %p346, %s343, 7
        %s348 = smul.addr %s345, 8
        %s349 = sadd.s32 %s347, %s348
        %s350 = smul.addr %s349, 8
        %s351 = scalar_lea.vmem %s3, %s350
      $region44: #{mymodule_forward.6} parent=39 // pred_fallthru
        _
    $region40: #{mymodule_forward.6} parent=5 // pred_fallthru
      _
  $region6: #{mymodule_forward.6} parent=0 // loop_footer
    %s13 = sadd.s32 1, %s9
  $region7: #{mymodule_forward.6} parent=0 // loop_footer_branch
    %8 = sbr.rel target = $region3
  $region8: #{mymodule_forward.6} parent=0 // loop_exit
    _

// kernel: mymodule_forward.8
$region0: #{mymodule_forward.8}
  #allocation0 [shape = 'u32[]', space=smem, size = 0x4, offset = 0x4, fixed_abs, tag = 'smem constant byte address 0x4 - core index']
  #allocation1 [shape = 'u32[72,128]{1,0:T(1,128)}', space=vmem, size = 0x9000, scoped, tag = 'internal scratch']
  %s0 = inlined_call_operand.vmem [shape: bf16[8,64], index: 0, kind: input, shape index: {}]
  %s1 = inlined_call_operand.vmem [shape: bf16[64,64], index: 1, kind: input, shape index: {}]
  %s2 = inlined_call_operand.vmem [shape: f32[1,64], index: 2, kind: input, shape index: {}]
  %s3 = inlined_call_operand.vmem [shape: f32[8,64], index: 3, kind: output, shape index: {}]
  %s4 = sld [smem:[#allocation0]]
  $region22: #{mymodule_forward.8} parent=0
    _
  %s6 = ssub.s32 1, %s4
  %s7 = scalar_select 0, %s6, %s4
  // Predicated region
  $region2: #{mymodule_forward.8} parent=0 // pred_check
    _
  $region3: #{mymodule_forward.8} parent=0 // pred_check_branch
    %9 = sbr.rel (0) target = $region5
  $region4: #{mymodule_forward.8} parent=0 // pred_region
    _
  $region5: #{mymodule_forward.8} parent=0 // pred_fallthru
    _
  // Predicated region
  $region6: #{mymodule_forward.8} parent=0 // pred_check
    _
  $region7: #{mymodule_forward.8} parent=0 // pred_check_branch
    %11 = sbr.rel (0) target = $region9
  $region8: #{mymodule_forward.8} parent=0 // pred_region
    _
  $region9: #{mymodule_forward.8} parent=0 // pred_fallthru
    _
  // Predicated region
  $region10: #{mymodule_forward.8} parent=0 // pred_check
    _
  $region11: #{mymodule_forward.8} parent=0 // pred_check_branch
    %13 = sbr.rel (0) target = $region13
  $region12: #{mymodule_forward.8} parent=0 // pred_region
    _
  $region13: #{mymodule_forward.8} parent=0 // pred_fallthru
    _
  %v15 = vld [vmem:[%s0] sm:$0xf]
  %v16 = vld [vmem:[%s1] sm:$0xf]
  %v17 = vld [vmem:[%s1 + $0x4] sm:$0xf]
  %v18 = vld [vmem:[%s1 + $0x8] sm:$0xf]
  %v19 = vld [vmem:[%s1 + $0xc] sm:$0xf]
  %v20 = vld [vmem:[%s1 + $0x10] sm:$0xf]
  %v21 = vld [vmem:[%s1 + $0x14] sm:$0xf]
  %v22 = vld [vmem:[%s1 + $0x18] sm:$0xf]
  %v23 = vld [vmem:[%s1 + $0x1c] sm:$0xf]
  %v24 = vld [vmem:[%s2] sm:$0x1]
  %v26 = vperm.slane %v24, 0
  %v36 = vunpack.c.l.b16 %v16
  %v37 = vunpack.c.l.b16 %v17
  %v38 = vunpack.c.l.b16 %v18
  %v39 = vunpack.c.l.b16 %v19
  %v40 = vunpack.c.l.b16 %v20
  %v41 = vunpack.c.l.b16 %v21
  %v42 = vunpack.c.l.b16 %v22
  %v43 = vunpack.c.l.b16 %v23
  %v44 = vpack.c.b16 %v37, %v36
  %v45 = vpack.c.b16 %v39, %v38
  %v46 = vpack.c.b16 %v41, %v40
  %v47 = vpack.c.b16 %v43, %v42
  %vm52 = vcmask 523264
  %v54 = vsel %vm52, %v15, 0
  %56 = vmatpush.bf16.msra.mxu0 0
  %57 = vmatpush.bf16.msra.mxu0 0
  %58 = vmatpush.bf16.msra.mxu0 0
  %59 = vmatpush.bf16.msra.mxu0 0
  %60 = vmatpush.bf16.msra.mxu0 %v47
  %61 = vmatpush.bf16.msra.mxu0 %v46
  %62 = vmatpush.bf16.msra.mxu0 %v45
  %63 = vmatpush.bf16.msra.mxu0 %v44
  %64 = vmatmul.bf16.gmra.mxu0 %v54
  %v65 = vpop.f32.mrf.mxu0
  %v66 = vadd.f32 %v26, %v65
  %v67 = vpop.f32.mrf.mxu0
  %68 = vdwg.mxu0
  %69 = vst.msk [vmem:[%s3] sm:$0xff] %vm52, %v66
  // Predicated region
  $region14: #{mymodule_forward.8} parent=0 // pred_check
    _
  $region15: #{mymodule_forward.8} parent=0 // pred_check_branch
    %71 = sbr.rel (0) target = $region17
  $region16: #{mymodule_forward.8} parent=0 // pred_region
    _
  $region17: #{mymodule_forward.8} parent=0 // pred_fallthru
    _
  // Predicated region
  $region18: #{mymodule_forward.8} parent=0 // pred_check
    _
  $region19: #{mymodule_forward.8} parent=0 // pred_check_branch
    %73 = sbr.rel (0) target = $region21
  $region20: #{mymodule_forward.8} parent=0 // pred_region
    _
  $region21: #{mymodule_forward.8} parent=0 // pred_fallthru
    _

// kernel: mymodule_forward.9
$region0: #{mymodule_forward.9}
  #allocation0 [shape = 'u32[]', space=smem, size = 0x4, offset = 0x4, fixed_abs, tag = 'smem constant byte address 0x4 - core index']
  #allocation1 [shape = 'u32[72,128]{1,0:T(1,128)}', space=vmem, size = 0x9000, scoped, tag = 'internal scratch']
  %s0 = inlined_call_operand.vmem [shape: bf16[64,16], index: 0, kind: input, shape index: {}]
  %s1 = inlined_call_operand.vmem [shape: bf16[16,192], index: 1, kind: input, shape index: {}]
  %s2 = inlined_call_operand.vmem [shape: f32[1,192], index: 2, kind: input, shape index: {}]
  %s3 = inlined_call_operand.vmem [shape: f32[64,192], index: 3, kind: output, shape index: {}]
  %s4 = sld [smem:[#allocation0]]
  $region22: #{mymodule_forward.9} parent=0
    _
  %s6 = ssub.s32 1, %s4
  %s7 = scalar_select 0, %s6, %s4
  // Predicated region
  $region2: #{mymodule_forward.9} parent=0 // pred_check
    _
  $region3: #{mymodule_forward.9} parent=0 // pred_check_branch
    %9 = sbr.rel (0) target = $region5
  $region4: #{mymodule_forward.9} parent=0 // pred_region
    _
  $region5: #{mymodule_forward.9} parent=0 // pred_fallthru
    _
  // Predicated region
  $region6: #{mymodule_forward.9} parent=0 // pred_check
    _
  $region7: #{mymodule_forward.9} parent=0 // pred_check_branch
    %11 = sbr.rel (0) target = $region9
  $region8: #{mymodule_forward.9} parent=0 // pred_region
    _
  $region9: #{mymodule_forward.9} parent=0 // pred_fallthru
    _
  // Predicated region
  $region10: #{mymodule_forward.9} parent=0 // pred_check
    _
  $region11: #{mymodule_forward.9} parent=0 // pred_check_branch
    %13 = sbr.rel (0) target = $region13
  $region12: #{mymodule_forward.9} parent=0 // pred_region
    _
  $region13: #{mymodule_forward.9} parent=0 // pred_fallthru
    _
  %v15 = vld [vmem:[%s0] sm:$0xf]
  %v16 = vld [vmem:[%s0 + $0x4] sm:$0xf]
  %v17 = vld [vmem:[%s0 + $0x8] sm:$0xf]
  %v18 = vld [vmem:[%s0 + $0xc] sm:$0xf]
  %v19 = vld [vmem:[%s0 + $0x10] sm:$0xf]
  %v20 = vld [vmem:[%s0 + $0x14] sm:$0xf]
  %v21 = vld [vmem:[%s0 + $0x18] sm:$0xf]
  %v22 = vld [vmem:[%s0 + $0x1c] sm:$0xf]
  %v23 = vld [vmem:[%s1] sm:$0xff]
  %v24 = vld [vmem:[%s1 + $0x8] sm:$0xff]
  %v25 = vld [vmem:[%s2] sm:$0x3]
  %v27 = vperm.slane %v25, 0
  %v28 = vperm.slane %v25, 1
  %v39 = vunpack.c.l.b16 %v15
  %v40 = vunpack.c.l.b16 %v16
  %v41 = vunpack.c.l.b16 %v17
  %v42 = vunpack.c.l.b16 %v18
  %v43 = vunpack.c.l.b16 %v19
  %v44 = vunpack.c.l.b16 %v20
  %v45 = vunpack.c.l.b16 %v21
  %v46 = vunpack.c.l.b16 %v22
  %v47 = vpack.c.b16 %v40, %v39
  %v48 = vpack.c.b16 %v42, %v41
  %v49 = vpack.c.b16 %v44, %v43
  %v50 = vpack.c.b16 %v46, %v45
  %v53 = vunpack.c.l.b16 %v23
  %v54 = vunpack.c.h.b16 %v23
  %v55 = vunpack.c.l.b16 %v24
  %v56 = vunpack.c.h.b16 %v24
  %v57 = vpack.c.b16 %v55, %v53
  %v58 = vpack.c.b16 %v56, %v54
  %vm61 = vcmask 130048
  %v63 = vsel %vm61, %v47, 0
  %v66 = vsel %vm61, %v48, 0
  %v69 = vsel %vm61, %v49, 0
  %v72 = vsel %vm61, %v50, 0
  %74 = vmatpush.bf16.msra.mxu0 0
  %75 = vmatpush.bf16.msra.mxu0 0
  %76 = vmatpush.bf16.msra.mxu0 0
  %77 = vmatpush.bf16.msra.mxu0 0
  %78 = vmatpush.bf16.msra.mxu0 0
  %79 = vmatpush.bf16.msra.mxu0 0
  %80 = vmatpush.bf16.msra.mxu0 0
  %81 = vmatpush.bf16.msra.mxu0 %v57
  %82 = vmatmul.bf16.gmra.mxu0 %v63
  %v83 = vpop.f32.mrf.mxu0
  %v84 = vadd.f32 %v27, %v83
  %v85 = vpop.f32.mrf.mxu0
  %v86 = vadd.f32 %v27, %v85
  %87 = vmatmul.bf16.gmra.mxu0 %v66
  %v88 = vpop.f32.mrf.mxu0
  %v89 = vadd.f32 %v27, %v88
  %v90 = vpop.f32.mrf.mxu0
  %v91 = vadd.f32 %v27, %v90
  %92 = vmatmul.bf16.gmra.mxu0 %v69
  %v93 = vpop.f32.mrf.mxu0
  %v94 = vadd.f32 %v27, %v93
  %v95 = vpop.f32.mrf.mxu0
  %v96 = vadd.f32 %v27, %v95
  %97 = vmatmul.bf16.gmra.mxu0 %v72
  %v98 = vpop.f32.mrf.mxu0
  %v99 = vadd.f32 %v27, %v98
  %v100 = vpop.f32.mrf.mxu0
  %v101 = vadd.f32 %v27, %v100
  %102 = vdwg.mxu0
  %103 = vmatpush.bf16.msra.mxu0 0
  %104 = vmatpush.bf16.msra.mxu0 0
  %105 = vmatpush.bf16.msra.mxu0 0
  %106 = vmatpush.bf16.msra.mxu0 0
  %107 = vmatpush.bf16.msra.mxu0 0
  %108 = vmatpush.bf16.msra.mxu0 0
  %109 = vmatpush.bf16.msra.mxu0 0
  %110 = vmatpush.bf16.msra.mxu0 %v58
  %111 = vmatmul.bf16.gmra.mxu0 %v63
  %v112 = vpop.f32.mrf.mxu0
  %v113 = vadd.f32 %v28, %v112
  %v114 = vpop.f32.mrf.mxu0
  %v115 = vadd.f32 %v28, %v114
  %116 = vmatmul.bf16.gmra.mxu0 %v66
  %v117 = vpop.f32.mrf.mxu0
  %v118 = vadd.f32 %v28, %v117
  %v119 = vpop.f32.mrf.mxu0
  %v120 = vadd.f32 %v28, %v119
  %121 = vmatmul.bf16.gmra.mxu0 %v69
  %v122 = vpop.f32.mrf.mxu0
  %v123 = vadd.f32 %v28, %v122
  %v124 = vpop.f32.mrf.mxu0
  %v125 = vadd.f32 %v28, %v124
  %126 = vmatmul.bf16.gmra.mxu0 %v72
  %v127 = vpop.f32.mrf.mxu0
  %v128 = vadd.f32 %v28, %v127
  %v129 = vpop.f32.mrf.mxu0
  %v130 = vadd.f32 %v28, %v129
  %131 = vdwg.mxu0
  %132 = vst [vmem:[%s3] sm:$0xff] %v84
  %vm133 = vcmask 523264
  %134 = vst.msk [vmem:[%s3 + $0x8] sm:$0xff] %vm133, %v113
  %135 = vst [vmem:[%s3 + $0x10] sm:$0xff] %v86
  %136 = vst.msk [vmem:[%s3 + $0x18] sm:$0xff] %vm133, %v115
  %137 = vst [vmem:[%s3 + $0x20] sm:$0xff] %v89
  %138 = vst.msk [vmem:[%s3 + $0x28] sm:$0xff] %vm133, %v118
  %139 = vst [vmem:[%s3 + $0x30] sm:$0xff] %v91
  %140 = vst.msk [vmem:[%s3 + $0x38] sm:$0xff] %vm133, %v120
  %141 = vst [vmem:[%s3 + $0x40] sm:$0xff] %v94
  %142 = vst.msk [vmem:[%s3 + $0x48] sm:$0xff] %vm133, %v123
  %143 = vst [vmem:[%s3 + $0x50] sm:$0xff] %v96
  %144 = vst.msk [vmem:[%s3 + $0x58] sm:$0xff] %vm133, %v125
  %145 = vst [vmem:[%s3 + $0x60] sm:$0xff] %v99
  %146 = vst.msk [vmem:[%s3 + $0x68] sm:$0xff] %vm133, %v128
  %147 = vst [vmem:[%s3 + $0x70] sm:$0xff] %v101
  %148 = vst.msk [vmem:[%s3 + $0x78] sm:$0xff] %vm133, %v130
  // Predicated region
  $region14: #{mymodule_forward.9} parent=0 // pred_check
    _
  $region15: #{mymodule_forward.9} parent=0 // pred_check_branch
    %150 = sbr.rel (0) target = $region17
  $region16: #{mymodule_forward.9} parent=0 // pred_region
    _
  $region17: #{mymodule_forward.9} parent=0 // pred_fallthru
    _
  // Predicated region
  $region18: #{mymodule_forward.9} parent=0 // pred_check
    _
  $region19: #{mymodule_forward.9} parent=0 // pred_check_branch
    %152 = sbr.rel (0) target = $region21
  $region20: #{mymodule_forward.9} parent=0 // pred_region
    _
  $region21: #{mymodule_forward.9} parent=0 // pred_fallthru
    _

// kernel: mymodule_forward.7
$region0: #{mymodule_forward.7}
  #allocation0 [shape = 'u32[]', space=smem, size = 0x4, offset = 0x4, fixed_abs, tag = 'smem constant byte address 0x4 - core index']
  #allocation1 [shape = 'u32[72,128]{1,0:T(1,128)}', space=vmem, size = 0x9000, scoped, tag = 'internal scratch']
  #allocation2 [shape = 'f32[8,32]{1,0:T(8,128)}', space=vmem, size = 0x1000, scoped, tag = 'scratch operand']
  %s0 = inlined_call_operand.vmem [shape: f32[2,8,8,96], index: 0, kind: input, shape index: {}]
  %s1 = inlined_call_operand.vmem [shape: s32[8,1], index: 1, kind: input, shape index: {}]
  %s2 = inlined_call_operand.vmem [shape: bf16[2,32,96], index: 2, kind: input, shape index: {}]
  %s3 = inlined_call_operand.vmem [shape: f32[2,1,32], index: 3, kind: input, shape index: {}]
  %s4 = inlined_call_operand.vmem [shape: f32[2,8,8,32], index: 4, kind: output, shape index: {0}]
  %s5 = inlined_call_operand.vmem [shape: f32[2,8,32], index: 5, kind: output, shape index: {1}]
  %6 = xla_tuple %s4, %s5
  %s7 = sld [smem:[#allocation0]]
  $region65: #{mymodule_forward.7} parent=0
    _
  %s9 = ssub.s32 1, %s7
  %s10 = scalar_select 0, %s9, %s7
  loop: start=0, step=1, limit=4
  $region2: #{mymodule_forward.7} parent=0 // loop_pre_header
    _
  $region3: #{mymodule_forward.7} parent=0 // loop_header
    %s12 = sphi 0, %s16
    %p13 = scmp.ge.s32.totalorder %s12, 4
    %s19 = sphi 0, %s31
    %s20 = sphi 0, %s27
    %s21 = sphi 0, %s19
    %s22 = sphi 0, %s20
    %s23 = sphi 0, %s21
    %s24 = sphi 0, %s22
    %s44 = sphi 0, %s46
    %s47 = sphi 0, %s44
    %s48 = sphi 0, %s47
    %s64 = sphi 0, %s48
    %s68 = sphi 0, %s68
    %s70 = sphi 0, %s68
    %s71 = sphi 0, %s70
    %s85 = sphi 0, %s71
    %s91 = sphi 0, %s93
    %s94 = sphi 0, %s91
    %s95 = sphi 0, %s94
    %s111 = sphi 0, %s95
    %s117 = sphi 0, %s119
    %s120 = sphi 0, %s117
    %s121 = sphi 0, %s120
    %s137 = sphi 0, %s121
    %s153 = sphi 0, %s155
    %s156 = sphi 0, %s153
    %s157 = sphi 0, %s156
    %s173 = sphi 0, %s157
    %s179 = sphi 0, %s181
    %s182 = sphi 0, %s179
    %s183 = sphi 0, %s182
    %s199 = sphi 0, %s183
  $region4: #{mymodule_forward.7} parent=0 // loop_header_branch
    %15 = sbr.rel (%p13) target = $region8
  $region5: #{mymodule_forward.7} parent=0 // loop_body
    %s17 = ssub.s32 %s12, 1
    %s18 = ssub.s32 %s12, 2
    %s25 = sadd.s32 1, %s20
    %p26 = scmp.ge.s32.totalorder %s25, 1
    %s27 = scalar_select %p26, 0, %s25
    %s28 = sadd.s32 1, %s19
    %s29 = scalar_select %p26, %s28, %s19
    %p30 = scmp.ge.s32.totalorder %s29, 2
    %s31 = scalar_select %p30, 0, %s29
    %s32 = smul.u32 %s20, 2
    %s33 = ssub.s32 0, %s32
    %s34 = smul.u32 %s19, %s33
    %s35 = sadd.s32 %s20, %s34
    %s36 = smul.u32 %s27, 2
    %s37 = ssub.s32 0, %s36
    %s38 = smul.u32 %s31, %s37
    %s39 = sadd.s32 %s27, %s38
    %s40 = ssub.s32 %s19, %s31
    %s41 = ssub.s32 %s35, %s39
    %s42 = sor.u32 %s40, %s41
    %p43 = scmp.eq.s32.totalorder %s42, 0
    %s45 = sadd.s32 %s44, 1
    %s46 = scalar_select %p43, %s44, %s45
    %p49 = pneg %p43
    %p50 = scmp.eq.s32.totalorder %s12, 1
    %p51 = por %p49, %p50
    %p52 = scmp.ne.s32.totalorder %s44, %s47
    %p53 = scmp.eq.s32.totalorder %s12, 0
    %p54 = por %p52, %p53
    %p55 = scmp.ne.s32.totalorder %s44, %s47
    %p56 = scmp.eq.s32.totalorder %s17, 1
    %p57 = por %p55, %p56
    %p58 = scmp.ne.s32.totalorder %s47, %s48
    %p59 = scmp.eq.s32.totalorder %s17, 0
    %p60 = por %p58, %p59
    %p61 = scmp.ne.s32.totalorder %s47, %s48
    %p62 = scmp.eq.s32.totalorder %s18, 1
    %p63 = por %p61, %p62
    %p65 = scmp.ne.s32.totalorder %s48, %s64
    %p66 = scmp.eq.s32.totalorder %s18, 0
    %p67 = por %p65, %p66
    %s69 = sadd.s32 %s68, 1
    %p72 = scmp.eq.s32.totalorder %s12, 1
    %p73 = scmp.ne.s32.totalorder %s68, %s70
    %p74 = scmp.eq.s32.totalorder %s12, 0
    %p75 = por %p73, %p74
    %p76 = scmp.ne.s32.totalorder %s68, %s70
    %p77 = scmp.eq.s32.totalorder %s17, 1
    %p78 = por %p76, %p77
    %p79 = scmp.ne.s32.totalorder %s70, %s71
    %p80 = scmp.eq.s32.totalorder %s17, 0
    %p81 = por %p79, %p80
    %p82 = scmp.ne.s32.totalorder %s70, %s71
    %p83 = scmp.eq.s32.totalorder %s18, 1
    %p84 = por %p82, %p83
    %p86 = scmp.ne.s32.totalorder %s71, %s85
    %p87 = scmp.eq.s32.totalorder %s18, 0
    %p88 = por %p86, %p87
    %s89 = ssub.s32 %s19, %s31
    %p90 = scmp.eq.s32.totalorder %s89, 0
    %s92 = sadd.s32 %s91, 1
    %s93 = scalar_select %p90, %s91, %s92
    %p96 = pneg %p90
    %p97 = scmp.eq.s32.totalorder %s12, 1
    %p98 = por %p96, %p97
    %p99 = scmp.ne.s32.totalorder %s91, %s94
    %p100 = scmp.eq.s32.totalorder %s12, 0
    %p101 = por %p99, %p100
    %p102 = scmp.ne.s32.totalorder %s91, %s94
    %p103 = scmp.eq.s32.totalorder %s17, 1
    %p104 = por %p102, %p103
    %p105 = scmp.ne.s32.totalorder %s94, %s95
    %p106 = scmp.eq.s32.totalorder %s17, 0
    %p107 = por %p105, %p106
    %p108 = scmp.ne.s32.totalorder %s94, %s95
    %p109 = scmp.eq.s32.totalorder %s18, 1
    %p110 = por %p108, %p109
    %p112 = scmp.ne.s32.totalorder %s95, %s111
    %p113 = scmp.eq.s32.totalorder %s18, 0
    %p114 = por %p112, %p113
    %s115 = ssub.s32 %s19, %s31
    %p116 = scmp.eq.s32.totalorder %s115, 0
    %s118 = sadd.s32 %s117, 1
    %s119 = scalar_select %p116, %s117, %s118
    %p122 = pneg %p116
    %p123 = scmp.eq.s32.totalorder %s12, 1
    %p124 = por %p122, %p123
    %p125 = scmp.ne.s32.totalorder %s117, %s120
    %p126 = scmp.eq.s32.totalorder %s12, 0
    %p127 = por %p125, %p126
    %p128 = scmp.ne.s32.totalorder %s117, %s120
    %p129 = scmp.eq.s32.totalorder %s17, 1
    %p130 = por %p128, %p129
    %p131 = scmp.ne.s32.totalorder %s120, %s121
    %p132 = scmp.eq.s32.totalorder %s17, 0
    %p133 = por %p131, %p132
    %p134 = scmp.ne.s32.totalorder %s120, %s121
    %p135 = scmp.eq.s32.totalorder %s18, 1
    %p136 = por %p134, %p135
    %p138 = scmp.ne.s32.totalorder %s121, %s137
    %p139 = scmp.eq.s32.totalorder %s18, 0
    %p140 = por %p138, %p139
    %s141 = smul.u32 %s20, 2
    %s142 = ssub.s32 0, %s141
    %s143 = smul.u32 %s19, %s142
    %s144 = sadd.s32 %s20, %s143
    %s145 = smul.u32 %s27, 2
    %s146 = ssub.s32 0, %s145
    %s147 = smul.u32 %s31, %s146
    %s148 = sadd.s32 %s27, %s147
    %s149 = ssub.s32 %s19, %s31
    %s150 = ssub.s32 %s144, %s148
    %s151 = sor.u32 %s149, %s150
    %p152 = scmp.eq.s32.totalorder %s151, 0
    %s154 = sadd.s32 %s153, 1
    %s155 = scalar_select %p152, %s153, %s154
    %p158 = pneg %p152
    %p159 = scmp.eq.s32.totalorder %s12, 1
    %p160 = por %p158, %p159
    %p161 = scmp.ne.s32.totalorder %s153, %s156
    %p162 = scmp.eq.s32.totalorder %s12, 0
    %p163 = por %p161, %p162
    %p164 = scmp.ne.s32.totalorder %s153, %s156
    %p165 = scmp.eq.s32.totalorder %s17, 1
    %p166 = por %p164, %p165
    %p167 = scmp.ne.s32.totalorder %s156, %s157
    %p168 = scmp.eq.s32.totalorder %s17, 0
    %p169 = por %p167, %p168
    %p170 = scmp.ne.s32.totalorder %s156, %s157
    %p171 = scmp.eq.s32.totalorder %s18, 1
    %p172 = por %p170, %p171
    %p174 = scmp.ne.s32.totalorder %s157, %s173
    %p175 = scmp.eq.s32.totalorder %s18, 0
    %p176 = por %p174, %p175
    %s177 = ssub.s32 %s19, %s31
    %p178 = scmp.eq.s32.totalorder %s177, 0
    %s180 = sadd.s32 %s179, 1
    %s181 = scalar_select %p178, %s179, %s180
    %p184 = pneg %p178
    %p185 = scmp.eq.s32.totalorder %s12, 1
    %p186 = por %p184, %p185
    %p187 = scmp.ne.s32.totalorder %s179, %s182
    %p188 = scmp.eq.s32.totalorder %s12, 0
    %p189 = por %p187, %p188
    %p190 = scmp.ne.s32.totalorder %s179, %s182
    %p191 = scmp.eq.s32.totalorder %s17, 1
    %p192 = por %p190, %p191
    %p193 = scmp.ne.s32.totalorder %s182, %s183
    %p194 = scmp.eq.s32.totalorder %s17, 0
    %p195 = por %p193, %p194
    %p196 = scmp.ne.s32.totalorder %s182, %s183
    %p197 = scmp.eq.s32.totalorder %s18, 1
    %p198 = por %p196, %p197
    %p200 = scmp.ne.s32.totalorder %s183, %s199
    %p201 = scmp.eq.s32.totalorder %s18, 0
    %p202 = por %p200, %p201
    %p203 = scmp.le.s32.totalorder 1, %s12
    %p204 = scmp.lt.s32.totalorder %s12, 3
    %p205 = pnand %p203, %p204
    %p206 = pneg %p205
    // Predicated region
    $region9: #{mymodule_forward.7} parent=5 // pred_check
      _
    $region10: #{mymodule_forward.7} parent=5 // pred_check_branch
      %208 = sbr.rel (%p205) target = $region12
    $region11: #{mymodule_forward.7} parent=5 // pred_region
      %s209 = ssub.s32 %s12, 1
      // Predicated region
      $region13: #{mymodule_forward.7} parent=11 // pred_check
        %p210 = pneg %p81
      $region14: #{mymodule_forward.7} parent=11 // pred_check_branch
        %212 = sbr.rel (%p210) target = $region16
      $region15: #{mymodule_forward.7} parent=11 // pred_region
        _
      $region16: #{mymodule_forward.7} parent=11 // pred_fallthru
        _
    $region12: #{mymodule_forward.7} parent=5 // pred_fallthru
      _
    %p213 = scmp.lt.s32.totalorder %s12, 2
    // Predicated region
    $region17: #{mymodule_forward.7} parent=5 // pred_check
      %p214 = pneg %p213
    $region18: #{mymodule_forward.7} parent=5 // pred_check_branch
      %216 = sbr.rel (%p214) target = $region20
    $region19: #{mymodule_forward.7} parent=5 // pred_region
      // Predicated region
      $region21: #{mymodule_forward.7} parent=19 // pred_check
        %p217 = pneg %p54
      $region22: #{mymodule_forward.7} parent=19 // pred_check_branch
        %219 = sbr.rel (%p217) target = $region24
      $region23: #{mymodule_forward.7} parent=19 // pred_region
        %s220 = smul.u32 %s20, 2
        %s221 = ssub.s32 0, %s220
        %s222 = smul.u32 %s19, %s221
        %s223 = sadd.s32 %s20, %s222
        %s224 = smul.u32 8, %s223
        %p225 = scmp.lt.s32.totalorder %s19, 1
        %s226 = scalar_select %p225, %s19, 1
        %p227 = scmp.lt.s32.totalorder %s224, 7
        %s228 = scalar_select %p227, %s224, 7
        %s229 = smul.addr %s226, 8
        %s230 = sadd.s32 %s228, %s229
        %s231 = smul.addr %s230, 8
        %s232 = scalar_lea.vmem %s0, %s231
        %s233 = smul.u32 %s20, 2
        %s234 = ssub.s32 0, %s233
        %s235 = smul.u32 %s19, %s234
        %s236 = sadd.s32 %s20, %s235
        %s237 = smul.u32 8, %s236
      $region24: #{mymodule_forward.7} parent=19 // pred_fallthru
        _
      // Predicated region
      $region25: #{mymodule_forward.7} parent=19 // pred_check
        %p238 = pneg %p101
      $region26: #{mymodule_forward.7} parent=19 // pred_check_branch
        %240 = sbr.rel (%p238) target = $region28
      $region27: #{mymodule_forward.7} parent=19 // pred_region
        %p241 = scmp.lt.s32.totalorder %s19, 1
        %s242 = scalar_select %p241, %s19, 1
        %s243 = smul.addr %s242, 4
        %s244 = smul.addr %s243, 4
        %s245 = scalar_lea.vmem %s2, %s244
      $region28: #{mymodule_forward.7} parent=19 // pred_fallthru
        _
      // Predicated region
      $region29: #{mymodule_forward.7} parent=19 // pred_check
        %p246 = pneg %p127
      $region30: #{mymodule_forward.7} parent=19 // pred_check_branch
        %248 = sbr.rel (%p246) target = $region32
      $region31: #{mymodule_forward.7} parent=19 // pred_region
        %p249 = scmp.lt.s32.totalorder %s19, 1
        %s250 = scalar_select %p249, %s19, 1
        %s251 = scalar_lea.vmem %s3, %s250
      $region32: #{mymodule_forward.7} parent=19 // pred_fallthru
        _
    $region20: #{mymodule_forward.7} parent=5 // pred_fallthru
      _
    %p252 = scmp.le.s32.totalorder 1, %s12
    %p253 = scmp.lt.s32.totalorder %s12, 3
    %p254 = pnand %p252, %p253
    %p255 = pneg %p254
    // Predicated region
    $region33: #{mymodule_forward.7} parent=5 // pred_check
      _
    $region34: #{mymodule_forward.7} parent=5 // pred_check_branch
      %257 = sbr.rel (%p254) target = $region36
    $region35: #{mymodule_forward.7} parent=5 // pred_region
      %s258 = ssub.s32 %s12, 1
      %s259 = smul.u32 %s22, 2
      %s260 = ssub.s32 0, %s259
      %s261 = smul.u32 %s21, %s260
      %s262 = sadd.s32 %s22, %s261
      %s263 = smul.u32 8, %s262
      %p264 = scmp.lt.s32.totalorder %s21, 1
      %s265 = scalar_select %p264, %s21, 1
      %p266 = scmp.lt.s32.totalorder %s263, 7
      %s267 = scalar_select %p266, %s263, 7
      %s268 = smul.addr %s265, 8
      %s269 = sadd.s32 %s267, %s268
      %s270 = smul.addr %s269, 8
      %s271 = scalar_lea.vmem %s0, %s270
      %p272 = pneg %p60
      %p273 = pneg %p57
      %p274 = pneg %p81
      %p275 = pneg %p78
      %p276 = scmp.lt.s32.totalorder %s21, 1
      %s277 = scalar_select %p276, %s21, 1
      %s278 = smul.addr %s277, 4
      %s279 = smul.addr %s278, 4
      %s280 = scalar_lea.vmem %s2, %s279
      %p281 = pneg %p107
      %p282 = pneg %p104
      %p283 = scmp.lt.s32.totalorder %s21, 1
      %s284 = scalar_select %p283, %s21, 1
      %s285 = scalar_lea.vmem %s3, %s284
      %p286 = pneg %p133
      %p287 = pneg %p130
      %p288 = pneg %p169
      %p289 = pneg %p166
      %s290 = smul.u32 %s22, 2
      %s291 = ssub.s32 0, %s290
      %s292 = smul.u32 %s21, %s291
      %s293 = sadd.s32 %s22, %s292
      %s294 = smul.u32 8, %s293
      %p295 = scmp.lt.s32.totalorder %s21, 1
      %s296 = scalar_select %p295, %s21, 1
      %p297 = scmp.lt.s32.totalorder %s294, 7
      %s298 = scalar_select %p297, %s294, 7
      %s299 = smul.addr %s296, 8
      %s300 = sadd.s32 %s298, %s299
      %s301 = smul.addr %s300, 8
      %s302 = scalar_lea.vmem %s4, %s301
      %p303 = pneg %p195
      %p304 = pneg %p192
      %p305 = scmp.lt.s32.totalorder %s21, 1
      %s306 = scalar_select %p305, %s21, 1
      %s307 = smul.addr %s306, 8
      %s308 = scalar_lea.vmem %s5, %s307
      %s309 = smul.u32 %s22, 2
      %s310 = ssub.s32 0, %s309
      %s311 = smul.u32 %s21, %s310
      %s312 = sadd.s32 %s22, %s311
      %s313 = smul.u32 8, %s312
      %p314 = scmp.lt.s32.totalorder %s21, 1
      %s315 = scalar_select %p314, %s21, 1
      %p316 = scmp.lt.s32.totalorder %s313, 7
      %s317 = scalar_select %p316, %s313, 7
      %s318 = smul.addr %s315, 8
      %s319 = sadd.s32 %s317, %s318
      %s320 = smul.addr %s319, 8
      %s321 = scalar_lea.vmem %s0, %s320
      %s322 = smul.u32 %s22, 2
      %s323 = ssub.s32 0, %s322
      %s324 = smul.u32 %s21, %s323
      %s325 = sadd.s32 %s22, %s324
      %s326 = smul.u32 8, %s325
      %p327 = scmp.lt.s32.totalorder %s21, 1
      %s328 = scalar_select %p327, %s21, 1
      %s329 = smul.addr %s328, 4
      %s330 = smul.addr %s329, 4
      %s331 = scalar_lea.vmem %s2, %s330
      %p332 = scmp.lt.s32.totalorder %s21, 1
      %s333 = scalar_select %p332, %s21, 1
      %s334 = scalar_lea.vmem %s3, %s333
      %s335 = smul.u32 %s22, 2
      %s336 = ssub.s32 0, %s335
      %s337 = smul.u32 %s21, %s336
      %s338 = sadd.s32 %s22, %s337
      %s339 = smul.u32 8, %s338
      %p340 = scmp.lt.s32.totalorder %s21, 1
      %s341 = scalar_select %p340, %s21, 1
      %p342 = scmp.lt.s32.totalorder %s339, 7
      %s343 = scalar_select %p342, %s339, 7
      %s344 = smul.addr %s341, 8
      %s345 = sadd.s32 %s343, %s344
      %s346 = smul.addr %s345, 8
      %s347 = scalar_lea.vmem %s4, %s346
      %s348 = smul.u32 %s22, 2
      %s349 = ssub.s32 0, %s348
      %s350 = smul.u32 %s21, %s349
      %s351 = sadd.s32 %s22, %s350
      %s352 = smul.u32 8, %s351
      %p353 = scmp.lt.s32.totalorder %s21, 1
      %s354 = scalar_select %p353, %s21, 1
      %s355 = smul.addr %s354, 8
      %s356 = scalar_lea.vmem %s5, %s355
      %p358 = scmp.eq.s32.totalorder %s22, 0
      // Predicated region
      $region37: #{mymodule_forward.7} parent=35 // pred_check
        %p359 = pneg %p358
      $region38: #{mymodule_forward.7} parent=35 // pred_check_branch
        %361 = sbr.rel (%p359) target = $region40
      $region39: #{mymodule_forward.7} parent=35 // pred_region
        %vm362 = vcmask 261120
        %363 = vst.msk [vmem:[#allocation2] sm:$0xff] %vm362, 0.0
      $region40: #{mymodule_forward.7} parent=35 // pred_fallthru
        _
      %v364 = vld [vmem:[%s1] sm:$0xff]
      %v365 = vld [vmem:[%s331] sm:$0xf]
      %v366 = vld [vmem:[%s331 + $0x4] sm:$0xf]
      %v367 = vld [vmem:[%s331 + $0x8] sm:$0xf]
      %v368 = vld [vmem:[%s331 + $0xc] sm:$0xf]
      %v369 = vld [vmem:[%s334] sm:$0x1]
      %s370 = smul.u32 %s22, 2
      %s371 = ssub.s32 0, %s370
      %s372 = smul.u32 %s21, %s371
      %s373 = sadd.s32 %s22, %s372
      %s374 = smul.u32 %s21, 7
      %s375 = smul.u32 %s373, 8
      %s376 = sadd.s32 %s375, %s374
      %s377 = smul.u32 %s374, 8
      %s378 = scalar_lea.vmem %s321, %s377
      %v379 = vld [vmem:[%s378] sm:$0xff]
      %v380 = vld [vmem:[#allocation2] sm:$0xff]
      %v381 = vpack.c.bf16 %v380, %v380
      %v386 = vunpack.c.l.b16 %v365
      %v387 = vunpack.c.l.b16 %v366
      %v388 = vunpack.c.l.b16 %v367
      %v389 = vunpack.c.l.b16 %v368
      %v390 = vpack.c.b16 %v387, %v386
      %v391 = vpack.c.b16 %v389, %v388
      %vm394 = vcmask 261120
      %v396 = vsel %vm394, %v381, 0
      %398 = vmatpush.bf16.msra.mxu0 0
      %399 = vmatpush.bf16.msra.mxu0 0
      %400 = vmatpush.bf16.msra.mxu0 0
      %401 = vmatpush.bf16.msra.mxu0 0
      %402 = vmatpush.bf16.msra.mxu0 0
      %403 = vmatpush.bf16.msra.mxu0 0
      %404 = vmatpush.bf16.msra.mxu0 %v391
      %405 = vmatpush.bf16.msra.mxu0 %v390
      %406 = vmatmul.bf16.gmra.mxu0 %v396
      %v407 = vpop.f32.mrf.mxu0
      %v408 = vadd.f32 0.0, %v407
      %v409 = vpop.f32.mrf.mxu0
      %410 = vdwg.mxu0
      %v411 = vadd.f32 %v379, %v408
      %v412 = vxor.u32 %v411, 2147483648
      %v413 = vmul.f32 %v412, 1.442695
      %v414 = vpow.pop %v413
      %v415 = vadd.f32 %v414, 1.0
      %v416 = vrcp.pop %v415
      %v417 = vmul.f32 %v415, %v416
      %v418 = vsub.f32 1.0, %v417
      %v419 = vmul.f32 %v416, %v418
      %v420 = vadd.f32 %v416, %v419
      %vm421 = vweird.f32 %v415
      %vm422 = vweird.f32 %v416
      %vm423 = vmor %vm421, %vm422
      %v424 = vsel %vm423, %v416, %v420
      %v425 = vand.u32 2147483647, %v415
      %vm426 = vcmp.eq.f32.partialorder %v425, 8.507059e+37
      %v427 = vand.u32 %v415, 2147483648
      %v428 = vor.u32 1.1754944e-38, %v427
      %v429 = vsel %vm426, %v428, %v424
      %v430 = vmul.f32 1.0, %v429
      %v432 = vperm.slane %v369, 0
      %433 = vrot.lane.b32.xlu0 %v432, 64
      %v434 = vpop.permute.xlu0 %433
      %v436 = vadd.f32 %v408, %v434
      %438 = vrot.lane.b32.xlu0 %v436, 64
      %v439 = vpop.permute.xlu0 %438
      %v441 = vmul.f32 %v430, %v439
      %443 = vrot.lane.b32.xlu0 %v441, 64
      %v444 = vpop.permute.xlu0 %443
      %v446 = vadd.f32 %v379, %v444
      %v447 = vtanh.pop %v446
      %v448 = vsub.f32 1.0, %v430
      %450 = vrot.lane.b32.xlu0 %v447, 96
      %v451 = vpop.permute.xlu0 %450
      %v453 = vmul.f32 %v448, %v451
      %455 = vrot.lane.b32.xlu0 %v380, 32
      %v456 = vpop.permute.xlu0 %455
      %v458 = vmul.f32 %v430, %v456
      %v459 = vadd.f32 %v453, %v458
      %v460 = vstv %s376
      %vm461 = vcmp.gt.s32.totalorder %v364, %v460
      %v462 = vsel %vm461, 1, 0
      %463 = vset.pattern.permute.xlu0 0
      %464 = vperm.xlu0 %463, %v462
      %v465 = vpop.permute.xlu0 %464
      %vm466 = vcmp.eq.s32.totalorder %v465, 1
      %v467 = vsel %vm466, %v459, %v456
      %469 = vrot.lane.b32.xlu0 %v467, 96
      %v470 = vpop.permute.xlu0 %469
      %472 = vst.msk [vmem:[#allocation2] sm:$0xff] %vm394, %v470
      %v473 = vsel %vm466, %v459, 0.0
      %475 = vrot.lane.b32.xlu0 %v473, 96
      %v476 = vpop.permute.xlu0 %475
      %s478 = scalar_lea.vmem %s347, %s377
      %479 = vst.msk [vmem:[%s478] sm:$0xff] %vm394, %v476
      %s480 = smul.u32 %s21, 5
      %s481 = sadd.s32 %s480, 1
      %s482 = sadd.s32 %s375, %s481
      %s483 = smul.u32 %s481, 8
      %s484 = scalar_lea.vmem %s321, %s483
      %v485 = vld [vmem:[%s484] sm:$0xff]
      %v486 = vld [vmem:[#allocation2] sm:$0xff]
      %v487 = vpack.c.bf16 %v486, %v486
      %v489 = vsel %vm394, %v487, 0
      %491 = vmatpush.bf16.msra.mxu0 0
      %492 = vmatpush.bf16.msra.mxu0 0
      %493 = vmatpush.bf16.msra.mxu0 0
      %494 = vmatpush.bf16.msra.mxu0 0
      %495 = vmatpush.bf16.msra.mxu0 0
      %496 = vmatpush.bf16.msra.mxu0 0
      %497 = vmatpush.bf16.msra.mxu0 %v391
      %498 = vmatpush.bf16.msra.mxu0 %v390
      %499 = vmatmul.bf16.gmra.mxu0 %v489
      %v500 = vpop.f32.mrf.mxu0
      %v501 = vadd.f32 0.0, %v500
      %v502 = vpop.f32.mrf.mxu0
      %503 = vdwg.mxu0
      %v504 = vadd.f32 %v485, %v501
      %v505 = vxor.u32 %v504, 2147483648
      %v506 = vmul.f32 %v505, 1.442695
      %v507 = vpow.pop %v506
      %v508 = vadd.f32 %v507, 1.0
      %v509 = vrcp.pop %v508
      %v510 = vmul.f32 %v508, %v509
      %v511 = vsub.f32 1.0, %v510
      %v512 = vmul.f32 %v509, %v511
      %v513 = vadd.f32 %v509, %v512
      %vm514 = vweird.f32 %v508
      %vm515 = vweird.f32 %v509
      %vm516 = vmor %vm514, %vm515
      %v517 = vsel %vm516, %v509, %v513
      %v518 = vand.u32 2147483647, %v508
      %vm519 = vcmp.eq.f32.partialorder %v518, 8.507059e+37
      %v520 = vand.u32 %v508, 2147483648
      %v521 = vor.u32 1.1754944e-38, %v520
      %v522 = vsel %vm519, %v521, %v517
      %v523 = vmul.f32 1.0, %v522
      %v524 = vadd.f32 %v501, %v434
      %526 = vrot.lane.b32.xlu0 %v524, 64
      %v527 = vpop.permute.xlu0 %526
      %v529 = vmul.f32 %v523, %v527
      %531 = vrot.lane.b32.xlu0 %v529, 64
      %v532 = vpop.permute.xlu0 %531
      %v534 = vadd.f32 %v485, %v532
      %v535 = vtanh.pop %v534
      %v536 = vsub.f32 1.0, %v523
      %538 = vrot.lane.b32.xlu0 %v535, 96
      %v539 = vpop.permute.xlu0 %538
      %v541 = vmul.f32 %v536, %v539
      %543 = vrot.lane.b32.xlu0 %v486, 32
      %v544 = vpop.permute.xlu0 %543
      %v546 = vmul.f32 %v523, %v544
      %v547 = vadd.f32 %v541, %v546
      %v548 = vstv %s482
      %vm549 = vcmp.gt.s32.totalorder %v364, %v548
      %v550 = vsel %vm549, 1, 0
      %551 = vset.pattern.permute.xlu0 0
      %552 = vperm.xlu0 %551, %v550
      %v553 = vpop.permute.xlu0 %552
      %vm554 = vcmp.eq.s32.totalorder %v553, 1
      %v555 = vsel %vm554, %v547, %v544
      %557 = vrot.lane.b32.xlu0 %v555, 96
      %v558 = vpop.permute.xlu0 %557
      %560 = vst.msk [vmem:[#allocation2] sm:$0xff] %vm394, %v558
      %v561 = vsel %vm554, %v547, 0.0
      %563 = vrot.lane.b32.xlu0 %v561, 96
      %v564 = vpop.permute.xlu0 %563
      %s566 = scalar_lea.vmem %s347, %s483
      %567 = vst.msk [vmem:[%s566] sm:$0xff] %vm394, %v564
      %s568 = smul.u32 %s21, 3
      %s569 = sadd.s32 %s568, 2
      %s570 = sadd.s32 %s375, %s569
      %s571 = smul.u32 %s569, 8
      %s572 = scalar_lea.vmem %s321, %s571
      %v573 = vld [vmem:[%s572] sm:$0xff]
      %v574 = vld [vmem:[#allocation2] sm:$0xff]
      %v575 = vpack.c.bf16 %v574, %v574
      %v577 = vsel %vm394, %v575, 0
      %579 = vmatpush.bf16.msra.mxu0 0
      %580 = vmatpush.bf16.msra.mxu0 0
      %581 = vmatpush.bf16.msra.mxu0 0
      %582 = vmatpush.bf16.msra.mxu0 0
      %583 = vmatpush.bf16.msra.mxu0 0
      %584 = vmatpush.bf16.msra.mxu0 0
      %585 = vmatpush.bf16.msra.mxu0 %v391
      %586 = vmatpush.bf16.msra.mxu0 %v390
      %587 = vmatmul.bf16.gmra.mxu0 %v577
      %v588 = vpop.f32.mrf.mxu0
      %v589 = vadd.f32 0.0, %v588
      %v590 = vpop.f32.mrf.mxu0
      %591 = vdwg.mxu0
      %v592 = vadd.f32 %v573, %v589
      %v593 = vxor.u32 %v592, 2147483648
      %v594 = vmul.f32 %v593, 1.442695
      %v595 = vpow.pop %v594
      %v596 = vadd.f32 %v595, 1.0
      %v597 = vrcp.pop %v596
      %v598 = vmul.f32 %v596, %v597
      %v599 = vsub.f32 1.0, %v598
      %v600 = vmul.f32 %v597, %v599
      %v601 = vadd.f32 %v597, %v600
      %vm602 = vweird.f32 %v596
      %vm603 = vweird.f32 %v597
      %vm604 = vmor %vm602, %vm603
      %v605 = vsel %vm604, %v597, %v601
      %v606 = vand.u32 2147483647, %v596
      %vm607 = vcmp.eq.f32.partialorder %v606, 8.507059e+37
      %v608 = vand.u32 %v596, 2147483648
      %v609 = vor.u32 1.1754944e-38, %v608
      %v610 = vsel %vm607, %v609, %v605
      %v611 = vmul.f32 1.0, %v610
      %v612 = vadd.f32 %v589, %v434
      %614 = vrot.lane.b32.xlu0 %v612, 64
      %v615 = vpop.permute.xlu0 %614
      %v617 = vmul.f32 %v611, %v615
      %619 = vrot.lane.b32.xlu0 %v617, 64
      %v620 = vpop.permute.xlu0 %619
      %v622 = vadd.f32 %v573, %v620
      %v623 = vtanh.pop %v622
      %v624 = vsub.f32 1.0, %v611
      %626 = vrot.lane.b32.xlu0 %v623, 96
      %v627 = vpop.permute.xlu0 %626
      %v629 = vmul.f32 %v624, %v627
      %631 = vrot.lane.b32.xlu0 %v574, 32
      %v632 = vpop.permute.xlu0 %631
      %v634 = vmul.f32 %v611, %v632
      %v635 = vadd.f32 %v629, %v634
      %v636 = vstv %s570
      %vm637 = vcmp.gt.s32.totalorder %v364, %v636
      %v638 = vsel %vm637, 1, 0
      %639 = vset.pattern.permute.xlu0 0
      %640 = vperm.xlu0 %639, %v638
      %v641 = vpop.permute.xlu0 %640
      %vm642 = vcmp.eq.s32.totalorder %v641, 1
      %v643 = vsel %vm642, %v635, %v632
      %645 = vrot.lane.b32.xlu0 %v643, 96
      %v646 = vpop.permute.xlu0 %645
      %648 = vst.msk [vmem:[#allocation2] sm:$0xff] %vm394, %v646
      %v649 = vsel %vm642, %v635, 0.0
      %651 = vrot.lane.b32.xlu0 %v649, 96
      %v652 = vpop.permute.xlu0 %651
      %s654 = scalar_lea.vmem %s347, %s571
      %655 = vst.msk [vmem:[%s654] sm:$0xff] %vm394, %v652
      %s656 = sadd.s32 %s21, 3
      %s657 = sadd.s32 %s375, %s656
      %s658 = smul.u32 %s656, 8
      %s659 = scalar_lea.vmem %s321, %s658
      %v660 = vld [vmem:[%s659] sm:$0xff]
      %v661 = vld [vmem:[#allocation2] sm:$0xff]
      %v662 = vpack.c.bf16 %v661, %v661
      %v664 = vsel %vm394, %v662, 0
      %666 = vmatpush.bf16.msra.mxu0 0
      %667 = vmatpush.bf16.msra.mxu0 0
      %668 = vmatpush.bf16.msra.mxu0 0
      %669 = vmatpush.bf16.msra.mxu0 0
      %670 = vmatpush.bf16.msra.mxu0 0
      %671 = vmatpush.bf16.msra.mxu0 0
      %672 = vmatpush.bf16.msra.mxu0 %v391
      %673 = vmatpush.bf16.msra.mxu0 %v390
      %674 = vmatmul.bf16.gmra.mxu0 %v664
      %v675 = vpop.f32.mrf.mxu0
      %v676 = vadd.f32 0.0, %v675
      %v677 = vpop.f32.mrf.mxu0
      %678 = vdwg.mxu0
      %v679 = vadd.f32 %v660, %v676
      %v680 = vxor.u32 %v679, 2147483648
      %v681 = vmul.f32 %v680, 1.442695
      %v682 = vpow.pop %v681
      %v683 = vadd.f32 %v682, 1.0
      %v684 = vrcp.pop %v683
      %v685 = vmul.f32 %v683, %v684
      %v686 = vsub.f32 1.0, %v685
      %v687 = vmul.f32 %v684, %v686
      %v688 = vadd.f32 %v684, %v687
      %vm689 = vweird.f32 %v683
      %vm690 = vweird.f32 %v684
      %vm691 = vmor %vm689, %vm690
      %v692 = vsel %vm691, %v684, %v688
      %v693 = vand.u32 2147483647, %v683
      %vm694 = vcmp.eq.f32.partialorder %v693, 8.507059e+37
      %v695 = vand.u32 %v683, 2147483648
      %v696 = vor.u32 1.1754944e-38, %v695
      %v697 = vsel %vm694, %v696, %v692
      %v698 = vmul.f32 1.0, %v697
      %v699 = vadd.f32 %v676, %v434
      %701 = vrot.lane.b32.xlu0 %v699, 64
      %v702 = vpop.permute.xlu0 %701
      %v704 = vmul.f32 %v698, %v702
      %706 = vrot.lane.b32.xlu0 %v704, 64
      %v707 = vpop.permute.xlu0 %706
      %v709 = vadd.f32 %v660, %v707
      %v710 = vtanh.pop %v709
      %v711 = vsub.f32 1.0, %v698
      %713 = vrot.lane.b32.xlu0 %v710, 96
      %v714 = vpop.permute.xlu0 %713
      %v716 = vmul.f32 %v711, %v714
      %718 = vrot.lane.b32.xlu0 %v661, 32
      %v719 = vpop.permute.xlu0 %718
      %v721 = vmul.f32 %v698, %v719
      %v722 = vadd.f32 %v716, %v721
      %v723 = vstv %s657
      %vm724 = vcmp.gt.s32.totalorder %v364, %v723
      %v725 = vsel %vm724, 1, 0
      %726 = vset.pattern.permute.xlu0 0
      %727 = vperm.xlu0 %726, %v725
      %v728 = vpop.permute.xlu0 %727
      %vm729 = vcmp.eq.s32.totalorder %v728, 1
      %v730 = vsel %vm729, %v722, %v719
      %732 = vrot.lane.b32.xlu0 %v730, 96
      %v733 = vpop.permute.xlu0 %732
      %735 = vst.msk [vmem:[#allocation2] sm:$0xff] %vm394, %v733
      %v736 = vsel %vm729, %v722, 0.0
      %738 = vrot.lane.b32.xlu0 %v736, 96
      %v739 = vpop.permute.xlu0 %738
      %s741 = scalar_lea.vmem %s347, %s658
      %742 = vst.msk [vmem:[%s741] sm:$0xff] %vm394, %v739
      %s743 = ssub.s32 4, %s21
      %s744 = sadd.s32 %s375, %s743
      %s745 = smul.u32 %s743, 8
      %s746 = scalar_lea.vmem %s321, %s745
      %v747 = vld [vmem:[%s746] sm:$0xff]
      %v748 = vld [vmem:[#allocation2] sm:$0xff]
      %v749 = vpack.c.bf16 %v748, %v748
      %v751 = vsel %vm394, %v749, 0
      %753 = vmatpush.bf16.msra.mxu0 0
      %754 = vmatpush.bf16.msra.mxu0 0
      %755 = vmatpush.bf16.msra.mxu0 0
      %756 = vmatpush.bf16.msra.mxu0 0
      %757 = vmatpush.bf16.msra.mxu0 0
      %758 = vmatpush.bf16.msra.mxu0 0
      %759 = vmatpush.bf16.msra.mxu0 %v391
      %760 = vmatpush.bf16.msra.mxu0 %v390
      %761 = vmatmul.bf16.gmra.mxu0 %v751
      %v762 = vpop.f32.mrf.mxu0
      %v763 = vadd.f32 0.0, %v762
      %v764 = vpop.f32.mrf.mxu0
      %765 = vdwg.mxu0
      %v766 = vadd.f32 %v747, %v763
      %v767 = vxor.u32 %v766, 2147483648
      %v768 = vmul.f32 %v767, 1.442695
      %v769 = vpow.pop %v768
      %v770 = vadd.f32 %v769, 1.0
      %v771 = vrcp.pop %v770
      %v772 = vmul.f32 %v770, %v771
      %v773 = vsub.f32 1.0, %v772
      %v774 = vmul.f32 %v771, %v773
      %v775 = vadd.f32 %v771, %v774
      %vm776 = vweird.f32 %v770
      %vm777 = vweird.f32 %v771
      %vm778 = vmor %vm776, %vm777
      %v779 = vsel %vm778, %v771, %v775
      %v780 = vand.u32 2147483647, %v770
      %vm781 = vcmp.eq.f32.partialorder %v780, 8.507059e+37
      %v782 = vand.u32 %v770, 2147483648
      %v783 = vor.u32 1.1754944e-38, %v782
      %v784 = vsel %vm781, %v783, %v779
      %v785 = vmul.f32 1.0, %v784
      %v786 = vadd.f32 %v763, %v434
      %788 = vrot.lane.b32.xlu0 %v786, 64
      %v789 = vpop.permute.xlu0 %788
      %v791 = vmul.f32 %v785, %v789
      %793 = vrot.lane.b32.xlu0 %v791, 64
      %v794 = vpop.permute.xlu0 %793
      %v796 = vadd.f32 %v747, %v794
      %v797 = vtanh.pop %v796
      %v798 = vsub.f32 1.0, %v785
      %800 = vrot.lane.b32.xlu0 %v797, 96
      %v801 = vpop.permute.xlu0 %800
      %v803 = vmul.f32 %v798, %v801
      %805 = vrot.lane.b32.xlu0 %v748, 32
      %v806 = vpop.permute.xlu0 %805
      %v808 = vmul.f32 %v785, %v806
      %v809 = vadd.f32 %v803, %v808
      %v810 = vstv %s744
      %vm811 = vcmp.gt.s32.totalorder %v364, %v810
      %v812 = vsel %vm811, 1, 0
      %813 = vset.pattern.permute.xlu0 0
      %814 = vperm.xlu0 %813, %v812
      %v815 = vpop.permute.xlu0 %814
      %vm816 = vcmp.eq.s32.totalorder %v815, 1
      %v817 = vsel %vm816, %v809, %v806
      %819 = vrot.lane.b32.xlu0 %v817, 96
      %v820 = vpop.permute.xlu0 %819
      %822 = vst.msk [vmem:[#allocation2] sm:$0xff] %vm394, %v820
      %v823 = vsel %vm816, %v809, 0.0
      %825 = vrot.lane.b32.xlu0 %v823, 96
      %v826 = vpop.permute.xlu0 %825
      %s828 = scalar_lea.vmem %s347, %s745
      %829 = vst.msk [vmem:[%s828] sm:$0xff] %vm394, %v826
      %s830 = smul.u32 %s21, 4294967293
      %s831 = sadd.s32 %s830, 5
      %s832 = sadd.s32 %s375, %s831
      %s833 = smul.u32 %s831, 8
      %s834 = scalar_lea.vmem %s321, %s833
      %v835 = vld [vmem:[%s834] sm:$0xff]
      %v836 = vld [vmem:[#allocation2] sm:$0xff]
      %v837 = vpack.c.bf16 %v836, %v836
      %v839 = vsel %vm394, %v837, 0
      %841 = vmatpush.bf16.msra.mxu0 0
      %842 = vmatpush.bf16.msra.mxu0 0
      %843 = vmatpush.bf16.msra.mxu0 0
      %844 = vmatpush.bf16.msra.mxu0 0
      %845 = vmatpush.bf16.msra.mxu0 0
      %846 = vmatpush.bf16.msra.mxu0 0
      %847 = vmatpush.bf16.msra.mxu0 %v391
      %848 = vmatpush.bf16.msra.mxu0 %v390
      %849 = vmatmul.bf16.gmra.mxu0 %v839
      %v850 = vpop.f32.mrf.mxu0
      %v851 = vadd.f32 0.0, %v850
      %v852 = vpop.f32.mrf.mxu0
      %853 = vdwg.mxu0
      %v854 = vadd.f32 %v835, %v851
      %v855 = vxor.u32 %v854, 2147483648
      %v856 = vmul.f32 %v855, 1.442695
      %v857 = vpow.pop %v856
      %v858 = vadd.f32 %v857, 1.0
      %v859 = vrcp.pop %v858
      %v860 = vmul.f32 %v858, %v859
      %v861 = vsub.f32 1.0, %v860
      %v862 = vmul.f32 %v859, %v861
      %v863 = vadd.f32 %v859, %v862
      %vm864 = vweird.f32 %v858
      %vm865 = vweird.f32 %v859
      %vm866 = vmor %vm864, %vm865
      %v867 = vsel %vm866, %v859, %v863
      %v868 = vand.u32 2147483647, %v858
      %vm869 = vcmp.eq.f32.partialorder %v868, 8.507059e+37
      %v870 = vand.u32 %v858, 2147483648
      %v871 = vor.u32 1.1754944e-38, %v870
      %v872 = vsel %vm869, %v871, %v867
      %v873 = vmul.f32 1.0, %v872
      %v874 = vadd.f32 %v851, %v434
      %876 = vrot.lane.b32.xlu0 %v874, 64
      %v877 = vpop.permute.xlu0 %876
      %v879 = vmul.f32 %v873, %v877
      %881 = vrot.lane.b32.xlu0 %v879, 64
      %v882 = vpop.permute.xlu0 %881
      %v884 = vadd.f32 %v835, %v882
      %v885 = vtanh.pop %v884
      %v886 = vsub.f32 1.0, %v873
      %888 = vrot.lane.b32.xlu0 %v885, 96
      %v889 = vpop.permute.xlu0 %888
      %v891 = vmul.f32 %v886, %v889
      %893 = vrot.lane.b32.xlu0 %v836, 32
      %v894 = vpop.permute.xlu0 %893
      %v896 = vmul.f32 %v873, %v894
      %v897 = vadd.f32 %v891, %v896
      %v898 = vstv %s832
      %vm899 = vcmp.gt.s32.totalorder %v364, %v898
      %v900 = vsel %vm899, 1, 0
      %901 = vset.pattern.permute.xlu0 0
      %902 = vperm.xlu0 %901, %v900
      %v903 = vpop.permute.xlu0 %902
      %vm904 = vcmp.eq.s32.totalorder %v903, 1
      %v905 = vsel %vm904, %v897, %v894
      %907 = vrot.lane.b32.xlu0 %v905, 96
      %v908 = vpop.permute.xlu0 %907
      %910 = vst.msk [vmem:[#allocation2] sm:$0xff] %vm394, %v908
      %v911 = vsel %vm904, %v897, 0.0
      %913 = vrot.lane.b32.xlu0 %v911, 96
      %v914 = vpop.permute.xlu0 %913
      %s916 = scalar_lea.vmem %s347, %s833
      %917 = vst.msk [vmem:[%s916] sm:$0xff] %vm394, %v914
      %s918 = smul.u32 %s21, 4294967291
      %s919 = sadd.s32 %s918, 6
      %s920 = sadd.s32 %s375, %s919
      %s921 = smul.u32 %s919, 8
      %s922 = scalar_lea.vmem %s321, %s921
      %v923 = vld [vmem:[%s922] sm:$0xff]
      %v924 = vld [vmem:[#allocation2] sm:$0xff]
      %v925 = vpack.c.bf16 %v924, %v924
      %v927 = vsel %vm394, %v925, 0
      %929 = vmatpush.bf16.msra.mxu0 0
      %930 = vmatpush.bf16.msra.mxu0 0
      %931 = vmatpush.bf16.msra.mxu0 0
      %932 = vmatpush.bf16.msra.mxu0 0
      %933 = vmatpush.bf16.msra.mxu0 0
      %934 = vmatpush.bf16.msra.mxu0 0
      %935 = vmatpush.bf16.msra.mxu0 %v391
      %936 = vmatpush.bf16.msra.mxu0 %v390
      %937 = vmatmul.bf16.gmra.mxu0 %v927
      %v938 = vpop.f32.mrf.mxu0
      %v939 = vadd.f32 0.0, %v938
      %v940 = vpop.f32.mrf.mxu0
      %941 = vdwg.mxu0
      %v942 = vadd.f32 %v923, %v939
      %v943 = vxor.u32 %v942, 2147483648
      %v944 = vmul.f32 %v943, 1.442695
      %v945 = vpow.pop %v944
      %v946 = vadd.f32 %v945, 1.0
      %v947 = vrcp.pop %v946
      %v948 = vmul.f32 %v946, %v947
      %v949 = vsub.f32 1.0, %v948
      %v950 = vmul.f32 %v947, %v949
      %v951 = vadd.f32 %v947, %v950
      %vm952 = vweird.f32 %v946
      %vm953 = vweird.f32 %v947
      %vm954 = vmor %vm952, %vm953
      %v955 = vsel %vm954, %v947, %v951
      %v956 = vand.u32 2147483647, %v946
      %vm957 = vcmp.eq.f32.partialorder %v956, 8.507059e+37
      %v958 = vand.u32 %v946, 2147483648
      %v959 = vor.u32 1.1754944e-38, %v958
      %v960 = vsel %vm957, %v959, %v955
      %v961 = vmul.f32 1.0, %v960
      %v962 = vadd.f32 %v939, %v434
      %964 = vrot.lane.b32.xlu0 %v962, 64
      %v965 = vpop.permute.xlu0 %964
      %v967 = vmul.f32 %v961, %v965
      %969 = vrot.lane.b32.xlu0 %v967, 64
      %v970 = vpop.permute.xlu0 %969
      %v972 = vadd.f32 %v923, %v970
      %v973 = vtanh.pop %v972
      %v974 = vsub.f32 1.0, %v961
      %976 = vrot.lane.b32.xlu0 %v973, 96
      %v977 = vpop.permute.xlu0 %976
      %v979 = vmul.f32 %v974, %v977
      %981 = vrot.lane.b32.xlu0 %v924, 32
      %v982 = vpop.permute.xlu0 %981
      %v984 = vmul.f32 %v961, %v982
      %v985 = vadd.f32 %v979, %v984
      %v986 = vstv %s920
      %vm987 = vcmp.gt.s32.totalorder %v364, %v986
      %v988 = vsel %vm987, 1, 0
      %989 = vset.pattern.permute.xlu0 0
      %990 = vperm.xlu0 %989, %v988
      %v991 = vpop.permute.xlu0 %990
      %vm992 = vcmp.eq.s32.totalorder %v991, 1
      %v993 = vsel %vm992, %v985, %v982
      %995 = vrot.lane.b32.xlu0 %v993, 96
      %v996 = vpop.permute.xlu0 %995
      %998 = vst.msk [vmem:[#allocation2] sm:$0xff] %vm394, %v996
      %v999 = vsel %vm992, %v985, 0.0
      %1001 = vrot.lane.b32.xlu0 %v999, 96
      %v1002 = vpop.permute.xlu0 %1001
      %s1004 = scalar_lea.vmem %s347, %s921
      %1005 = vst.msk [vmem:[%s1004] sm:$0xff] %vm394, %v1002
      %s1006 = smul.u32 %s21, 4294967289
      %s1007 = sadd.s32 %s1006, 7
      %s1008 = sadd.s32 %s375, %s1007
      %s1009 = smul.u32 %s1007, 8
      %s1010 = scalar_lea.vmem %s321, %s1009
      %v1011 = vld [vmem:[%s1010] sm:$0xff]
      %v1012 = vld [vmem:[#allocation2] sm:$0xff]
      %v1013 = vpack.c.bf16 %v1012, %v1012
      %v1015 = vsel %vm394, %v1013, 0
      %1017 = vmatpush.bf16.msra.mxu0 0
      %1018 = vmatpush.bf16.msra.mxu0 0
      %1019 = vmatpush.bf16.msra.mxu0 0
      %1020 = vmatpush.bf16.msra.mxu0 0
      %1021 = vmatpush.bf16.msra.mxu0 0
      %1022 = vmatpush.bf16.msra.mxu0 0
      %1023 = vmatpush.bf16.msra.mxu0 %v391
      %1024 = vmatpush.bf16.msra.mxu0 %v390
      %1025 = vmatmul.bf16.gmra.mxu0 %v1015
      %v1026 = vpop.f32.mrf.mxu0
      %v1027 = vadd.f32 0.0, %v1026
      %v1028 = vpop.f32.mrf.mxu0
      %1029 = vdwg.mxu0
      %v1030 = vadd.f32 %v1011, %v1027
      %v1031 = vxor.u32 %v1030, 2147483648
      %v1032 = vmul.f32 %v1031, 1.442695
      %v1033 = vpow.pop %v1032
      %v1034 = vadd.f32 %v1033, 1.0
      %v1035 = vrcp.pop %v1034
      %v1036 = vmul.f32 %v1034, %v1035
      %v1037 = vsub.f32 1.0, %v1036
      %v1038 = vmul.f32 %v1035, %v1037
      %v1039 = vadd.f32 %v1035, %v1038
      %vm1040 = vweird.f32 %v1034
      %vm1041 = vweird.f32 %v1035
      %vm1042 = vmor %vm1040, %vm1041
      %v1043 = vsel %vm1042, %v1035, %v1039
      %v1044 = vand.u32 2147483647, %v1034
      %vm1045 = vcmp.eq.f32.partialorder %v1044, 8.507059e+37
      %v1046 = vand.u32 %v1034, 2147483648
      %v1047 = vor.u32 1.1754944e-38, %v1046
      %v1048 = vsel %vm1045, %v1047, %v1043
      %v1049 = vmul.f32 1.0, %v1048
      %v1050 = vadd.f32 %v1027, %v434
      %1052 = vrot.lane.b32.xlu0 %v1050, 64
      %v1053 = vpop.permute.xlu0 %1052
      %v1055 = vmul.f32 %v1049, %v1053
      %1057 = vrot.lane.b32.xlu0 %v1055, 64
      %v1058 = vpop.permute.xlu0 %1057
      %v1060 = vadd.f32 %v1011, %v1058
      %v1061 = vtanh.pop %v1060
      %v1062 = vsub.f32 1.0, %v1049
      %1064 = vrot.lane.b32.xlu0 %v1061, 96
      %v1065 = vpop.permute.xlu0 %1064
      %v1067 = vmul.f32 %v1062, %v1065
      %1069 = vrot.lane.b32.xlu0 %v1012, 32
      %v1070 = vpop.permute.xlu0 %1069
      %v1072 = vmul.f32 %v1049, %v1070
      %v1073 = vadd.f32 %v1067, %v1072
      %v1074 = vstv %s1008
      %vm1075 = vcmp.gt.s32.totalorder %v364, %v1074
      %v1076 = vsel %vm1075, 1, 0
      %1077 = vset.pattern.permute.xlu0 0
      %1078 = vperm.xlu0 %1077, %v1076
      %v1079 = vpop.permute.xlu0 %1078
      %vm1080 = vcmp.eq.s32.totalorder %v1079, 1
      %v1081 = vsel %vm1080, %v1073, %v1070
      %1083 = vrot.lane.b32.xlu0 %v1081, 96
      %v1084 = vpop.permute.xlu0 %1083
      %1086 = vst.msk [vmem:[#allocation2] sm:$0xff] %vm394, %v1084
      %v1087 = vsel %vm1080, %v1073, 0.0
      %1089 = vrot.lane.b32.xlu0 %v1087, 96
      %v1090 = vpop.permute.xlu0 %1089
      %s1092 = scalar_lea.vmem %s347, %s1009
      %1093 = vst.msk [vmem:[%s1092] sm:$0xff] %vm394, %v1090
      // Predicated region
      $region41: #{mymodule_forward.7} parent=35 // pred_check
        %p1094 = pneg %p358
      $region42: #{mymodule_forward.7} parent=35 // pred_check_branch
        %1096 = sbr.rel (%p1094) target = $region44
      $region43: #{mymodule_forward.7} parent=35 // pred_region
        %v1097 = vld [vmem:[#allocation2] sm:$0xff]
        %1098 = vst.msk [vmem:[%s356] sm:$0xff] %vm394, %v1097
      $region44: #{mymodule_forward.7} parent=35 // pred_fallthru
        _
      %s1099 = smul.u32 %s22, 2
      %s1100 = ssub.s32 0, %s1099
      %s1101 = smul.u32 %s21, %s1100
      %s1102 = sadd.s32 %s22, %s1101
      %s1103 = smul.u32 8, %s1102
      %p1104 = scmp.lt.s32.totalorder %s21, 1
      %s1105 = scalar_select %p1104, %s21, 1
      %p1106 = scmp.lt.s32.totalorder %s1103, 7
      %s1107 = scalar_select %p1106, %s1103, 7
      %s1108 = smul.addr %s1105, 8
      %s1109 = sadd.s32 %s1107, %s1108
      %s1110 = smul.addr %s1109, 8
      %s1111 = scalar_lea.vmem %s4, %s1110
      %p1112 = scmp.lt.s32.totalorder %s21, 1
      %s1113 = scalar_select %p1112, %s21, 1
      %s1114 = smul.addr %s1113, 8
      %s1115 = scalar_lea.vmem %s5, %s1114
      // Predicated region
      $region45: #{mymodule_forward.7} parent=35 // pred_check
        %p1116 = pneg %p166
      $region46: #{mymodule_forward.7} parent=35 // pred_check_branch
        %1118 = sbr.rel (%p1116) target = $region48
      $region47: #{mymodule_forward.7} parent=35 // pred_region
        %s1119 = smul.u32 %s22, 2
        %s1120 = ssub.s32 0, %s1119
        %s1121 = smul.u32 %s21, %s1120
        %s1122 = sadd.s32 %s22, %s1121
        %s1123 = smul.u32 8, %s1122
      $region48: #{mymodule_forward.7} parent=35 // pred_fallthru
        _
      // Predicated region
      $region49: #{mymodule_forward.7} parent=35 // pred_check
        %p1124 = pneg %p192
      $region50: #{mymodule_forward.7} parent=35 // pred_check_branch
        %1126 = sbr.rel (%p1124) target = $region52
      $region51: #{mymodule_forward.7} parent=35 // pred_region
        _
      $region52: #{mymodule_forward.7} parent=35 // pred_fallthru
        _
    $region36: #{mymodule_forward.7} parent=5 // pred_fallthru
      _
    %p1127 = scmp.le.s32.totalorder 2, %s12
    // Predicated region
    $region53: #{mymodule_forward.7} parent=5 // pred_check
      %p1128 = pneg %p1127
    $region54: #{mymodule_forward.7} parent=5 // pred_check_branch
      %1130 = sbr.rel (%p1128) target = $region56
    $region55: #{mymodule_forward.7} parent=5 // pred_region
      %s1131 = ssub.s32 %s12, 2
      // Predicated region
      $region57: #{mymodule_forward.7} parent=55 // pred_check
        %p1132 = pneg %p172
      $region58: #{mymodule_forward.7} parent=55 // pred_check_branch
        %1134 = sbr.rel (%p1132) target = $region60
      $region59: #{mymodule_forward.7} parent=55 // pred_region
        %s1135 = smul.u32 %s24, 2
        %s1136 = ssub.s32 0, %s1135
        %s1137 = smul.u32 %s23, %s1136
        %s1138 = sadd.s32 %s24, %s1137
        %s1139 = smul.u32 8, %s1138
        %p1140 = scmp.lt.s32.totalorder %s23, 1
        %s1141 = scalar_select %p1140, %s23, 1
        %p1142 = scmp.lt.s32.totalorder %s1139, 7
        %s1143 = scalar_select %p1142, %s1139, 7
        %s1144 = smul.addr %s1141, 8
        %s1145 = sadd.s32 %s1143, %s1144
        %s1146 = smul.addr %s1145, 8
        %s1147 = scalar_lea.vmem %s4, %s1146
      $region60: #{mymodule_forward.7} parent=55 // pred_fallthru
        _
      // Predicated region
      $region61: #{mymodule_forward.7} parent=55 // pred_check
        %p1148 = pneg %p198
      $region62: #{mymodule_forward.7} parent=55 // pred_check_branch
        %1150 = sbr.rel (%p1148) target = $region64
      $region63: #{mymodule_forward.7} parent=55 // pred_region
        %p1151 = scmp.lt.s32.totalorder %s23, 1
        %s1152 = scalar_select %p1151, %s23, 1
        %s1153 = smul.addr %s1152, 8
        %s1154 = scalar_lea.vmem %s5, %s1153
      $region64: #{mymodule_forward.7} parent=55 // pred_fallthru
        _
    $region56: #{mymodule_forward.7} parent=5 // pred_fallthru
      _
  $region6: #{mymodule_forward.7} parent=0 // loop_footer
    %s16 = sadd.s32 1, %s12
  $region7: #{mymodule_forward.7} parent=0 // loop_footer_branch
    %11 = sbr.rel target = $region3
  $region8: #{mymodule_forward.7} parent=0 // loop_exit
    _

// kernel: mymodule_forward.11
$region0: #{mymodule_forward.11}
  #allocation0 [shape = 'u32[]', space=smem, size = 0x4, offset = 0x4, fixed_abs, tag = 'smem constant byte address 0x4 - core index']
  #allocation1 [shape = 'u32[72,128]{1,0:T(1,128)}', space=vmem, size = 0x9000, scoped, tag = 'internal scratch']
  %s0 = inlined_call_operand.vmem [shape: bf16[48,64], index: 0, kind: input, shape index: {}]
  %s1 = inlined_call_operand.vmem [shape: bf16[48,64], index: 1, kind: input, shape index: {}]
  %s2 = inlined_call_operand.vmem [shape: bf16[64,128], index: 2, kind: input, shape index: {}]
  %s3 = inlined_call_operand.vmem [shape: bf16[64,128], index: 3, kind: input, shape index: {}]
  %s4 = inlined_call_operand.vmem [shape: f32[1,128], index: 4, kind: input, shape index: {}]
  %s5 = inlined_call_operand.vmem [shape: f32[48,128], index: 5, kind: output, shape index: {}]
  %s6 = sld [smem:[#allocation0]]
  $region30: #{mymodule_forward.11} parent=0
    _
  %s8 = ssub.s32 1, %s6
  %s9 = scalar_select 0, %s8, %s6
  // Predicated region
  $region2: #{mymodule_forward.11} parent=0 // pred_check
    _
  $region3: #{mymodule_forward.11} parent=0 // pred_check_branch
    %11 = sbr.rel (0) target = $region5
  $region4: #{mymodule_forward.11} parent=0 // pred_region
    _
  $region5: #{mymodule_forward.11} parent=0 // pred_fallthru
    _
  // Predicated region
  $region6: #{mymodule_forward.11} parent=0 // pred_check
    _
  $region7: #{mymodule_forward.11} parent=0 // pred_check_branch
    %13 = sbr.rel (0) target = $region9
  $region8: #{mymodule_forward.11} parent=0 // pred_region
    _
  $region9: #{mymodule_forward.11} parent=0 // pred_fallthru
    _
  // Predicated region
  $region10: #{mymodule_forward.11} parent=0 // pred_check
    _
  $region11: #{mymodule_forward.11} parent=0 // pred_check_branch
    %15 = sbr.rel (0) target = $region13
  $region12: #{mymodule_forward.11} parent=0 // pred_region
    _
  $region13: #{mymodule_forward.11} parent=0 // pred_fallthru
    _
  // Predicated region
  $region14: #{mymodule_forward.11} parent=0 // pred_check
    _
  $region15: #{mymodule_forward.11} parent=0 // pred_check_branch
    %17 = sbr.rel (0) target = $region17
  $region16: #{mymodule_forward.11} parent=0 // pred_region
    _
  $region17: #{mymodule_forward.11} parent=0 // pred_fallthru
    _
  // Predicated region
  $region18: #{mymodule_forward.11} parent=0 // pred_check
    _
  $region19: #{mymodule_forward.11} parent=0 // pred_check_branch
    %19 = sbr.rel (0) target = $region21
  $region20: #{mymodule_forward.11} parent=0 // pred_region
    _
  $region21: #{mymodule_forward.11} parent=0 // pred_fallthru
    _
  %v21 = vld [vmem:[%s0] sm:$0xf]
  %v22 = vld [vmem:[%s0 + $0x4] sm:$0xf]
  %v23 = vld [vmem:[%s0 + $0x8] sm:$0xf]
  %v24 = vld [vmem:[%s0 + $0xc] sm:$0xf]
  %v25 = vld [vmem:[%s0 + $0x10] sm:$0xf]
  %v26 = vld [vmem:[%s0 + $0x14] sm:$0xf]
  %v27 = vld [vmem:[%s2] sm:$0xf]
  %v28 = vld [vmem:[%s2 + $0x4] sm:$0xf]
  %v29 = vld [vmem:[%s2 + $0x8] sm:$0xf]
  %v30 = vld [vmem:[%s2 + $0xc] sm:$0xf]
  %v31 = vld [vmem:[%s2 + $0x10] sm:$0xf]
  %v32 = vld [vmem:[%s2 + $0x14] sm:$0xf]
  %v33 = vld [vmem:[%s2 + $0x18] sm:$0xf]
  %v34 = vld [vmem:[%s2 + $0x1c] sm:$0xf]
  %v35 = vld [vmem:[%s1] sm:$0xf]
  %v36 = vld [vmem:[%s1 + $0x4] sm:$0xf]
  %v37 = vld [vmem:[%s1 + $0x8] sm:$0xf]
  %v38 = vld [vmem:[%s1 + $0xc] sm:$0xf]
  %v39 = vld [vmem:[%s1 + $0x10] sm:$0xf]
  %v40 = vld [vmem:[%s1 + $0x14] sm:$0xf]
  %v41 = vld [vmem:[%s3] sm:$0xf]
  %v42 = vld [vmem:[%s3 + $0x4] sm:$0xf]
  %v43 = vld [vmem:[%s3 + $0x8] sm:$0xf]
  %v44 = vld [vmem:[%s3 + $0xc] sm:$0xf]
  %v45 = vld [vmem:[%s3 + $0x10] sm:$0xf]
  %v46 = vld [vmem:[%s3 + $0x14] sm:$0xf]
  %v47 = vld [vmem:[%s3 + $0x18] sm:$0xf]
  %v48 = vld [vmem:[%s3 + $0x1c] sm:$0xf]
  %v55 = vunpack.c.l.b16 %v35
  %v56 = vunpack.c.l.b16 %v36
  %v57 = vunpack.c.l.b16 %v37
  %v58 = vunpack.c.l.b16 %v38
  %v59 = vunpack.c.l.b16 %v39
  %v60 = vunpack.c.l.b16 %v40
  %v61 = vpack.c.b16 %v56, %v55
  %v62 = vpack.c.b16 %v58, %v57
  %v63 = vpack.c.b16 %v60, %v59
  %v72 = vunpack.c.l.b16 %v41
  %v73 = vunpack.c.l.b16 %v42
  %v74 = vunpack.c.l.b16 %v43
  %v75 = vunpack.c.l.b16 %v44
  %v76 = vunpack.c.l.b16 %v45
  %v77 = vunpack.c.l.b16 %v46
  %v78 = vunpack.c.l.b16 %v47
  %v79 = vunpack.c.l.b16 %v48
  %v80 = vpack.c.b16 %v73, %v72
  %v81 = vpack.c.b16 %v75, %v74
  %v82 = vpack.c.b16 %v77, %v76
  %v83 = vpack.c.b16 %v79, %v78
  %vm88 = vcmask 523264
  %v90 = vsel %vm88, %v61, 0
  %v93 = vsel %vm88, %v62, 0
  %v96 = vsel %vm88, %v63, 0
  %98 = vmatpush.bf16.msra.mxu0 0
  %99 = vmatpush.bf16.msra.mxu0 0
  %100 = vmatpush.bf16.msra.mxu0 0
  %101 = vmatpush.bf16.msra.mxu0 0
  %102 = vmatpush.bf16.msra.mxu0 %v83
  %103 = vmatpush.bf16.msra.mxu0 %v82
  %104 = vmatpush.bf16.msra.mxu0 %v81
  %105 = vmatpush.bf16.msra.mxu0 %v80
  %106 = vmatmul.bf16.gmra.mxu0 %v90
  %v107 = vpop.f32.mrf.mxu0
  %v108 = vadd.f32 0.0, %v107
  %v109 = vpop.f32.mrf.mxu0
  %v110 = vadd.f32 0.0, %v109
  %111 = vmatmul.bf16.gmra.mxu0 %v93
  %v112 = vpop.f32.mrf.mxu0
  %v113 = vadd.f32 0.0, %v112
  %v114 = vpop.f32.mrf.mxu0
  %v115 = vadd.f32 0.0, %v114
  %116 = vmatmul.bf16.gmra.mxu0 %v96
  %v117 = vpop.f32.mrf.mxu0
  %v118 = vadd.f32 0.0, %v117
  %v119 = vpop.f32.mrf.mxu0
  %v120 = vadd.f32 0.0, %v119
  %121 = vdwg.mxu0
  %v128 = vunpack.c.l.b16 %v21
  %v129 = vunpack.c.l.b16 %v22
  %v130 = vunpack.c.l.b16 %v23
  %v131 = vunpack.c.l.b16 %v24
  %v132 = vunpack.c.l.b16 %v25
  %v133 = vunpack.c.l.b16 %v26
  %v134 = vpack.c.b16 %v129, %v128
  %v135 = vpack.c.b16 %v131, %v130
  %v136 = vpack.c.b16 %v133, %v132
  %v145 = vunpack.c.l.b16 %v27
  %v146 = vunpack.c.l.b16 %v28
  %v147 = vunpack.c.l.b16 %v29
  %v148 = vunpack.c.l.b16 %v30
  %v149 = vunpack.c.l.b16 %v31
  %v150 = vunpack.c.l.b16 %v32
  %v151 = vunpack.c.l.b16 %v33
  %v152 = vunpack.c.l.b16 %v34
  %v153 = vpack.c.b16 %v146, %v145
  %v154 = vpack.c.b16 %v148, %v147
  %v155 = vpack.c.b16 %v150, %v149
  %v156 = vpack.c.b16 %v152, %v151
  %v162 = vsel %vm88, %v134, 0
  %v165 = vsel %vm88, %v135, 0
  %v168 = vsel %vm88, %v136, 0
  %170 = vmatpush.bf16.msra.mxu0 0
  %171 = vmatpush.bf16.msra.mxu0 0
  %172 = vmatpush.bf16.msra.mxu0 0
  %173 = vmatpush.bf16.msra.mxu0 0
  %174 = vmatpush.bf16.msra.mxu0 %v156
  %175 = vmatpush.bf16.msra.mxu0 %v155
  %176 = vmatpush.bf16.msra.mxu0 %v154
  %177 = vmatpush.bf16.msra.mxu0 %v153
  %178 = vmatmul.bf16.gmra.mxu0 %v162
  %v179 = vpop.f32.mrf.mxu0
  %v180 = vadd.f32 %v108, %v179
  %v181 = vpop.f32.mrf.mxu0
  %v182 = vadd.f32 %v110, %v181
  %183 = vmatmul.bf16.gmra.mxu0 %v165
  %v184 = vpop.f32.mrf.mxu0
  %v185 = vadd.f32 %v113, %v184
  %v186 = vpop.f32.mrf.mxu0
  %v187 = vadd.f32 %v115, %v186
  %188 = vmatmul.bf16.gmra.mxu0 %v168
  %v189 = vpop.f32.mrf.mxu0
  %v190 = vadd.f32 %v118, %v189
  %v191 = vpop.f32.mrf.mxu0
  %v192 = vadd.f32 %v120, %v191
  %193 = vdwg.mxu0
  %v194 = vld [vmem:[%s4] sm:$0x1]
  %v196 = vperm.slane %v194, 0
  %v198 = vadd.f32 %v180, %v196
  %v199 = vadd.f32 %v182, %v196
  %v200 = vadd.f32 %v185, %v196
  %v201 = vadd.f32 %v187, %v196
  %v202 = vadd.f32 %v190, %v196
  %v203 = vadd.f32 %v192, %v196
  %204 = vst [vmem:[%s5] sm:$0xff] %v198
  %205 = vst [vmem:[%s5 + $0x8] sm:$0xff] %v199
  %206 = vst [vmem:[%s5 + $0x10] sm:$0xff] %v200
  %207 = vst [vmem:[%s5 + $0x18] sm:$0xff] %v201
  %208 = vst [vmem:[%s5 + $0x20] sm:$0xff] %v202
  %209 = vst [vmem:[%s5 + $0x28] sm:$0xff] %v203
  // Predicated region
  $region22: #{mymodule_forward.11} parent=0 // pred_check
    _
  $region23: #{mymodule_forward.11} parent=0 // pred_check_branch
    %211 = sbr.rel (0) target = $region25
  $region24: #{mymodule_forward.11} parent=0 // pred_region
    _
  $region25: #{mymodule_forward.11} parent=0 // pred_fallthru
    _
  // Predicated region
  $region26: #{mymodule_forward.11} parent=0 // pred_check
    _
  $region27: #{mymodule_forward.11} parent=0 // pred_check_branch
    %213 = sbr.rel (0) target = $region29
  $region28: #{mymodule_forward.11} parent=0 // pred_region
    _
  $region29: #{mymodule_forward.11} parent=0 // pred_fallthru
    _

// kernel: mymodule_forward.10
$region0: #{mymodule_forward.10}
  #allocation0 [shape = 'u32[]', space=smem, size = 0x4, offset = 0x4, fixed_abs, tag = 'smem constant byte address 0x4 - core index']
  #allocation1 [shape = 'u32[72,128]{1,0:T(1,128)}', space=vmem, size = 0x9000, scoped, tag = 'internal scratch']
  #allocation2 [shape = 'f32[8,64]{1,0:T(8,128)}', space=vmem, size = 0x1000, scoped, tag = 'scratch operand']
  #allocation3 [shape = 'f32[8,64]{1,0:T(8,128)}', space=vmem, size = 0x1000, scoped, tag = 'scratch operand']
  %s0 = inlined_call_operand.vmem [shape: f32[8,8,192], index: 0, kind: input, shape index: {}]
  %s1 = inlined_call_operand.vmem [shape: bf16[64,192], index: 1, kind: input, shape index: {}]
  %s2 = inlined_call_operand.vmem [shape: bf16[64,192], index: 2, kind: input, shape index: {}]
  %s3 = inlined_call_operand.vmem [shape: f32[1,64], index: 3, kind: input, shape index: {}]
  %s4 = inlined_call_operand.vmem [shape: f32[8,8,64], index: 4, kind: input, shape index: {}]
  %s5 = inlined_call_operand.vmem [shape: f32[8,64], index: 5, kind: input, shape index: {}]
  %s6 = inlined_call_operand.vmem [shape: f32[8,8,64], index: 6, kind: output, shape index: {0}]
  %s7 = inlined_call_operand.vmem [shape: f32[8,8,64], index: 7, kind: output, shape index: {1}]
  %8 = xla_tuple %s6, %s7
  %s9 = sld [smem:[#allocation0]]
  $region46: #{mymodule_forward.10} parent=0
    _
  %s11 = ssub.s32 1, %s9
  %s12 = scalar_select 0, %s11, %s9
  // Predicated region
  $region2: #{mymodule_forward.10} parent=0 // pred_check
    _
  $region3: #{mymodule_forward.10} parent=0 // pred_check_branch
    %14 = sbr.rel (0) target = $region5
  $region4: #{mymodule_forward.10} parent=0 // pred_region
    _
  $region5: #{mymodule_forward.10} parent=0 // pred_fallthru
    _
  // Predicated region
  $region6: #{mymodule_forward.10} parent=0 // pred_check
    _
  $region7: #{mymodule_forward.10} parent=0 // pred_check_branch
    %16 = sbr.rel (0) target = $region9
  $region8: #{mymodule_forward.10} parent=0 // pred_region
    _
  $region9: #{mymodule_forward.10} parent=0 // pred_fallthru
    _
  // Predicated region
  $region10: #{mymodule_forward.10} parent=0 // pred_check
    _
  $region11: #{mymodule_forward.10} parent=0 // pred_check_branch
    %18 = sbr.rel (0) target = $region13
  $region12: #{mymodule_forward.10} parent=0 // pred_region
    _
  $region13: #{mymodule_forward.10} parent=0 // pred_fallthru
    _
  // Predicated region
  $region14: #{mymodule_forward.10} parent=0 // pred_check
    _
  $region15: #{mymodule_forward.10} parent=0 // pred_check_branch
    %20 = sbr.rel (0) target = $region17
  $region16: #{mymodule_forward.10} parent=0 // pred_region
    _
  $region17: #{mymodule_forward.10} parent=0 // pred_fallthru
    _
  // Predicated region
  $region18: #{mymodule_forward.10} parent=0 // pred_check
    _
  $region19: #{mymodule_forward.10} parent=0 // pred_check_branch
    %22 = sbr.rel (0) target = $region21
  $region20: #{mymodule_forward.10} parent=0 // pred_region
    _
  $region21: #{mymodule_forward.10} parent=0 // pred_fallthru
    _
  // Predicated region
  $region22: #{mymodule_forward.10} parent=0 // pred_check
    _
  $region23: #{mymodule_forward.10} parent=0 // pred_check_branch
    %24 = sbr.rel (0) target = $region25
  $region24: #{mymodule_forward.10} parent=0 // pred_region
    _
  $region25: #{mymodule_forward.10} parent=0 // pred_fallthru
    _
  %p26 = scmp.eq.s32.totalorder 0, 0
  // Predicated region
  $region26: #{mymodule_forward.10} parent=0 // pred_check
    %p27 = pneg %p26
  $region27: #{mymodule_forward.10} parent=0 // pred_check_branch
    %29 = sbr.rel (%p27) target = $region29
  $region28: #{mymodule_forward.10} parent=0 // pred_region
    %v30 = vld [vmem:[%s5] sm:$0xff]
    %vm31 = vcmask 523264
    %32 = vst.msk [vmem:[#allocation2] sm:$0xff] %vm31, %v30
    %33 = vst.msk [vmem:[#allocation3] sm:$0xff] %vm31, 0.0
  $region29: #{mymodule_forward.10} parent=0 // pred_fallthru
    _
  %v34 = vld [vmem:[%s4] sm:$0xff]
  %v35 = vld [vmem:[%s4 + $0x8] sm:$0xff]
  %v36 = vld [vmem:[%s4 + $0x10] sm:$0xff]
  %v37 = vld [vmem:[%s4 + $0x18] sm:$0xff]
  %v38 = vld [vmem:[%s4 + $0x20] sm:$0xff]
  %v39 = vld [vmem:[%s4 + $0x28] sm:$0xff]
  %v40 = vld [vmem:[%s4 + $0x30] sm:$0xff]
  %v41 = vld [vmem:[%s4 + $0x38] sm:$0xff]
  %v42 = vld [vmem:[%s1] sm:$0xff]
  %v43 = vld [vmem:[%s1 + $0x8] sm:$0xff]
  %v44 = vld [vmem:[%s1 + $0x10] sm:$0xff]
  %v45 = vld [vmem:[%s1 + $0x18] sm:$0xff]
  %v46 = vld [vmem:[%s1 + $0x20] sm:$0xff]
  %v47 = vld [vmem:[%s1 + $0x28] sm:$0xff]
  %v48 = vld [vmem:[%s1 + $0x30] sm:$0xff]
  %v49 = vld [vmem:[%s1 + $0x38] sm:$0xff]
  %v50 = vld [vmem:[%s2] sm:$0xff]
  %v51 = vld [vmem:[%s2 + $0x8] sm:$0xff]
  %v52 = vld [vmem:[%s2 + $0x10] sm:$0xff]
  %v53 = vld [vmem:[%s2 + $0x18] sm:$0xff]
  %v54 = vld [vmem:[%s2 + $0x20] sm:$0xff]
  %v55 = vld [vmem:[%s2 + $0x28] sm:$0xff]
  %v56 = vld [vmem:[%s2 + $0x30] sm:$0xff]
  %v57 = vld [vmem:[%s2 + $0x38] sm:$0xff]
  %v58 = vld [vmem:[%s3] sm:$0x1]
  %v59 = vld [vmem:[#allocation2] sm:$0xff]
  %v60 = vld [vmem:[#allocation3] sm:$0xff]
  %v61 = vld [vmem:[%s0] sm:$0xff]
  %v62 = vld [vmem:[%s0 + $0x8] sm:$0xff]
  %v63 = vpack.c.bf16 %v60, %v60
  %v72 = vunpack.c.l.b16 %v42
  %v73 = vunpack.c.h.b16 %v42
  %v74 = vunpack.c.l.b16 %v43
  %v75 = vunpack.c.h.b16 %v43
  %v76 = vunpack.c.l.b16 %v44
  %v77 = vunpack.c.h.b16 %v44
  %v78 = vunpack.c.l.b16 %v45
  %v79 = vunpack.c.h.b16 %v45
  %v80 = vunpack.c.l.b16 %v46
  %v81 = vunpack.c.h.b16 %v46
  %v82 = vunpack.c.l.b16 %v47
  %v83 = vunpack.c.h.b16 %v47
  %v84 = vunpack.c.l.b16 %v48
  %v85 = vunpack.c.h.b16 %v48
  %v86 = vunpack.c.l.b16 %v49
  %v87 = vunpack.c.h.b16 %v49
  %v88 = vpack.c.b16 %v74, %v72
  %v89 = vpack.c.b16 %v75, %v73
  %v90 = vpack.c.b16 %v78, %v76
  %v91 = vpack.c.b16 %v79, %v77
  %v92 = vpack.c.b16 %v82, %v80
  %v93 = vpack.c.b16 %v83, %v81
  %v94 = vpack.c.b16 %v86, %v84
  %v95 = vpack.c.b16 %v87, %v85
  %vm104 = vcmask 523264
  %v106 = vsel %vm104, %v63, 0
  %108 = vmatpush.bf16.msra.mxu0 0
  %109 = vmatpush.bf16.msra.mxu0 0
  %110 = vmatpush.bf16.msra.mxu0 0
  %111 = vmatpush.bf16.msra.mxu0 0
  %112 = vmatpush.bf16.msra.mxu0 %v94
  %113 = vmatpush.bf16.msra.mxu0 %v92
  %114 = vmatpush.bf16.msra.mxu0 %v90
  %115 = vmatpush.bf16.msra.mxu0 %v88
  %116 = vmatmul.bf16.gmra.mxu0 %v106
  %v117 = vpop.f32.mrf.mxu0
  %v118 = vadd.f32 0.0, %v117
  %v119 = vpop.f32.mrf.mxu0
  %120 = vdwg.mxu0
  %121 = vmatpush.bf16.msra.mxu0 0
  %122 = vmatpush.bf16.msra.mxu0 0
  %123 = vmatpush.bf16.msra.mxu0 0
  %124 = vmatpush.bf16.msra.mxu0 0
  %125 = vmatpush.bf16.msra.mxu0 %v95
  %126 = vmatpush.bf16.msra.mxu0 %v93
  %127 = vmatpush.bf16.msra.mxu0 %v91
  %128 = vmatpush.bf16.msra.mxu0 %v89
  %129 = vmatmul.bf16.gmra.mxu0 %v106
  %v130 = vpop.f32.mrf.mxu0
  %v131 = vadd.f32 0.0, %v130
  %v132 = vpop.f32.mrf.mxu0
  %133 = vdwg.mxu0
  %v134 = vadd.f32 %v61, %v118
  %v135 = vadd.f32 %v62, %v131
  %v136 = vpack.c.bf16 %v59, %v59
  %v145 = vunpack.c.l.b16 %v50
  %v146 = vunpack.c.h.b16 %v50
  %v147 = vunpack.c.l.b16 %v51
  %v148 = vunpack.c.h.b16 %v51
  %v149 = vunpack.c.l.b16 %v52
  %v150 = vunpack.c.h.b16 %v52
  %v151 = vunpack.c.l.b16 %v53
  %v152 = vunpack.c.h.b16 %v53
  %v153 = vunpack.c.l.b16 %v54
  %v154 = vunpack.c.h.b16 %v54
  %v155 = vunpack.c.l.b16 %v55
  %v156 = vunpack.c.h.b16 %v55
  %v157 = vunpack.c.l.b16 %v56
  %v158 = vunpack.c.h.b16 %v56
  %v159 = vunpack.c.l.b16 %v57
  %v160 = vunpack.c.h.b16 %v57
  %v161 = vpack.c.b16 %v147, %v145
  %v162 = vpack.c.b16 %v148, %v146
  %v163 = vpack.c.b16 %v151, %v149
  %v164 = vpack.c.b16 %v152, %v150
  %v165 = vpack.c.b16 %v155, %v153
  %v166 = vpack.c.b16 %v156, %v154
  %v167 = vpack.c.b16 %v159, %v157
  %v168 = vpack.c.b16 %v160, %v158
  %v178 = vsel %vm104, %v136, 0
  %180 = vmatpush.bf16.msra.mxu0 0
  %181 = vmatpush.bf16.msra.mxu0 0
  %182 = vmatpush.bf16.msra.mxu0 0
  %183 = vmatpush.bf16.msra.mxu0 0
  %184 = vmatpush.bf16.msra.mxu0 %v167
  %185 = vmatpush.bf16.msra.mxu0 %v165
  %186 = vmatpush.bf16.msra.mxu0 %v163
  %187 = vmatpush.bf16.msra.mxu0 %v161
  %188 = vmatmul.bf16.gmra.mxu0 %v178
  %v189 = vpop.f32.mrf.mxu0
  %v190 = vadd.f32 0.0, %v189
  %v191 = vpop.f32.mrf.mxu0
  %192 = vdwg.mxu0
  %193 = vmatpush.bf16.msra.mxu0 0
  %194 = vmatpush.bf16.msra.mxu0 0
  %195 = vmatpush.bf16.msra.mxu0 0
  %196 = vmatpush.bf16.msra.mxu0 0
  %197 = vmatpush.bf16.msra.mxu0 %v168
  %198 = vmatpush.bf16.msra.mxu0 %v166
  %199 = vmatpush.bf16.msra.mxu0 %v164
  %200 = vmatpush.bf16.msra.mxu0 %v162
  %201 = vmatmul.bf16.gmra.mxu0 %v178
  %v202 = vpop.f32.mrf.mxu0
  %v203 = vadd.f32 0.0, %v202
  %v204 = vpop.f32.mrf.mxu0
  %205 = vdwg.mxu0
  %v206 = vadd.f32 %v134, %v190
  %v207 = vxor.u32 %v206, 2147483648
  %v208 = vmul.f32 %v207, 1.442695
  %v209 = vpow.pop %v208
  %v210 = vadd.f32 %v209, 1.0
  %v211 = vrcp.pop %v210
  %v212 = vmul.f32 %v210, %v211
  %v213 = vsub.f32 1.0, %v212
  %v214 = vmul.f32 %v211, %v213
  %v215 = vadd.f32 %v211, %v214
  %vm216 = vweird.f32 %v210
  %vm217 = vweird.f32 %v211
  %vm218 = vmor %vm216, %vm217
  %v219 = vsel %vm218, %v211, %v215
  %v220 = vand.u32 2147483647, %v210
  %vm221 = vcmp.eq.f32.partialorder %v220, 8.507059e+37
  %v222 = vand.u32 %v210, 2147483648
  %v223 = vor.u32 1.1754944e-38, %v222
  %v224 = vsel %vm221, %v223, %v219
  %v225 = vmul.f32 1.0, %v224
  %v227 = vperm.slane %v58, 0
  %v229 = vadd.f32 %v203, %v227
  %v230 = vmul.f32 %v225, %v229
  %v231 = vadd.f32 %v135, %v230
  %v232 = vtanh.pop %v231
  %v233 = vsub.f32 1.0, %v225
  %235 = vrot.lane.b32.xlu0 %v232, 64
  %v236 = vpop.permute.xlu0 %235
  %v238 = vmul.f32 %v233, %v236
  %240 = vrot.lane.b32.xlu0 %v59, 64
  %v241 = vpop.permute.xlu0 %240
  %v243 = vmul.f32 %v225, %v241
  %v244 = vadd.f32 %v238, %v243
  %v246 = vrot.slane %v244, 1
  %v247 = vrot.slane %v244, 2
  %v248 = vrot.slane %v244, 3
  %v249 = vrot.slane %v244, 4
  %v250 = vrot.slane %v244, 5
  %v251 = vrot.slane %v244, 6
  %v252 = vrot.slane %v244, 7
  %v253 = vperm.slane %v244, 0
  %v254 = vperm.slane %v246, 0
  %v255 = vperm.slane %v247, 0
  %v256 = vperm.slane %v248, 0
  %v257 = vperm.slane %v249, 0
  %v258 = vperm.slane %v250, 0
  %v259 = vperm.slane %v251, 0
  %v260 = vperm.slane %v252, 0
  %261 = vrot.lane.b32.xlu0 %v253, 64
  %v262 = vpop.permute.xlu0 %261
  %263 = vrot.lane.b32.xlu0 %v254, 64
  %v264 = vpop.permute.xlu0 %263
  %265 = vrot.lane.b32.xlu0 %v255, 64
  %v266 = vpop.permute.xlu0 %265
  %267 = vrot.lane.b32.xlu0 %v256, 64
  %v268 = vpop.permute.xlu0 %267
  %269 = vrot.lane.b32.xlu0 %v257, 64
  %v270 = vpop.permute.xlu0 %269
  %271 = vrot.lane.b32.xlu0 %v258, 64
  %v272 = vpop.permute.xlu0 %271
  %273 = vrot.lane.b32.xlu0 %v259, 64
  %v274 = vpop.permute.xlu0 %273
  %275 = vrot.lane.b32.xlu0 %v260, 64
  %v276 = vpop.permute.xlu0 %275
  %v285 = vmul.f32 %v34, %v262
  %v286 = vmul.f32 %v35, %v264
  %v287 = vmul.f32 %v36, %v266
  %v288 = vmul.f32 %v37, %v268
  %v289 = vmul.f32 %v38, %v270
  %v290 = vmul.f32 %v39, %v272
  %v291 = vmul.f32 %v40, %v274
  %v292 = vmul.f32 %v41, %v276
  %v293 = vsel %vm104, %v285, 0.0
  %294 = vadd.xlane.f32.xlu0 %v293
  %v295 = vpop.xlane.xlu0 %294
  %v296 = vsel %vm104, %v286, 0.0
  %297 = vadd.xlane.f32.xlu0 %v296
  %v298 = vpop.xlane.xlu0 %297
  %v299 = vsel %vm104, %v287, 0.0
  %300 = vadd.xlane.f32.xlu0 %v299
  %v301 = vpop.xlane.xlu0 %300
  %v302 = vsel %vm104, %v288, 0.0
  %303 = vadd.xlane.f32.xlu0 %v302
  %v304 = vpop.xlane.xlu0 %303
  %v305 = vsel %vm104, %v289, 0.0
  %306 = vadd.xlane.f32.xlu0 %v305
  %v307 = vpop.xlane.xlu0 %306
  %v308 = vsel %vm104, %v290, 0.0
  %309 = vadd.xlane.f32.xlu0 %v308
  %v310 = vpop.xlane.xlu0 %309
  %v311 = vsel %vm104, %v291, 0.0
  %312 = vadd.xlane.f32.xlu0 %v311
  %v313 = vpop.xlane.xlu0 %312
  %v314 = vsel %vm104, %v292, 0.0
  %315 = vadd.xlane.f32.xlu0 %v314
  %v316 = vpop.xlane.xlu0 %315
  %v325 = vlaneseq
  %v326 = vand.u32 %v325, 127
  %v327 = vperm.slane %v295, %v326
  %v328 = vperm.slane %v298, %v326
  %v329 = vperm.slane %v301, %v326
  %v330 = vperm.slane %v304, %v326
  %v331 = vperm.slane %v307, %v326
  %v332 = vperm.slane %v310, %v326
  %v333 = vperm.slane %v313, %v326
  %v334 = vperm.slane %v316, %v326
  %vm335 = vcmask 1041409
  %v336 = vsel %vm335, %v328, %v327
  %vm337 = vcmask 1042434
  %v338 = vsel %vm337, %v329, %v336
  %vm339 = vcmask 1043459
  %v340 = vsel %vm339, %v330, %v338
  %vm341 = vcmask 1044484
  %v342 = vsel %vm341, %v331, %v340
  %vm343 = vcmask 1045509
  %v344 = vsel %vm343, %v332, %v342
  %vm345 = vcmask 1046534
  %v346 = vsel %vm345, %v333, %v344
  %vm347 = vcmask 1047559
  %v348 = vsel %vm347, %v334, %v346
  %vm350 = vcmask 64512
  %v351 = vsel %vm350, %v348, -inf
  %352 = vmax.xlane.f32.xlu0 %v351
  %v353 = vpop.xlane.xlu0 %352
  %v355 = vperm.slane %v353, 0
  %v356 = vperm.slane %v353, 1
  %v357 = vperm.slane %v353, 2
  %v358 = vperm.slane %v353, 3
  %v359 = vperm.slane %v353, 4
  %v360 = vperm.slane %v353, 5
  %v361 = vperm.slane %v353, 6
  %v362 = vperm.slane %v353, 7
  %v371 = vsub.f32 %v295, %v355
  %v372 = vsub.f32 %v298, %v356
  %v373 = vsub.f32 %v301, %v357
  %v374 = vsub.f32 %v304, %v358
  %v375 = vsub.f32 %v307, %v359
  %v376 = vsub.f32 %v310, %v360
  %v377 = vsub.f32 %v313, %v361
  %v378 = vsub.f32 %v316, %v362
  %v379 = vmul.f32 %v371, 1.442695
  %v380 = vpow.pop %v379
  %v381 = vmul.f32 %v372, 1.442695
  %v382 = vpow.pop %v381
  %v383 = vmul.f32 %v373, 1.442695
  %v384 = vpow.pop %v383
  %v385 = vmul.f32 %v374, 1.442695
  %v386 = vpow.pop %v385
  %v387 = vmul.f32 %v375, 1.442695
  %v388 = vpow.pop %v387
  %v389 = vmul.f32 %v376, 1.442695
  %v390 = vpow.pop %v389
  %v391 = vmul.f32 %v377, 1.442695
  %v392 = vpow.pop %v391
  %v393 = vmul.f32 %v378, 1.442695
  %v394 = vpow.pop %v393
  %403 = vset.pattern.permute.xlu0 0
  %404 = vperm.xlu0 %403, %v380
  %v405 = vpop.permute.xlu0 %404
  %406 = vset.pattern.permute.xlu0 0
  %407 = vperm.xlu0 %406, %v382
  %v408 = vpop.permute.xlu0 %407
  %409 = vset.pattern.permute.xlu0 0
  %410 = vperm.xlu0 %409, %v384
  %v411 = vpop.permute.xlu0 %410
  %412 = vset.pattern.permute.xlu0 0
  %413 = vperm.xlu0 %412, %v386
  %v414 = vpop.permute.xlu0 %413
  %415 = vset.pattern.permute.xlu0 0
  %416 = vperm.xlu0 %415, %v388
  %v417 = vpop.permute.xlu0 %416
  %418 = vset.pattern.permute.xlu0 0
  %419 = vperm.xlu0 %418, %v390
  %v420 = vpop.permute.xlu0 %419
  %421 = vset.pattern.permute.xlu0 0
  %422 = vperm.xlu0 %421, %v392
  %v423 = vpop.permute.xlu0 %422
  %424 = vset.pattern.permute.xlu0 0
  %425 = vperm.xlu0 %424, %v394
  %v426 = vpop.permute.xlu0 %425
  %v427 = vperm.slane %v405, %v326
  %v428 = vperm.slane %v408, %v326
  %v429 = vperm.slane %v411, %v326
  %v430 = vperm.slane %v414, %v326
  %v431 = vperm.slane %v417, %v326
  %v432 = vperm.slane %v420, %v326
  %v433 = vperm.slane %v423, %v326
  %v434 = vperm.slane %v426, %v326
  %v435 = vsel %vm335, %v428, %v427
  %v436 = vsel %vm337, %v429, %v435
  %v437 = vsel %vm339, %v430, %v436
  %v438 = vsel %vm341, %v431, %v437
  %v439 = vsel %vm343, %v432, %v438
  %v440 = vsel %vm345, %v433, %v439
  %v441 = vsel %vm347, %v434, %v440
  %v443 = vsel %vm350, %v441, 0.0
  %444 = vadd.xlane.f32.xlu0 %v443
  %v445 = vpop.xlane.xlu0 %444
  %v447 = vperm.slane %v445, 0
  %v448 = vperm.slane %v445, 1
  %v449 = vperm.slane %v445, 2
  %v450 = vperm.slane %v445, 3
  %v451 = vperm.slane %v445, 4
  %v452 = vperm.slane %v445, 5
  %v453 = vperm.slane %v445, 6
  %v454 = vperm.slane %v445, 7
  %v463 = vrcp.pop %v447
  %v464 = vmul.f32 %v447, %v463
  %v465 = vsub.f32 1.0, %v464
  %v466 = vmul.f32 %v463, %v465
  %v467 = vadd.f32 %v463, %v466
  %vm468 = vweird.f32 %v447
  %vm469 = vweird.f32 %v463
  %vm470 = vmor %vm468, %vm469
  %v471 = vsel %vm470, %v463, %v467
  %v472 = vand.u32 2147483647, %v447
  %vm473 = vcmp.eq.f32.partialorder %v472, 8.507059e+37
  %v474 = vand.u32 %v447, 2147483648
  %v475 = vor.u32 1.1754944e-38, %v474
  %v476 = vsel %vm473, %v475, %v471
  %v477 = vmul.f32 %v380, %v476
  %v478 = vrcp.pop %v448
  %v479 = vmul.f32 %v448, %v478
  %v480 = vsub.f32 1.0, %v479
  %v481 = vmul.f32 %v478, %v480
  %v482 = vadd.f32 %v478, %v481
  %vm483 = vweird.f32 %v448
  %vm484 = vweird.f32 %v478
  %vm485 = vmor %vm483, %vm484
  %v486 = vsel %vm485, %v478, %v482
  %v487 = vand.u32 2147483647, %v448
  %vm488 = vcmp.eq.f32.partialorder %v487, 8.507059e+37
  %v489 = vand.u32 %v448, 2147483648
  %v490 = vor.u32 1.1754944e-38, %v489
  %v491 = vsel %vm488, %v490, %v486
  %v492 = vmul.f32 %v382, %v491
  %v493 = vrcp.pop %v449
  %v494 = vmul.f32 %v449, %v493
  %v495 = vsub.f32 1.0, %v494
  %v496 = vmul.f32 %v493, %v495
  %v497 = vadd.f32 %v493, %v496
  %vm498 = vweird.f32 %v449
  %vm499 = vweird.f32 %v493
  %vm500 = vmor %vm498, %vm499
  %v501 = vsel %vm500, %v493, %v497
  %v502 = vand.u32 2147483647, %v449
  %vm503 = vcmp.eq.f32.partialorder %v502, 8.507059e+37
  %v504 = vand.u32 %v449, 2147483648
  %v505 = vor.u32 1.1754944e-38, %v504
  %v506 = vsel %vm503, %v505, %v501
  %v507 = vmul.f32 %v384, %v506
  %v508 = vrcp.pop %v450
  %v509 = vmul.f32 %v450, %v508
  %v510 = vsub.f32 1.0, %v509
  %v511 = vmul.f32 %v508, %v510
  %v512 = vadd.f32 %v508, %v511
  %vm513 = vweird.f32 %v450
  %vm514 = vweird.f32 %v508
  %vm515 = vmor %vm513, %vm514
  %v516 = vsel %vm515, %v508, %v512
  %v517 = vand.u32 2147483647, %v450
  %vm518 = vcmp.eq.f32.partialorder %v517, 8.507059e+37
  %v519 = vand.u32 %v450, 2147483648
  %v520 = vor.u32 1.1754944e-38, %v519
  %v521 = vsel %vm518, %v520, %v516
  %v522 = vmul.f32 %v386, %v521
  %v523 = vrcp.pop %v451
  %v524 = vmul.f32 %v451, %v523
  %v525 = vsub.f32 1.0, %v524
  %v526 = vmul.f32 %v523, %v525
  %v527 = vadd.f32 %v523, %v526
  %vm528 = vweird.f32 %v451
  %vm529 = vweird.f32 %v523
  %vm530 = vmor %vm528, %vm529
  %v531 = vsel %vm530, %v523, %v527
  %v532 = vand.u32 2147483647, %v451
  %vm533 = vcmp.eq.f32.partialorder %v532, 8.507059e+37
  %v534 = vand.u32 %v451, 2147483648
  %v535 = vor.u32 1.1754944e-38, %v534
  %v536 = vsel %vm533, %v535, %v531
  %v537 = vmul.f32 %v388, %v536
  %v538 = vrcp.pop %v452
  %v539 = vmul.f32 %v452, %v538
  %v540 = vsub.f32 1.0, %v539
  %v541 = vmul.f32 %v538, %v540
  %v542 = vadd.f32 %v538, %v541
  %vm543 = vweird.f32 %v452
  %vm544 = vweird.f32 %v538
  %vm545 = vmor %vm543, %vm544
  %v546 = vsel %vm545, %v538, %v542
  %v547 = vand.u32 2147483647, %v452
  %vm548 = vcmp.eq.f32.partialorder %v547, 8.507059e+37
  %v549 = vand.u32 %v452, 2147483648
  %v550 = vor.u32 1.1754944e-38, %v549
  %v551 = vsel %vm548, %v550, %v546
  %v552 = vmul.f32 %v390, %v551
  %v553 = vrcp.pop %v453
  %v554 = vmul.f32 %v453, %v553
  %v555 = vsub.f32 1.0, %v554
  %v556 = vmul.f32 %v553, %v555
  %v557 = vadd.f32 %v553, %v556
  %vm558 = vweird.f32 %v453
  %vm559 = vweird.f32 %v553
  %vm560 = vmor %vm558, %vm559
  %v561 = vsel %vm560, %v553, %v557
  %v562 = vand.u32 2147483647, %v453
  %vm563 = vcmp.eq.f32.partialorder %v562, 8.507059e+37
  %v564 = vand.u32 %v453, 2147483648
  %v565 = vor.u32 1.1754944e-38, %v564
  %v566 = vsel %vm563, %v565, %v561
  %v567 = vmul.f32 %v392, %v566
  %v568 = vrcp.pop %v454
  %v569 = vmul.f32 %v454, %v568
  %v570 = vsub.f32 1.0, %v569
  %v571 = vmul.f32 %v568, %v570
  %v572 = vadd.f32 %v568, %v571
  %vm573 = vweird.f32 %v454
  %vm574 = vweird.f32 %v568
  %vm575 = vmor %vm573, %vm574
  %v576 = vsel %vm575, %v568, %v572
  %v577 = vand.u32 2147483647, %v454
  %vm578 = vcmp.eq.f32.partialorder %v577, 8.507059e+37
  %v579 = vand.u32 %v454, 2147483648
  %v580 = vor.u32 1.1754944e-38, %v579
  %v581 = vsel %vm578, %v580, %v576
  %v582 = vmul.f32 %v394, %v581
  %584 = vset.pattern.permute.xlu0 0
  %585 = vperm.xlu0 %584, %v477
  %v586 = vpop.permute.xlu0 %585
  %589 = vset.pattern.permute.xlu0 0
  %590 = vperm.xlu0 %589, %v492
  %v591 = vpop.permute.xlu0 %590
  %594 = vset.pattern.permute.xlu0 0
  %595 = vperm.xlu0 %594, %v507
  %v596 = vpop.permute.xlu0 %595
  %599 = vset.pattern.permute.xlu0 0
  %600 = vperm.xlu0 %599, %v522
  %v601 = vpop.permute.xlu0 %600
  %604 = vset.pattern.permute.xlu0 0
  %605 = vperm.xlu0 %604, %v537
  %v606 = vpop.permute.xlu0 %605
  %609 = vset.pattern.permute.xlu0 0
  %610 = vperm.xlu0 %609, %v552
  %v611 = vpop.permute.xlu0 %610
  %614 = vset.pattern.permute.xlu0 0
  %615 = vperm.xlu0 %614, %v567
  %v616 = vpop.permute.xlu0 %615
  %619 = vset.pattern.permute.xlu0 0
  %620 = vperm.xlu0 %619, %v582
  %v621 = vpop.permute.xlu0 %620
  %v623 = vmul.f32 %v586, %v34
  %v624 = vmul.f32 %v591, %v35
  %v625 = vmul.f32 %v596, %v36
  %v626 = vmul.f32 %v601, %v37
  %v627 = vmul.f32 %v606, %v38
  %v628 = vmul.f32 %v611, %v39
  %v629 = vmul.f32 %v616, %v40
  %v630 = vmul.f32 %v621, %v41
  %v631 = vsel %vm104, %v623, 0.0
  %v632 = vrot.slane %v631, 4
  %v633 = vadd.f32 %v631, %v632
  %v634 = vrot.slane %v633, 2
  %v635 = vadd.f32 %v633, %v634
  %v636 = vrot.slane %v635, 1
  %v637 = vadd.f32 %v635, %v636
  %v638 = vsel %vm104, %v624, 0.0
  %v639 = vrot.slane %v638, 4
  %v640 = vadd.f32 %v638, %v639
  %v641 = vrot.slane %v640, 2
  %v642 = vadd.f32 %v640, %v641
  %v643 = vrot.slane %v642, 1
  %v644 = vadd.f32 %v642, %v643
  %v645 = vsel %vm104, %v625, 0.0
  %v646 = vrot.slane %v645, 4
  %v647 = vadd.f32 %v645, %v646
  %v648 = vrot.slane %v647, 2
  %v649 = vadd.f32 %v647, %v648
  %v650 = vrot.slane %v649, 1
  %v651 = vadd.f32 %v649, %v650
  %v652 = vsel %vm104, %v626, 0.0
  %v653 = vrot.slane %v652, 4
  %v654 = vadd.f32 %v652, %v653
  %v655 = vrot.slane %v654, 2
  %v656 = vadd.f32 %v654, %v655
  %v657 = vrot.slane %v656, 1
  %v658 = vadd.f32 %v656, %v657
  %v659 = vsel %vm104, %v627, 0.0
  %v660 = vrot.slane %v659, 4
  %v661 = vadd.f32 %v659, %v660
  %v662 = vrot.slane %v661, 2
  %v663 = vadd.f32 %v661, %v662
  %v664 = vrot.slane %v663, 1
  %v665 = vadd.f32 %v663, %v664
  %v666 = vsel %vm104, %v628, 0.0
  %v667 = vrot.slane %v666, 4
  %v668 = vadd.f32 %v666, %v667
  %v669 = vrot.slane %v668, 2
  %v670 = vadd.f32 %v668, %v669
  %v671 = vrot.slane %v670, 1
  %v672 = vadd.f32 %v670, %v671
  %v673 = vsel %vm104, %v629, 0.0
  %v674 = vrot.slane %v673, 4
  %v675 = vadd.f32 %v673, %v674
  %v676 = vrot.slane %v675, 2
  %v677 = vadd.f32 %v675, %v676
  %v678 = vrot.slane %v677, 1
  %v679 = vadd.f32 %v677, %v678
  %v680 = vsel %vm104, %v630, 0.0
  %v681 = vrot.slane %v680, 4
  %v682 = vadd.f32 %v680, %v681
  %v683 = vrot.slane %v682, 2
  %v684 = vadd.f32 %v682, %v683
  %v685 = vrot.slane %v684, 1
  %v686 = vadd.f32 %v684, %v685
  %687 = vrot.lane.b32.xlu0 %v244, 64
  %v688 = vpop.permute.xlu0 %687
  %690 = vst.msk [vmem:[#allocation2] sm:$0xff] %vm104, %v688
  %v699 = vsel %vm335, %v644, %v637
  %v700 = vsel %vm337, %v651, %v699
  %v701 = vsel %vm339, %v658, %v700
  %v702 = vsel %vm341, %v665, %v701
  %v703 = vsel %vm343, %v672, %v702
  %v704 = vsel %vm345, %v679, %v703
  %v705 = vsel %vm347, %v686, %v704
  %707 = vst.msk [vmem:[#allocation3] sm:$0xff] %vm104, %v705
  %708 = vst.msk [vmem:[%s7] sm:$0xff] %vm104, %v688
  %709 = vst.msk [vmem:[%s6] sm:$0xff] %vm104, %v705
  %v710 = vld [vmem:[#allocation2] sm:$0xff]
  %v711 = vld [vmem:[#allocation3] sm:$0xff]
  %s712 = scalar_lea.vmem %s0, 16
  %v713 = vld [vmem:[%s712] sm:$0xff]
  %v714 = vld [vmem:[%s712 + $0x8] sm:$0xff]
  %v715 = vpack.c.bf16 %v711, %v711
  %v717 = vsel %vm104, %v715, 0
  %719 = vmatpush.bf16.msra.mxu0 0
  %720 = vmatpush.bf16.msra.mxu0 0
  %721 = vmatpush.bf16.msra.mxu0 0
  %722 = vmatpush.bf16.msra.mxu0 0
  %723 = vmatpush.bf16.msra.mxu0 %v94
  %724 = vmatpush.bf16.msra.mxu0 %v92
  %725 = vmatpush.bf16.msra.mxu0 %v90
  %726 = vmatpush.bf16.msra.mxu0 %v88
  %727 = vmatmul.bf16.gmra.mxu0 %v717
  %v728 = vpop.f32.mrf.mxu0
  %v729 = vadd.f32 0.0, %v728
  %v730 = vpop.f32.mrf.mxu0
  %731 = vdwg.mxu0
  %732 = vmatpush.bf16.msra.mxu0 0
  %733 = vmatpush.bf16.msra.mxu0 0
  %734 = vmatpush.bf16.msra.mxu0 0
  %735 = vmatpush.bf16.msra.mxu0 0
  %736 = vmatpush.bf16.msra.mxu0 %v95
  %737 = vmatpush.bf16.msra.mxu0 %v93
  %738 = vmatpush.bf16.msra.mxu0 %v91
  %739 = vmatpush.bf16.msra.mxu0 %v89
  %740 = vmatmul.bf16.gmra.mxu0 %v717
  %v741 = vpop.f32.mrf.mxu0
  %v742 = vadd.f32 0.0, %v741
  %v743 = vpop.f32.mrf.mxu0
  %744 = vdwg.mxu0
  %v745 = vadd.f32 %v713, %v729
  %v746 = vadd.f32 %v714, %v742
  %v747 = vpack.c.bf16 %v710, %v710
  %v749 = vsel %vm104, %v747, 0
  %751 = vmatpush.bf16.msra.mxu0 0
  %752 = vmatpush.bf16.msra.mxu0 0
  %753 = vmatpush.bf16.msra.mxu0 0
  %754 = vmatpush.bf16.msra.mxu0 0
  %755 = vmatpush.bf16.msra.mxu0 %v167
  %756 = vmatpush.bf16.msra.mxu0 %v165
  %757 = vmatpush.bf16.msra.mxu0 %v163
  %758 = vmatpush.bf16.msra.mxu0 %v161
  %759 = vmatmul.bf16.gmra.mxu0 %v749
  %v760 = vpop.f32.mrf.mxu0
  %v761 = vadd.f32 0.0, %v760
  %v762 = vpop.f32.mrf.mxu0
  %763 = vdwg.mxu0
  %764 = vmatpush.bf16.msra.mxu0 0
  %765 = vmatpush.bf16.msra.mxu0 0
  %766 = vmatpush.bf16.msra.mxu0 0
  %767 = vmatpush.bf16.msra.mxu0 0
  %768 = vmatpush.bf16.msra.mxu0 %v168
  %769 = vmatpush.bf16.msra.mxu0 %v166
  %770 = vmatpush.bf16.msra.mxu0 %v164
  %771 = vmatpush.bf16.msra.mxu0 %v162
  %772 = vmatmul.bf16.gmra.mxu0 %v749
  %v773 = vpop.f32.mrf.mxu0
  %v774 = vadd.f32 0.0, %v773
  %v775 = vpop.f32.mrf.mxu0
  %776 = vdwg.mxu0
  %v777 = vadd.f32 %v745, %v761
  %v778 = vxor.u32 %v777, 2147483648
  %v779 = vmul.f32 %v778, 1.442695
  %v780 = vpow.pop %v779
  %v781 = vadd.f32 %v780, 1.0
  %v782 = vrcp.pop %v781
  %v783 = vmul.f32 %v781, %v782
  %v784 = vsub.f32 1.0, %v783
  %v785 = vmul.f32 %v782, %v784
  %v786 = vadd.f32 %v782, %v785
  %vm787 = vweird.f32 %v781
  %vm788 = vweird.f32 %v782
  %vm789 = vmor %vm787, %vm788
  %v790 = vsel %vm789, %v782, %v786
  %v791 = vand.u32 2147483647, %v781
  %vm792 = vcmp.eq.f32.partialorder %v791, 8.507059e+37
  %v793 = vand.u32 %v781, 2147483648
  %v794 = vor.u32 1.1754944e-38, %v793
  %v795 = vsel %vm792, %v794, %v790
  %v796 = vmul.f32 1.0, %v795
  %v797 = vadd.f32 %v774, %v227
  %v798 = vmul.f32 %v796, %v797
  %v799 = vadd.f32 %v746, %v798
  %v800 = vtanh.pop %v799
  %v801 = vsub.f32 1.0, %v796
  %803 = vrot.lane.b32.xlu0 %v800, 64
  %v804 = vpop.permute.xlu0 %803
  %v806 = vmul.f32 %v801, %v804
  %808 = vrot.lane.b32.xlu0 %v710, 64
  %v809 = vpop.permute.xlu0 %808
  %v811 = vmul.f32 %v796, %v809
  %v812 = vadd.f32 %v806, %v811
  %v814 = vrot.slane %v812, 1
  %v815 = vrot.slane %v812, 2
  %v816 = vrot.slane %v812, 3
  %v817 = vrot.slane %v812, 4
  %v818 = vrot.slane %v812, 5
  %v819 = vrot.slane %v812, 6
  %v820 = vrot.slane %v812, 7
  %v821 = vperm.slane %v812, 0
  %v822 = vperm.slane %v814, 0
  %v823 = vperm.slane %v815, 0
  %v824 = vperm.slane %v816, 0
  %v825 = vperm.slane %v817, 0
  %v826 = vperm.slane %v818, 0
  %v827 = vperm.slane %v819, 0
  %v828 = vperm.slane %v820, 0
  %829 = vrot.lane.b32.xlu0 %v821, 64
  %v830 = vpop.permute.xlu0 %829
  %831 = vrot.lane.b32.xlu0 %v822, 64
  %v832 = vpop.permute.xlu0 %831
  %833 = vrot.lane.b32.xlu0 %v823, 64
  %v834 = vpop.permute.xlu0 %833
  %835 = vrot.lane.b32.xlu0 %v824, 64
  %v836 = vpop.permute.xlu0 %835
  %837 = vrot.lane.b32.xlu0 %v825, 64
  %v838 = vpop.permute.xlu0 %837
  %839 = vrot.lane.b32.xlu0 %v826, 64
  %v840 = vpop.permute.xlu0 %839
  %841 = vrot.lane.b32.xlu0 %v827, 64
  %v842 = vpop.permute.xlu0 %841
  %843 = vrot.lane.b32.xlu0 %v828, 64
  %v844 = vpop.permute.xlu0 %843
  %v853 = vmul.f32 %v34, %v830
  %v854 = vmul.f32 %v35, %v832
  %v855 = vmul.f32 %v36, %v834
  %v856 = vmul.f32 %v37, %v836
  %v857 = vmul.f32 %v38, %v838
  %v858 = vmul.f32 %v39, %v840
  %v859 = vmul.f32 %v40, %v842
  %v860 = vmul.f32 %v41, %v844
  %v861 = vsel %vm104, %v853, 0.0
  %862 = vadd.xlane.f32.xlu0 %v861
  %v863 = vpop.xlane.xlu0 %862
  %v864 = vsel %vm104, %v854, 0.0
  %865 = vadd.xlane.f32.xlu0 %v864
  %v866 = vpop.xlane.xlu0 %865
  %v867 = vsel %vm104, %v855, 0.0
  %868 = vadd.xlane.f32.xlu0 %v867
  %v869 = vpop.xlane.xlu0 %868
  %v870 = vsel %vm104, %v856, 0.0
  %871 = vadd.xlane.f32.xlu0 %v870
  %v872 = vpop.xlane.xlu0 %871
  %v873 = vsel %vm104, %v857, 0.0
  %874 = vadd.xlane.f32.xlu0 %v873
  %v875 = vpop.xlane.xlu0 %874
  %v876 = vsel %vm104, %v858, 0.0
  %877 = vadd.xlane.f32.xlu0 %v876
  %v878 = vpop.xlane.xlu0 %877
  %v879 = vsel %vm104, %v859, 0.0
  %880 = vadd.xlane.f32.xlu0 %v879
  %v881 = vpop.xlane.xlu0 %880
  %v882 = vsel %vm104, %v860, 0.0
  %883 = vadd.xlane.f32.xlu0 %v882
  %v884 = vpop.xlane.xlu0 %883
  %v893 = vperm.slane %v863, %v326
  %v894 = vperm.slane %v866, %v326
  %v895 = vperm.slane %v869, %v326
  %v896 = vperm.slane %v872, %v326
  %v897 = vperm.slane %v875, %v326
  %v898 = vperm.slane %v878, %v326
  %v899 = vperm.slane %v881, %v326
  %v900 = vperm.slane %v884, %v326
  %v901 = vsel %vm335, %v894, %v893
  %v902 = vsel %vm337, %v895, %v901
  %v903 = vsel %vm339, %v896, %v902
  %v904 = vsel %vm341, %v897, %v903
  %v905 = vsel %vm343, %v898, %v904
  %v906 = vsel %vm345, %v899, %v905
  %v907 = vsel %vm347, %v900, %v906
  %v909 = vsel %vm350, %v907, -inf
  %910 = vmax.xlane.f32.xlu0 %v909
  %v911 = vpop.xlane.xlu0 %910
  %v913 = vperm.slane %v911, 0
  %v914 = vperm.slane %v911, 1
  %v915 = vperm.slane %v911, 2
  %v916 = vperm.slane %v911, 3
  %v917 = vperm.slane %v911, 4
  %v918 = vperm.slane %v911, 5
  %v919 = vperm.slane %v911, 6
  %v920 = vperm.slane %v911, 7
  %v929 = vsub.f32 %v863, %v913
  %v930 = vsub.f32 %v866, %v914
  %v931 = vsub.f32 %v869, %v915
  %v932 = vsub.f32 %v872, %v916
  %v933 = vsub.f32 %v875, %v917
  %v934 = vsub.f32 %v878, %v918
  %v935 = vsub.f32 %v881, %v919
  %v936 = vsub.f32 %v884, %v920
  %v937 = vmul.f32 %v929, 1.442695
  %v938 = vpow.pop %v937
  %v939 = vmul.f32 %v930, 1.442695
  %v940 = vpow.pop %v939
  %v941 = vmul.f32 %v931, 1.442695
  %v942 = vpow.pop %v941
  %v943 = vmul.f32 %v932, 1.442695
  %v944 = vpow.pop %v943
  %v945 = vmul.f32 %v933, 1.442695
  %v946 = vpow.pop %v945
  %v947 = vmul.f32 %v934, 1.442695
  %v948 = vpow.pop %v947
  %v949 = vmul.f32 %v935, 1.442695
  %v950 = vpow.pop %v949
  %v951 = vmul.f32 %v936, 1.442695
  %v952 = vpow.pop %v951
  %961 = vset.pattern.permute.xlu0 0
  %962 = vperm.xlu0 %961, %v938
  %v963 = vpop.permute.xlu0 %962
  %964 = vset.pattern.permute.xlu0 0
  %965 = vperm.xlu0 %964, %v940
  %v966 = vpop.permute.xlu0 %965
  %967 = vset.pattern.permute.xlu0 0
  %968 = vperm.xlu0 %967, %v942
  %v969 = vpop.permute.xlu0 %968
  %970 = vset.pattern.permute.xlu0 0
  %971 = vperm.xlu0 %970, %v944
  %v972 = vpop.permute.xlu0 %971
  %973 = vset.pattern.permute.xlu0 0
  %974 = vperm.xlu0 %973, %v946
  %v975 = vpop.permute.xlu0 %974
  %976 = vset.pattern.permute.xlu0 0
  %977 = vperm.xlu0 %976, %v948
  %v978 = vpop.permute.xlu0 %977
  %979 = vset.pattern.permute.xlu0 0
  %980 = vperm.xlu0 %979, %v950
  %v981 = vpop.permute.xlu0 %980
  %982 = vset.pattern.permute.xlu0 0
  %983 = vperm.xlu0 %982, %v952
  %v984 = vpop.permute.xlu0 %983
  %v985 = vperm.slane %v963, %v326
  %v986 = vperm.slane %v966, %v326
  %v987 = vperm.slane %v969, %v326
  %v988 = vperm.slane %v972, %v326
  %v989 = vperm.slane %v975, %v326
  %v990 = vperm.slane %v978, %v326
  %v991 = vperm.slane %v981, %v326
  %v992 = vperm.slane %v984, %v326
  %v993 = vsel %vm335, %v986, %v985
  %v994 = vsel %vm337, %v987, %v993
  %v995 = vsel %vm339, %v988, %v994
  %v996 = vsel %vm341, %v989, %v995
  %v997 = vsel %vm343, %v990, %v996
  %v998 = vsel %vm345, %v991, %v997
  %v999 = vsel %vm347, %v992, %v998
  %v1001 = vsel %vm350, %v999, 0.0
  %1002 = vadd.xlane.f32.xlu0 %v1001
  %v1003 = vpop.xlane.xlu0 %1002
  %v1005 = vperm.slane %v1003, 0
  %v1006 = vperm.slane %v1003, 1
  %v1007 = vperm.slane %v1003, 2
  %v1008 = vperm.slane %v1003, 3
  %v1009 = vperm.slane %v1003, 4
  %v1010 = vperm.slane %v1003, 5
  %v1011 = vperm.slane %v1003, 6
  %v1012 = vperm.slane %v1003, 7
  %v1021 = vrcp.pop %v1005
  %v1022 = vmul.f32 %v1005, %v1021
  %v1023 = vsub.f32 1.0, %v1022
  %v1024 = vmul.f32 %v1021, %v1023
  %v1025 = vadd.f32 %v1021, %v1024
  %vm1026 = vweird.f32 %v1005
  %vm1027 = vweird.f32 %v1021
  %vm1028 = vmor %vm1026, %vm1027
  %v1029 = vsel %vm1028, %v1021, %v1025
  %v1030 = vand.u32 2147483647, %v1005
  %vm1031 = vcmp.eq.f32.partialorder %v1030, 8.507059e+37
  %v1032 = vand.u32 %v1005, 2147483648
  %v1033 = vor.u32 1.1754944e-38, %v1032
  %v1034 = vsel %vm1031, %v1033, %v1029
  %v1035 = vmul.f32 %v938, %v1034
  %v1036 = vrcp.pop %v1006
  %v1037 = vmul.f32 %v1006, %v1036
  %v1038 = vsub.f32 1.0, %v1037
  %v1039 = vmul.f32 %v1036, %v1038
  %v1040 = vadd.f32 %v1036, %v1039
  %vm1041 = vweird.f32 %v1006
  %vm1042 = vweird.f32 %v1036
  %vm1043 = vmor %vm1041, %vm1042
  %v1044 = vsel %vm1043, %v1036, %v1040
  %v1045 = vand.u32 2147483647, %v1006
  %vm1046 = vcmp.eq.f32.partialorder %v1045, 8.507059e+37
  %v1047 = vand.u32 %v1006, 2147483648
  %v1048 = vor.u32 1.1754944e-38, %v1047
  %v1049 = vsel %vm1046, %v1048, %v1044
  %v1050 = vmul.f32 %v940, %v1049
  %v1051 = vrcp.pop %v1007
  %v1052 = vmul.f32 %v1007, %v1051
  %v1053 = vsub.f32 1.0, %v1052
  %v1054 = vmul.f32 %v1051, %v1053
  %v1055 = vadd.f32 %v1051, %v1054
  %vm1056 = vweird.f32 %v1007
  %vm1057 = vweird.f32 %v1051
  %vm1058 = vmor %vm1056, %vm1057
  %v1059 = vsel %vm1058, %v1051, %v1055
  %v1060 = vand.u32 2147483647, %v1007
  %vm1061 = vcmp.eq.f32.partialorder %v1060, 8.507059e+37
  %v1062 = vand.u32 %v1007, 2147483648
  %v1063 = vor.u32 1.1754944e-38, %v1062
  %v1064 = vsel %vm1061, %v1063, %v1059
  %v1065 = vmul.f32 %v942, %v1064
  %v1066 = vrcp.pop %v1008
  %v1067 = vmul.f32 %v1008, %v1066
  %v1068 = vsub.f32 1.0, %v1067
  %v1069 = vmul.f32 %v1066, %v1068
  %v1070 = vadd.f32 %v1066, %v1069
  %vm1071 = vweird.f32 %v1008
  %vm1072 = vweird.f32 %v1066
  %vm1073 = vmor %vm1071, %vm1072
  %v1074 = vsel %vm1073, %v1066, %v1070
  %v1075 = vand.u32 2147483647, %v1008
  %vm1076 = vcmp.eq.f32.partialorder %v1075, 8.507059e+37
  %v1077 = vand.u32 %v1008, 2147483648
  %v1078 = vor.u32 1.1754944e-38, %v1077
  %v1079 = vsel %vm1076, %v1078, %v1074
  %v1080 = vmul.f32 %v944, %v1079
  %v1081 = vrcp.pop %v1009
  %v1082 = vmul.f32 %v1009, %v1081
  %v1083 = vsub.f32 1.0, %v1082
  %v1084 = vmul.f32 %v1081, %v1083
  %v1085 = vadd.f32 %v1081, %v1084
  %vm1086 = vweird.f32 %v1009
  %vm1087 = vweird.f32 %v1081
  %vm1088 = vmor %vm1086, %vm1087
  %v1089 = vsel %vm1088, %v1081, %v1085
  %v1090 = vand.u32 2147483647, %v1009
  %vm1091 = vcmp.eq.f32.partialorder %v1090, 8.507059e+37
  %v1092 = vand.u32 %v1009, 2147483648
  %v1093 = vor.u32 1.1754944e-38, %v1092
  %v1094 = vsel %vm1091, %v1093, %v1089
  %v1095 = vmul.f32 %v946, %v1094
  %v1096 = vrcp.pop %v1010
  %v1097 = vmul.f32 %v1010, %v1096
  %v1098 = vsub.f32 1.0, %v1097
  %v1099 = vmul.f32 %v1096, %v1098
  %v1100 = vadd.f32 %v1096, %v1099
  %vm1101 = vweird.f32 %v1010
  %vm1102 = vweird.f32 %v1096
  %vm1103 = vmor %vm1101, %vm1102
  %v1104 = vsel %vm1103, %v1096, %v1100
  %v1105 = vand.u32 2147483647, %v1010
  %vm1106 = vcmp.eq.f32.partialorder %v1105, 8.507059e+37
  %v1107 = vand.u32 %v1010, 2147483648
  %v1108 = vor.u32 1.1754944e-38, %v1107
  %v1109 = vsel %vm1106, %v1108, %v1104
  %v1110 = vmul.f32 %v948, %v1109
  %v1111 = vrcp.pop %v1011
  %v1112 = vmul.f32 %v1011, %v1111
  %v1113 = vsub.f32 1.0, %v1112
  %v1114 = vmul.f32 %v1111, %v1113
  %v1115 = vadd.f32 %v1111, %v1114
  %vm1116 = vweird.f32 %v1011
  %vm1117 = vweird.f32 %v1111
  %vm1118 = vmor %vm1116, %vm1117
  %v1119 = vsel %vm1118, %v1111, %v1115
  %v1120 = vand.u32 2147483647, %v1011
  %vm1121 = vcmp.eq.f32.partialorder %v1120, 8.507059e+37
  %v1122 = vand.u32 %v1011, 2147483648
  %v1123 = vor.u32 1.1754944e-38, %v1122
  %v1124 = vsel %vm1121, %v1123, %v1119
  %v1125 = vmul.f32 %v950, %v1124
  %v1126 = vrcp.pop %v1012
  %v1127 = vmul.f32 %v1012, %v1126
  %v1128 = vsub.f32 1.0, %v1127
  %v1129 = vmul.f32 %v1126, %v1128
  %v1130 = vadd.f32 %v1126, %v1129
  %vm1131 = vweird.f32 %v1012
  %vm1132 = vweird.f32 %v1126
  %vm1133 = vmor %vm1131, %vm1132
  %v1134 = vsel %vm1133, %v1126, %v1130
  %v1135 = vand.u32 2147483647, %v1012
  %vm1136 = vcmp.eq.f32.partialorder %v1135, 8.507059e+37
  %v1137 = vand.u32 %v1012, 2147483648
  %v1138 = vor.u32 1.1754944e-38, %v1137
  %v1139 = vsel %vm1136, %v1138, %v1134
  %v1140 = vmul.f32 %v952, %v1139
  %1142 = vset.pattern.permute.xlu0 0
  %1143 = vperm.xlu0 %1142, %v1035
  %v1144 = vpop.permute.xlu0 %1143
  %1147 = vset.pattern.permute.xlu0 0
  %1148 = vperm.xlu0 %1147, %v1050
  %v1149 = vpop.permute.xlu0 %1148
  %1152 = vset.pattern.permute.xlu0 0
  %1153 = vperm.xlu0 %1152, %v1065
  %v1154 = vpop.permute.xlu0 %1153
  %1157 = vset.pattern.permute.xlu0 0
  %1158 = vperm.xlu0 %1157, %v1080
  %v1159 = vpop.permute.xlu0 %1158
  %1162 = vset.pattern.permute.xlu0 0
  %1163 = vperm.xlu0 %1162, %v1095
  %v1164 = vpop.permute.xlu0 %1163
  %1167 = vset.pattern.permute.xlu0 0
  %1168 = vperm.xlu0 %1167, %v1110
  %v1169 = vpop.permute.xlu0 %1168
  %1172 = vset.pattern.permute.xlu0 0
  %1173 = vperm.xlu0 %1172, %v1125
  %v1174 = vpop.permute.xlu0 %1173
  %1177 = vset.pattern.permute.xlu0 0
  %1178 = vperm.xlu0 %1177, %v1140
  %v1179 = vpop.permute.xlu0 %1178
  %v1181 = vmul.f32 %v1144, %v34
  %v1182 = vmul.f32 %v1149, %v35
  %v1183 = vmul.f32 %v1154, %v36
  %v1184 = vmul.f32 %v1159, %v37
  %v1185 = vmul.f32 %v1164, %v38
  %v1186 = vmul.f32 %v1169, %v39
  %v1187 = vmul.f32 %v1174, %v40
  %v1188 = vmul.f32 %v1179, %v41
  %v1189 = vsel %vm104, %v1181, 0.0
  %v1190 = vrot.slane %v1189, 4
  %v1191 = vadd.f32 %v1189, %v1190
  %v1192 = vrot.slane %v1191, 2
  %v1193 = vadd.f32 %v1191, %v1192
  %v1194 = vrot.slane %v1193, 1
  %v1195 = vadd.f32 %v1193, %v1194
  %v1196 = vsel %vm104, %v1182, 0.0
  %v1197 = vrot.slane %v1196, 4
  %v1198 = vadd.f32 %v1196, %v1197
  %v1199 = vrot.slane %v1198, 2
  %v1200 = vadd.f32 %v1198, %v1199
  %v1201 = vrot.slane %v1200, 1
  %v1202 = vadd.f32 %v1200, %v1201
  %v1203 = vsel %vm104, %v1183, 0.0
  %v1204 = vrot.slane %v1203, 4
  %v1205 = vadd.f32 %v1203, %v1204
  %v1206 = vrot.slane %v1205, 2
  %v1207 = vadd.f32 %v1205, %v1206
  %v1208 = vrot.slane %v1207, 1
  %v1209 = vadd.f32 %v1207, %v1208
  %v1210 = vsel %vm104, %v1184, 0.0
  %v1211 = vrot.slane %v1210, 4
  %v1212 = vadd.f32 %v1210, %v1211
  %v1213 = vrot.slane %v1212, 2
  %v1214 = vadd.f32 %v1212, %v1213
  %v1215 = vrot.slane %v1214, 1
  %v1216 = vadd.f32 %v1214, %v1215
  %v1217 = vsel %vm104, %v1185, 0.0
  %v1218 = vrot.slane %v1217, 4
  %v1219 = vadd.f32 %v1217, %v1218
  %v1220 = vrot.slane %v1219, 2
  %v1221 = vadd.f32 %v1219, %v1220
  %v1222 = vrot.slane %v1221, 1
  %v1223 = vadd.f32 %v1221, %v1222
  %v1224 = vsel %vm104, %v1186, 0.0
  %v1225 = vrot.slane %v1224, 4
  %v1226 = vadd.f32 %v1224, %v1225
  %v1227 = vrot.slane %v1226, 2
  %v1228 = vadd.f32 %v1226, %v1227
  %v1229 = vrot.slane %v1228, 1
  %v1230 = vadd.f32 %v1228, %v1229
  %v1231 = vsel %vm104, %v1187, 0.0
  %v1232 = vrot.slane %v1231, 4
  %v1233 = vadd.f32 %v1231, %v1232
  %v1234 = vrot.slane %v1233, 2
  %v1235 = vadd.f32 %v1233, %v1234
  %v1236 = vrot.slane %v1235, 1
  %v1237 = vadd.f32 %v1235, %v1236
  %v1238 = vsel %vm104, %v1188, 0.0
  %v1239 = vrot.slane %v1238, 4
  %v1240 = vadd.f32 %v1238, %v1239
  %v1241 = vrot.slane %v1240, 2
  %v1242 = vadd.f32 %v1240, %v1241
  %v1243 = vrot.slane %v1242, 1
  %v1244 = vadd.f32 %v1242, %v1243
  %1245 = vrot.lane.b32.xlu0 %v812, 64
  %v1246 = vpop.permute.xlu0 %1245
  %1248 = vst.msk [vmem:[#allocation2] sm:$0xff] %vm104, %v1246
  %v1257 = vsel %vm335, %v1202, %v1195
  %v1258 = vsel %vm337, %v1209, %v1257
  %v1259 = vsel %vm339, %v1216, %v1258
  %v1260 = vsel %vm341, %v1223, %v1259
  %v1261 = vsel %vm343, %v1230, %v1260
  %v1262 = vsel %vm345, %v1237, %v1261
  %v1263 = vsel %vm347, %v1244, %v1262
  %1265 = vst.msk [vmem:[#allocation3] sm:$0xff] %vm104, %v1263
  %s1266 = scalar_lea.vmem %s7, 8
  %1267 = vst.msk [vmem:[%s1266] sm:$0xff] %vm104, %v1246
  %s1268 = scalar_lea.vmem %s6, 8
  %1269 = vst.msk [vmem:[%s1268] sm:$0xff] %vm104, %v1263
  %v1270 = vld [vmem:[#allocation2] sm:$0xff]
  %v1271 = vld [vmem:[#allocation3] sm:$0xff]
  %s1272 = scalar_lea.vmem %s0, 32
  %v1273 = vld [vmem:[%s1272] sm:$0xff]
  %v1274 = vld [vmem:[%s1272 + $0x8] sm:$0xff]
  %v1275 = vpack.c.bf16 %v1271, %v1271
  %v1277 = vsel %vm104, %v1275, 0
  %1279 = vmatpush.bf16.msra.mxu0 0
  %1280 = vmatpush.bf16.msra.mxu0 0
  %1281 = vmatpush.bf16.msra.mxu0 0
  %1282 = vmatpush.bf16.msra.mxu0 0
  %1283 = vmatpush.bf16.msra.mxu0 %v94
  %1284 = vmatpush.bf16.msra.mxu0 %v92
  %1285 = vmatpush.bf16.msra.mxu0 %v90
  %1286 = vmatpush.bf16.msra.mxu0 %v88
  %1287 = vmatmul.bf16.gmra.mxu0 %v1277
  %v1288 = vpop.f32.mrf.mxu0
  %v1289 = vadd.f32 0.0, %v1288
  %v1290 = vpop.f32.mrf.mxu0
  %1291 = vdwg.mxu0
  %1292 = vmatpush.bf16.msra.mxu0 0
  %1293 = vmatpush.bf16.msra.mxu0 0
  %1294 = vmatpush.bf16.msra.mxu0 0
  %1295 = vmatpush.bf16.msra.mxu0 0
  %1296 = vmatpush.bf16.msra.mxu0 %v95
  %1297 = vmatpush.bf16.msra.mxu0 %v93
  %1298 = vmatpush.bf16.msra.mxu0 %v91
  %1299 = vmatpush.bf16.msra.mxu0 %v89
  %1300 = vmatmul.bf16.gmra.mxu0 %v1277
  %v1301 = vpop.f32.mrf.mxu0
  %v1302 = vadd.f32 0.0, %v1301
  %v1303 = vpop.f32.mrf.mxu0
  %1304 = vdwg.mxu0
  %v1305 = vadd.f32 %v1273, %v1289
  %v1306 = vadd.f32 %v1274, %v1302
  %v1307 = vpack.c.bf16 %v1270, %v1270
  %v1309 = vsel %vm104, %v1307, 0
  %1311 = vmatpush.bf16.msra.mxu0 0
  %1312 = vmatpush.bf16.msra.mxu0 0
  %1313 = vmatpush.bf16.msra.mxu0 0
  %1314 = vmatpush.bf16.msra.mxu0 0
  %1315 = vmatpush.bf16.msra.mxu0 %v167
  %1316 = vmatpush.bf16.msra.mxu0 %v165
  %1317 = vmatpush.bf16.msra.mxu0 %v163
  %1318 = vmatpush.bf16.msra.mxu0 %v161
  %1319 = vmatmul.bf16.gmra.mxu0 %v1309
  %v1320 = vpop.f32.mrf.mxu0
  %v1321 = vadd.f32 0.0, %v1320
  %v1322 = vpop.f32.mrf.mxu0
  %1323 = vdwg.mxu0
  %1324 = vmatpush.bf16.msra.mxu0 0
  %1325 = vmatpush.bf16.msra.mxu0 0
  %1326 = vmatpush.bf16.msra.mxu0 0
  %1327 = vmatpush.bf16.msra.mxu0 0
  %1328 = vmatpush.bf16.msra.mxu0 %v168
  %1329 = vmatpush.bf16.msra.mxu0 %v166
  %1330 = vmatpush.bf16.msra.mxu0 %v164
  %1331 = vmatpush.bf16.msra.mxu0 %v162
  %1332 = vmatmul.bf16.gmra.mxu0 %v1309
  %v1333 = vpop.f32.mrf.mxu0
  %v1334 = vadd.f32 0.0, %v1333
  %v1335 = vpop.f32.mrf.mxu0
  %1336 = vdwg.mxu0
  %v1337 = vadd.f32 %v1305, %v1321
  %v1338 = vxor.u32 %v1337, 2147483648
  %v1339 = vmul.f32 %v1338, 1.442695
  %v1340 = vpow.pop %v1339
  %v1341 = vadd.f32 %v1340, 1.0
  %v1342 = vrcp.pop %v1341
  %v1343 = vmul.f32 %v1341, %v1342
  %v1344 = vsub.f32 1.0, %v1343
  %v1345 = vmul.f32 %v1342, %v1344
  %v1346 = vadd.f32 %v1342, %v1345
  %vm1347 = vweird.f32 %v1341
  %vm1348 = vweird.f32 %v1342
  %vm1349 = vmor %vm1347, %vm1348
  %v1350 = vsel %vm1349, %v1342, %v1346
  %v1351 = vand.u32 2147483647, %v1341
  %vm1352 = vcmp.eq.f32.partialorder %v1351, 8.507059e+37
  %v1353 = vand.u32 %v1341, 2147483648
  %v1354 = vor.u32 1.1754944e-38, %v1353
  %v1355 = vsel %vm1352, %v1354, %v1350
  %v1356 = vmul.f32 1.0, %v1355
  %v1357 = vadd.f32 %v1334, %v227
  %v1358 = vmul.f32 %v1356, %v1357
  %v1359 = vadd.f32 %v1306, %v1358
  %v1360 = vtanh.pop %v1359
  %v1361 = vsub.f32 1.0, %v1356
  %1363 = vrot.lane.b32.xlu0 %v1360, 64
  %v1364 = vpop.permute.xlu0 %1363
  %v1366 = vmul.f32 %v1361, %v1364
  %1368 = vrot.lane.b32.xlu0 %v1270, 64
  %v1369 = vpop.permute.xlu0 %1368
  %v1371 = vmul.f32 %v1356, %v1369
  %v1372 = vadd.f32 %v1366, %v1371
  %v1374 = vrot.slane %v1372, 1
  %v1375 = vrot.slane %v1372, 2
  %v1376 = vrot.slane %v1372, 3
  %v1377 = vrot.slane %v1372, 4
  %v1378 = vrot.slane %v1372, 5
  %v1379 = vrot.slane %v1372, 6
  %v1380 = vrot.slane %v1372, 7
  %v1381 = vperm.slane %v1372, 0
  %v1382 = vperm.slane %v1374, 0
  %v1383 = vperm.slane %v1375, 0
  %v1384 = vperm.slane %v1376, 0
  %v1385 = vperm.slane %v1377, 0
  %v1386 = vperm.slane %v1378, 0
  %v1387 = vperm.slane %v1379, 0
  %v1388 = vperm.slane %v1380, 0
  %1389 = vrot.lane.b32.xlu0 %v1381, 64
  %v1390 = vpop.permute.xlu0 %1389
  %1391 = vrot.lane.b32.xlu0 %v1382, 64
  %v1392 = vpop.permute.xlu0 %1391
  %1393 = vrot.lane.b32.xlu0 %v1383, 64
  %v1394 = vpop.permute.xlu0 %1393
  %1395 = vrot.lane.b32.xlu0 %v1384, 64
  %v1396 = vpop.permute.xlu0 %1395
  %1397 = vrot.lane.b32.xlu0 %v1385, 64
  %v1398 = vpop.permute.xlu0 %1397
  %1399 = vrot.lane.b32.xlu0 %v1386, 64
  %v1400 = vpop.permute.xlu0 %1399
  %1401 = vrot.lane.b32.xlu0 %v1387, 64
  %v1402 = vpop.permute.xlu0 %1401
  %1403 = vrot.lane.b32.xlu0 %v1388, 64
  %v1404 = vpop.permute.xlu0 %1403
  %v1413 = vmul.f32 %v34, %v1390
  %v1414 = vmul.f32 %v35, %v1392
  %v1415 = vmul.f32 %v36, %v1394
  %v1416 = vmul.f32 %v37, %v1396
  %v1417 = vmul.f32 %v38, %v1398
  %v1418 = vmul.f32 %v39, %v1400
  %v1419 = vmul.f32 %v40, %v1402
  %v1420 = vmul.f32 %v41, %v1404
  %v1421 = vsel %vm104, %v1413, 0.0
  %1422 = vadd.xlane.f32.xlu0 %v1421
  %v1423 = vpop.xlane.xlu0 %1422
  %v1424 = vsel %vm104, %v1414, 0.0
  %1425 = vadd.xlane.f32.xlu0 %v1424
  %v1426 = vpop.xlane.xlu0 %1425
  %v1427 = vsel %vm104, %v1415, 0.0
  %1428 = vadd.xlane.f32.xlu0 %v1427
  %v1429 = vpop.xlane.xlu0 %1428
  %v1430 = vsel %vm104, %v1416, 0.0
  %1431 = vadd.xlane.f32.xlu0 %v1430
  %v1432 = vpop.xlane.xlu0 %1431
  %v1433 = vsel %vm104, %v1417, 0.0
  %1434 = vadd.xlane.f32.xlu0 %v1433
  %v1435 = vpop.xlane.xlu0 %1434
  %v1436 = vsel %vm104, %v1418, 0.0
  %1437 = vadd.xlane.f32.xlu0 %v1436
  %v1438 = vpop.xlane.xlu0 %1437
  %v1439 = vsel %vm104, %v1419, 0.0
  %1440 = vadd.xlane.f32.xlu0 %v1439
  %v1441 = vpop.xlane.xlu0 %1440
  %v1442 = vsel %vm104, %v1420, 0.0
  %1443 = vadd.xlane.f32.xlu0 %v1442
  %v1444 = vpop.xlane.xlu0 %1443
  %v1453 = vperm.slane %v1423, %v326
  %v1454 = vperm.slane %v1426, %v326
  %v1455 = vperm.slane %v1429, %v326
  %v1456 = vperm.slane %v1432, %v326
  %v1457 = vperm.slane %v1435, %v326
  %v1458 = vperm.slane %v1438, %v326
  %v1459 = vperm.slane %v1441, %v326
  %v1460 = vperm.slane %v1444, %v326
  %v1461 = vsel %vm335, %v1454, %v1453
  %v1462 = vsel %vm337, %v1455, %v1461
  %v1463 = vsel %vm339, %v1456, %v1462
  %v1464 = vsel %vm341, %v1457, %v1463
  %v1465 = vsel %vm343, %v1458, %v1464
  %v1466 = vsel %vm345, %v1459, %v1465
  %v1467 = vsel %vm347, %v1460, %v1466
  %v1469 = vsel %vm350, %v1467, -inf
  %1470 = vmax.xlane.f32.xlu0 %v1469
  %v1471 = vpop.xlane.xlu0 %1470
  %v1473 = vperm.slane %v1471, 0
  %v1474 = vperm.slane %v1471, 1
  %v1475 = vperm.slane %v1471, 2
  %v1476 = vperm.slane %v1471, 3
  %v1477 = vperm.slane %v1471, 4
  %v1478 = vperm.slane %v1471, 5
  %v1479 = vperm.slane %v1471, 6
  %v1480 = vperm.slane %v1471, 7
  %v1489 = vsub.f32 %v1423, %v1473
  %v1490 = vsub.f32 %v1426, %v1474
  %v1491 = vsub.f32 %v1429, %v1475
  %v1492 = vsub.f32 %v1432, %v1476
  %v1493 = vsub.f32 %v1435, %v1477
  %v1494 = vsub.f32 %v1438, %v1478
  %v1495 = vsub.f32 %v1441, %v1479
  %v1496 = vsub.f32 %v1444, %v1480
  %v1497 = vmul.f32 %v1489, 1.442695
  %v1498 = vpow.pop %v1497
  %v1499 = vmul.f32 %v1490, 1.442695
  %v1500 = vpow.pop %v1499
  %v1501 = vmul.f32 %v1491, 1.442695
  %v1502 = vpow.pop %v1501
  %v1503 = vmul.f32 %v1492, 1.442695
  %v1504 = vpow.pop %v1503
  %v1505 = vmul.f32 %v1493, 1.442695
  %v1506 = vpow.pop %v1505
  %v1507 = vmul.f32 %v1494, 1.442695
  %v1508 = vpow.pop %v1507
  %v1509 = vmul.f32 %v1495, 1.442695
  %v1510 = vpow.pop %v1509
  %v1511 = vmul.f32 %v1496, 1.442695
  %v1512 = vpow.pop %v1511
  %1521 = vset.pattern.permute.xlu0 0
  %1522 = vperm.xlu0 %1521, %v1498
  %v1523 = vpop.permute.xlu0 %1522
  %1524 = vset.pattern.permute.xlu0 0
  %1525 = vperm.xlu0 %1524, %v1500
  %v1526 = vpop.permute.xlu0 %1525
  %1527 = vset.pattern.permute.xlu0 0
  %1528 = vperm.xlu0 %1527, %v1502
  %v1529 = vpop.permute.xlu0 %1528
  %1530 = vset.pattern.permute.xlu0 0
  %1531 = vperm.xlu0 %1530, %v1504
  %v1532 = vpop.permute.xlu0 %1531
  %1533 = vset.pattern.permute.xlu0 0
  %1534 = vperm.xlu0 %1533, %v1506
  %v1535 = vpop.permute.xlu0 %1534
  %1536 = vset.pattern.permute.xlu0 0
  %1537 = vperm.xlu0 %1536, %v1508
  %v1538 = vpop.permute.xlu0 %1537
  %1539 = vset.pattern.permute.xlu0 0
  %1540 = vperm.xlu0 %1539, %v1510
  %v1541 = vpop.permute.xlu0 %1540
  %1542 = vset.pattern.permute.xlu0 0
  %1543 = vperm.xlu0 %1542, %v1512
  %v1544 = vpop.permute.xlu0 %1543
  %v1545 = vperm.slane %v1523, %v326
  %v1546 = vperm.slane %v1526, %v326
  %v1547 = vperm.slane %v1529, %v326
  %v1548 = vperm.slane %v1532, %v326
  %v1549 = vperm.slane %v1535, %v326
  %v1550 = vperm.slane %v1538, %v326
  %v1551 = vperm.slane %v1541, %v326
  %v1552 = vperm.slane %v1544, %v326
  %v1553 = vsel %vm335, %v1546, %v1545
  %v1554 = vsel %vm337, %v1547, %v1553
  %v1555 = vsel %vm339, %v1548, %v1554
  %v1556 = vsel %vm341, %v1549, %v1555
  %v1557 = vsel %vm343, %v1550, %v1556
  %v1558 = vsel %vm345, %v1551, %v1557
  %v1559 = vsel %vm347, %v1552, %v1558
  %v1561 = vsel %vm350, %v1559, 0.0
  %1562 = vadd.xlane.f32.xlu0 %v1561
  %v1563 = vpop.xlane.xlu0 %1562
  %v1565 = vperm.slane %v1563, 0
  %v1566 = vperm.slane %v1563, 1
  %v1567 = vperm.slane %v1563, 2
  %v1568 = vperm.slane %v1563, 3
  %v1569 = vperm.slane %v1563, 4
  %v1570 = vperm.slane %v1563, 5
  %v1571 = vperm.slane %v1563, 6
  %v1572 = vperm.slane %v1563, 7
  %v1581 = vrcp.pop %v1565
  %v1582 = vmul.f32 %v1565, %v1581
  %v1583 = vsub.f32 1.0, %v1582
  %v1584 = vmul.f32 %v1581, %v1583
  %v1585 = vadd.f32 %v1581, %v1584
  %vm1586 = vweird.f32 %v1565
  %vm1587 = vweird.f32 %v1581
  %vm1588 = vmor %vm1586, %vm1587
  %v1589 = vsel %vm1588, %v1581, %v1585
  %v1590 = vand.u32 2147483647, %v1565
  %vm1591 = vcmp.eq.f32.partialorder %v1590, 8.507059e+37
  %v1592 = vand.u32 %v1565, 2147483648
  %v1593 = vor.u32 1.1754944e-38, %v1592
  %v1594 = vsel %vm1591, %v1593, %v1589
  %v1595 = vmul.f32 %v1498, %v1594
  %v1596 = vrcp.pop %v1566
  %v1597 = vmul.f32 %v1566, %v1596
  %v1598 = vsub.f32 1.0, %v1597
  %v1599 = vmul.f32 %v1596, %v1598
  %v1600 = vadd.f32 %v1596, %v1599
  %vm1601 = vweird.f32 %v1566
  %vm1602 = vweird.f32 %v1596
  %vm1603 = vmor %vm1601, %vm1602
  %v1604 = vsel %vm1603, %v1596, %v1600
  %v1605 = vand.u32 2147483647, %v1566
  %vm1606 = vcmp.eq.f32.partialorder %v1605, 8.507059e+37
  %v1607 = vand.u32 %v1566, 2147483648
  %v1608 = vor.u32 1.1754944e-38, %v1607
  %v1609 = vsel %vm1606, %v1608, %v1604
  %v1610 = vmul.f32 %v1500, %v1609
  %v1611 = vrcp.pop %v1567
  %v1612 = vmul.f32 %v1567, %v1611
  %v1613 = vsub.f32 1.0, %v1612
  %v1614 = vmul.f32 %v1611, %v1613
  %v1615 = vadd.f32 %v1611, %v1614
  %vm1616 = vweird.f32 %v1567
  %vm1617 = vweird.f32 %v1611
  %vm1618 = vmor %vm1616, %vm1617
  %v1619 = vsel %vm1618, %v1611, %v1615
  %v1620 = vand.u32 2147483647, %v1567
  %vm1621 = vcmp.eq.f32.partialorder %v1620, 8.507059e+37
  %v1622 = vand.u32 %v1567, 2147483648
  %v1623 = vor.u32 1.1754944e-38, %v1622
  %v1624 = vsel %vm1621, %v1623, %v1619
  %v1625 = vmul.f32 %v1502, %v1624
  %v1626 = vrcp.pop %v1568
  %v1627 = vmul.f32 %v1568, %v1626
  %v1628 = vsub.f32 1.0, %v1627
  %v1629 = vmul.f32 %v1626, %v1628
  %v1630 = vadd.f32 %v1626, %v1629
  %vm1631 = vweird.f32 %v1568
  %vm1632 = vweird.f32 %v1626
  %vm1633 = vmor %vm1631, %vm1632
  %v1634 = vsel %vm1633, %v1626, %v1630
  %v1635 = vand.u32 2147483647, %v1568
  %vm1636 = vcmp.eq.f32.partialorder %v1635, 8.507059e+37
  %v1637 = vand.u32 %v1568, 2147483648
  %v1638 = vor.u32 1.1754944e-38, %v1637
  %v1639 = vsel %vm1636, %v1638, %v1634
  %v1640 = vmul.f32 %v1504, %v1639
  %v1641 = vrcp.pop %v1569
  %v1642 = vmul.f32 %v1569, %v1641
  %v1643 = vsub.f32 1.0, %v1642
  %v1644 = vmul.f32 %v1641, %v1643
  %v1645 = vadd.f32 %v1641, %v1644
  %vm1646 = vweird.f32 %v1569
  %vm1647 = vweird.f32 %v1641
  %vm1648 = vmor %vm1646, %vm1647
  %v1649 = vsel %vm1648, %v1641, %v1645
  %v1650 = vand.u32 2147483647, %v1569
  %vm1651 = vcmp.eq.f32.partialorder %v1650, 8.507059e+37
  %v1652 = vand.u32 %v1569, 2147483648
  %v1653 = vor.u32 1.1754944e-38, %v1652
  %v1654 = vsel %vm1651, %v1653, %v1649
  %v1655 = vmul.f32 %v1506, %v1654
  %v1656 = vrcp.pop %v1570
  %v1657 = vmul.f32 %v1570, %v1656
  %v1658 = vsub.f32 1.0, %v1657
  %v1659 = vmul.f32 %v1656, %v1658
  %v1660 = vadd.f32 %v1656, %v1659
  %vm1661 = vweird.f32 %v1570
  %vm1662 = vweird.f32 %v1656
  %vm1663 = vmor %vm1661, %vm1662
  %v1664 = vsel %vm1663, %v1656, %v1660
  %v1665 = vand.u32 2147483647, %v1570
  %vm1666 = vcmp.eq.f32.partialorder %v1665, 8.507059e+37
  %v1667 = vand.u32 %v1570, 2147483648
  %v1668 = vor.u32 1.1754944e-38, %v1667
  %v1669 = vsel %vm1666, %v1668, %v1664
  %v1670 = vmul.f32 %v1508, %v1669
  %v1671 = vrcp.pop %v1571
  %v1672 = vmul.f32 %v1571, %v1671
  %v1673 = vsub.f32 1.0, %v1672
  %v1674 = vmul.f32 %v1671, %v1673
  %v1675 = vadd.f32 %v1671, %v1674
  %vm1676 = vweird.f32 %v1571
  %vm1677 = vweird.f32 %v1671
  %vm1678 = vmor %vm1676, %vm1677
  %v1679 = vsel %vm1678, %v1671, %v1675
  %v1680 = vand.u32 2147483647, %v1571
  %vm1681 = vcmp.eq.f32.partialorder %v1680, 8.507059e+37
  %v1682 = vand.u32 %v1571, 2147483648
  %v1683 = vor.u32 1.1754944e-38, %v1682
  %v1684 = vsel %vm1681, %v1683, %v1679
  %v1685 = vmul.f32 %v1510, %v1684
  %v1686 = vrcp.pop %v1572
  %v1687 = vmul.f32 %v1572, %v1686
  %v1688 = vsub.f32 1.0, %v1687
  %v1689 = vmul.f32 %v1686, %v1688
  %v1690 = vadd.f32 %v1686, %v1689
  %vm1691 = vweird.f32 %v1572
  %vm1692 = vweird.f32 %v1686
  %vm1693 = vmor %vm1691, %vm1692
  %v1694 = vsel %vm1693, %v1686, %v1690
  %v1695 = vand.u32 2147483647, %v1572
  %vm1696 = vcmp.eq.f32.partialorder %v1695, 8.507059e+37
  %v1697 = vand.u32 %v1572, 2147483648
  %v1698 = vor.u32 1.1754944e-38, %v1697
  %v1699 = vsel %vm1696, %v1698, %v1694
  %v1700 = vmul.f32 %v1512, %v1699
  %1702 = vset.pattern.permute.xlu0 0
  %1703 = vperm.xlu0 %1702, %v1595
  %v1704 = vpop.permute.xlu0 %1703
  %1707 = vset.pattern.permute.xlu0 0
  %1708 = vperm.xlu0 %1707, %v1610
  %v1709 = vpop.permute.xlu0 %1708
  %1712 = vset.pattern.permute.xlu0 0
  %1713 = vperm.xlu0 %1712, %v1625
  %v1714 = vpop.permute.xlu0 %1713
  %1717 = vset.pattern.permute.xlu0 0
  %1718 = vperm.xlu0 %1717, %v1640
  %v1719 = vpop.permute.xlu0 %1718
  %1722 = vset.pattern.permute.xlu0 0
  %1723 = vperm.xlu0 %1722, %v1655
  %v1724 = vpop.permute.xlu0 %1723
  %1727 = vset.pattern.permute.xlu0 0
  %1728 = vperm.xlu0 %1727, %v1670
  %v1729 = vpop.permute.xlu0 %1728
  %1732 = vset.pattern.permute.xlu0 0
  %1733 = vperm.xlu0 %1732, %v1685
  %v1734 = vpop.permute.xlu0 %1733
  %1737 = vset.pattern.permute.xlu0 0
  %1738 = vperm.xlu0 %1737, %v1700
  %v1739 = vpop.permute.xlu0 %1738
  %v1741 = vmul.f32 %v1704, %v34
  %v1742 = vmul.f32 %v1709, %v35
  %v1743 = vmul.f32 %v1714, %v36
  %v1744 = vmul.f32 %v1719, %v37
  %v1745 = vmul.f32 %v1724, %v38
  %v1746 = vmul.f32 %v1729, %v39
  %v1747 = vmul.f32 %v1734, %v40
  %v1748 = vmul.f32 %v1739, %v41
  %v1749 = vsel %vm104, %v1741, 0.0
  %v1750 = vrot.slane %v1749, 4
  %v1751 = vadd.f32 %v1749, %v1750
  %v1752 = vrot.slane %v1751, 2
  %v1753 = vadd.f32 %v1751, %v1752
  %v1754 = vrot.slane %v1753, 1
  %v1755 = vadd.f32 %v1753, %v1754
  %v1756 = vsel %vm104, %v1742, 0.0
  %v1757 = vrot.slane %v1756, 4
  %v1758 = vadd.f32 %v1756, %v1757
  %v1759 = vrot.slane %v1758, 2
  %v1760 = vadd.f32 %v1758, %v1759
  %v1761 = vrot.slane %v1760, 1
  %v1762 = vadd.f32 %v1760, %v1761
  %v1763 = vsel %vm104, %v1743, 0.0
  %v1764 = vrot.slane %v1763, 4
  %v1765 = vadd.f32 %v1763, %v1764
  %v1766 = vrot.slane %v1765, 2
  %v1767 = vadd.f32 %v1765, %v1766
  %v1768 = vrot.slane %v1767, 1
  %v1769 = vadd.f32 %v1767, %v1768
  %v1770 = vsel %vm104, %v1744, 0.0
  %v1771 = vrot.slane %v1770, 4
  %v1772 = vadd.f32 %v1770, %v1771
  %v1773 = vrot.slane %v1772, 2
  %v1774 = vadd.f32 %v1772, %v1773
  %v1775 = vrot.slane %v1774, 1
  %v1776 = vadd.f32 %v1774, %v1775
  %v1777 = vsel %vm104, %v1745, 0.0
  %v1778 = vrot.slane %v1777, 4
  %v1779 = vadd.f32 %v1777, %v1778
  %v1780 = vrot.slane %v1779, 2
  %v1781 = vadd.f32 %v1779, %v1780
  %v1782 = vrot.slane %v1781, 1
  %v1783 = vadd.f32 %v1781, %v1782
  %v1784 = vsel %vm104, %v1746, 0.0
  %v1785 = vrot.slane %v1784, 4
  %v1786 = vadd.f32 %v1784, %v1785
  %v1787 = vrot.slane %v1786, 2
  %v1788 = vadd.f32 %v1786, %v1787
  %v1789 = vrot.slane %v1788, 1
  %v1790 = vadd.f32 %v1788, %v1789
  %v1791 = vsel %vm104, %v1747, 0.0
  %v1792 = vrot.slane %v1791, 4
  %v1793 = vadd.f32 %v1791, %v1792
  %v1794 = vrot.slane %v1793, 2
  %v1795 = vadd.f32 %v1793, %v1794
  %v1796 = vrot.slane %v1795, 1
  %v1797 = vadd.f32 %v1795, %v1796
  %v1798 = vsel %vm104, %v1748, 0.0
  %v1799 = vrot.slane %v1798, 4
  %v1800 = vadd.f32 %v1798, %v1799
  %v1801 = vrot.slane %v1800, 2
  %v1802 = vadd.f32 %v1800, %v1801
  %v1803 = vrot.slane %v1802, 1
  %v1804 = vadd.f32 %v1802, %v1803
  %1805 = vrot.lane.b32.xlu0 %v1372, 64
  %v1806 = vpop.permute.xlu0 %1805
  %1808 = vst.msk [vmem:[#allocation2] sm:$0xff] %vm104, %v1806
  %v1817 = vsel %vm335, %v1762, %v1755
  %v1818 = vsel %vm337, %v1769, %v1817
  %v1819 = vsel %vm339, %v1776, %v1818
  %v1820 = vsel %vm341, %v1783, %v1819
  %v1821 = vsel %vm343, %v1790, %v1820
  %v1822 = vsel %vm345, %v1797, %v1821
  %v1823 = vsel %vm347, %v1804, %v1822
  %1825 = vst.msk [vmem:[#allocation3] sm:$0xff] %vm104, %v1823
  %s1826 = scalar_lea.vmem %s7, 16
  %1827 = vst.msk [vmem:[%s1826] sm:$0xff] %vm104, %v1806
  %s1828 = scalar_lea.vmem %s6, 16
  %1829 = vst.msk [vmem:[%s1828] sm:$0xff] %vm104, %v1823
  %v1830 = vld [vmem:[#allocation2] sm:$0xff]
  %v1831 = vld [vmem:[#allocation3] sm:$0xff]
  %s1832 = scalar_lea.vmem %s0, 48
  %v1833 = vld [vmem:[%s1832] sm:$0xff]
  %v1834 = vld [vmem:[%s1832 + $0x8] sm:$0xff]
  %v1835 = vpack.c.bf16 %v1831, %v1831
  %v1837 = vsel %vm104, %v1835, 0
  %1839 = vmatpush.bf16.msra.mxu0 0
  %1840 = vmatpush.bf16.msra.mxu0 0
  %1841 = vmatpush.bf16.msra.mxu0 0
  %1842 = vmatpush.bf16.msra.mxu0 0
  %1843 = vmatpush.bf16.msra.mxu0 %v94
  %1844 = vmatpush.bf16.msra.mxu0 %v92
  %1845 = vmatpush.bf16.msra.mxu0 %v90
  %1846 = vmatpush.bf16.msra.mxu0 %v88
  %1847 = vmatmul.bf16.gmra.mxu0 %v1837
  %v1848 = vpop.f32.mrf.mxu0
  %v1849 = vadd.f32 0.0, %v1848
  %v1850 = vpop.f32.mrf.mxu0
  %1851 = vdwg.mxu0
  %1852 = vmatpush.bf16.msra.mxu0 0
  %1853 = vmatpush.bf16.msra.mxu0 0
  %1854 = vmatpush.bf16.msra.mxu0 0
  %1855 = vmatpush.bf16.msra.mxu0 0
  %1856 = vmatpush.bf16.msra.mxu0 %v95
  %1857 = vmatpush.bf16.msra.mxu0 %v93
  %1858 = vmatpush.bf16.msra.mxu0 %v91
  %1859 = vmatpush.bf16.msra.mxu0 %v89
  %1860 = vmatmul.bf16.gmra.mxu0 %v1837
  %v1861 = vpop.f32.mrf.mxu0
  %v1862 = vadd.f32 0.0, %v1861
  %v1863 = vpop.f32.mrf.mxu0
  %1864 = vdwg.mxu0
  %v1865 = vadd.f32 %v1833, %v1849
  %v1866 = vadd.f32 %v1834, %v1862
  %v1867 = vpack.c.bf16 %v1830, %v1830
  %v1869 = vsel %vm104, %v1867, 0
  %1871 = vmatpush.bf16.msra.mxu0 0
  %1872 = vmatpush.bf16.msra.mxu0 0
  %1873 = vmatpush.bf16.msra.mxu0 0
  %1874 = vmatpush.bf16.msra.mxu0 0
  %1875 = vmatpush.bf16.msra.mxu0 %v167
  %1876 = vmatpush.bf16.msra.mxu0 %v165
  %1877 = vmatpush.bf16.msra.mxu0 %v163
  %1878 = vmatpush.bf16.msra.mxu0 %v161
  %1879 = vmatmul.bf16.gmra.mxu0 %v1869
  %v1880 = vpop.f32.mrf.mxu0
  %v1881 = vadd.f32 0.0, %v1880
  %v1882 = vpop.f32.mrf.mxu0
  %1883 = vdwg.mxu0
  %1884 = vmatpush.bf16.msra.mxu0 0
  %1885 = vmatpush.bf16.msra.mxu0 0
  %1886 = vmatpush.bf16.msra.mxu0 0
  %1887 = vmatpush.bf16.msra.mxu0 0
  %1888 = vmatpush.bf16.msra.mxu0 %v168
  %1889 = vmatpush.bf16.msra.mxu0 %v166
  %1890 = vmatpush.bf16.msra.mxu0 %v164
  %1891 = vmatpush.bf16.msra.mxu0 %v162
  %1892 = vmatmul.bf16.gmra.mxu0 %v1869
  %v1893 = vpop.f32.mrf.mxu0
  %v1894 = vadd.f32 0.0, %v1893
  %v1895 = vpop.f32.mrf.mxu0
  %1896 = vdwg.mxu0
  %v1897 = vadd.f32 %v1865, %v1881
  %v1898 = vxor.u32 %v1897, 2147483648
  %v1899 = vmul.f32 %v1898, 1.442695
  %v1900 = vpow.pop %v1899
  %v1901 = vadd.f32 %v1900, 1.0
  %v1902 = vrcp.pop %v1901
  %v1903 = vmul.f32 %v1901, %v1902
  %v1904 = vsub.f32 1.0, %v1903
  %v1905 = vmul.f32 %v1902, %v1904
  %v1906 = vadd.f32 %v1902, %v1905
  %vm1907 = vweird.f32 %v1901
  %vm1908 = vweird.f32 %v1902
  %vm1909 = vmor %vm1907, %vm1908
  %v1910 = vsel %vm1909, %v1902, %v1906
  %v1911 = vand.u32 2147483647, %v1901
  %vm1912 = vcmp.eq.f32.partialorder %v1911, 8.507059e+37
  %v1913 = vand.u32 %v1901, 2147483648
  %v1914 = vor.u32 1.1754944e-38, %v1913
  %v1915 = vsel %vm1912, %v1914, %v1910
  %v1916 = vmul.f32 1.0, %v1915
  %v1917 = vadd.f32 %v1894, %v227
  %v1918 = vmul.f32 %v1916, %v1917
  %v1919 = vadd.f32 %v1866, %v1918
  %v1920 = vtanh.pop %v1919
  %v1921 = vsub.f32 1.0, %v1916
  %1923 = vrot.lane.b32.xlu0 %v1920, 64
  %v1924 = vpop.permute.xlu0 %1923
  %v1926 = vmul.f32 %v1921, %v1924
  %1928 = vrot.lane.b32.xlu0 %v1830, 64
  %v1929 = vpop.permute.xlu0 %1928
  %v1931 = vmul.f32 %v1916, %v1929
  %v1932 = vadd.f32 %v1926, %v1931
  %v1934 = vrot.slane %v1932, 1
  %v1935 = vrot.slane %v1932, 2
  %v1936 = vrot.slane %v1932, 3
  %v1937 = vrot.slane %v1932, 4
  %v1938 = vrot.slane %v1932, 5
  %v1939 = vrot.slane %v1932, 6
  %v1940 = vrot.slane %v1932, 7
  %v1941 = vperm.slane %v1932, 0
  %v1942 = vperm.slane %v1934, 0
  %v1943 = vperm.slane %v1935, 0
  %v1944 = vperm.slane %v1936, 0
  %v1945 = vperm.slane %v1937, 0
  %v1946 = vperm.slane %v1938, 0
  %v1947 = vperm.slane %v1939, 0
  %v1948 = vperm.slane %v1940, 0
  %1949 = vrot.lane.b32.xlu0 %v1941, 64
  %v1950 = vpop.permute.xlu0 %1949
  %1951 = vrot.lane.b32.xlu0 %v1942, 64
  %v1952 = vpop.permute.xlu0 %1951
  %1953 = vrot.lane.b32.xlu0 %v1943, 64
  %v1954 = vpop.permute.xlu0 %1953
  %1955 = vrot.lane.b32.xlu0 %v1944, 64
  %v1956 = vpop.permute.xlu0 %1955
  %1957 = vrot.lane.b32.xlu0 %v1945, 64
  %v1958 = vpop.permute.xlu0 %1957
  %1959 = vrot.lane.b32.xlu0 %v1946, 64
  %v1960 = vpop.permute.xlu0 %1959
  %1961 = vrot.lane.b32.xlu0 %v1947, 64
  %v1962 = vpop.permute.xlu0 %1961
  %1963 = vrot.lane.b32.xlu0 %v1948, 64
  %v1964 = vpop.permute.xlu0 %1963
  %v1973 = vmul.f32 %v34, %v1950
  %v1974 = vmul.f32 %v35, %v1952
  %v1975 = vmul.f32 %v36, %v1954
  %v1976 = vmul.f32 %v37, %v1956
  %v1977 = vmul.f32 %v38, %v1958
  %v1978 = vmul.f32 %v39, %v1960
  %v1979 = vmul.f32 %v40, %v1962
  %v1980 = vmul.f32 %v41, %v1964
  %v1981 = vsel %vm104, %v1973, 0.0
  %1982 = vadd.xlane.f32.xlu0 %v1981
  %v1983 = vpop.xlane.xlu0 %1982
  %v1984 = vsel %vm104, %v1974, 0.0
  %1985 = vadd.xlane.f32.xlu0 %v1984
  %v1986 = vpop.xlane.xlu0 %1985
  %v1987 = vsel %vm104, %v1975, 0.0
  %1988 = vadd.xlane.f32.xlu0 %v1987
  %v1989 = vpop.xlane.xlu0 %1988
  %v1990 = vsel %vm104, %v1976, 0.0
  %1991 = vadd.xlane.f32.xlu0 %v1990
  %v1992 = vpop.xlane.xlu0 %1991
  %v1993 = vsel %vm104, %v1977, 0.0
  %1994 = vadd.xlane.f32.xlu0 %v1993
  %v1995 = vpop.xlane.xlu0 %1994
  %v1996 = vsel %vm104, %v1978, 0.0
  %1997 = vadd.xlane.f32.xlu0 %v1996
  %v1998 = vpop.xlane.xlu0 %1997
  %v1999 = vsel %vm104, %v1979, 0.0
  %2000 = vadd.xlane.f32.xlu0 %v1999
  %v2001 = vpop.xlane.xlu0 %2000
  %v2002 = vsel %vm104, %v1980, 0.0
  %2003 = vadd.xlane.f32.xlu0 %v2002
  %v2004 = vpop.xlane.xlu0 %2003
  %v2013 = vperm.slane %v1983, %v326
  %v2014 = vperm.slane %v1986, %v326
  %v2015 = vperm.slane %v1989, %v326
  %v2016 = vperm.slane %v1992, %v326
  %v2017 = vperm.slane %v1995, %v326
  %v2018 = vperm.slane %v1998, %v326
  %v2019 = vperm.slane %v2001, %v326
  %v2020 = vperm.slane %v2004, %v326
  %v2021 = vsel %vm335, %v2014, %v2013
  %v2022 = vsel %vm337, %v2015, %v2021
  %v2023 = vsel %vm339, %v2016, %v2022
  %v2024 = vsel %vm341, %v2017, %v2023
  %v2025 = vsel %vm343, %v2018, %v2024
  %v2026 = vsel %vm345, %v2019, %v2025
  %v2027 = vsel %vm347, %v2020, %v2026
  %v2029 = vsel %vm350, %v2027, -inf
  %2030 = vmax.xlane.f32.xlu0 %v2029
  %v2031 = vpop.xlane.xlu0 %2030
  %v2033 = vperm.slane %v2031, 0
  %v2034 = vperm.slane %v2031, 1
  %v2035 = vperm.slane %v2031, 2
  %v2036 = vperm.slane %v2031, 3
  %v2037 = vperm.slane %v2031, 4
  %v2038 = vperm.slane %v2031, 5
  %v2039 = vperm.slane %v2031, 6
  %v2040 = vperm.slane %v2031, 7
  %v2049 = vsub.f32 %v1983, %v2033
  %v2050 = vsub.f32 %v1986, %v2034
  %v2051 = vsub.f32 %v1989, %v2035
  %v2052 = vsub.f32 %v1992, %v2036
  %v2053 = vsub.f32 %v1995, %v2037
  %v2054 = vsub.f32 %v1998, %v2038
  %v2055 = vsub.f32 %v2001, %v2039
  %v2056 = vsub.f32 %v2004, %v2040
  %v2057 = vmul.f32 %v2049, 1.442695
  %v2058 = vpow.pop %v2057
  %v2059 = vmul.f32 %v2050, 1.442695
  %v2060 = vpow.pop %v2059
  %v2061 = vmul.f32 %v2051, 1.442695
  %v2062 = vpow.pop %v2061
  %v2063 = vmul.f32 %v2052, 1.442695
  %v2064 = vpow.pop %v2063
  %v2065 = vmul.f32 %v2053, 1.442695
  %v2066 = vpow.pop %v2065
  %v2067 = vmul.f32 %v2054, 1.442695
  %v2068 = vpow.pop %v2067
  %v2069 = vmul.f32 %v2055, 1.442695
  %v2070 = vpow.pop %v2069
  %v2071 = vmul.f32 %v2056, 1.442695
  %v2072 = vpow.pop %v2071
  %2081 = vset.pattern.permute.xlu0 0
  %2082 = vperm.xlu0 %2081, %v2058
  %v2083 = vpop.permute.xlu0 %2082
  %2084 = vset.pattern.permute.xlu0 0
  %2085 = vperm.xlu0 %2084, %v2060
  %v2086 = vpop.permute.xlu0 %2085
  %2087 = vset.pattern.permute.xlu0 0
  %2088 = vperm.xlu0 %2087, %v2062
  %v2089 = vpop.permute.xlu0 %2088
  %2090 = vset.pattern.permute.xlu0 0
  %2091 = vperm.xlu0 %2090, %v2064
  %v2092 = vpop.permute.xlu0 %2091
  %2093 = vset.pattern.permute.xlu0 0
  %2094 = vperm.xlu0 %2093, %v2066
  %v2095 = vpop.permute.xlu0 %2094
  %2096 = vset.pattern.permute.xlu0 0
  %2097 = vperm.xlu0 %2096, %v2068
  %v2098 = vpop.permute.xlu0 %2097
  %2099 = vset.pattern.permute.xlu0 0
  %2100 = vperm.xlu0 %2099, %v2070
  %v2101 = vpop.permute.xlu0 %2100
  %2102 = vset.pattern.permute.xlu0 0
  %2103 = vperm.xlu0 %2102, %v2072
  %v2104 = vpop.permute.xlu0 %2103
  %v2105 = vperm.slane %v2083, %v326
  %v2106 = vperm.slane %v2086, %v326
  %v2107 = vperm.slane %v2089, %v326
  %v2108 = vperm.slane %v2092, %v326
  %v2109 = vperm.slane %v2095, %v326
  %v2110 = vperm.slane %v2098, %v326
  %v2111 = vperm.slane %v2101, %v326
  %v2112 = vperm.slane %v2104, %v326
  %v2113 = vsel %vm335, %v2106, %v2105
  %v2114 = vsel %vm337, %v2107, %v2113
  %v2115 = vsel %vm339, %v2108, %v2114
  %v2116 = vsel %vm341, %v2109, %v2115
  %v2117 = vsel %vm343, %v2110, %v2116
  %v2118 = vsel %vm345, %v2111, %v2117
  %v2119 = vsel %vm347, %v2112, %v2118
  %v2121 = vsel %vm350, %v2119, 0.0
  %2122 = vadd.xlane.f32.xlu0 %v2121
  %v2123 = vpop.xlane.xlu0 %2122
  %v2125 = vperm.slane %v2123, 0
  %v2126 = vperm.slane %v2123, 1
  %v2127 = vperm.slane %v2123, 2
  %v2128 = vperm.slane %v2123, 3
  %v2129 = vperm.slane %v2123, 4
  %v2130 = vperm.slane %v2123, 5
  %v2131 = vperm.slane %v2123, 6
  %v2132 = vperm.slane %v2123, 7
  %v2141 = vrcp.pop %v2125
  %v2142 = vmul.f32 %v2125, %v2141
  %v2143 = vsub.f32 1.0, %v2142
  %v2144 = vmul.f32 %v2141, %v2143
  %v2145 = vadd.f32 %v2141, %v2144
  %vm2146 = vweird.f32 %v2125
  %vm2147 = vweird.f32 %v2141
  %vm2148 = vmor %vm2146, %vm2147
  %v2149 = vsel %vm2148, %v2141, %v2145
  %v2150 = vand.u32 2147483647, %v2125
  %vm2151 = vcmp.eq.f32.partialorder %v2150, 8.507059e+37
  %v2152 = vand.u32 %v2125, 2147483648
  %v2153 = vor.u32 1.1754944e-38, %v2152
  %v2154 = vsel %vm2151, %v2153, %v2149
  %v2155 = vmul.f32 %v2058, %v2154
  %v2156 = vrcp.pop %v2126
  %v2157 = vmul.f32 %v2126, %v2156
  %v2158 = vsub.f32 1.0, %v2157
  %v2159 = vmul.f32 %v2156, %v2158
  %v2160 = vadd.f32 %v2156, %v2159
  %vm2161 = vweird.f32 %v2126
  %vm2162 = vweird.f32 %v2156
  %vm2163 = vmor %vm2161, %vm2162
  %v2164 = vsel %vm2163, %v2156, %v2160
  %v2165 = vand.u32 2147483647, %v2126
  %vm2166 = vcmp.eq.f32.partialorder %v2165, 8.507059e+37
  %v2167 = vand.u32 %v2126, 2147483648
  %v2168 = vor.u32 1.1754944e-38, %v2167
  %v2169 = vsel %vm2166, %v2168, %v2164
  %v2170 = vmul.f32 %v2060, %v2169
  %v2171 = vrcp.pop %v2127
  %v2172 = vmul.f32 %v2127, %v2171
  %v2173 = vsub.f32 1.0, %v2172
  %v2174 = vmul.f32 %v2171, %v2173
  %v2175 = vadd.f32 %v2171, %v2174
  %vm2176 = vweird.f32 %v2127
  %vm2177 = vweird.f32 %v2171
  %vm2178 = vmor %vm2176, %vm2177
  %v2179 = vsel %vm2178, %v2171, %v2175
  %v2180 = vand.u32 2147483647, %v2127
  %vm2181 = vcmp.eq.f32.partialorder %v2180, 8.507059e+37
  %v2182 = vand.u32 %v2127, 2147483648
  %v2183 = vor.u32 1.1754944e-38, %v2182
  %v2184 = vsel %vm2181, %v2183, %v2179
  %v2185 = vmul.f32 %v2062, %v2184
  %v2186 = vrcp.pop %v2128
  %v2187 = vmul.f32 %v2128, %v2186
  %v2188 = vsub.f32 1.0, %v2187
  %v2189 = vmul.f32 %v2186, %v2188
  %v2190 = vadd.f32 %v2186, %v2189
  %vm2191 = vweird.f32 %v2128
  %vm2192 = vweird.f32 %v2186
  %vm2193 = vmor %vm2191, %vm2192
  %v2194 = vsel %vm2193, %v2186, %v2190
  %v2195 = vand.u32 2147483647, %v2128
  %vm2196 = vcmp.eq.f32.partialorder %v2195, 8.507059e+37
  %v2197 = vand.u32 %v2128, 2147483648
  %v2198 = vor.u32 1.1754944e-38, %v2197
  %v2199 = vsel %vm2196, %v2198, %v2194
  %v2200 = vmul.f32 %v2064, %v2199
  %v2201 = vrcp.pop %v2129
  %v2202 = vmul.f32 %v2129, %v2201
  %v2203 = vsub.f32 1.0, %v2202
  %v2204 = vmul.f32 %v2201, %v2203
  %v2205 = vadd.f32 %v2201, %v2204
  %vm2206 = vweird.f32 %v2129
  %vm2207 = vweird.f32 %v2201
  %vm2208 = vmor %vm2206, %vm2207
  %v2209 = vsel %vm2208, %v2201, %v2205
  %v2210 = vand.u32 2147483647, %v2129
  %vm2211 = vcmp.eq.f32.partialorder %v2210, 8.507059e+37
  %v2212 = vand.u32 %v2129, 2147483648
  %v2213 = vor.u32 1.1754944e-38, %v2212
  %v2214 = vsel %vm2211, %v2213, %v2209
  %v2215 = vmul.f32 %v2066, %v2214
  %v2216 = vrcp.pop %v2130
  %v2217 = vmul.f32 %v2130, %v2216
  %v2218 = vsub.f32 1.0, %v2217
  %v2219 = vmul.f32 %v2216, %v2218
  %v2220 = vadd.f32 %v2216, %v2219
  %vm2221 = vweird.f32 %v2130
  %vm2222 = vweird.f32 %v2216
  %vm2223 = vmor %vm2221, %vm2222
  %v2224 = vsel %vm2223, %v2216, %v2220
  %v2225 = vand.u32 2147483647, %v2130
  %vm2226 = vcmp.eq.f32.partialorder %v2225, 8.507059e+37
  %v2227 = vand.u32 %v2130, 2147483648
  %v2228 = vor.u32 1.1754944e-38, %v2227
  %v2229 = vsel %vm2226, %v2228, %v2224
  %v2230 = vmul.f32 %v2068, %v2229
  %v2231 = vrcp.pop %v2131
  %v2232 = vmul.f32 %v2131, %v2231
  %v2233 = vsub.f32 1.0, %v2232
  %v2234 = vmul.f32 %v2231, %v2233
  %v2235 = vadd.f32 %v2231, %v2234
  %vm2236 = vweird.f32 %v2131
  %vm2237 = vweird.f32 %v2231
  %vm2238 = vmor %vm2236, %vm2237
  %v2239 = vsel %vm2238, %v2231, %v2235
  %v2240 = vand.u32 2147483647, %v2131
  %vm2241 = vcmp.eq.f32.partialorder %v2240, 8.507059e+37
  %v2242 = vand.u32 %v2131, 2147483648
  %v2243 = vor.u32 1.1754944e-38, %v2242
  %v2244 = vsel %vm2241, %v2243, %v2239
  %v2245 = vmul.f32 %v2070, %v2244
  %v2246 = vrcp.pop %v2132
  %v2247 = vmul.f32 %v2132, %v2246
  %v2248 = vsub.f32 1.0, %v2247
  %v2249 = vmul.f32 %v2246, %v2248
  %v2250 = vadd.f32 %v2246, %v2249
  %vm2251 = vweird.f32 %v2132
  %vm2252 = vweird.f32 %v2246
  %vm2253 = vmor %vm2251, %vm2252
  %v2254 = vsel %vm2253, %v2246, %v2250
  %v2255 = vand.u32 2147483647, %v2132
  %vm2256 = vcmp.eq.f32.partialorder %v2255, 8.507059e+37
  %v2257 = vand.u32 %v2132, 2147483648
  %v2258 = vor.u32 1.1754944e-38, %v2257
  %v2259 = vsel %vm2256, %v2258, %v2254
  %v2260 = vmul.f32 %v2072, %v2259
  %2262 = vset.pattern.permute.xlu0 0
  %2263 = vperm.xlu0 %2262, %v2155
  %v2264 = vpop.permute.xlu0 %2263
  %2267 = vset.pattern.permute.xlu0 0
  %2268 = vperm.xlu0 %2267, %v2170
  %v2269 = vpop.permute.xlu0 %2268
  %2272 = vset.pattern.permute.xlu0 0
  %2273 = vperm.xlu0 %2272, %v2185
  %v2274 = vpop.permute.xlu0 %2273
  %2277 = vset.pattern.permute.xlu0 0
  %2278 = vperm.xlu0 %2277, %v2200
  %v2279 = vpop.permute.xlu0 %2278
  %2282 = vset.pattern.permute.xlu0 0
  %2283 = vperm.xlu0 %2282, %v2215
  %v2284 = vpop.permute.xlu0 %2283
  %2287 = vset.pattern.permute.xlu0 0
  %2288 = vperm.xlu0 %2287, %v2230
  %v2289 = vpop.permute.xlu0 %2288
  %2292 = vset.pattern.permute.xlu0 0
  %2293 = vperm.xlu0 %2292, %v2245
  %v2294 = vpop.permute.xlu0 %2293
  %2297 = vset.pattern.permute.xlu0 0
  %2298 = vperm.xlu0 %2297, %v2260
  %v2299 = vpop.permute.xlu0 %2298
  %v2301 = vmul.f32 %v2264, %v34
  %v2302 = vmul.f32 %v2269, %v35
  %v2303 = vmul.f32 %v2274, %v36
  %v2304 = vmul.f32 %v2279, %v37
  %v2305 = vmul.f32 %v2284, %v38
  %v2306 = vmul.f32 %v2289, %v39
  %v2307 = vmul.f32 %v2294, %v40
  %v2308 = vmul.f32 %v2299, %v41
  %v2309 = vsel %vm104, %v2301, 0.0
  %v2310 = vrot.slane %v2309, 4
  %v2311 = vadd.f32 %v2309, %v2310
  %v2312 = vrot.slane %v2311, 2
  %v2313 = vadd.f32 %v2311, %v2312
  %v2314 = vrot.slane %v2313, 1
  %v2315 = vadd.f32 %v2313, %v2314
  %v2316 = vsel %vm104, %v2302, 0.0
  %v2317 = vrot.slane %v2316, 4
  %v2318 = vadd.f32 %v2316, %v2317
  %v2319 = vrot.slane %v2318, 2
  %v2320 = vadd.f32 %v2318, %v2319
  %v2321 = vrot.slane %v2320, 1
  %v2322 = vadd.f32 %v2320, %v2321
  %v2323 = vsel %vm104, %v2303, 0.0
  %v2324 = vrot.slane %v2323, 4
  %v2325 = vadd.f32 %v2323, %v2324
  %v2326 = vrot.slane %v2325, 2
  %v2327 = vadd.f32 %v2325, %v2326
  %v2328 = vrot.slane %v2327, 1
  %v2329 = vadd.f32 %v2327, %v2328
  %v2330 = vsel %vm104, %v2304, 0.0
  %v2331 = vrot.slane %v2330, 4
  %v2332 = vadd.f32 %v2330, %v2331
  %v2333 = vrot.slane %v2332, 2
  %v2334 = vadd.f32 %v2332, %v2333
  %v2335 = vrot.slane %v2334, 1
  %v2336 = vadd.f32 %v2334, %v2335
  %v2337 = vsel %vm104, %v2305, 0.0
  %v2338 = vrot.slane %v2337, 4
  %v2339 = vadd.f32 %v2337, %v2338
  %v2340 = vrot.slane %v2339, 2
  %v2341 = vadd.f32 %v2339, %v2340
  %v2342 = vrot.slane %v2341, 1
  %v2343 = vadd.f32 %v2341, %v2342
  %v2344 = vsel %vm104, %v2306, 0.0
  %v2345 = vrot.slane %v2344, 4
  %v2346 = vadd.f32 %v2344, %v2345
  %v2347 = vrot.slane %v2346, 2
  %v2348 = vadd.f32 %v2346, %v2347
  %v2349 = vrot.slane %v2348, 1
  %v2350 = vadd.f32 %v2348, %v2349
  %v2351 = vsel %vm104, %v2307, 0.0
  %v2352 = vrot.slane %v2351, 4
  %v2353 = vadd.f32 %v2351, %v2352
  %v2354 = vrot.slane %v2353, 2
  %v2355 = vadd.f32 %v2353, %v2354
  %v2356 = vrot.slane %v2355, 1
  %v2357 = vadd.f32 %v2355, %v2356
  %v2358 = vsel %vm104, %v2308, 0.0
  %v2359 = vrot.slane %v2358, 4
  %v2360 = vadd.f32 %v2358, %v2359
  %v2361 = vrot.slane %v2360, 2
  %v2362 = vadd.f32 %v2360, %v2361
  %v2363 = vrot.slane %v2362, 1
  %v2364 = vadd.f32 %v2362, %v2363
  %2365 = vrot.lane.b32.xlu0 %v1932, 64
  %v2366 = vpop.permute.xlu0 %2365
  %2368 = vst.msk [vmem:[#allocation2] sm:$0xff] %vm104, %v2366
  %v2377 = vsel %vm335, %v2322, %v2315
  %v2378 = vsel %vm337, %v2329, %v2377
  %v2379 = vsel %vm339, %v2336, %v2378
  %v2380 = vsel %vm341, %v2343, %v2379
  %v2381 = vsel %vm343, %v2350, %v2380
  %v2382 = vsel %vm345, %v2357, %v2381
  %v2383 = vsel %vm347, %v2364, %v2382
  %2385 = vst.msk [vmem:[#allocation3] sm:$0xff] %vm104, %v2383
  %s2386 = scalar_lea.vmem %s7, 24
  %2387 = vst.msk [vmem:[%s2386] sm:$0xff] %vm104, %v2366
  %s2388 = scalar_lea.vmem %s6, 24
  %2389 = vst.msk [vmem:[%s2388] sm:$0xff] %vm104, %v2383
  %v2390 = vld [vmem:[#allocation2] sm:$0xff]
  %v2391 = vld [vmem:[#allocation3] sm:$0xff]
  %s2392 = scalar_lea.vmem %s0, 64
  %v2393 = vld [vmem:[%s2392] sm:$0xff]
  %v2394 = vld [vmem:[%s2392 + $0x8] sm:$0xff]
  %v2395 = vpack.c.bf16 %v2391, %v2391
  %v2397 = vsel %vm104, %v2395, 0
  %2399 = vmatpush.bf16.msra.mxu0 0
  %2400 = vmatpush.bf16.msra.mxu0 0
  %2401 = vmatpush.bf16.msra.mxu0 0
  %2402 = vmatpush.bf16.msra.mxu0 0
  %2403 = vmatpush.bf16.msra.mxu0 %v94
  %2404 = vmatpush.bf16.msra.mxu0 %v92
  %2405 = vmatpush.bf16.msra.mxu0 %v90
  %2406 = vmatpush.bf16.msra.mxu0 %v88
  %2407 = vmatmul.bf16.gmra.mxu0 %v2397
  %v2408 = vpop.f32.mrf.mxu0
  %v2409 = vadd.f32 0.0, %v2408
  %v2410 = vpop.f32.mrf.mxu0
  %2411 = vdwg.mxu0
  %2412 = vmatpush.bf16.msra.mxu0 0
  %2413 = vmatpush.bf16.msra.mxu0 0
  %2414 = vmatpush.bf16.msra.mxu0 0
  %2415 = vmatpush.bf16.msra.mxu0 0
  %2416 = vmatpush.bf16.msra.mxu0 %v95
  %2417 = vmatpush.bf16.msra.mxu0 %v93
  %2418 = vmatpush.bf16.msra.mxu0 %v91
  %2419 = vmatpush.bf16.msra.mxu0 %v89
  %2420 = vmatmul.bf16.gmra.mxu0 %v2397
  %v2421 = vpop.f32.mrf.mxu0
  %v2422 = vadd.f32 0.0, %v2421
  %v2423 = vpop.f32.mrf.mxu0
  %2424 = vdwg.mxu0
  %v2425 = vadd.f32 %v2393, %v2409
  %v2426 = vadd.f32 %v2394, %v2422
  %v2427 = vpack.c.bf16 %v2390, %v2390
  %v2429 = vsel %vm104, %v2427, 0
  %2431 = vmatpush.bf16.msra.mxu0 0
  %2432 = vmatpush.bf16.msra.mxu0 0
  %2433 = vmatpush.bf16.msra.mxu0 0
  %2434 = vmatpush.bf16.msra.mxu0 0
  %2435 = vmatpush.bf16.msra.mxu0 %v167
  %2436 = vmatpush.bf16.msra.mxu0 %v165
  %2437 = vmatpush.bf16.msra.mxu0 %v163
  %2438 = vmatpush.bf16.msra.mxu0 %v161
  %2439 = vmatmul.bf16.gmra.mxu0 %v2429
  %v2440 = vpop.f32.mrf.mxu0
  %v2441 = vadd.f32 0.0, %v2440
  %v2442 = vpop.f32.mrf.mxu0
  %2443 = vdwg.mxu0
  %2444 = vmatpush.bf16.msra.mxu0 0
  %2445 = vmatpush.bf16.msra.mxu0 0
  %2446 = vmatpush.bf16.msra.mxu0 0
  %2447 = vmatpush.bf16.msra.mxu0 0
  %2448 = vmatpush.bf16.msra.mxu0 %v168
  %2449 = vmatpush.bf16.msra.mxu0 %v166
  %2450 = vmatpush.bf16.msra.mxu0 %v164
  %2451 = vmatpush.bf16.msra.mxu0 %v162
  %2452 = vmatmul.bf16.gmra.mxu0 %v2429
  %v2453 = vpop.f32.mrf.mxu0
  %v2454 = vadd.f32 0.0, %v2453
  %v2455 = vpop.f32.mrf.mxu0
  %2456 = vdwg.mxu0
  %v2457 = vadd.f32 %v2425, %v2441
  %v2458 = vxor.u32 %v2457, 2147483648
  %v2459 = vmul.f32 %v2458, 1.442695
  %v2460 = vpow.pop %v2459
  %v2461 = vadd.f32 %v2460, 1.0
  %v2462 = vrcp.pop %v2461
  %v2463 = vmul.f32 %v2461, %v2462
  %v2464 = vsub.f32 1.0, %v2463
  %v2465 = vmul.f32 %v2462, %v2464
  %v2466 = vadd.f32 %v2462, %v2465
  %vm2467 = vweird.f32 %v2461
  %vm2468 = vweird.f32 %v2462
  %vm2469 = vmor %vm2467, %vm2468
  %v2470 = vsel %vm2469, %v2462, %v2466
  %v2471 = vand.u32 2147483647, %v2461
  %vm2472 = vcmp.eq.f32.partialorder %v2471, 8.507059e+37
  %v2473 = vand.u32 %v2461, 2147483648
  %v2474 = vor.u32 1.1754944e-38, %v2473
  %v2475 = vsel %vm2472, %v2474, %v2470
  %v2476 = vmul.f32 1.0, %v2475
  %v2477 = vadd.f32 %v2454, %v227
  %v2478 = vmul.f32 %v2476, %v2477
  %v2479 = vadd.f32 %v2426, %v2478
  %v2480 = vtanh.pop %v2479
  %v2481 = vsub.f32 1.0, %v2476
  %2483 = vrot.lane.b32.xlu0 %v2480, 64
  %v2484 = vpop.permute.xlu0 %2483
  %v2486 = vmul.f32 %v2481, %v2484
  %2488 = vrot.lane.b32.xlu0 %v2390, 64
  %v2489 = vpop.permute.xlu0 %2488
  %v2491 = vmul.f32 %v2476, %v2489
  %v2492 = vadd.f32 %v2486, %v2491
  %v2494 = vrot.slane %v2492, 1
  %v2495 = vrot.slane %v2492, 2
  %v2496 = vrot.slane %v2492, 3
  %v2497 = vrot.slane %v2492, 4
  %v2498 = vrot.slane %v2492, 5
  %v2499 = vrot.slane %v2492, 6
  %v2500 = vrot.slane %v2492, 7
  %v2501 = vperm.slane %v2492, 0
  %v2502 = vperm.slane %v2494, 0
  %v2503 = vperm.slane %v2495, 0
  %v2504 = vperm.slane %v2496, 0
  %v2505 = vperm.slane %v2497, 0
  %v2506 = vperm.slane %v2498, 0
  %v2507 = vperm.slane %v2499, 0
  %v2508 = vperm.slane %v2500, 0
  %2509 = vrot.lane.b32.xlu0 %v2501, 64
  %v2510 = vpop.permute.xlu0 %2509
  %2511 = vrot.lane.b32.xlu0 %v2502, 64
  %v2512 = vpop.permute.xlu0 %2511
  %2513 = vrot.lane.b32.xlu0 %v2503, 64
  %v2514 = vpop.permute.xlu0 %2513
  %2515 = vrot.lane.b32.xlu0 %v2504, 64
  %v2516 = vpop.permute.xlu0 %2515
  %2517 = vrot.lane.b32.xlu0 %v2505, 64
  %v2518 = vpop.permute.xlu0 %2517
  %2519 = vrot.lane.b32.xlu0 %v2506, 64
  %v2520 = vpop.permute.xlu0 %2519
  %2521 = vrot.lane.b32.xlu0 %v2507, 64
  %v2522 = vpop.permute.xlu0 %2521
  %2523 = vrot.lane.b32.xlu0 %v2508, 64
  %v2524 = vpop.permute.xlu0 %2523
  %v2533 = vmul.f32 %v34, %v2510
  %v2534 = vmul.f32 %v35, %v2512
  %v2535 = vmul.f32 %v36, %v2514
  %v2536 = vmul.f32 %v37, %v2516
  %v2537 = vmul.f32 %v38, %v2518
  %v2538 = vmul.f32 %v39, %v2520
  %v2539 = vmul.f32 %v40, %v2522
  %v2540 = vmul.f32 %v41, %v2524
  %v2541 = vsel %vm104, %v2533, 0.0
  %2542 = vadd.xlane.f32.xlu0 %v2541
  %v2543 = vpop.xlane.xlu0 %2542
  %v2544 = vsel %vm104, %v2534, 0.0
  %2545 = vadd.xlane.f32.xlu0 %v2544
  %v2546 = vpop.xlane.xlu0 %2545
  %v2547 = vsel %vm104, %v2535, 0.0
  %2548 = vadd.xlane.f32.xlu0 %v2547
  %v2549 = vpop.xlane.xlu0 %2548
  %v2550 = vsel %vm104, %v2536, 0.0
  %2551 = vadd.xlane.f32.xlu0 %v2550
  %v2552 = vpop.xlane.xlu0 %2551
  %v2553 = vsel %vm104, %v2537, 0.0
  %2554 = vadd.xlane.f32.xlu0 %v2553
  %v2555 = vpop.xlane.xlu0 %2554
  %v2556 = vsel %vm104, %v2538, 0.0
  %2557 = vadd.xlane.f32.xlu0 %v2556
  %v2558 = vpop.xlane.xlu0 %2557
  %v2559 = vsel %vm104, %v2539, 0.0
  %2560 = vadd.xlane.f32.xlu0 %v2559
  %v2561 = vpop.xlane.xlu0 %2560
  %v2562 = vsel %vm104, %v2540, 0.0
  %2563 = vadd.xlane.f32.xlu0 %v2562
  %v2564 = vpop.xlane.xlu0 %2563
  %v2573 = vperm.slane %v2543, %v326
  %v2574 = vperm.slane %v2546, %v326
  %v2575 = vperm.slane %v2549, %v326
  %v2576 = vperm.slane %v2552, %v326
  %v2577 = vperm.slane %v2555, %v326
  %v2578 = vperm.slane %v2558, %v326
  %v2579 = vperm.slane %v2561, %v326
  %v2580 = vperm.slane %v2564, %v326
  %v2581 = vsel %vm335, %v2574, %v2573
  %v2582 = vsel %vm337, %v2575, %v2581
  %v2583 = vsel %vm339, %v2576, %v2582
  %v2584 = vsel %vm341, %v2577, %v2583
  %v2585 = vsel %vm343, %v2578, %v2584
  %v2586 = vsel %vm345, %v2579, %v2585
  %v2587 = vsel %vm347, %v2580, %v2586
  %v2589 = vsel %vm350, %v2587, -inf
  %2590 = vmax.xlane.f32.xlu0 %v2589
  %v2591 = vpop.xlane.xlu0 %2590
  %v2593 = vperm.slane %v2591, 0
  %v2594 = vperm.slane %v2591, 1
  %v2595 = vperm.slane %v2591, 2
  %v2596 = vperm.slane %v2591, 3
  %v2597 = vperm.slane %v2591, 4
  %v2598 = vperm.slane %v2591, 5
  %v2599 = vperm.slane %v2591, 6
  %v2600 = vperm.slane %v2591, 7
  %v2609 = vsub.f32 %v2543, %v2593
  %v2610 = vsub.f32 %v2546, %v2594
  %v2611 = vsub.f32 %v2549, %v2595
  %v2612 = vsub.f32 %v2552, %v2596
  %v2613 = vsub.f32 %v2555, %v2597
  %v2614 = vsub.f32 %v2558, %v2598
  %v2615 = vsub.f32 %v2561, %v2599
  %v2616 = vsub.f32 %v2564, %v2600
  %v2617 = vmul.f32 %v2609, 1.442695
  %v2618 = vpow.pop %v2617
  %v2619 = vmul.f32 %v2610, 1.442695
  %v2620 = vpow.pop %v2619
  %v2621 = vmul.f32 %v2611, 1.442695
  %v2622 = vpow.pop %v2621
  %v2623 = vmul.f32 %v2612, 1.442695
  %v2624 = vpow.pop %v2623
  %v2625 = vmul.f32 %v2613, 1.442695
  %v2626 = vpow.pop %v2625
  %v2627 = vmul.f32 %v2614, 1.442695
  %v2628 = vpow.pop %v2627
  %v2629 = vmul.f32 %v2615, 1.442695
  %v2630 = vpow.pop %v2629
  %v2631 = vmul.f32 %v2616, 1.442695
  %v2632 = vpow.pop %v2631
  %2641 = vset.pattern.permute.xlu0 0
  %2642 = vperm.xlu0 %2641, %v2618
  %v2643 = vpop.permute.xlu0 %2642
  %2644 = vset.pattern.permute.xlu0 0
  %2645 = vperm.xlu0 %2644, %v2620
  %v2646 = vpop.permute.xlu0 %2645
  %2647 = vset.pattern.permute.xlu0 0
  %2648 = vperm.xlu0 %2647, %v2622
  %v2649 = vpop.permute.xlu0 %2648
  %2650 = vset.pattern.permute.xlu0 0
  %2651 = vperm.xlu0 %2650, %v2624
  %v2652 = vpop.permute.xlu0 %2651
  %2653 = vset.pattern.permute.xlu0 0
  %2654 = vperm.xlu0 %2653, %v2626
  %v2655 = vpop.permute.xlu0 %2654
  %2656 = vset.pattern.permute.xlu0 0
  %2657 = vperm.xlu0 %2656, %v2628
  %v2658 = vpop.permute.xlu0 %2657
  %2659 = vset.pattern.permute.xlu0 0
  %2660 = vperm.xlu0 %2659, %v2630
  %v2661 = vpop.permute.xlu0 %2660
  %2662 = vset.pattern.permute.xlu0 0
  %2663 = vperm.xlu0 %2662, %v2632
  %v2664 = vpop.permute.xlu0 %2663
  %v2665 = vperm.slane %v2643, %v326
  %v2666 = vperm.slane %v2646, %v326
  %v2667 = vperm.slane %v2649, %v326
  %v2668 = vperm.slane %v2652, %v326
  %v2669 = vperm.slane %v2655, %v326
  %v2670 = vperm.slane %v2658, %v326
  %v2671 = vperm.slane %v2661, %v326
  %v2672 = vperm.slane %v2664, %v326
  %v2673 = vsel %vm335, %v2666, %v2665
  %v2674 = vsel %vm337, %v2667, %v2673
  %v2675 = vsel %vm339, %v2668, %v2674
  %v2676 = vsel %vm341, %v2669, %v2675
  %v2677 = vsel %vm343, %v2670, %v2676
  %v2678 = vsel %vm345, %v2671, %v2677
  %v2679 = vsel %vm347, %v2672, %v2678
  %v2681 = vsel %vm350, %v2679, 0.0
  %2682 = vadd.xlane.f32.xlu0 %v2681
  %v2683 = vpop.xlane.xlu0 %2682
  %v2685 = vperm.slane %v2683, 0
  %v2686 = vperm.slane %v2683, 1
  %v2687 = vperm.slane %v2683, 2
  %v2688 = vperm.slane %v2683, 3
  %v2689 = vperm.slane %v2683, 4
  %v2690 = vperm.slane %v2683, 5
  %v2691 = vperm.slane %v2683, 6
  %v2692 = vperm.slane %v2683, 7
  %v2701 = vrcp.pop %v2685
  %v2702 = vmul.f32 %v2685, %v2701
  %v2703 = vsub.f32 1.0, %v2702
  %v2704 = vmul.f32 %v2701, %v2703
  %v2705 = vadd.f32 %v2701, %v2704
  %vm2706 = vweird.f32 %v2685
  %vm2707 = vweird.f32 %v2701
  %vm2708 = vmor %vm2706, %vm2707
  %v2709 = vsel %vm2708, %v2701, %v2705
  %v2710 = vand.u32 2147483647, %v2685
  %vm2711 = vcmp.eq.f32.partialorder %v2710, 8.507059e+37
  %v2712 = vand.u32 %v2685, 2147483648
  %v2713 = vor.u32 1.1754944e-38, %v2712
  %v2714 = vsel %vm2711, %v2713, %v2709
  %v2715 = vmul.f32 %v2618, %v2714
  %v2716 = vrcp.pop %v2686
  %v2717 = vmul.f32 %v2686, %v2716
  %v2718 = vsub.f32 1.0, %v2717
  %v2719 = vmul.f32 %v2716, %v2718
  %v2720 = vadd.f32 %v2716, %v2719
  %vm2721 = vweird.f32 %v2686
  %vm2722 = vweird.f32 %v2716
  %vm2723 = vmor %vm2721, %vm2722
  %v2724 = vsel %vm2723, %v2716, %v2720
  %v2725 = vand.u32 2147483647, %v2686
  %vm2726 = vcmp.eq.f32.partialorder %v2725, 8.507059e+37
  %v2727 = vand.u32 %v2686, 2147483648
  %v2728 = vor.u32 1.1754944e-38, %v2727
  %v2729 = vsel %vm2726, %v2728, %v2724
  %v2730 = vmul.f32 %v2620, %v2729
  %v2731 = vrcp.pop %v2687
  %v2732 = vmul.f32 %v2687, %v2731
  %v2733 = vsub.f32 1.0, %v2732
  %v2734 = vmul.f32 %v2731, %v2733
  %v2735 = vadd.f32 %v2731, %v2734
  %vm2736 = vweird.f32 %v2687
  %vm2737 = vweird.f32 %v2731
  %vm2738 = vmor %vm2736, %vm2737
  %v2739 = vsel %vm2738, %v2731, %v2735
  %v2740 = vand.u32 2147483647, %v2687
  %vm2741 = vcmp.eq.f32.partialorder %v2740, 8.507059e+37
  %v2742 = vand.u32 %v2687, 2147483648
  %v2743 = vor.u32 1.1754944e-38, %v2742
  %v2744 = vsel %vm2741, %v2743, %v2739
  %v2745 = vmul.f32 %v2622, %v2744
  %v2746 = vrcp.pop %v2688
  %v2747 = vmul.f32 %v2688, %v2746
  %v2748 = vsub.f32 1.0, %v2747
  %v2749 = vmul.f32 %v2746, %v2748
  %v2750 = vadd.f32 %v2746, %v2749
  %vm2751 = vweird.f32 %v2688
  %vm2752 = vweird.f32 %v2746
  %vm2753 = vmor %vm2751, %vm2752
  %v2754 = vsel %vm2753, %v2746, %v2750
  %v2755 = vand.u32 2147483647, %v2688
  %vm2756 = vcmp.eq.f32.partialorder %v2755, 8.507059e+37
  %v2757 = vand.u32 %v2688, 2147483648
  %v2758 = vor.u32 1.1754944e-38, %v2757
  %v2759 = vsel %vm2756, %v2758, %v2754
  %v2760 = vmul.f32 %v2624, %v2759
  %v2761 = vrcp.pop %v2689
  %v2762 = vmul.f32 %v2689, %v2761
  %v2763 = vsub.f32 1.0, %v2762
  %v2764 = vmul.f32 %v2761, %v2763
  %v2765 = vadd.f32 %v2761, %v2764
  %vm2766 = vweird.f32 %v2689
  %vm2767 = vweird.f32 %v2761
  %vm2768 = vmor %vm2766, %vm2767
  %v2769 = vsel %vm2768, %v2761, %v2765
  %v2770 = vand.u32 2147483647, %v2689
  %vm2771 = vcmp.eq.f32.partialorder %v2770, 8.507059e+37
  %v2772 = vand.u32 %v2689, 2147483648
  %v2773 = vor.u32 1.1754944e-38, %v2772
  %v2774 = vsel %vm2771, %v2773, %v2769
  %v2775 = vmul.f32 %v2626, %v2774
  %v2776 = vrcp.pop %v2690
  %v2777 = vmul.f32 %v2690, %v2776
  %v2778 = vsub.f32 1.0, %v2777
  %v2779 = vmul.f32 %v2776, %v2778
  %v2780 = vadd.f32 %v2776, %v2779
  %vm2781 = vweird.f32 %v2690
  %vm2782 = vweird.f32 %v2776
  %vm2783 = vmor %vm2781, %vm2782
  %v2784 = vsel %vm2783, %v2776, %v2780
  %v2785 = vand.u32 2147483647, %v2690
  %vm2786 = vcmp.eq.f32.partialorder %v2785, 8.507059e+37
  %v2787 = vand.u32 %v2690, 2147483648
  %v2788 = vor.u32 1.1754944e-38, %v2787
  %v2789 = vsel %vm2786, %v2788, %v2784
  %v2790 = vmul.f32 %v2628, %v2789
  %v2791 = vrcp.pop %v2691
  %v2792 = vmul.f32 %v2691, %v2791
  %v2793 = vsub.f32 1.0, %v2792
  %v2794 = vmul.f32 %v2791, %v2793
  %v2795 = vadd.f32 %v2791, %v2794
  %vm2796 = vweird.f32 %v2691
  %vm2797 = vweird.f32 %v2791
  %vm2798 = vmor %vm2796, %vm2797
  %v2799 = vsel %vm2798, %v2791, %v2795
  %v2800 = vand.u32 2147483647, %v2691
  %vm2801 = vcmp.eq.f32.partialorder %v2800, 8.507059e+37
  %v2802 = vand.u32 %v2691, 2147483648
  %v2803 = vor.u32 1.1754944e-38, %v2802
  %v2804 = vsel %vm2801, %v2803, %v2799
  %v2805 = vmul.f32 %v2630, %v2804
  %v2806 = vrcp.pop %v2692
  %v2807 = vmul.f32 %v2692, %v2806
  %v2808 = vsub.f32 1.0, %v2807
  %v2809 = vmul.f32 %v2806, %v2808
  %v2810 = vadd.f32 %v2806, %v2809
  %vm2811 = vweird.f32 %v2692
  %vm2812 = vweird.f32 %v2806
  %vm2813 = vmor %vm2811, %vm2812
  %v2814 = vsel %vm2813, %v2806, %v2810
  %v2815 = vand.u32 2147483647, %v2692
  %vm2816 = vcmp.eq.f32.partialorder %v2815, 8.507059e+37
  %v2817 = vand.u32 %v2692, 2147483648
  %v2818 = vor.u32 1.1754944e-38, %v2817
  %v2819 = vsel %vm2816, %v2818, %v2814
  %v2820 = vmul.f32 %v2632, %v2819
  %2822 = vset.pattern.permute.xlu0 0
  %2823 = vperm.xlu0 %2822, %v2715
  %v2824 = vpop.permute.xlu0 %2823
  %2827 = vset.pattern.permute.xlu0 0
  %2828 = vperm.xlu0 %2827, %v2730
  %v2829 = vpop.permute.xlu0 %2828
  %2832 = vset.pattern.permute.xlu0 0
  %2833 = vperm.xlu0 %2832, %v2745
  %v2834 = vpop.permute.xlu0 %2833
  %2837 = vset.pattern.permute.xlu0 0
  %2838 = vperm.xlu0 %2837, %v2760
  %v2839 = vpop.permute.xlu0 %2838
  %2842 = vset.pattern.permute.xlu0 0
  %2843 = vperm.xlu0 %2842, %v2775
  %v2844 = vpop.permute.xlu0 %2843
  %2847 = vset.pattern.permute.xlu0 0
  %2848 = vperm.xlu0 %2847, %v2790
  %v2849 = vpop.permute.xlu0 %2848
  %2852 = vset.pattern.permute.xlu0 0
  %2853 = vperm.xlu0 %2852, %v2805
  %v2854 = vpop.permute.xlu0 %2853
  %2857 = vset.pattern.permute.xlu0 0
  %2858 = vperm.xlu0 %2857, %v2820
  %v2859 = vpop.permute.xlu0 %2858
  %v2861 = vmul.f32 %v2824, %v34
  %v2862 = vmul.f32 %v2829, %v35
  %v2863 = vmul.f32 %v2834, %v36
  %v2864 = vmul.f32 %v2839, %v37
  %v2865 = vmul.f32 %v2844, %v38
  %v2866 = vmul.f32 %v2849, %v39
  %v2867 = vmul.f32 %v2854, %v40
  %v2868 = vmul.f32 %v2859, %v41
  %v2869 = vsel %vm104, %v2861, 0.0
  %v2870 = vrot.slane %v2869, 4
  %v2871 = vadd.f32 %v2869, %v2870
  %v2872 = vrot.slane %v2871, 2
  %v2873 = vadd.f32 %v2871, %v2872
  %v2874 = vrot.slane %v2873, 1
  %v2875 = vadd.f32 %v2873, %v2874
  %v2876 = vsel %vm104, %v2862, 0.0
  %v2877 = vrot.slane %v2876, 4
  %v2878 = vadd.f32 %v2876, %v2877
  %v2879 = vrot.slane %v2878, 2
  %v2880 = vadd.f32 %v2878, %v2879
  %v2881 = vrot.slane %v2880, 1
  %v2882 = vadd.f32 %v2880, %v2881
  %v2883 = vsel %vm104, %v2863, 0.0
  %v2884 = vrot.slane %v2883, 4
  %v2885 = vadd.f32 %v2883, %v2884
  %v2886 = vrot.slane %v2885, 2
  %v2887 = vadd.f32 %v2885, %v2886
  %v2888 = vrot.slane %v2887, 1
  %v2889 = vadd.f32 %v2887, %v2888
  %v2890 = vsel %vm104, %v2864, 0.0
  %v2891 = vrot.slane %v2890, 4
  %v2892 = vadd.f32 %v2890, %v2891
  %v2893 = vrot.slane %v2892, 2
  %v2894 = vadd.f32 %v2892, %v2893
  %v2895 = vrot.slane %v2894, 1
  %v2896 = vadd.f32 %v2894, %v2895
  %v2897 = vsel %vm104, %v2865, 0.0
  %v2898 = vrot.slane %v2897, 4
  %v2899 = vadd.f32 %v2897, %v2898
  %v2900 = vrot.slane %v2899, 2
  %v2901 = vadd.f32 %v2899, %v2900
  %v2902 = vrot.slane %v2901, 1
  %v2903 = vadd.f32 %v2901, %v2902
  %v2904 = vsel %vm104, %v2866, 0.0
  %v2905 = vrot.slane %v2904, 4
  %v2906 = vadd.f32 %v2904, %v2905
  %v2907 = vrot.slane %v2906, 2
  %v2908 = vadd.f32 %v2906, %v2907
  %v2909 = vrot.slane %v2908, 1
  %v2910 = vadd.f32 %v2908, %v2909
  %v2911 = vsel %vm104, %v2867, 0.0
  %v2912 = vrot.slane %v2911, 4
  %v2913 = vadd.f32 %v2911, %v2912
  %v2914 = vrot.slane %v2913, 2
  %v2915 = vadd.f32 %v2913, %v2914
  %v2916 = vrot.slane %v2915, 1
  %v2917 = vadd.f32 %v2915, %v2916
  %v2918 = vsel %vm104, %v2868, 0.0
  %v2919 = vrot.slane %v2918, 4
  %v2920 = vadd.f32 %v2918, %v2919
  %v2921 = vrot.slane %v2920, 2
  %v2922 = vadd.f32 %v2920, %v2921
  %v2923 = vrot.slane %v2922, 1
  %v2924 = vadd.f32 %v2922, %v2923
  %2925 = vrot.lane.b32.xlu0 %v2492, 64
  %v2926 = vpop.permute.xlu0 %2925
  %2928 = vst.msk [vmem:[#allocation2] sm:$0xff] %vm104, %v2926
  %v2937 = vsel %vm335, %v2882, %v2875
  %v2938 = vsel %vm337, %v2889, %v2937
  %v2939 = vsel %vm339, %v2896, %v2938
  %v2940 = vsel %vm341, %v2903, %v2939
  %v2941 = vsel %vm343, %v2910, %v2940
  %v2942 = vsel %vm345, %v2917, %v2941
  %v2943 = vsel %vm347, %v2924, %v2942
  %2945 = vst.msk [vmem:[#allocation3] sm:$0xff] %vm104, %v2943
  %s2946 = scalar_lea.vmem %s7, 32
  %2947 = vst.msk [vmem:[%s2946] sm:$0xff] %vm104, %v2926
  %s2948 = scalar_lea.vmem %s6, 32
  %2949 = vst.msk [vmem:[%s2948] sm:$0xff] %vm104, %v2943
  %v2950 = vld [vmem:[#allocation2] sm:$0xff]
  %v2951 = vld [vmem:[#allocation3] sm:$0xff]
  %s2952 = scalar_lea.vmem %s0, 80
  %v2953 = vld [vmem:[%s2952] sm:$0xff]
  %v2954 = vld [vmem:[%s2952 + $0x8] sm:$0xff]
  %v2955 = vpack.c.bf16 %v2951, %v2951
  %v2957 = vsel %vm104, %v2955, 0
  %2959 = vmatpush.bf16.msra.mxu0 0
  %2960 = vmatpush.bf16.msra.mxu0 0
  %2961 = vmatpush.bf16.msra.mxu0 0
  %2962 = vmatpush.bf16.msra.mxu0 0
  %2963 = vmatpush.bf16.msra.mxu0 %v94
  %2964 = vmatpush.bf16.msra.mxu0 %v92
  %2965 = vmatpush.bf16.msra.mxu0 %v90
  %2966 = vmatpush.bf16.msra.mxu0 %v88
  %2967 = vmatmul.bf16.gmra.mxu0 %v2957
  %v2968 = vpop.f32.mrf.mxu0
  %v2969 = vadd.f32 0.0, %v2968
  %v2970 = vpop.f32.mrf.mxu0
  %2971 = vdwg.mxu0
  %2972 = vmatpush.bf16.msra.mxu0 0
  %2973 = vmatpush.bf16.msra.mxu0 0
  %2974 = vmatpush.bf16.msra.mxu0 0
  %2975 = vmatpush.bf16.msra.mxu0 0
  %2976 = vmatpush.bf16.msra.mxu0 %v95
  %2977 = vmatpush.bf16.msra.mxu0 %v93
  %2978 = vmatpush.bf16.msra.mxu0 %v91
  %2979 = vmatpush.bf16.msra.mxu0 %v89
  %2980 = vmatmul.bf16.gmra.mxu0 %v2957
  %v2981 = vpop.f32.mrf.mxu0
  %v2982 = vadd.f32 0.0, %v2981
  %v2983 = vpop.f32.mrf.mxu0
  %2984 = vdwg.mxu0
  %v2985 = vadd.f32 %v2953, %v2969
  %v2986 = vadd.f32 %v2954, %v2982
  %v2987 = vpack.c.bf16 %v2950, %v2950
  %v2989 = vsel %vm104, %v2987, 0
  %2991 = vmatpush.bf16.msra.mxu0 0
  %2992 = vmatpush.bf16.msra.mxu0 0
  %2993 = vmatpush.bf16.msra.mxu0 0
  %2994 = vmatpush.bf16.msra.mxu0 0
  %2995 = vmatpush.bf16.msra.mxu0 %v167
  %2996 = vmatpush.bf16.msra.mxu0 %v165
  %2997 = vmatpush.bf16.msra.mxu0 %v163
  %2998 = vmatpush.bf16.msra.mxu0 %v161
  %2999 = vmatmul.bf16.gmra.mxu0 %v2989
  %v3000 = vpop.f32.mrf.mxu0
  %v3001 = vadd.f32 0.0, %v3000
  %v3002 = vpop.f32.mrf.mxu0
  %3003 = vdwg.mxu0
  %3004 = vmatpush.bf16.msra.mxu0 0
  %3005 = vmatpush.bf16.msra.mxu0 0
  %3006 = vmatpush.bf16.msra.mxu0 0
  %3007 = vmatpush.bf16.msra.mxu0 0
  %3008 = vmatpush.bf16.msra.mxu0 %v168
  %3009 = vmatpush.bf16.msra.mxu0 %v166
  %3010 = vmatpush.bf16.msra.mxu0 %v164
  %3011 = vmatpush.bf16.msra.mxu0 %v162
  %3012 = vmatmul.bf16.gmra.mxu0 %v2989
  %v3013 = vpop.f32.mrf.mxu0
  %v3014 = vadd.f32 0.0, %v3013
  %v3015 = vpop.f32.mrf.mxu0
  %3016 = vdwg.mxu0
  %v3017 = vadd.f32 %v2985, %v3001
  %v3018 = vxor.u32 %v3017, 2147483648
  %v3019 = vmul.f32 %v3018, 1.442695
  %v3020 = vpow.pop %v3019
  %v3021 = vadd.f32 %v3020, 1.0
  %v3022 = vrcp.pop %v3021
  %v3023 = vmul.f32 %v3021, %v3022
  %v3024 = vsub.f32 1.0, %v3023
  %v3025 = vmul.f32 %v3022, %v3024
  %v3026 = vadd.f32 %v3022, %v3025
  %vm3027 = vweird.f32 %v3021
  %vm3028 = vweird.f32 %v3022
  %vm3029 = vmor %vm3027, %vm3028
  %v3030 = vsel %vm3029, %v3022, %v3026
  %v3031 = vand.u32 2147483647, %v3021
  %vm3032 = vcmp.eq.f32.partialorder %v3031, 8.507059e+37
  %v3033 = vand.u32 %v3021, 2147483648
  %v3034 = vor.u32 1.1754944e-38, %v3033
  %v3035 = vsel %vm3032, %v3034, %v3030
  %v3036 = vmul.f32 1.0, %v3035
  %v3037 = vadd.f32 %v3014, %v227
  %v3038 = vmul.f32 %v3036, %v3037
  %v3039 = vadd.f32 %v2986, %v3038
  %v3040 = vtanh.pop %v3039
  %v3041 = vsub.f32 1.0, %v3036
  %3043 = vrot.lane.b32.xlu0 %v3040, 64
  %v3044 = vpop.permute.xlu0 %3043
  %v3046 = vmul.f32 %v3041, %v3044
  %3048 = vrot.lane.b32.xlu0 %v2950, 64
  %v3049 = vpop.permute.xlu0 %3048
  %v3051 = vmul.f32 %v3036, %v3049
  %v3052 = vadd.f32 %v3046, %v3051
  %v3054 = vrot.slane %v3052, 1
  %v3055 = vrot.slane %v3052, 2
  %v3056 = vrot.slane %v3052, 3
  %v3057 = vrot.slane %v3052, 4
  %v3058 = vrot.slane %v3052, 5
  %v3059 = vrot.slane %v3052, 6
  %v3060 = vrot.slane %v3052, 7
  %v3061 = vperm.slane %v3052, 0
  %v3062 = vperm.slane %v3054, 0
  %v3063 = vperm.slane %v3055, 0
  %v3064 = vperm.slane %v3056, 0
  %v3065 = vperm.slane %v3057, 0
  %v3066 = vperm.slane %v3058, 0
  %v3067 = vperm.slane %v3059, 0
  %v3068 = vperm.slane %v3060, 0
  %3069 = vrot.lane.b32.xlu0 %v3061, 64
  %v3070 = vpop.permute.xlu0 %3069
  %3071 = vrot.lane.b32.xlu0 %v3062, 64
  %v3072 = vpop.permute.xlu0 %3071
  %3073 = vrot.lane.b32.xlu0 %v3063, 64
  %v3074 = vpop.permute.xlu0 %3073
  %3075 = vrot.lane.b32.xlu0 %v3064, 64
  %v3076 = vpop.permute.xlu0 %3075
  %3077 = vrot.lane.b32.xlu0 %v3065, 64
  %v3078 = vpop.permute.xlu0 %3077
  %3079 = vrot.lane.b32.xlu0 %v3066, 64
  %v3080 = vpop.permute.xlu0 %3079
  %3081 = vrot.lane.b32.xlu0 %v3067, 64
  %v3082 = vpop.permute.xlu0 %3081
  %3083 = vrot.lane.b32.xlu0 %v3068, 64
  %v3084 = vpop.permute.xlu0 %3083
  %v3093 = vmul.f32 %v34, %v3070
  %v3094 = vmul.f32 %v35, %v3072
  %v3095 = vmul.f32 %v36, %v3074
  %v3096 = vmul.f32 %v37, %v3076
  %v3097 = vmul.f32 %v38, %v3078
  %v3098 = vmul.f32 %v39, %v3080
  %v3099 = vmul.f32 %v40, %v3082
  %v3100 = vmul.f32 %v41, %v3084
  %v3101 = vsel %vm104, %v3093, 0.0
  %3102 = vadd.xlane.f32.xlu0 %v3101
  %v3103 = vpop.xlane.xlu0 %3102
  %v3104 = vsel %vm104, %v3094, 0.0
  %3105 = vadd.xlane.f32.xlu0 %v3104
  %v3106 = vpop.xlane.xlu0 %3105
  %v3107 = vsel %vm104, %v3095, 0.0
  %3108 = vadd.xlane.f32.xlu0 %v3107
  %v3109 = vpop.xlane.xlu0 %3108
  %v3110 = vsel %vm104, %v3096, 0.0
  %3111 = vadd.xlane.f32.xlu0 %v3110
  %v3112 = vpop.xlane.xlu0 %3111
  %v3113 = vsel %vm104, %v3097, 0.0
  %3114 = vadd.xlane.f32.xlu0 %v3113
  %v3115 = vpop.xlane.xlu0 %3114
  %v3116 = vsel %vm104, %v3098, 0.0
  %3117 = vadd.xlane.f32.xlu0 %v3116
  %v3118 = vpop.xlane.xlu0 %3117
  %v3119 = vsel %vm104, %v3099, 0.0
  %3120 = vadd.xlane.f32.xlu0 %v3119
  %v3121 = vpop.xlane.xlu0 %3120
  %v3122 = vsel %vm104, %v3100, 0.0
  %3123 = vadd.xlane.f32.xlu0 %v3122
  %v3124 = vpop.xlane.xlu0 %3123
  %v3133 = vperm.slane %v3103, %v326
  %v3134 = vperm.slane %v3106, %v326
  %v3135 = vperm.slane %v3109, %v326
  %v3136 = vperm.slane %v3112, %v326
  %v3137 = vperm.slane %v3115, %v326
  %v3138 = vperm.slane %v3118, %v326
  %v3139 = vperm.slane %v3121, %v326
  %v3140 = vperm.slane %v3124, %v326
  %v3141 = vsel %vm335, %v3134, %v3133
  %v3142 = vsel %vm337, %v3135, %v3141
  %v3143 = vsel %vm339, %v3136, %v3142
  %v3144 = vsel %vm341, %v3137, %v3143
  %v3145 = vsel %vm343, %v3138, %v3144
  %v3146 = vsel %vm345, %v3139, %v3145
  %v3147 = vsel %vm347, %v3140, %v3146
  %v3149 = vsel %vm350, %v3147, -inf
  %3150 = vmax.xlane.f32.xlu0 %v3149
  %v3151 = vpop.xlane.xlu0 %3150
  %v3153 = vperm.slane %v3151, 0
  %v3154 = vperm.slane %v3151, 1
  %v3155 = vperm.slane %v3151, 2
  %v3156 = vperm.slane %v3151, 3
  %v3157 = vperm.slane %v3151, 4
  %v3158 = vperm.slane %v3151, 5
  %v3159 = vperm.slane %v3151, 6
  %v3160 = vperm.slane %v3151, 7
  %v3169 = vsub.f32 %v3103, %v3153
  %v3170 = vsub.f32 %v3106, %v3154
  %v3171 = vsub.f32 %v3109, %v3155
  %v3172 = vsub.f32 %v3112, %v3156
  %v3173 = vsub.f32 %v3115, %v3157
  %v3174 = vsub.f32 %v3118, %v3158
  %v3175 = vsub.f32 %v3121, %v3159
  %v3176 = vsub.f32 %v3124, %v3160
  %v3177 = vmul.f32 %v3169, 1.442695
  %v3178 = vpow.pop %v3177
  %v3179 = vmul.f32 %v3170, 1.442695
  %v3180 = vpow.pop %v3179
  %v3181 = vmul.f32 %v3171, 1.442695
  %v3182 = vpow.pop %v3181
  %v3183 = vmul.f32 %v3172, 1.442695
  %v3184 = vpow.pop %v3183
  %v3185 = vmul.f32 %v3173, 1.442695
  %v3186 = vpow.pop %v3185
  %v3187 = vmul.f32 %v3174, 1.442695
  %v3188 = vpow.pop %v3187
  %v3189 = vmul.f32 %v3175, 1.442695
  %v3190 = vpow.pop %v3189
  %v3191 = vmul.f32 %v3176, 1.442695
  %v3192 = vpow.pop %v3191
  %3201 = vset.pattern.permute.xlu0 0
  %3202 = vperm.xlu0 %3201, %v3178
  %v3203 = vpop.permute.xlu0 %3202
  %3204 = vset.pattern.permute.xlu0 0
  %3205 = vperm.xlu0 %3204, %v3180
  %v3206 = vpop.permute.xlu0 %3205
  %3207 = vset.pattern.permute.xlu0 0
  %3208 = vperm.xlu0 %3207, %v3182
  %v3209 = vpop.permute.xlu0 %3208
  %3210 = vset.pattern.permute.xlu0 0
  %3211 = vperm.xlu0 %3210, %v3184
  %v3212 = vpop.permute.xlu0 %3211
  %3213 = vset.pattern.permute.xlu0 0
  %3214 = vperm.xlu0 %3213, %v3186
  %v3215 = vpop.permute.xlu0 %3214
  %3216 = vset.pattern.permute.xlu0 0
  %3217 = vperm.xlu0 %3216, %v3188
  %v3218 = vpop.permute.xlu0 %3217
  %3219 = vset.pattern.permute.xlu0 0
  %3220 = vperm.xlu0 %3219, %v3190
  %v3221 = vpop.permute.xlu0 %3220
  %3222 = vset.pattern.permute.xlu0 0
  %3223 = vperm.xlu0 %3222, %v3192
  %v3224 = vpop.permute.xlu0 %3223
  %v3225 = vperm.slane %v3203, %v326
  %v3226 = vperm.slane %v3206, %v326
  %v3227 = vperm.slane %v3209, %v326
  %v3228 = vperm.slane %v3212, %v326
  %v3229 = vperm.slane %v3215, %v326
  %v3230 = vperm.slane %v3218, %v326
  %v3231 = vperm.slane %v3221, %v326
  %v3232 = vperm.slane %v3224, %v326
  %v3233 = vsel %vm335, %v3226, %v3225
  %v3234 = vsel %vm337, %v3227, %v3233
  %v3235 = vsel %vm339, %v3228, %v3234
  %v3236 = vsel %vm341, %v3229, %v3235
  %v3237 = vsel %vm343, %v3230, %v3236
  %v3238 = vsel %vm345, %v3231, %v3237
  %v3239 = vsel %vm347, %v3232, %v3238
  %v3241 = vsel %vm350, %v3239, 0.0
  %3242 = vadd.xlane.f32.xlu0 %v3241
  %v3243 = vpop.xlane.xlu0 %3242
  %v3245 = vperm.slane %v3243, 0
  %v3246 = vperm.slane %v3243, 1
  %v3247 = vperm.slane %v3243, 2
  %v3248 = vperm.slane %v3243, 3
  %v3249 = vperm.slane %v3243, 4
  %v3250 = vperm.slane %v3243, 5
  %v3251 = vperm.slane %v3243, 6
  %v3252 = vperm.slane %v3243, 7
  %v3261 = vrcp.pop %v3245
  %v3262 = vmul.f32 %v3245, %v3261
  %v3263 = vsub.f32 1.0, %v3262
  %v3264 = vmul.f32 %v3261, %v3263
  %v3265 = vadd.f32 %v3261, %v3264
  %vm3266 = vweird.f32 %v3245
  %vm3267 = vweird.f32 %v3261
  %vm3268 = vmor %vm3266, %vm3267
  %v3269 = vsel %vm3268, %v3261, %v3265
  %v3270 = vand.u32 2147483647, %v3245
  %vm3271 = vcmp.eq.f32.partialorder %v3270, 8.507059e+37
  %v3272 = vand.u32 %v3245, 2147483648
  %v3273 = vor.u32 1.1754944e-38, %v3272
  %v3274 = vsel %vm3271, %v3273, %v3269
  %v3275 = vmul.f32 %v3178, %v3274
  %v3276 = vrcp.pop %v3246
  %v3277 = vmul.f32 %v3246, %v3276
  %v3278 = vsub.f32 1.0, %v3277
  %v3279 = vmul.f32 %v3276, %v3278
  %v3280 = vadd.f32 %v3276, %v3279
  %vm3281 = vweird.f32 %v3246
  %vm3282 = vweird.f32 %v3276
  %vm3283 = vmor %vm3281, %vm3282
  %v3284 = vsel %vm3283, %v3276, %v3280
  %v3285 = vand.u32 2147483647, %v3246
  %vm3286 = vcmp.eq.f32.partialorder %v3285, 8.507059e+37
  %v3287 = vand.u32 %v3246, 2147483648
  %v3288 = vor.u32 1.1754944e-38, %v3287
  %v3289 = vsel %vm3286, %v3288, %v3284
  %v3290 = vmul.f32 %v3180, %v3289
  %v3291 = vrcp.pop %v3247
  %v3292 = vmul.f32 %v3247, %v3291
  %v3293 = vsub.f32 1.0, %v3292
  %v3294 = vmul.f32 %v3291, %v3293
  %v3295 = vadd.f32 %v3291, %v3294
  %vm3296 = vweird.f32 %v3247
  %vm3297 = vweird.f32 %v3291
  %vm3298 = vmor %vm3296, %vm3297
  %v3299 = vsel %vm3298, %v3291, %v3295
  %v3300 = vand.u32 2147483647, %v3247
  %vm3301 = vcmp.eq.f32.partialorder %v3300, 8.507059e+37
  %v3302 = vand.u32 %v3247, 2147483648
  %v3303 = vor.u32 1.1754944e-38, %v3302
  %v3304 = vsel %vm3301, %v3303, %v3299
  %v3305 = vmul.f32 %v3182, %v3304
  %v3306 = vrcp.pop %v3248
  %v3307 = vmul.f32 %v3248, %v3306
  %v3308 = vsub.f32 1.0, %v3307
  %v3309 = vmul.f32 %v3306, %v3308
  %v3310 = vadd.f32 %v3306, %v3309
  %vm3311 = vweird.f32 %v3248
  %vm3312 = vweird.f32 %v3306
  %vm3313 = vmor %vm3311, %vm3312
  %v3314 = vsel %vm3313, %v3306, %v3310
  %v3315 = vand.u32 2147483647, %v3248
  %vm3316 = vcmp.eq.f32.partialorder %v3315, 8.507059e+37
  %v3317 = vand.u32 %v3248, 2147483648
  %v3318 = vor.u32 1.1754944e-38, %v3317
  %v3319 = vsel %vm3316, %v3318, %v3314
  %v3320 = vmul.f32 %v3184, %v3319
  %v3321 = vrcp.pop %v3249
  %v3322 = vmul.f32 %v3249, %v3321
  %v3323 = vsub.f32 1.0, %v3322
  %v3324 = vmul.f32 %v3321, %v3323
  %v3325 = vadd.f32 %v3321, %v3324
  %vm3326 = vweird.f32 %v3249
  %vm3327 = vweird.f32 %v3321
  %vm3328 = vmor %vm3326, %vm3327
  %v3329 = vsel %vm3328, %v3321, %v3325
  %v3330 = vand.u32 2147483647, %v3249
  %vm3331 = vcmp.eq.f32.partialorder %v3330, 8.507059e+37
  %v3332 = vand.u32 %v3249, 2147483648
  %v3333 = vor.u32 1.1754944e-38, %v3332
  %v3334 = vsel %vm3331, %v3333, %v3329
  %v3335 = vmul.f32 %v3186, %v3334
  %v3336 = vrcp.pop %v3250
  %v3337 = vmul.f32 %v3250, %v3336
  %v3338 = vsub.f32 1.0, %v3337
  %v3339 = vmul.f32 %v3336, %v3338
  %v3340 = vadd.f32 %v3336, %v3339
  %vm3341 = vweird.f32 %v3250
  %vm3342 = vweird.f32 %v3336
  %vm3343 = vmor %vm3341, %vm3342
  %v3344 = vsel %vm3343, %v3336, %v3340
  %v3345 = vand.u32 2147483647, %v3250
  %vm3346 = vcmp.eq.f32.partialorder %v3345, 8.507059e+37
  %v3347 = vand.u32 %v3250, 2147483648
  %v3348 = vor.u32 1.1754944e-38, %v3347
  %v3349 = vsel %vm3346, %v3348, %v3344
  %v3350 = vmul.f32 %v3188, %v3349
  %v3351 = vrcp.pop %v3251
  %v3352 = vmul.f32 %v3251, %v3351
  %v3353 = vsub.f32 1.0, %v3352
  %v3354 = vmul.f32 %v3351, %v3353
  %v3355 = vadd.f32 %v3351, %v3354
  %vm3356 = vweird.f32 %v3251
  %vm3357 = vweird.f32 %v3351
  %vm3358 = vmor %vm3356, %vm3357
  %v3359 = vsel %vm3358, %v3351, %v3355
  %v3360 = vand.u32 2147483647, %v3251
  %vm3361 = vcmp.eq.f32.partialorder %v3360, 8.507059e+37
  %v3362 = vand.u32 %v3251, 2147483648
  %v3363 = vor.u32 1.1754944e-38, %v3362
  %v3364 = vsel %vm3361, %v3363, %v3359
  %v3365 = vmul.f32 %v3190, %v3364
  %v3366 = vrcp.pop %v3252
  %v3367 = vmul.f32 %v3252, %v3366
  %v3368 = vsub.f32 1.0, %v3367
  %v3369 = vmul.f32 %v3366, %v3368
  %v3370 = vadd.f32 %v3366, %v3369
  %vm3371 = vweird.f32 %v3252
  %vm3372 = vweird.f32 %v3366
  %vm3373 = vmor %vm3371, %vm3372
  %v3374 = vsel %vm3373, %v3366, %v3370
  %v3375 = vand.u32 2147483647, %v3252
  %vm3376 = vcmp.eq.f32.partialorder %v3375, 8.507059e+37
  %v3377 = vand.u32 %v3252, 2147483648
  %v3378 = vor.u32 1.1754944e-38, %v3377
  %v3379 = vsel %vm3376, %v3378, %v3374
  %v3380 = vmul.f32 %v3192, %v3379
  %3382 = vset.pattern.permute.xlu0 0
  %3383 = vperm.xlu0 %3382, %v3275
  %v3384 = vpop.permute.xlu0 %3383
  %3387 = vset.pattern.permute.xlu0 0
  %3388 = vperm.xlu0 %3387, %v3290
  %v3389 = vpop.permute.xlu0 %3388
  %3392 = vset.pattern.permute.xlu0 0
  %3393 = vperm.xlu0 %3392, %v3305
  %v3394 = vpop.permute.xlu0 %3393
  %3397 = vset.pattern.permute.xlu0 0
  %3398 = vperm.xlu0 %3397, %v3320
  %v3399 = vpop.permute.xlu0 %3398
  %3402 = vset.pattern.permute.xlu0 0
  %3403 = vperm.xlu0 %3402, %v3335
  %v3404 = vpop.permute.xlu0 %3403
  %3407 = vset.pattern.permute.xlu0 0
  %3408 = vperm.xlu0 %3407, %v3350
  %v3409 = vpop.permute.xlu0 %3408
  %3412 = vset.pattern.permute.xlu0 0
  %3413 = vperm.xlu0 %3412, %v3365
  %v3414 = vpop.permute.xlu0 %3413
  %3417 = vset.pattern.permute.xlu0 0
  %3418 = vperm.xlu0 %3417, %v3380
  %v3419 = vpop.permute.xlu0 %3418
  %v3421 = vmul.f32 %v3384, %v34
  %v3422 = vmul.f32 %v3389, %v35
  %v3423 = vmul.f32 %v3394, %v36
  %v3424 = vmul.f32 %v3399, %v37
  %v3425 = vmul.f32 %v3404, %v38
  %v3426 = vmul.f32 %v3409, %v39
  %v3427 = vmul.f32 %v3414, %v40
  %v3428 = vmul.f32 %v3419, %v41
  %v3429 = vsel %vm104, %v3421, 0.0
  %v3430 = vrot.slane %v3429, 4
  %v3431 = vadd.f32 %v3429, %v3430
  %v3432 = vrot.slane %v3431, 2
  %v3433 = vadd.f32 %v3431, %v3432
  %v3434 = vrot.slane %v3433, 1
  %v3435 = vadd.f32 %v3433, %v3434
  %v3436 = vsel %vm104, %v3422, 0.0
  %v3437 = vrot.slane %v3436, 4
  %v3438 = vadd.f32 %v3436, %v3437
  %v3439 = vrot.slane %v3438, 2
  %v3440 = vadd.f32 %v3438, %v3439
  %v3441 = vrot.slane %v3440, 1
  %v3442 = vadd.f32 %v3440, %v3441
  %v3443 = vsel %vm104, %v3423, 0.0
  %v3444 = vrot.slane %v3443, 4
  %v3445 = vadd.f32 %v3443, %v3444
  %v3446 = vrot.slane %v3445, 2
  %v3447 = vadd.f32 %v3445, %v3446
  %v3448 = vrot.slane %v3447, 1
  %v3449 = vadd.f32 %v3447, %v3448
  %v3450 = vsel %vm104, %v3424, 0.0
  %v3451 = vrot.slane %v3450, 4
  %v3452 = vadd.f32 %v3450, %v3451
  %v3453 = vrot.slane %v3452, 2
  %v3454 = vadd.f32 %v3452, %v3453
  %v3455 = vrot.slane %v3454, 1
  %v3456 = vadd.f32 %v3454, %v3455
  %v3457 = vsel %vm104, %v3425, 0.0
  %v3458 = vrot.slane %v3457, 4
  %v3459 = vadd.f32 %v3457, %v3458
  %v3460 = vrot.slane %v3459, 2
  %v3461 = vadd.f32 %v3459, %v3460
  %v3462 = vrot.slane %v3461, 1
  %v3463 = vadd.f32 %v3461, %v3462
  %v3464 = vsel %vm104, %v3426, 0.0
  %v3465 = vrot.slane %v3464, 4
  %v3466 = vadd.f32 %v3464, %v3465
  %v3467 = vrot.slane %v3466, 2
  %v3468 = vadd.f32 %v3466, %v3467
  %v3469 = vrot.slane %v3468, 1
  %v3470 = vadd.f32 %v3468, %v3469
  %v3471 = vsel %vm104, %v3427, 0.0
  %v3472 = vrot.slane %v3471, 4
  %v3473 = vadd.f32 %v3471, %v3472
  %v3474 = vrot.slane %v3473, 2
  %v3475 = vadd.f32 %v3473, %v3474
  %v3476 = vrot.slane %v3475, 1
  %v3477 = vadd.f32 %v3475, %v3476
  %v3478 = vsel %vm104, %v3428, 0.0
  %v3479 = vrot.slane %v3478, 4
  %v3480 = vadd.f32 %v3478, %v3479
  %v3481 = vrot.slane %v3480, 2
  %v3482 = vadd.f32 %v3480, %v3481
  %v3483 = vrot.slane %v3482, 1
  %v3484 = vadd.f32 %v3482, %v3483
  %3485 = vrot.lane.b32.xlu0 %v3052, 64
  %v3486 = vpop.permute.xlu0 %3485
  %3488 = vst.msk [vmem:[#allocation2] sm:$0xff] %vm104, %v3486
  %v3497 = vsel %vm335, %v3442, %v3435
  %v3498 = vsel %vm337, %v3449, %v3497
  %v3499 = vsel %vm339, %v3456, %v3498
  %v3500 = vsel %vm341, %v3463, %v3499
  %v3501 = vsel %vm343, %v3470, %v3500
  %v3502 = vsel %vm345, %v3477, %v3501
  %v3503 = vsel %vm347, %v3484, %v3502
  %3505 = vst.msk [vmem:[#allocation3] sm:$0xff] %vm104, %v3503
  %s3506 = scalar_lea.vmem %s7, 40
  %3507 = vst.msk [vmem:[%s3506] sm:$0xff] %vm104, %v3486
  %s3508 = scalar_lea.vmem %s6, 40
  %3509 = vst.msk [vmem:[%s3508] sm:$0xff] %vm104, %v3503
  %v3510 = vld [vmem:[#allocation2] sm:$0xff]
  %v3511 = vld [vmem:[#allocation3] sm:$0xff]
  %s3512 = scalar_lea.vmem %s0, 96
  %v3513 = vld [vmem:[%s3512] sm:$0xff]
  %v3514 = vld [vmem:[%s3512 + $0x8] sm:$0xff]
  %v3515 = vpack.c.bf16 %v3511, %v3511
  %v3517 = vsel %vm104, %v3515, 0
  %3519 = vmatpush.bf16.msra.mxu0 0
  %3520 = vmatpush.bf16.msra.mxu0 0
  %3521 = vmatpush.bf16.msra.mxu0 0
  %3522 = vmatpush.bf16.msra.mxu0 0
  %3523 = vmatpush.bf16.msra.mxu0 %v94
  %3524 = vmatpush.bf16.msra.mxu0 %v92
  %3525 = vmatpush.bf16.msra.mxu0 %v90
  %3526 = vmatpush.bf16.msra.mxu0 %v88
  %3527 = vmatmul.bf16.gmra.mxu0 %v3517
  %v3528 = vpop.f32.mrf.mxu0
  %v3529 = vadd.f32 0.0, %v3528
  %v3530 = vpop.f32.mrf.mxu0
  %3531 = vdwg.mxu0
  %3532 = vmatpush.bf16.msra.mxu0 0
  %3533 = vmatpush.bf16.msra.mxu0 0
  %3534 = vmatpush.bf16.msra.mxu0 0
  %3535 = vmatpush.bf16.msra.mxu0 0
  %3536 = vmatpush.bf16.msra.mxu0 %v95
  %3537 = vmatpush.bf16.msra.mxu0 %v93
  %3538 = vmatpush.bf16.msra.mxu0 %v91
  %3539 = vmatpush.bf16.msra.mxu0 %v89
  %3540 = vmatmul.bf16.gmra.mxu0 %v3517
  %v3541 = vpop.f32.mrf.mxu0
  %v3542 = vadd.f32 0.0, %v3541
  %v3543 = vpop.f32.mrf.mxu0
  %3544 = vdwg.mxu0
  %v3545 = vadd.f32 %v3513, %v3529
  %v3546 = vadd.f32 %v3514, %v3542
  %v3547 = vpack.c.bf16 %v3510, %v3510
  %v3549 = vsel %vm104, %v3547, 0
  %3551 = vmatpush.bf16.msra.mxu0 0
  %3552 = vmatpush.bf16.msra.mxu0 0
  %3553 = vmatpush.bf16.msra.mxu0 0
  %3554 = vmatpush.bf16.msra.mxu0 0
  %3555 = vmatpush.bf16.msra.mxu0 %v167
  %3556 = vmatpush.bf16.msra.mxu0 %v165
  %3557 = vmatpush.bf16.msra.mxu0 %v163
  %3558 = vmatpush.bf16.msra.mxu0 %v161
  %3559 = vmatmul.bf16.gmra.mxu0 %v3549
  %v3560 = vpop.f32.mrf.mxu0
  %v3561 = vadd.f32 0.0, %v3560
  %v3562 = vpop.f32.mrf.mxu0
  %3563 = vdwg.mxu0
  %3564 = vmatpush.bf16.msra.mxu0 0
  %3565 = vmatpush.bf16.msra.mxu0 0
  %3566 = vmatpush.bf16.msra.mxu0 0
  %3567 = vmatpush.bf16.msra.mxu0 0
  %3568 = vmatpush.bf16.msra.mxu0 %v168
  %3569 = vmatpush.bf16.msra.mxu0 %v166
  %3570 = vmatpush.bf16.msra.mxu0 %v164
  %3571 = vmatpush.bf16.msra.mxu0 %v162
  %3572 = vmatmul.bf16.gmra.mxu0 %v3549
  %v3573 = vpop.f32.mrf.mxu0
  %v3574 = vadd.f32 0.0, %v3573
  %v3575 = vpop.f32.mrf.mxu0
  %3576 = vdwg.mxu0
  %v3577 = vadd.f32 %v3545, %v3561
  %v3578 = vxor.u32 %v3577, 2147483648
  %v3579 = vmul.f32 %v3578, 1.442695
  %v3580 = vpow.pop %v3579
  %v3581 = vadd.f32 %v3580, 1.0
  %v3582 = vrcp.pop %v3581
  %v3583 = vmul.f32 %v3581, %v3582
  %v3584 = vsub.f32 1.0, %v3583
  %v3585 = vmul.f32 %v3582, %v3584
  %v3586 = vadd.f32 %v3582, %v3585
  %vm3587 = vweird.f32 %v3581
  %vm3588 = vweird.f32 %v3582
  %vm3589 = vmor %vm3587, %vm3588
  %v3590 = vsel %vm3589, %v3582, %v3586
  %v3591 = vand.u32 2147483647, %v3581
  %vm3592 = vcmp.eq.f32.partialorder %v3591, 8.507059e+37
  %v3593 = vand.u32 %v3581, 2147483648
  %v3594 = vor.u32 1.1754944e-38, %v3593
  %v3595 = vsel %vm3592, %v3594, %v3590
  %v3596 = vmul.f32 1.0, %v3595
  %v3597 = vadd.f32 %v3574, %v227
  %v3598 = vmul.f32 %v3596, %v3597
  %v3599 = vadd.f32 %v3546, %v3598
  %v3600 = vtanh.pop %v3599
  %v3601 = vsub.f32 1.0, %v3596
  %3603 = vrot.lane.b32.xlu0 %v3600, 64
  %v3604 = vpop.permute.xlu0 %3603
  %v3606 = vmul.f32 %v3601, %v3604
  %3608 = vrot.lane.b32.xlu0 %v3510, 64
  %v3609 = vpop.permute.xlu0 %3608
  %v3611 = vmul.f32 %v3596, %v3609
  %v3612 = vadd.f32 %v3606, %v3611
  %v3614 = vrot.slane %v3612, 1
  %v3615 = vrot.slane %v3612, 2
  %v3616 = vrot.slane %v3612, 3
  %v3617 = vrot.slane %v3612, 4
  %v3618 = vrot.slane %v3612, 5
  %v3619 = vrot.slane %v3612, 6
  %v3620 = vrot.slane %v3612, 7
  %v3621 = vperm.slane %v3612, 0
  %v3622 = vperm.slane %v3614, 0
  %v3623 = vperm.slane %v3615, 0
  %v3624 = vperm.slane %v3616, 0
  %v3625 = vperm.slane %v3617, 0
  %v3626 = vperm.slane %v3618, 0
  %v3627 = vperm.slane %v3619, 0
  %v3628 = vperm.slane %v3620, 0
  %3629 = vrot.lane.b32.xlu0 %v3621, 64
  %v3630 = vpop.permute.xlu0 %3629
  %3631 = vrot.lane.b32.xlu0 %v3622, 64
  %v3632 = vpop.permute.xlu0 %3631
  %3633 = vrot.lane.b32.xlu0 %v3623, 64
  %v3634 = vpop.permute.xlu0 %3633
  %3635 = vrot.lane.b32.xlu0 %v3624, 64
  %v3636 = vpop.permute.xlu0 %3635
  %3637 = vrot.lane.b32.xlu0 %v3625, 64
  %v3638 = vpop.permute.xlu0 %3637
  %3639 = vrot.lane.b32.xlu0 %v3626, 64
  %v3640 = vpop.permute.xlu0 %3639
  %3641 = vrot.lane.b32.xlu0 %v3627, 64
  %v3642 = vpop.permute.xlu0 %3641
  %3643 = vrot.lane.b32.xlu0 %v3628, 64
  %v3644 = vpop.permute.xlu0 %3643
  %v3653 = vmul.f32 %v34, %v3630
  %v3654 = vmul.f32 %v35, %v3632
  %v3655 = vmul.f32 %v36, %v3634
  %v3656 = vmul.f32 %v37, %v3636
  %v3657 = vmul.f32 %v38, %v3638
  %v3658 = vmul.f32 %v39, %v3640
  %v3659 = vmul.f32 %v40, %v3642
  %v3660 = vmul.f32 %v41, %v3644
  %v3661 = vsel %vm104, %v3653, 0.0
  %3662 = vadd.xlane.f32.xlu0 %v3661
  %v3663 = vpop.xlane.xlu0 %3662
  %v3664 = vsel %vm104, %v3654, 0.0
  %3665 = vadd.xlane.f32.xlu0 %v3664
  %v3666 = vpop.xlane.xlu0 %3665
  %v3667 = vsel %vm104, %v3655, 0.0
  %3668 = vadd.xlane.f32.xlu0 %v3667
  %v3669 = vpop.xlane.xlu0 %3668
  %v3670 = vsel %vm104, %v3656, 0.0
  %3671 = vadd.xlane.f32.xlu0 %v3670
  %v3672 = vpop.xlane.xlu0 %3671
  %v3673 = vsel %vm104, %v3657, 0.0
  %3674 = vadd.xlane.f32.xlu0 %v3673
  %v3675 = vpop.xlane.xlu0 %3674
  %v3676 = vsel %vm104, %v3658, 0.0
  %3677 = vadd.xlane.f32.xlu0 %v3676
  %v3678 = vpop.xlane.xlu0 %3677
  %v3679 = vsel %vm104, %v3659, 0.0
  %3680 = vadd.xlane.f32.xlu0 %v3679
  %v3681 = vpop.xlane.xlu0 %3680
  %v3682 = vsel %vm104, %v3660, 0.0
  %3683 = vadd.xlane.f32.xlu0 %v3682
  %v3684 = vpop.xlane.xlu0 %3683
  %v3693 = vperm.slane %v3663, %v326
  %v3694 = vperm.slane %v3666, %v326
  %v3695 = vperm.slane %v3669, %v326
  %v3696 = vperm.slane %v3672, %v326
  %v3697 = vperm.slane %v3675, %v326
  %v3698 = vperm.slane %v3678, %v326
  %v3699 = vperm.slane %v3681, %v326
  %v3700 = vperm.slane %v3684, %v326
  %v3701 = vsel %vm335, %v3694, %v3693
  %v3702 = vsel %vm337, %v3695, %v3701
  %v3703 = vsel %vm339, %v3696, %v3702
  %v3704 = vsel %vm341, %v3697, %v3703
  %v3705 = vsel %vm343, %v3698, %v3704
  %v3706 = vsel %vm345, %v3699, %v3705
  %v3707 = vsel %vm347, %v3700, %v3706
  %v3709 = vsel %vm350, %v3707, -inf
  %3710 = vmax.xlane.f32.xlu0 %v3709
  %v3711 = vpop.xlane.xlu0 %3710
  %v3713 = vperm.slane %v3711, 0
  %v3714 = vperm.slane %v3711, 1
  %v3715 = vperm.slane %v3711, 2
  %v3716 = vperm.slane %v3711, 3
  %v3717 = vperm.slane %v3711, 4
  %v3718 = vperm.slane %v3711, 5
  %v3719 = vperm.slane %v3711, 6
  %v3720 = vperm.slane %v3711, 7
  %v3729 = vsub.f32 %v3663, %v3713
  %v3730 = vsub.f32 %v3666, %v3714
  %v3731 = vsub.f32 %v3669, %v3715
  %v3732 = vsub.f32 %v3672, %v3716
  %v3733 = vsub.f32 %v3675, %v3717
  %v3734 = vsub.f32 %v3678, %v3718
  %v3735 = vsub.f32 %v3681, %v3719
  %v3736 = vsub.f32 %v3684, %v3720
  %v3737 = vmul.f32 %v3729, 1.442695
  %v3738 = vpow.pop %v3737
  %v3739 = vmul.f32 %v3730, 1.442695
  %v3740 = vpow.pop %v3739
  %v3741 = vmul.f32 %v3731, 1.442695
  %v3742 = vpow.pop %v3741
  %v3743 = vmul.f32 %v3732, 1.442695
  %v3744 = vpow.pop %v3743
  %v3745 = vmul.f32 %v3733, 1.442695
  %v3746 = vpow.pop %v3745
  %v3747 = vmul.f32 %v3734, 1.442695
  %v3748 = vpow.pop %v3747
  %v3749 = vmul.f32 %v3735, 1.442695
  %v3750 = vpow.pop %v3749
  %v3751 = vmul.f32 %v3736, 1.442695
  %v3752 = vpow.pop %v3751
  %3761 = vset.pattern.permute.xlu0 0
  %3762 = vperm.xlu0 %3761, %v3738
  %v3763 = vpop.permute.xlu0 %3762
  %3764 = vset.pattern.permute.xlu0 0
  %3765 = vperm.xlu0 %3764, %v3740
  %v3766 = vpop.permute.xlu0 %3765
  %3767 = vset.pattern.permute.xlu0 0
  %3768 = vperm.xlu0 %3767, %v3742
  %v3769 = vpop.permute.xlu0 %3768
  %3770 = vset.pattern.permute.xlu0 0
  %3771 = vperm.xlu0 %3770, %v3744
  %v3772 = vpop.permute.xlu0 %3771
  %3773 = vset.pattern.permute.xlu0 0
  %3774 = vperm.xlu0 %3773, %v3746
  %v3775 = vpop.permute.xlu0 %3774
  %3776 = vset.pattern.permute.xlu0 0
  %3777 = vperm.xlu0 %3776, %v3748
  %v3778 = vpop.permute.xlu0 %3777
  %3779 = vset.pattern.permute.xlu0 0
  %3780 = vperm.xlu0 %3779, %v3750
  %v3781 = vpop.permute.xlu0 %3780
  %3782 = vset.pattern.permute.xlu0 0
  %3783 = vperm.xlu0 %3782, %v3752
  %v3784 = vpop.permute.xlu0 %3783
  %v3785 = vperm.slane %v3763, %v326
  %v3786 = vperm.slane %v3766, %v326
  %v3787 = vperm.slane %v3769, %v326
  %v3788 = vperm.slane %v3772, %v326
  %v3789 = vperm.slane %v3775, %v326
  %v3790 = vperm.slane %v3778, %v326
  %v3791 = vperm.slane %v3781, %v326
  %v3792 = vperm.slane %v3784, %v326
  %v3793 = vsel %vm335, %v3786, %v3785
  %v3794 = vsel %vm337, %v3787, %v3793
  %v3795 = vsel %vm339, %v3788, %v3794
  %v3796 = vsel %vm341, %v3789, %v3795
  %v3797 = vsel %vm343, %v3790, %v3796
  %v3798 = vsel %vm345, %v3791, %v3797
  %v3799 = vsel %vm347, %v3792, %v3798
  %v3801 = vsel %vm350, %v3799, 0.0
  %3802 = vadd.xlane.f32.xlu0 %v3801
  %v3803 = vpop.xlane.xlu0 %3802
  %v3805 = vperm.slane %v3803, 0
  %v3806 = vperm.slane %v3803, 1
  %v3807 = vperm.slane %v3803, 2
  %v3808 = vperm.slane %v3803, 3
  %v3809 = vperm.slane %v3803, 4
  %v3810 = vperm.slane %v3803, 5
  %v3811 = vperm.slane %v3803, 6
  %v3812 = vperm.slane %v3803, 7
  %v3821 = vrcp.pop %v3805
  %v3822 = vmul.f32 %v3805, %v3821
  %v3823 = vsub.f32 1.0, %v3822
  %v3824 = vmul.f32 %v3821, %v3823
  %v3825 = vadd.f32 %v3821, %v3824
  %vm3826 = vweird.f32 %v3805
  %vm3827 = vweird.f32 %v3821
  %vm3828 = vmor %vm3826, %vm3827
  %v3829 = vsel %vm3828, %v3821, %v3825
  %v3830 = vand.u32 2147483647, %v3805
  %vm3831 = vcmp.eq.f32.partialorder %v3830, 8.507059e+37
  %v3832 = vand.u32 %v3805, 2147483648
  %v3833 = vor.u32 1.1754944e-38, %v3832
  %v3834 = vsel %vm3831, %v3833, %v3829
  %v3835 = vmul.f32 %v3738, %v3834
  %v3836 = vrcp.pop %v3806
  %v3837 = vmul.f32 %v3806, %v3836
  %v3838 = vsub.f32 1.0, %v3837
  %v3839 = vmul.f32 %v3836, %v3838
  %v3840 = vadd.f32 %v3836, %v3839
  %vm3841 = vweird.f32 %v3806
  %vm3842 = vweird.f32 %v3836
  %vm3843 = vmor %vm3841, %vm3842
  %v3844 = vsel %vm3843, %v3836, %v3840
  %v3845 = vand.u32 2147483647, %v3806
  %vm3846 = vcmp.eq.f32.partialorder %v3845, 8.507059e+37
  %v3847 = vand.u32 %v3806, 2147483648
  %v3848 = vor.u32 1.1754944e-38, %v3847
  %v3849 = vsel %vm3846, %v3848, %v3844
  %v3850 = vmul.f32 %v3740, %v3849
  %v3851 = vrcp.pop %v3807
  %v3852 = vmul.f32 %v3807, %v3851
  %v3853 = vsub.f32 1.0, %v3852
  %v3854 = vmul.f32 %v3851, %v3853
  %v3855 = vadd.f32 %v3851, %v3854
  %vm3856 = vweird.f32 %v3807
  %vm3857 = vweird.f32 %v3851
  %vm3858 = vmor %vm3856, %vm3857
  %v3859 = vsel %vm3858, %v3851, %v3855
  %v3860 = vand.u32 2147483647, %v3807
  %vm3861 = vcmp.eq.f32.partialorder %v3860, 8.507059e+37
  %v3862 = vand.u32 %v3807, 2147483648
  %v3863 = vor.u32 1.1754944e-38, %v3862
  %v3864 = vsel %vm3861, %v3863, %v3859
  %v3865 = vmul.f32 %v3742, %v3864
  %v3866 = vrcp.pop %v3808
  %v3867 = vmul.f32 %v3808, %v3866
  %v3868 = vsub.f32 1.0, %v3867
  %v3869 = vmul.f32 %v3866, %v3868
  %v3870 = vadd.f32 %v3866, %v3869
  %vm3871 = vweird.f32 %v3808
  %vm3872 = vweird.f32 %v3866
  %vm3873 = vmor %vm3871, %vm3872
  %v3874 = vsel %vm3873, %v3866, %v3870
  %v3875 = vand.u32 2147483647, %v3808
  %vm3876 = vcmp.eq.f32.partialorder %v3875, 8.507059e+37
  %v3877 = vand.u32 %v3808, 2147483648
  %v3878 = vor.u32 1.1754944e-38, %v3877
  %v3879 = vsel %vm3876, %v3878, %v3874
  %v3880 = vmul.f32 %v3744, %v3879
  %v3881 = vrcp.pop %v3809
  %v3882 = vmul.f32 %v3809, %v3881
  %v3883 = vsub.f32 1.0, %v3882
  %v3884 = vmul.f32 %v3881, %v3883
  %v3885 = vadd.f32 %v3881, %v3884
  %vm3886 = vweird.f32 %v3809
  %vm3887 = vweird.f32 %v3881
  %vm3888 = vmor %vm3886, %vm3887
  %v3889 = vsel %vm3888, %v3881, %v3885
  %v3890 = vand.u32 2147483647, %v3809
  %vm3891 = vcmp.eq.f32.partialorder %v3890, 8.507059e+37
  %v3892 = vand.u32 %v3809, 2147483648
  %v3893 = vor.u32 1.1754944e-38, %v3892
  %v3894 = vsel %vm3891, %v3893, %v3889
  %v3895 = vmul.f32 %v3746, %v3894
  %v3896 = vrcp.pop %v3810
  %v3897 = vmul.f32 %v3810, %v3896
  %v3898 = vsub.f32 1.0, %v3897
  %v3899 = vmul.f32 %v3896, %v3898
  %v3900 = vadd.f32 %v3896, %v3899
  %vm3901 = vweird.f32 %v3810
  %vm3902 = vweird.f32 %v3896
  %vm3903 = vmor %vm3901, %vm3902
  %v3904 = vsel %vm3903, %v3896, %v3900
  %v3905 = vand.u32 2147483647, %v3810
  %vm3906 = vcmp.eq.f32.partialorder %v3905, 8.507059e+37
  %v3907 = vand.u32 %v3810, 2147483648
  %v3908 = vor.u32 1.1754944e-38, %v3907
  %v3909 = vsel %vm3906, %v3908, %v3904
  %v3910 = vmul.f32 %v3748, %v3909
  %v3911 = vrcp.pop %v3811
  %v3912 = vmul.f32 %v3811, %v3911
  %v3913 = vsub.f32 1.0, %v3912
  %v3914 = vmul.f32 %v3911, %v3913
  %v3915 = vadd.f32 %v3911, %v3914
  %vm3916 = vweird.f32 %v3811
  %vm3917 = vweird.f32 %v3911
  %vm3918 = vmor %vm3916, %vm3917
  %v3919 = vsel %vm3918, %v3911, %v3915
  %v3920 = vand.u32 2147483647, %v3811
  %vm3921 = vcmp.eq.f32.partialorder %v3920, 8.507059e+37
  %v3922 = vand.u32 %v3811, 2147483648
  %v3923 = vor.u32 1.1754944e-38, %v3922
  %v3924 = vsel %vm3921, %v3923, %v3919
  %v3925 = vmul.f32 %v3750, %v3924
  %v3926 = vrcp.pop %v3812
  %v3927 = vmul.f32 %v3812, %v3926
  %v3928 = vsub.f32 1.0, %v3927
  %v3929 = vmul.f32 %v3926, %v3928
  %v3930 = vadd.f32 %v3926, %v3929
  %vm3931 = vweird.f32 %v3812
  %vm3932 = vweird.f32 %v3926
  %vm3933 = vmor %vm3931, %vm3932
  %v3934 = vsel %vm3933, %v3926, %v3930
  %v3935 = vand.u32 2147483647, %v3812
  %vm3936 = vcmp.eq.f32.partialorder %v3935, 8.507059e+37
  %v3937 = vand.u32 %v3812, 2147483648
  %v3938 = vor.u32 1.1754944e-38, %v3937
  %v3939 = vsel %vm3936, %v3938, %v3934
  %v3940 = vmul.f32 %v3752, %v3939
  %3942 = vset.pattern.permute.xlu0 0
  %3943 = vperm.xlu0 %3942, %v3835
  %v3944 = vpop.permute.xlu0 %3943
  %3947 = vset.pattern.permute.xlu0 0
  %3948 = vperm.xlu0 %3947, %v3850
  %v3949 = vpop.permute.xlu0 %3948
  %3952 = vset.pattern.permute.xlu0 0
  %3953 = vperm.xlu0 %3952, %v3865
  %v3954 = vpop.permute.xlu0 %3953
  %3957 = vset.pattern.permute.xlu0 0
  %3958 = vperm.xlu0 %3957, %v3880
  %v3959 = vpop.permute.xlu0 %3958
  %3962 = vset.pattern.permute.xlu0 0
  %3963 = vperm.xlu0 %3962, %v3895
  %v3964 = vpop.permute.xlu0 %3963
  %3967 = vset.pattern.permute.xlu0 0
  %3968 = vperm.xlu0 %3967, %v3910
  %v3969 = vpop.permute.xlu0 %3968
  %3972 = vset.pattern.permute.xlu0 0
  %3973 = vperm.xlu0 %3972, %v3925
  %v3974 = vpop.permute.xlu0 %3973
  %3977 = vset.pattern.permute.xlu0 0
  %3978 = vperm.xlu0 %3977, %v3940
  %v3979 = vpop.permute.xlu0 %3978
  %v3981 = vmul.f32 %v3944, %v34
  %v3982 = vmul.f32 %v3949, %v35
  %v3983 = vmul.f32 %v3954, %v36
  %v3984 = vmul.f32 %v3959, %v37
  %v3985 = vmul.f32 %v3964, %v38
  %v3986 = vmul.f32 %v3969, %v39
  %v3987 = vmul.f32 %v3974, %v40
  %v3988 = vmul.f32 %v3979, %v41
  %v3989 = vsel %vm104, %v3981, 0.0
  %v3990 = vrot.slane %v3989, 4
  %v3991 = vadd.f32 %v3989, %v3990
  %v3992 = vrot.slane %v3991, 2
  %v3993 = vadd.f32 %v3991, %v3992
  %v3994 = vrot.slane %v3993, 1
  %v3995 = vadd.f32 %v3993, %v3994
  %v3996 = vsel %vm104, %v3982, 0.0
  %v3997 = vrot.slane %v3996, 4
  %v3998 = vadd.f32 %v3996, %v3997
  %v3999 = vrot.slane %v3998, 2
  %v4000 = vadd.f32 %v3998, %v3999
  %v4001 = vrot.slane %v4000, 1
  %v4002 = vadd.f32 %v4000, %v4001
  %v4003 = vsel %vm104, %v3983, 0.0
  %v4004 = vrot.slane %v4003, 4
  %v4005 = vadd.f32 %v4003, %v4004
  %v4006 = vrot.slane %v4005, 2
  %v4007 = vadd.f32 %v4005, %v4006
  %v4008 = vrot.slane %v4007, 1
  %v4009 = vadd.f32 %v4007, %v4008
  %v4010 = vsel %vm104, %v3984, 0.0
  %v4011 = vrot.slane %v4010, 4
  %v4012 = vadd.f32 %v4010, %v4011
  %v4013 = vrot.slane %v4012, 2
  %v4014 = vadd.f32 %v4012, %v4013
  %v4015 = vrot.slane %v4014, 1
  %v4016 = vadd.f32 %v4014, %v4015
  %v4017 = vsel %vm104, %v3985, 0.0
  %v4018 = vrot.slane %v4017, 4
  %v4019 = vadd.f32 %v4017, %v4018
  %v4020 = vrot.slane %v4019, 2
  %v4021 = vadd.f32 %v4019, %v4020
  %v4022 = vrot.slane %v4021, 1
  %v4023 = vadd.f32 %v4021, %v4022
  %v4024 = vsel %vm104, %v3986, 0.0
  %v4025 = vrot.slane %v4024, 4
  %v4026 = vadd.f32 %v4024, %v4025
  %v4027 = vrot.slane %v4026, 2
  %v4028 = vadd.f32 %v4026, %v4027
  %v4029 = vrot.slane %v4028, 1
  %v4030 = vadd.f32 %v4028, %v4029
  %v4031 = vsel %vm104, %v3987, 0.0
  %v4032 = vrot.slane %v4031, 4
  %v4033 = vadd.f32 %v4031, %v4032
  %v4034 = vrot.slane %v4033, 2
  %v4035 = vadd.f32 %v4033, %v4034
  %v4036 = vrot.slane %v4035, 1
  %v4037 = vadd.f32 %v4035, %v4036
  %v4038 = vsel %vm104, %v3988, 0.0
  %v4039 = vrot.slane %v4038, 4
  %v4040 = vadd.f32 %v4038, %v4039
  %v4041 = vrot.slane %v4040, 2
  %v4042 = vadd.f32 %v4040, %v4041
  %v4043 = vrot.slane %v4042, 1
  %v4044 = vadd.f32 %v4042, %v4043
  %4045 = vrot.lane.b32.xlu0 %v3612, 64
  %v4046 = vpop.permute.xlu0 %4045
  %4048 = vst.msk [vmem:[#allocation2] sm:$0xff] %vm104, %v4046
  %v4057 = vsel %vm335, %v4002, %v3995
  %v4058 = vsel %vm337, %v4009, %v4057
  %v4059 = vsel %vm339, %v4016, %v4058
  %v4060 = vsel %vm341, %v4023, %v4059
  %v4061 = vsel %vm343, %v4030, %v4060
  %v4062 = vsel %vm345, %v4037, %v4061
  %v4063 = vsel %vm347, %v4044, %v4062
  %4065 = vst.msk [vmem:[#allocation3] sm:$0xff] %vm104, %v4063
  %s4066 = scalar_lea.vmem %s7, 48
  %4067 = vst.msk [vmem:[%s4066] sm:$0xff] %vm104, %v4046
  %s4068 = scalar_lea.vmem %s6, 48
  %4069 = vst.msk [vmem:[%s4068] sm:$0xff] %vm104, %v4063
  %v4070 = vld [vmem:[#allocation2] sm:$0xff]
  %v4071 = vld [vmem:[#allocation3] sm:$0xff]
  %s4072 = scalar_lea.vmem %s0, 112
  %v4073 = vld [vmem:[%s4072] sm:$0xff]
  %v4074 = vld [vmem:[%s4072 + $0x8] sm:$0xff]
  %v4075 = vpack.c.bf16 %v4071, %v4071
  %v4077 = vsel %vm104, %v4075, 0
  %4079 = vmatpush.bf16.msra.mxu0 0
  %4080 = vmatpush.bf16.msra.mxu0 0
  %4081 = vmatpush.bf16.msra.mxu0 0
  %4082 = vmatpush.bf16.msra.mxu0 0
  %4083 = vmatpush.bf16.msra.mxu0 %v94
  %4084 = vmatpush.bf16.msra.mxu0 %v92
  %4085 = vmatpush.bf16.msra.mxu0 %v90
  %4086 = vmatpush.bf16.msra.mxu0 %v88
  %4087 = vmatmul.bf16.gmra.mxu0 %v4077
  %v4088 = vpop.f32.mrf.mxu0
  %v4089 = vadd.f32 0.0, %v4088
  %v4090 = vpop.f32.mrf.mxu0
  %4091 = vdwg.mxu0
  %4092 = vmatpush.bf16.msra.mxu0 0
  %4093 = vmatpush.bf16.msra.mxu0 0
  %4094 = vmatpush.bf16.msra.mxu0 0
  %4095 = vmatpush.bf16.msra.mxu0 0
  %4096 = vmatpush.bf16.msra.mxu0 %v95
  %4097 = vmatpush.bf16.msra.mxu0 %v93
  %4098 = vmatpush.bf16.msra.mxu0 %v91
  %4099 = vmatpush.bf16.msra.mxu0 %v89
  %4100 = vmatmul.bf16.gmra.mxu0 %v4077
  %v4101 = vpop.f32.mrf.mxu0
  %v4102 = vadd.f32 0.0, %v4101
  %v4103 = vpop.f32.mrf.mxu0
  %4104 = vdwg.mxu0
  %v4105 = vadd.f32 %v4073, %v4089
  %v4106 = vadd.f32 %v4074, %v4102
  %v4107 = vpack.c.bf16 %v4070, %v4070
  %v4109 = vsel %vm104, %v4107, 0
  %4111 = vmatpush.bf16.msra.mxu0 0
  %4112 = vmatpush.bf16.msra.mxu0 0
  %4113 = vmatpush.bf16.msra.mxu0 0
  %4114 = vmatpush.bf16.msra.mxu0 0
  %4115 = vmatpush.bf16.msra.mxu0 %v167
  %4116 = vmatpush.bf16.msra.mxu0 %v165
  %4117 = vmatpush.bf16.msra.mxu0 %v163
  %4118 = vmatpush.bf16.msra.mxu0 %v161
  %4119 = vmatmul.bf16.gmra.mxu0 %v4109
  %v4120 = vpop.f32.mrf.mxu0
  %v4121 = vadd.f32 0.0, %v4120
  %v4122 = vpop.f32.mrf.mxu0
  %4123 = vdwg.mxu0
  %4124 = vmatpush.bf16.msra.mxu0 0
  %4125 = vmatpush.bf16.msra.mxu0 0
  %4126 = vmatpush.bf16.msra.mxu0 0
  %4127 = vmatpush.bf16.msra.mxu0 0
  %4128 = vmatpush.bf16.msra.mxu0 %v168
  %4129 = vmatpush.bf16.msra.mxu0 %v166
  %4130 = vmatpush.bf16.msra.mxu0 %v164
  %4131 = vmatpush.bf16.msra.mxu0 %v162
  %4132 = vmatmul.bf16.gmra.mxu0 %v4109
  %v4133 = vpop.f32.mrf.mxu0
  %v4134 = vadd.f32 0.0, %v4133
  %v4135 = vpop.f32.mrf.mxu0
  %4136 = vdwg.mxu0
  %v4137 = vadd.f32 %v4105, %v4121
  %v4138 = vxor.u32 %v4137, 2147483648
  %v4139 = vmul.f32 %v4138, 1.442695
  %v4140 = vpow.pop %v4139
  %v4141 = vadd.f32 %v4140, 1.0
  %v4142 = vrcp.pop %v4141
  %v4143 = vmul.f32 %v4141, %v4142
  %v4144 = vsub.f32 1.0, %v4143
  %v4145 = vmul.f32 %v4142, %v4144
  %v4146 = vadd.f32 %v4142, %v4145
  %vm4147 = vweird.f32 %v4141
  %vm4148 = vweird.f32 %v4142
  %vm4149 = vmor %vm4147, %vm4148
  %v4150 = vsel %vm4149, %v4142, %v4146
  %v4151 = vand.u32 2147483647, %v4141
  %vm4152 = vcmp.eq.f32.partialorder %v4151, 8.507059e+37
  %v4153 = vand.u32 %v4141, 2147483648
  %v4154 = vor.u32 1.1754944e-38, %v4153
  %v4155 = vsel %vm4152, %v4154, %v4150
  %v4156 = vmul.f32 1.0, %v4155
  %v4157 = vadd.f32 %v4134, %v227
  %v4158 = vmul.f32 %v4156, %v4157
  %v4159 = vadd.f32 %v4106, %v4158
  %v4160 = vtanh.pop %v4159
  %v4161 = vsub.f32 1.0, %v4156
  %4163 = vrot.lane.b32.xlu0 %v4160, 64
  %v4164 = vpop.permute.xlu0 %4163
  %v4166 = vmul.f32 %v4161, %v4164
  %4168 = vrot.lane.b32.xlu0 %v4070, 64
  %v4169 = vpop.permute.xlu0 %4168
  %v4171 = vmul.f32 %v4156, %v4169
  %v4172 = vadd.f32 %v4166, %v4171
  %v4174 = vrot.slane %v4172, 1
  %v4175 = vrot.slane %v4172, 2
  %v4176 = vrot.slane %v4172, 3
  %v4177 = vrot.slane %v4172, 4
  %v4178 = vrot.slane %v4172, 5
  %v4179 = vrot.slane %v4172, 6
  %v4180 = vrot.slane %v4172, 7
  %v4181 = vperm.slane %v4172, 0
  %v4182 = vperm.slane %v4174, 0
  %v4183 = vperm.slane %v4175, 0
  %v4184 = vperm.slane %v4176, 0
  %v4185 = vperm.slane %v4177, 0
  %v4186 = vperm.slane %v4178, 0
  %v4187 = vperm.slane %v4179, 0
  %v4188 = vperm.slane %v4180, 0
  %4189 = vrot.lane.b32.xlu0 %v4181, 64
  %v4190 = vpop.permute.xlu0 %4189
  %4191 = vrot.lane.b32.xlu0 %v4182, 64
  %v4192 = vpop.permute.xlu0 %4191
  %4193 = vrot.lane.b32.xlu0 %v4183, 64
  %v4194 = vpop.permute.xlu0 %4193
  %4195 = vrot.lane.b32.xlu0 %v4184, 64
  %v4196 = vpop.permute.xlu0 %4195
  %4197 = vrot.lane.b32.xlu0 %v4185, 64
  %v4198 = vpop.permute.xlu0 %4197
  %4199 = vrot.lane.b32.xlu0 %v4186, 64
  %v4200 = vpop.permute.xlu0 %4199
  %4201 = vrot.lane.b32.xlu0 %v4187, 64
  %v4202 = vpop.permute.xlu0 %4201
  %4203 = vrot.lane.b32.xlu0 %v4188, 64
  %v4204 = vpop.permute.xlu0 %4203
  %v4213 = vmul.f32 %v34, %v4190
  %v4214 = vmul.f32 %v35, %v4192
  %v4215 = vmul.f32 %v36, %v4194
  %v4216 = vmul.f32 %v37, %v4196
  %v4217 = vmul.f32 %v38, %v4198
  %v4218 = vmul.f32 %v39, %v4200
  %v4219 = vmul.f32 %v40, %v4202
  %v4220 = vmul.f32 %v41, %v4204
  %v4221 = vsel %vm104, %v4213, 0.0
  %4222 = vadd.xlane.f32.xlu0 %v4221
  %v4223 = vpop.xlane.xlu0 %4222
  %v4224 = vsel %vm104, %v4214, 0.0
  %4225 = vadd.xlane.f32.xlu0 %v4224
  %v4226 = vpop.xlane.xlu0 %4225
  %v4227 = vsel %vm104, %v4215, 0.0
  %4228 = vadd.xlane.f32.xlu0 %v4227
  %v4229 = vpop.xlane.xlu0 %4228
  %v4230 = vsel %vm104, %v4216, 0.0
  %4231 = vadd.xlane.f32.xlu0 %v4230
  %v4232 = vpop.xlane.xlu0 %4231
  %v4233 = vsel %vm104, %v4217, 0.0
  %4234 = vadd.xlane.f32.xlu0 %v4233
  %v4235 = vpop.xlane.xlu0 %4234
  %v4236 = vsel %vm104, %v4218, 0.0
  %4237 = vadd.xlane.f32.xlu0 %v4236
  %v4238 = vpop.xlane.xlu0 %4237
  %v4239 = vsel %vm104, %v4219, 0.0
  %4240 = vadd.xlane.f32.xlu0 %v4239
  %v4241 = vpop.xlane.xlu0 %4240
  %v4242 = vsel %vm104, %v4220, 0.0
  %4243 = vadd.xlane.f32.xlu0 %v4242
  %v4244 = vpop.xlane.xlu0 %4243
  %v4253 = vperm.slane %v4223, %v326
  %v4254 = vperm.slane %v4226, %v326
  %v4255 = vperm.slane %v4229, %v326
  %v4256 = vperm.slane %v4232, %v326
  %v4257 = vperm.slane %v4235, %v326
  %v4258 = vperm.slane %v4238, %v326
  %v4259 = vperm.slane %v4241, %v326
  %v4260 = vperm.slane %v4244, %v326
  %v4261 = vsel %vm335, %v4254, %v4253
  %v4262 = vsel %vm337, %v4255, %v4261
  %v4263 = vsel %vm339, %v4256, %v4262
  %v4264 = vsel %vm341, %v4257, %v4263
  %v4265 = vsel %vm343, %v4258, %v4264
  %v4266 = vsel %vm345, %v4259, %v4265
  %v4267 = vsel %vm347, %v4260, %v4266
  %v4269 = vsel %vm350, %v4267, -inf
  %4270 = vmax.xlane.f32.xlu0 %v4269
  %v4271 = vpop.xlane.xlu0 %4270
  %v4273 = vperm.slane %v4271, 0
  %v4274 = vperm.slane %v4271, 1
  %v4275 = vperm.slane %v4271, 2
  %v4276 = vperm.slane %v4271, 3
  %v4277 = vperm.slane %v4271, 4
  %v4278 = vperm.slane %v4271, 5
  %v4279 = vperm.slane %v4271, 6
  %v4280 = vperm.slane %v4271, 7
  %v4289 = vsub.f32 %v4223, %v4273
  %v4290 = vsub.f32 %v4226, %v4274
  %v4291 = vsub.f32 %v4229, %v4275
  %v4292 = vsub.f32 %v4232, %v4276
  %v4293 = vsub.f32 %v4235, %v4277
  %v4294 = vsub.f32 %v4238, %v4278
  %v4295 = vsub.f32 %v4241, %v4279
  %v4296 = vsub.f32 %v4244, %v4280
  %v4297 = vmul.f32 %v4289, 1.442695
  %v4298 = vpow.pop %v4297
  %v4299 = vmul.f32 %v4290, 1.442695
  %v4300 = vpow.pop %v4299
  %v4301 = vmul.f32 %v4291, 1.442695
  %v4302 = vpow.pop %v4301
  %v4303 = vmul.f32 %v4292, 1.442695
  %v4304 = vpow.pop %v4303
  %v4305 = vmul.f32 %v4293, 1.442695
  %v4306 = vpow.pop %v4305
  %v4307 = vmul.f32 %v4294, 1.442695
  %v4308 = vpow.pop %v4307
  %v4309 = vmul.f32 %v4295, 1.442695
  %v4310 = vpow.pop %v4309
  %v4311 = vmul.f32 %v4296, 1.442695
  %v4312 = vpow.pop %v4311
  %4321 = vset.pattern.permute.xlu0 0
  %4322 = vperm.xlu0 %4321, %v4298
  %v4323 = vpop.permute.xlu0 %4322
  %4324 = vset.pattern.permute.xlu0 0
  %4325 = vperm.xlu0 %4324, %v4300
  %v4326 = vpop.permute.xlu0 %4325
  %4327 = vset.pattern.permute.xlu0 0
  %4328 = vperm.xlu0 %4327, %v4302
  %v4329 = vpop.permute.xlu0 %4328
  %4330 = vset.pattern.permute.xlu0 0
  %4331 = vperm.xlu0 %4330, %v4304
  %v4332 = vpop.permute.xlu0 %4331
  %4333 = vset.pattern.permute.xlu0 0
  %4334 = vperm.xlu0 %4333, %v4306
  %v4335 = vpop.permute.xlu0 %4334
  %4336 = vset.pattern.permute.xlu0 0
  %4337 = vperm.xlu0 %4336, %v4308
  %v4338 = vpop.permute.xlu0 %4337
  %4339 = vset.pattern.permute.xlu0 0
  %4340 = vperm.xlu0 %4339, %v4310
  %v4341 = vpop.permute.xlu0 %4340
  %4342 = vset.pattern.permute.xlu0 0
  %4343 = vperm.xlu0 %4342, %v4312
  %v4344 = vpop.permute.xlu0 %4343
  %v4345 = vperm.slane %v4323, %v326
  %v4346 = vperm.slane %v4326, %v326
  %v4347 = vperm.slane %v4329, %v326
  %v4348 = vperm.slane %v4332, %v326
  %v4349 = vperm.slane %v4335, %v326
  %v4350 = vperm.slane %v4338, %v326
  %v4351 = vperm.slane %v4341, %v326
  %v4352 = vperm.slane %v4344, %v326
  %v4353 = vsel %vm335, %v4346, %v4345
  %v4354 = vsel %vm337, %v4347, %v4353
  %v4355 = vsel %vm339, %v4348, %v4354
  %v4356 = vsel %vm341, %v4349, %v4355
  %v4357 = vsel %vm343, %v4350, %v4356
  %v4358 = vsel %vm345, %v4351, %v4357
  %v4359 = vsel %vm347, %v4352, %v4358
  %v4361 = vsel %vm350, %v4359, 0.0
  %4362 = vadd.xlane.f32.xlu0 %v4361
  %v4363 = vpop.xlane.xlu0 %4362
  %v4365 = vperm.slane %v4363, 0
  %v4366 = vperm.slane %v4363, 1
  %v4367 = vperm.slane %v4363, 2
  %v4368 = vperm.slane %v4363, 3
  %v4369 = vperm.slane %v4363, 4
  %v4370 = vperm.slane %v4363, 5
  %v4371 = vperm.slane %v4363, 6
  %v4372 = vperm.slane %v4363, 7
  %v4381 = vrcp.pop %v4365
  %v4382 = vmul.f32 %v4365, %v4381
  %v4383 = vsub.f32 1.0, %v4382
  %v4384 = vmul.f32 %v4381, %v4383
  %v4385 = vadd.f32 %v4381, %v4384
  %vm4386 = vweird.f32 %v4365
  %vm4387 = vweird.f32 %v4381
  %vm4388 = vmor %vm4386, %vm4387
  %v4389 = vsel %vm4388, %v4381, %v4385
  %v4390 = vand.u32 2147483647, %v4365
  %vm4391 = vcmp.eq.f32.partialorder %v4390, 8.507059e+37
  %v4392 = vand.u32 %v4365, 2147483648
  %v4393 = vor.u32 1.1754944e-38, %v4392
  %v4394 = vsel %vm4391, %v4393, %v4389
  %v4395 = vmul.f32 %v4298, %v4394
  %v4396 = vrcp.pop %v4366
  %v4397 = vmul.f32 %v4366, %v4396
  %v4398 = vsub.f32 1.0, %v4397
  %v4399 = vmul.f32 %v4396, %v4398
  %v4400 = vadd.f32 %v4396, %v4399
  %vm4401 = vweird.f32 %v4366
  %vm4402 = vweird.f32 %v4396
  %vm4403 = vmor %vm4401, %vm4402
  %v4404 = vsel %vm4403, %v4396, %v4400
  %v4405 = vand.u32 2147483647, %v4366
  %vm4406 = vcmp.eq.f32.partialorder %v4405, 8.507059e+37
  %v4407 = vand.u32 %v4366, 2147483648
  %v4408 = vor.u32 1.1754944e-38, %v4407
  %v4409 = vsel %vm4406, %v4408, %v4404
  %v4410 = vmul.f32 %v4300, %v4409
  %v4411 = vrcp.pop %v4367
  %v4412 = vmul.f32 %v4367, %v4411
  %v4413 = vsub.f32 1.0, %v4412
  %v4414 = vmul.f32 %v4411, %v4413
  %v4415 = vadd.f32 %v4411, %v4414
  %vm4416 = vweird.f32 %v4367
  %vm4417 = vweird.f32 %v4411
  %vm4418 = vmor %vm4416, %vm4417
  %v4419 = vsel %vm4418, %v4411, %v4415
  %v4420 = vand.u32 2147483647, %v4367
  %vm4421 = vcmp.eq.f32.partialorder %v4420, 8.507059e+37
  %v4422 = vand.u32 %v4367, 2147483648
  %v4423 = vor.u32 1.1754944e-38, %v4422
  %v4424 = vsel %vm4421, %v4423, %v4419
  %v4425 = vmul.f32 %v4302, %v4424
  %v4426 = vrcp.pop %v4368
  %v4427 = vmul.f32 %v4368, %v4426
  %v4428 = vsub.f32 1.0, %v4427
  %v4429 = vmul.f32 %v4426, %v4428
  %v4430 = vadd.f32 %v4426, %v4429
  %vm4431 = vweird.f32 %v4368
  %vm4432 = vweird.f32 %v4426
  %vm4433 = vmor %vm4431, %vm4432
  %v4434 = vsel %vm4433, %v4426, %v4430
  %v4435 = vand.u32 2147483647, %v4368
  %vm4436 = vcmp.eq.f32.partialorder %v4435, 8.507059e+37
  %v4437 = vand.u32 %v4368, 2147483648
  %v4438 = vor.u32 1.1754944e-38, %v4437
  %v4439 = vsel %vm4436, %v4438, %v4434
  %v4440 = vmul.f32 %v4304, %v4439
  %v4441 = vrcp.pop %v4369
  %v4442 = vmul.f32 %v4369, %v4441
  %v4443 = vsub.f32 1.0, %v4442
  %v4444 = vmul.f32 %v4441, %v4443
  %v4445 = vadd.f32 %v4441, %v4444
  %vm4446 = vweird.f32 %v4369
  %vm4447 = vweird.f32 %v4441
  %vm4448 = vmor %vm4446, %vm4447
  %v4449 = vsel %vm4448, %v4441, %v4445
  %v4450 = vand.u32 2147483647, %v4369
  %vm4451 = vcmp.eq.f32.partialorder %v4450, 8.507059e+37
  %v4452 = vand.u32 %v4369, 2147483648
  %v4453 = vor.u32 1.1754944e-38, %v4452
  %v4454 = vsel %vm4451, %v4453, %v4449
  %v4455 = vmul.f32 %v4306, %v4454
  %v4456 = vrcp.pop %v4370
  %v4457 = vmul.f32 %v4370, %v4456
  %v4458 = vsub.f32 1.0, %v4457
  %v4459 = vmul.f32 %v4456, %v4458
  %v4460 = vadd.f32 %v4456, %v4459
  %vm4461 = vweird.f32 %v4370
  %vm4462 = vweird.f32 %v4456
  %vm4463 = vmor %vm4461, %vm4462
  %v4464 = vsel %vm4463, %v4456, %v4460
  %v4465 = vand.u32 2147483647, %v4370
  %vm4466 = vcmp.eq.f32.partialorder %v4465, 8.507059e+37
  %v4467 = vand.u32 %v4370, 2147483648
  %v4468 = vor.u32 1.1754944e-38, %v4467
  %v4469 = vsel %vm4466, %v4468, %v4464
  %v4470 = vmul.f32 %v4308, %v4469
  %v4471 = vrcp.pop %v4371
  %v4472 = vmul.f32 %v4371, %v4471
  %v4473 = vsub.f32 1.0, %v4472
  %v4474 = vmul.f32 %v4471, %v4473
  %v4475 = vadd.f32 %v4471, %v4474
  %vm4476 = vweird.f32 %v4371
  %vm4477 = vweird.f32 %v4471
  %vm4478 = vmor %vm4476, %vm4477
  %v4479 = vsel %vm4478, %v4471, %v4475
  %v4480 = vand.u32 2147483647, %v4371
  %vm4481 = vcmp.eq.f32.partialorder %v4480, 8.507059e+37
  %v4482 = vand.u32 %v4371, 2147483648
  %v4483 = vor.u32 1.1754944e-38, %v4482
  %v4484 = vsel %vm4481, %v4483, %v4479
  %v4485 = vmul.f32 %v4310, %v4484
  %v4486 = vrcp.pop %v4372
  %v4487 = vmul.f32 %v4372, %v4486
  %v4488 = vsub.f32 1.0, %v4487
  %v4489 = vmul.f32 %v4486, %v4488
  %v4490 = vadd.f32 %v4486, %v4489
  %vm4491 = vweird.f32 %v4372
  %vm4492 = vweird.f32 %v4486
  %vm4493 = vmor %vm4491, %vm4492
  %v4494 = vsel %vm4493, %v4486, %v4490
  %v4495 = vand.u32 2147483647, %v4372
  %vm4496 = vcmp.eq.f32.partialorder %v4495, 8.507059e+37
  %v4497 = vand.u32 %v4372, 2147483648
  %v4498 = vor.u32 1.1754944e-38, %v4497
  %v4499 = vsel %vm4496, %v4498, %v4494
  %v4500 = vmul.f32 %v4312, %v4499
  %4502 = vset.pattern.permute.xlu0 0
  %4503 = vperm.xlu0 %4502, %v4395
  %v4504 = vpop.permute.xlu0 %4503
  %4507 = vset.pattern.permute.xlu0 0
  %4508 = vperm.xlu0 %4507, %v4410
  %v4509 = vpop.permute.xlu0 %4508
  %4512 = vset.pattern.permute.xlu0 0
  %4513 = vperm.xlu0 %4512, %v4425
  %v4514 = vpop.permute.xlu0 %4513
  %4517 = vset.pattern.permute.xlu0 0
  %4518 = vperm.xlu0 %4517, %v4440
  %v4519 = vpop.permute.xlu0 %4518
  %4522 = vset.pattern.permute.xlu0 0
  %4523 = vperm.xlu0 %4522, %v4455
  %v4524 = vpop.permute.xlu0 %4523
  %4527 = vset.pattern.permute.xlu0 0
  %4528 = vperm.xlu0 %4527, %v4470
  %v4529 = vpop.permute.xlu0 %4528
  %4532 = vset.pattern.permute.xlu0 0
  %4533 = vperm.xlu0 %4532, %v4485
  %v4534 = vpop.permute.xlu0 %4533
  %4537 = vset.pattern.permute.xlu0 0
  %4538 = vperm.xlu0 %4537, %v4500
  %v4539 = vpop.permute.xlu0 %4538
  %v4541 = vmul.f32 %v4504, %v34
  %v4542 = vmul.f32 %v4509, %v35
  %v4543 = vmul.f32 %v4514, %v36
  %v4544 = vmul.f32 %v4519, %v37
  %v4545 = vmul.f32 %v4524, %v38
  %v4546 = vmul.f32 %v4529, %v39
  %v4547 = vmul.f32 %v4534, %v40
  %v4548 = vmul.f32 %v4539, %v41
  %v4549 = vsel %vm104, %v4541, 0.0
  %v4550 = vrot.slane %v4549, 4
  %v4551 = vadd.f32 %v4549, %v4550
  %v4552 = vrot.slane %v4551, 2
  %v4553 = vadd.f32 %v4551, %v4552
  %v4554 = vrot.slane %v4553, 1
  %v4555 = vadd.f32 %v4553, %v4554
  %v4556 = vsel %vm104, %v4542, 0.0
  %v4557 = vrot.slane %v4556, 4
  %v4558 = vadd.f32 %v4556, %v4557
  %v4559 = vrot.slane %v4558, 2
  %v4560 = vadd.f32 %v4558, %v4559
  %v4561 = vrot.slane %v4560, 1
  %v4562 = vadd.f32 %v4560, %v4561
  %v4563 = vsel %vm104, %v4543, 0.0
  %v4564 = vrot.slane %v4563, 4
  %v4565 = vadd.f32 %v4563, %v4564
  %v4566 = vrot.slane %v4565, 2
  %v4567 = vadd.f32 %v4565, %v4566
  %v4568 = vrot.slane %v4567, 1
  %v4569 = vadd.f32 %v4567, %v4568
  %v4570 = vsel %vm104, %v4544, 0.0
  %v4571 = vrot.slane %v4570, 4
  %v4572 = vadd.f32 %v4570, %v4571
  %v4573 = vrot.slane %v4572, 2
  %v4574 = vadd.f32 %v4572, %v4573
  %v4575 = vrot.slane %v4574, 1
  %v4576 = vadd.f32 %v4574, %v4575
  %v4577 = vsel %vm104, %v4545, 0.0
  %v4578 = vrot.slane %v4577, 4
  %v4579 = vadd.f32 %v4577, %v4578
  %v4580 = vrot.slane %v4579, 2
  %v4581 = vadd.f32 %v4579, %v4580
  %v4582 = vrot.slane %v4581, 1
  %v4583 = vadd.f32 %v4581, %v4582
  %v4584 = vsel %vm104, %v4546, 0.0
  %v4585 = vrot.slane %v4584, 4
  %v4586 = vadd.f32 %v4584, %v4585
  %v4587 = vrot.slane %v4586, 2
  %v4588 = vadd.f32 %v4586, %v4587
  %v4589 = vrot.slane %v4588, 1
  %v4590 = vadd.f32 %v4588, %v4589
  %v4591 = vsel %vm104, %v4547, 0.0
  %v4592 = vrot.slane %v4591, 4
  %v4593 = vadd.f32 %v4591, %v4592
  %v4594 = vrot.slane %v4593, 2
  %v4595 = vadd.f32 %v4593, %v4594
  %v4596 = vrot.slane %v4595, 1
  %v4597 = vadd.f32 %v4595, %v4596
  %v4598 = vsel %vm104, %v4548, 0.0
  %v4599 = vrot.slane %v4598, 4
  %v4600 = vadd.f32 %v4598, %v4599
  %v4601 = vrot.slane %v4600, 2
  %v4602 = vadd.f32 %v4600, %v4601
  %v4603 = vrot.slane %v4602, 1
  %v4604 = vadd.f32 %v4602, %v4603
  %4605 = vrot.lane.b32.xlu0 %v4172, 64
  %v4606 = vpop.permute.xlu0 %4605
  %4608 = vst.msk [vmem:[#allocation2] sm:$0xff] %vm104, %v4606
  %v4617 = vsel %vm335, %v4562, %v4555
  %v4618 = vsel %vm337, %v4569, %v4617
  %v4619 = vsel %vm339, %v4576, %v4618
  %v4620 = vsel %vm341, %v4583, %v4619
  %v4621 = vsel %vm343, %v4590, %v4620
  %v4622 = vsel %vm345, %v4597, %v4621
  %v4623 = vsel %vm347, %v4604, %v4622
  %4625 = vst.msk [vmem:[#allocation3] sm:$0xff] %vm104, %v4623
  %s4626 = scalar_lea.vmem %s7, 56
  %4627 = vst.msk [vmem:[%s4626] sm:$0xff] %vm104, %v4606
  %s4628 = scalar_lea.vmem %s6, 56
  %4629 = vst.msk [vmem:[%s4628] sm:$0xff] %vm104, %v4623
  // Predicated region
  $region30: #{mymodule_forward.10} parent=0 // pred_check
    _
  $region31: #{mymodule_forward.10} parent=0 // pred_check_branch
    %4631 = sbr.rel (0) target = $region33
  $region32: #{mymodule_forward.10} parent=0 // pred_region
    _
  $region33: #{mymodule_forward.10} parent=0 // pred_fallthru
    _
  // Predicated region
  $region34: #{mymodule_forward.10} parent=0 // pred_check
    _
  $region35: #{mymodule_forward.10} parent=0 // pred_check_branch
    %4633 = sbr.rel (0) target = $region37
  $region36: #{mymodule_forward.10} parent=0 // pred_region
    _
  $region37: #{mymodule_forward.10} parent=0 // pred_fallthru
    _
  // Predicated region
  $region38: #{mymodule_forward.10} parent=0 // pred_check
    _
  $region39: #{mymodule_forward.10} parent=0 // pred_check_branch
    %4635 = sbr.rel (0) target = $region41
  $region40: #{mymodule_forward.10} parent=0 // pred_region
    _
  $region41: #{mymodule_forward.10} parent=0 // pred_fallthru
    _
  // Predicated region
  $region42: #{mymodule_forward.10} parent=0 // pred_check
    _
  $region43: #{mymodule_forward.10} parent=0 // pred_check_branch
    %4637 = sbr.rel (0) target = $region45
  $region44: #{mymodule_forward.10} parent=0 // pred_region
    _
  $region45: #{mymodule_forward.10} parent=0 // pred_fallthru
    _

</llo_original>
